<compile_context>
chip_gen: v5e
topology: v5e:2x2
jax: 0.10.0
libtpu: 0.0.40
codegen_flags: <defaults>
</compile_context>

<pallas_src>
import jax
import jax.numpy as jnp
from jax.experimental import pallas as pl
from jax.experimental.pallas import tpu as pltpu

LANE = 128
N_CLS = 10
VMEM_LIMIT_BYTES = 32 * 1024 * 1024   # safe on v5e/v6e/v7x; these kernels use ~1-6 MB
MAX_TM = 512                          # single-block threshold for the rows dimension
TILE_TM = 256                         # rows tile when M exceeds MAX_TM


def _round_up(x, m):
    return (x + m - 1) // m * m


# --------------------------------------------------------------------------- #
# Kernel for conv1 and conv2:  pool(relu(conv + b)) as a q-slab GEMM.
#   x_ref : (4, tm, K) bf16  im2col rows, one slab per 2x2 pool offset
#   w_ref : (K, N)     bf16
#   b_ref : (1, N)     f32
#   o_ref : (tm, N)    bf16  pooled activations (rows = pooled positions)
# --------------------------------------------------------------------------- #
def _conv_pool_kernel(x_ref, w_ref, b_ref, o_ref):
    w = w_ref[...]
    m = jnp.dot(x_ref[0], w, preferred_element_type=jnp.float32)
    for q in range(1, x_ref.shape[0]):
        m = jnp.maximum(m, jnp.dot(x_ref[q], w,
                                   preferred_element_type=jnp.float32))
    o_ref[...] = jnp.maximum(m + b_ref[...], 0.0).astype(o_ref.dtype)


def conv_relu_pool_gemm(cols, w, b, *, out_dtype=jnp.bfloat16):
    """cols: (4, M, K) bf16 with K % 128 == 0.  Returns (Mp, N), Mp >= M."""
    Q, M, K = cols.shape
    N = w.shape[1]
    Mp = _round_up(M, 8)
    tm = Mp if Mp <= MAX_TM else TILE_TM
    Mp = _round_up(Mp, tm)
    if Mp != M:
        cols = jnp.pad(cols, ((0, 0), (0, Mp - M), (0, 0)))
    return pl.pallas_call(
        _conv_pool_kernel,
        out_shape=jax.ShapeDtypeStruct((Mp, N), out_dtype),
        grid=(Mp // tm,),
        in_specs=[
            pl.BlockSpec((Q, tm, K), lambda i: (0, i, 0)),
            pl.BlockSpec((K, N), lambda i: (0, 0)),
            pl.BlockSpec((1, N), lambda i: (0, 0)),
        ],
        out_specs=pl.BlockSpec((tm, N), lambda i: (i, 0)),
        compiler_params=pltpu.CompilerParams(
            dimension_semantics=("parallel",),
            vmem_limit_bytes=VMEM_LIMIT_BYTES),
    )(cols, w, b)


# --------------------------------------------------------------------------- #
# Pool-ordered im2col (XLA side; fuses into one gather/concat fusion).
# Returns (4, B*Hp*Wp, k*k*C): slab q holds the conv patches for pool offset
# (oi, oj) = (q // 2, q % 2), rows ordered (b, ph, pw), K ordered (ki, kj, c) to
# match the (kh, kw, cin, cout)-reshaped weights.
# --------------------------------------------------------------------------- #
def _im2col_pooled(x, k):
    B, H, W, C = x.shape
    Ho, Wo = H - k + 1, W - k + 1           # VALID conv output size
    Hp, Wp = Ho // 2, Wo // 2               # 2x2/stride-2 pooled size
    taps = [x[:, ki:ki + Ho, kj:kj + Wo, :]
            for ki in range(k) for kj in range(k)]
    patches = jnp.concatenate(taps, axis=-1)             # (B, Ho, Wo, k*k*C)
    slabs = [patches[:, oi:oi + 2 * Hp:2, oj:oj + 2 * Wp:2, :]
             .reshape(B * Hp * Wp, k * k * C)
             for oi in (0, 1) for oj in (0, 1)]
    return jnp.stack(slabs, axis=0), (B, Hp, Wp)          # (4, B*Hp*Wp, k*k*C)


# --------------------------------------------------------------------------- #
# Fused FC head: fc1 -> ReLU -> fc2 -> ReLU -> fc3 in one pallas_call.
# --------------------------------------------------------------------------- #
def _fc_head_kernel(x_ref, w1_ref, b1_ref, w2_ref, b2_ref, w3_ref, b3_ref,
                    o_ref):
    h = jnp.dot(x_ref[...], w1_ref[...], preferred_element_type=jnp.float32)
    h = jnp.maximum(h + b1_ref[...], 0.0).astype(x_ref.dtype)
    h = jnp.dot(h, w2_ref[...], preferred_element_type=jnp.float32)
    h = jnp.maximum(h + b2_ref[...], 0.0).astype(x_ref.dtype)
    o_ref[...] = (jnp.dot(h, w3_ref[...], preferred_element_type=jnp.float32)
                  + b3_ref[...])


def fc_head(x, w1, b1, w2, b2, w3, b3):
    M, K = x.shape
    N = w3.shape[1]
    Mp = _round_up(M, 8)
    tm = Mp if Mp <= MAX_TM else TILE_TM
    Mp = _round_up(Mp, tm)
    xp = jnp.pad(x, ((0, Mp - M), (0, 0)))

    def full(a):
        return pl.BlockSpec(a.shape, lambda i: (0,) * a.ndim)

    out = pl.pallas_call(
        _fc_head_kernel,
        out_shape=jax.ShapeDtypeStruct((Mp, N), jnp.float32),
        grid=(Mp // tm,),
        in_specs=[pl.BlockSpec((tm, K), lambda i: (i, 0)),
                  full(w1), full(b1), full(w2), full(b2), full(w3), full(b3)],
        out_specs=pl.BlockSpec((tm, N), lambda i: (i, 0)),
        compiler_params=pltpu.CompilerParams(
            dimension_semantics=("parallel",),
            vmem_limit_bytes=VMEM_LIMIT_BYTES),
    )(xp, w1, b1, w2, b2, w3, b3)
    return out[:M]


# ------------------------------- parameters -------------------------------- #
def init_params(key):
    ks = jax.random.split(key, 10)

    def u(k, shape, fan_in):
        bound = 1.0 / (fan_in ** 0.5)
        return jax.random.uniform(k, shape, jnp.float32, -bound, bound)

    return {
        "conv1_w": u(ks[0], (64, 3, 5, 5), 3 * 5 * 5),
        "conv1_b": u(ks[1], (64,), 3 * 5 * 5),
        "conv2_w": u(ks[2], (64, 64, 5, 5), 64 * 5 * 5),
        "conv2_b": u(ks[3], (64,), 64 * 5 * 5),
        "fc1_w": u(ks[4], (384, 64 * 5 * 5), 64 * 5 * 5),
        "fc1_b": u(ks[5], (384,), 64 * 5 * 5),
        "fc2_w": u(ks[6], (192, 384), 384),
        "fc2_b": u(ks[7], (192,), 384),
        "fc3_w": u(ks[8], (10, 192), 192),
        "fc3_b": u(ks[9], (10,), 192),
    }


def prepare_params(p):
    """One-time layout prep: reorder, pre-transpose, zero-pad to lane widths, bf16."""
    bf, f32 = jnp.bfloat16, jnp.float32

    # conv1: (O=64, I=3, 5, 5) -> (kh, kw, I, O) -> (75, 64) -> zero-pad to (128, 128)
    w1 = jnp.transpose(p["conv1_w"], (2, 3, 1, 0)).reshape(75, 64)
    w1 = jnp.pad(w1, ((0, LANE - 75), (0, LANE - 64))).astype(bf)
    b1 = jnp.pad(p["conv1_b"], (0, LANE - 64)).reshape(1, LANE).astype(f32)

    # conv2: (O=64, I=64, 5, 5) -> (kh, kw, I, O), pad I and O to 128 -> (3200, 128)
    w2 = jnp.transpose(p["conv2_w"], (2, 3, 1, 0))                  # (5,5,64,64)
    w2 = jnp.pad(w2, ((0, 0), (0, 0), (0, 64), (0, 64)))            # (5,5,128,128)
    w2 = w2.reshape(5 * 5 * LANE, LANE).astype(bf)
    b2 = jnp.pad(p["conv2_b"], (0, LANE - 64)).reshape(1, LANE).astype(f32)

    # fc1: permute rows from PyTorch NCHW flatten (c*25 + h*5 + w) to our pooled-NHWC
    # flatten (h*640 + w*128 + c), with zero rows for the padded channels 64..127.
    fw1 = p["fc1_w"].reshape(384, 64, 5, 5)                         # (O, C, H, W)
    fw1 = jnp.transpose(fw1, (2, 3, 1, 0))                          # (H, W, C, O)
    fw1 = jnp.pad(fw1, ((0, 0), (0, 0), (0, 64), (0, 0)))           # (5, 5, 128, 384)
    fw1 = fw1.reshape(5 * 5 * LANE, 384).astype(bf)
    fb1 = p["fc1_b"].reshape(1, 384).astype(f32)

    # fc2: (192, 384) -> (384, 192) -> pad N to 256 (lane-dense hidden)
    fw2 = jnp.pad(p["fc2_w"].T, ((0, 0), (0, 64))).astype(bf)       # (384, 256)
    fb2 = jnp.pad(p["fc2_b"], (0, 64)).reshape(1, 256).astype(f32)

    # fc3: (10, 192) -> (192, 10) -> pad K to 256 (zero rows), N to 128
    fw3 = jnp.pad(p["fc3_w"].T, ((0, 64), (0, LANE - N_CLS))).astype(bf)  # (256, 128)
    fb3 = jnp.pad(p["fc3_b"], (0, LANE - N_CLS)).reshape(1, LANE).astype(f32)

    return {
        "conv1_w": w1, "conv1_b": b1,
        "conv2_w": w2, "conv2_b": b2,
        "fc1_w": fw1, "fc1_b": fb1,
        "fc2_w": fw2, "fc2_b": fb2,
        "fc3_w": fw3, "fc3_b": fb3,
    }


# -------------------------------- forward ---------------------------------- #
def net_forward(prep, x_nchw):
    B = x_nchw.shape[0]
    x = jnp.transpose(x_nchw, (0, 2, 3, 1)).astype(jnp.bfloat16)    # NCHW -> NHWC bf16

    # conv1 + ReLU + pool -> (B, 14, 14, 128); channels 64..127 are zero by padding.
    cols1, (_, Hp1, Wp1) = _im2col_pooled(x, 5)                     # (4, B*196, 75)
    cols1 = jnp.pad(cols1, ((0, 0), (0, 0), (0, LANE - cols1.shape[-1])))
    a1 = conv_relu_pool_gemm(cols1, prep["conv1_w"], prep["conv1_b"])
    a1 = a1[:B * Hp1 * Wp1].reshape(B, Hp1, Wp1, LANE)

    # conv2 + ReLU + pool -> rows (b, ph, pw) x 128 channels.
    cols2, (_, Hp2, Wp2) = _im2col_pooled(a1, 5)                    # (4, B*25, 3200)
    a2 = conv_relu_pool_gemm(cols2, prep["conv2_w"], prep["conv2_b"])

    # Flatten in pooled-NHWC order; fc1_w rows were permuted (and zero-padded) to
    # match, so no transpose and no channel slice are needed here.
    feat = a2[:B * Hp2 * Wp2].reshape(B, Hp2 * Wp2 * LANE)          # (B, 3200)

    logits = fc_head(feat, prep["fc1_w"], prep["fc1_b"],
                     prep["fc2_w"], prep["fc2_b"],
                     prep["fc3_w"], prep["fc3_b"])                  # (B, 128) f32
    return logits[:, :N_CLS]


if __name__ == "__main__":
    key = jax.random.PRNGKey(0)
    pkey, xkey = jax.random.split(key)
    params = init_params(pkey)
    prep = prepare_params(params)
    # 32x32 spatial is required by the module's fixed 64*5*5 flatten.
    x = jax.random.normal(xkey, (2, 3, 32, 32), jnp.float32)
    out = jax.jit(net_forward)(prep, x)
    jax.block_until_ready(out)
    assert out.shape == (2, N_CLS) and out.dtype == jnp.float32
    print("KERNEL_OK")
</pallas_src>

<mosaic_0001>
module attributes {stable_mosaic.version = 11 : i64} {
  func.func @_conv_pool_kernel(%arg0: i32, %arg1: memref<4x392x128xbf16, #tpu.memory_space<vmem>>, %arg2: memref<128x128xbf16, #tpu.memory_space<vmem>>, %arg3: memref<1x128xf32, #tpu.memory_space<vmem>>, %arg4: memref<392x128xbf16, #tpu.memory_space<vmem>>) attributes {dimension_semantics = [#tpu.dimension_semantics<parallel>], iteration_bounds = array<i64: 1>, scalar_prefetch = 0 : i64, scratch_operands = 0 : i64, tpu.core_type = #tpu.core_type<tc>, window_params = [{transform_indices = @transform_0, window_bounds = array<i64: 4, 392, 128>}, {pipeline_mode = #tpu.pipeline_mode<synchronous>, transform_indices = @transform_1, window_bounds = array<i64: 128, 128>}, {pipeline_mode = #tpu.pipeline_mode<synchronous>, transform_indices = @transform_2, window_bounds = array<i64: 1, 128>}, {transform_indices = @transform_3, window_bounds = array<i64: 392, 128>}]} {
    %c0 = arith.constant 0 : index
    %c0_0 = arith.constant 0 : index
    %0 = vector.load %arg2[%c0, %c0_0] : memref<128x128xbf16, #tpu.memory_space<vmem>>, vector<128x128xbf16>
    %c0_1 = arith.constant 0 : index
    %c0_2 = arith.constant 0 : index
    %c0_3 = arith.constant 0 : index
    %1 = vector.load %arg1[%c0_1, %c0_2, %c0_3] : memref<4x392x128xbf16, #tpu.memory_space<vmem>>, vector<1x392x128xbf16>
    %2 = vector.shape_cast %1 : vector<1x392x128xbf16> to vector<392x128xbf16>
    %cst = arith.constant dense<0.000000e+00> : vector<392x128xf32>
    %3 = tpu.matmul %2, %0, %cst {dimension_numbers = #tpu.dot_dimension_numbers<[1], [0], [0], [1], [0, 0, 1, 1], [], []>} : vector<392x128xbf16>, vector<128x128xbf16>, vector<392x128xf32> -> vector<392x128xf32>
    %c1 = arith.constant 1 : index
    %c0_4 = arith.constant 0 : index
    %c0_5 = arith.constant 0 : index
    %4 = vector.load %arg1[%c1, %c0_4, %c0_5] : memref<4x392x128xbf16, #tpu.memory_space<vmem>>, vector<1x392x128xbf16>
    %5 = vector.shape_cast %4 : vector<1x392x128xbf16> to vector<392x128xbf16>
    %cst_6 = arith.constant dense<0.000000e+00> : vector<392x128xf32>
    %6 = tpu.matmul %5, %0, %cst_6 {dimension_numbers = #tpu.dot_dimension_numbers<[1], [0], [0], [1], [0, 0, 1, 1], [], []>} : vector<392x128xbf16>, vector<128x128xbf16>, vector<392x128xf32> -> vector<392x128xf32>
    %7 = arith.maximumf %3, %6 : vector<392x128xf32>
    %c2 = arith.constant 2 : index
    %c0_7 = arith.constant 0 : index
    %c0_8 = arith.constant 0 : index
    %8 = vector.load %arg1[%c2, %c0_7, %c0_8] : memref<4x392x128xbf16, #tpu.memory_space<vmem>>, vector<1x392x128xbf16>
    %9 = vector.shape_cast %8 : vector<1x392x128xbf16> to vector<392x128xbf16>
    %cst_9 = arith.constant dense<0.000000e+00> : vector<392x128xf32>
    %10 = tpu.matmul %9, %0, %cst_9 {dimension_numbers = #tpu.dot_dimension_numbers<[1], [0], [0], [1], [0, 0, 1, 1], [], []>} : vector<392x128xbf16>, vector<128x128xbf16>, vector<392x128xf32> -> vector<392x128xf32>
    %11 = arith.maximumf %7, %10 : vector<392x128xf32>
    %c3 = arith.constant 3 : index
    %c0_10 = arith.constant 0 : index
    %c0_11 = arith.constant 0 : index
    %12 = vector.load %arg1[%c3, %c0_10, %c0_11] : memref<4x392x128xbf16, #tpu.memory_space<vmem>>, vector<1x392x128xbf16>
    %13 = vector.shape_cast %12 : vector<1x392x128xbf16> to vector<392x128xbf16>
    %cst_12 = arith.constant dense<0.000000e+00> : vector<392x128xf32>
    %14 = tpu.matmul %13, %0, %cst_12 {dimension_numbers = #tpu.dot_dimension_numbers<[1], [0], [0], [1], [0, 0, 1, 1], [], []>} : vector<392x128xbf16>, vector<128x128xbf16>, vector<392x128xf32> -> vector<392x128xf32>
    %15 = arith.maximumf %11, %14 : vector<392x128xf32>
    %c0_13 = arith.constant 0 : index
    %c0_14 = arith.constant 0 : index
    %16 = vector.load %arg3[%c0_13, %c0_14] : memref<1x128xf32, #tpu.memory_space<vmem>>, vector<1x128xf32>
    %17 = vector.broadcast %16 : vector<1x128xf32> to vector<392x128xf32>
    %18 = arith.addf %15, %17 : vector<392x128xf32>
    %cst_15 = arith.constant 0.000000e+00 : f32
    %19 = vector.broadcast %cst_15 : f32 to vector<392x128xf32>
    %20 = arith.maximumf %18, %19 : vector<392x128xf32>
    %21 = arith.truncf %20 : vector<392x128xf32> to vector<392x128xbf16>
    %c0_16 = arith.constant 0 : index
    %c0_17 = arith.constant 0 : index
    %22 = vector.load %arg4[%c0_16, %c0_17] : memref<392x128xbf16, #tpu.memory_space<vmem>>, vector<392x128xbf16>
    tpu.vector_store %arg4[%c0_16, %c0_17], %21 {strides = array<i32>} : memref<392x128xbf16, #tpu.memory_space<vmem>>, vector<392x128xbf16>,
    return
  }
  func.func @transform_0(%arg0: i32) -> (i32, i32, i32) {
    %c0_i32 = arith.constant 0 : i32
    %c0_i32_0 = arith.constant 0 : i32
    %c0_i32_1 = arith.constant 0 : i32
    return %c0_i32, %arg0, %c0_i32_0 : i32, i32, i32
  }
  func.func @transform_1(%arg0: i32) -> (i32, i32) {
    %c0_i32 = arith.constant 0 : i32
    %c0_i32_0 = arith.constant 0 : i32
    %c0_i32_1 = arith.constant 0 : i32
    return %c0_i32, %c0_i32_0 : i32, i32
  }
  func.func @transform_2(%arg0: i32) -> (i32, i32) {
    %c0_i32 = arith.constant 0 : i32
    %c0_i32_0 = arith.constant 0 : i32
    %c0_i32_1 = arith.constant 0 : i32
    return %c0_i32, %c0_i32_0 : i32, i32
  }
  func.func @transform_3(%arg0: i32) -> (i32, i32) {
    %c0_i32 = arith.constant 0 : i32
    %c0_i32_0 = arith.constant 0 : i32
    return %arg0, %c0_i32 : i32, i32
  }
}

module attributes {stable_mosaic.version = 11 : i64} {
  func.func @_fc_head_kernel(%arg0: i32, %arg1: memref<8x3200xbf16, #tpu.memory_space<vmem>>, %arg2: memref<3200x384xbf16, #tpu.memory_space<vmem>>, %arg3: memref<1x384xf32, #tpu.memory_space<vmem>>, %arg4: memref<384x256xbf16, #tpu.memory_space<vmem>>, %arg5: memref<1x256xf32, #tpu.memory_space<vmem>>, %arg6: memref<256x128xbf16, #tpu.memory_space<vmem>>, %arg7: memref<1x128xf32, #tpu.memory_space<vmem>>, %arg8: memref<8x128xf32, #tpu.memory_space<vmem>>) attributes {dimension_semantics = [#tpu.dimension_semantics<parallel>], iteration_bounds = array<i64: 1>, scalar_prefetch = 0 : i64, scratch_operands = 0 : i64, tpu.core_type = #tpu.core_type<tc>, window_params = [{transform_indices = @transform_0, window_bounds = array<i64: 8, 3200>}, {pipeline_mode = #tpu.pipeline_mode<synchronous>, transform_indices = @transform_1, window_bounds = array<i64: 3200, 384>}, {pipeline_mode = #tpu.pipeline_mode<synchronous>, transform_indices = @transform_2, window_bounds = array<i64: 1, 384>}, {pipeline_mode = #tpu.pipeline_mode<synchronous>, transform_indices = @transform_3, window_bounds = array<i64: 384, 256>}, {pipeline_mode = #tpu.pipeline_mode<synchronous>, transform_indices = @transform_4, window_bounds = array<i64: 1, 256>}, {pipeline_mode = #tpu.pipeline_mode<synchronous>, transform_indices = @transform_5, window_bounds = array<i64: 256, 128>}, {pipeline_mode = #tpu.pipeline_mode<synchronous>, transform_indices = @transform_6, window_bounds = array<i64: 1, 128>}, {transform_indices = @transform_7, window_bounds = array<i64: 8, 128>}]} {
    %c0 = arith.constant 0 : index
    %c0_0 = arith.constant 0 : index
    %0 = vector.load %arg1[%c0, %c0_0] : memref<8x3200xbf16, #tpu.memory_space<vmem>>, vector<8x3200xbf16>
    %c0_1 = arith.constant 0 : index
    %c0_2 = arith.constant 0 : index
    %1 = vector.load %arg2[%c0_1, %c0_2] : memref<3200x384xbf16, #tpu.memory_space<vmem>>, vector<3200x384xbf16>
    %cst = arith.constant dense<0.000000e+00> : vector<8x384xf32>
    %2 = tpu.matmul %0, %1, %cst {dimension_numbers = #tpu.dot_dimension_numbers<[1], [0], [0], [1], [0, 0, 1, 1], [], []>} : vector<8x3200xbf16>, vector<3200x384xbf16>, vector<8x384xf32> -> vector<8x384xf32>
    %c0_3 = arith.constant 0 : index
    %c0_4 = arith.constant 0 : index
    %3 = vector.load %arg3[%c0_3, %c0_4] : memref<1x384xf32, #tpu.memory_space<vmem>>, vector<1x384xf32>
    %4 = vector.broadcast %3 : vector<1x384xf32> to vector<8x384xf32>
    %5 = arith.addf %2, %4 : vector<8x384xf32>
    %cst_5 = arith.constant 0.000000e+00 : f32
    %6 = vector.broadcast %cst_5 : f32 to vector<8x384xf32>
    %7 = arith.maximumf %5, %6 : vector<8x384xf32>
    %8 = arith.truncf %7 : vector<8x384xf32> to vector<8x384xbf16>
    %c0_6 = arith.constant 0 : index
    %c0_7 = arith.constant 0 : index
    %9 = vector.load %arg4[%c0_6, %c0_7] : memref<384x256xbf16, #tpu.memory_space<vmem>>, vector<384x256xbf16>
    %cst_8 = arith.constant dense<0.000000e+00> : vector<8x256xf32>
    %10 = tpu.matmul %8, %9, %cst_8 {dimension_numbers = #tpu.dot_dimension_numbers<[1], [0], [0], [1], [0, 0, 1, 1], [], []>} : vector<8x384xbf16>, vector<384x256xbf16>, vector<8x256xf32> -> vector<8x256xf32>
    %c0_9 = arith.constant 0 : index
    %c0_10 = arith.constant 0 : index
    %11 = vector.load %arg5[%c0_9, %c0_10] : memref<1x256xf32, #tpu.memory_space<vmem>>, vector<1x256xf32>
    %12 = vector.broadcast %11 : vector<1x256xf32> to vector<8x256xf32>
    %13 = arith.addf %10, %12 : vector<8x256xf32>
    %cst_11 = arith.constant 0.000000e+00 : f32
    %14 = vector.broadcast %cst_11 : f32 to vector<8x256xf32>
    %15 = arith.maximumf %13, %14 : vector<8x256xf32>
    %16 = arith.truncf %15 : vector<8x256xf32> to vector<8x256xbf16>
    %c0_12 = arith.constant 0 : index
    %c0_13 = arith.constant 0 : index
    %17 = vector.load %arg6[%c0_12, %c0_13] : memref<256x128xbf16, #tpu.memory_space<vmem>>, vector<256x128xbf16>
    %cst_14 = arith.constant dense<0.000000e+00> : vector<8x128xf32>
    %18 = tpu.matmul %16, %17, %cst_14 {dimension_numbers = #tpu.dot_dimension_numbers<[1], [0], [0], [1], [0, 0, 1, 1], [], []>} : vector<8x256xbf16>, vector<256x128xbf16>, vector<8x128xf32> -> vector<8x128xf32>
    %c0_15 = arith.constant 0 : index
    %c0_16 = arith.constant 0 : index
    %19 = vector.load %arg7[%c0_15, %c0_16] : memref<1x128xf32, #tpu.memory_space<vmem>>, vector<1x128xf32>
    %20 = vector.broadcast %19 : vector<1x128xf32> to vector<8x128xf32>
    %21 = arith.addf %18, %20 : vector<8x128xf32>
    %c0_17 = arith.constant 0 : index
    %c0_18 = arith.constant 0 : index
    %22 = vector.load %arg8[%c0_17, %c0_18] : memref<8x128xf32, #tpu.memory_space<vmem>>, vector<8x128xf32>
    tpu.vector_store %arg8[%c0_17, %c0_18], %21 {strides = array<i32>} : memref<8x128xf32, #tpu.memory_space<vmem>>, vector<8x128xf32>,
    return
  }
  func.func @transform_0(%arg0: i32) -> (i32, i32) {
    %c0_i32 = arith.constant 0 : i32
    %c0_i32_0 = arith.constant 0 : i32
    return %arg0, %c0_i32 : i32, i32
  }
  func.func @transform_1(%arg0: i32) -> (i32, i32) {
    %c0_i32 = arith.constant 0 : i32
    %c0_i32_0 = arith.constant 0 : i32
    %c0_i32_1 = arith.constant 0 : i32
    return %c0_i32, %c0_i32_0 : i32, i32
  }
  func.func @transform_2(%arg0: i32) -> (i32, i32) {
    %c0_i32 = arith.constant 0 : i32
    %c0_i32_0 = arith.constant 0 : i32
    %c0_i32_1 = arith.constant 0 : i32
    return %c0_i32, %c0_i32_0 : i32, i32
  }
  func.func @transform_3(%arg0: i32) -> (i32, i32) {
    %c0_i32 = arith.constant 0 : i32
    %c0_i32_0 = arith.constant 0 : i32
    %c0_i32_1 = arith.constant 0 : i32
    return %c0_i32, %c0_i32_0 : i32, i32
  }
  func.func @transform_4(%arg0: i32) -> (i32, i32) {
    %c0_i32 = arith.constant 0 : i32
    %c0_i32_0 = arith.constant 0 : i32
    %c0_i32_1 = arith.constant 0 : i32
    return %c0_i32, %c0_i32_0 : i32, i32
  }
  func.func @transform_5(%arg0: i32) -> (i32, i32) {
    %c0_i32 = arith.constant 0 : i32
    %c0_i32_0 = arith.constant 0 : i32
    %c0_i32_1 = arith.constant 0 : i32
    return %c0_i32, %c0_i32_0 : i32, i32
  }
  func.func @transform_6(%arg0: i32) -> (i32, i32) {
    %c0_i32 = arith.constant 0 : i32
    %c0_i32_0 = arith.constant 0 : i32
    %c0_i32_1 = arith.constant 0 : i32
    return %c0_i32, %c0_i32_0 : i32, i32
  }
  func.func @transform_7(%arg0: i32) -> (i32, i32) {
    %c0_i32 = arith.constant 0 : i32
    %c0_i32_0 = arith.constant 0 : i32
    return %arg0, %c0_i32 : i32, i32
  }
}

module attributes {stable_mosaic.version = 11 : i64} {
  func.func @_conv_pool_kernel(%arg0: i32, %arg1: memref<4x56x3200xbf16, #tpu.memory_space<vmem>>, %arg2: memref<3200x128xbf16, #tpu.memory_space<vmem>>, %arg3: memref<1x128xf32, #tpu.memory_space<vmem>>, %arg4: memref<56x128xbf16, #tpu.memory_space<vmem>>) attributes {dimension_semantics = [#tpu.dimension_semantics<parallel>], iteration_bounds = array<i64: 1>, scalar_prefetch = 0 : i64, scratch_operands = 0 : i64, tpu.core_type = #tpu.core_type<tc>, window_params = [{transform_indices = @transform_0, window_bounds = array<i64: 4, 56, 3200>}, {pipeline_mode = #tpu.pipeline_mode<synchronous>, transform_indices = @transform_1, window_bounds = array<i64: 3200, 128>}, {pipeline_mode = #tpu.pipeline_mode<synchronous>, transform_indices = @transform_2, window_bounds = array<i64: 1, 128>}, {transform_indices = @transform_3, window_bounds = array<i64: 56, 128>}]} {
    %c0 = arith.constant 0 : index
    %c0_0 = arith.constant 0 : index
    %0 = vector.load %arg2[%c0, %c0_0] : memref<3200x128xbf16, #tpu.memory_space<vmem>>, vector<3200x128xbf16>
    %c0_1 = arith.constant 0 : index
    %c0_2 = arith.constant 0 : index
    %c0_3 = arith.constant 0 : index
    %1 = vector.load %arg1[%c0_1, %c0_2, %c0_3] : memref<4x56x3200xbf16, #tpu.memory_space<vmem>>, vector<1x56x3200xbf16>
    %2 = vector.shape_cast %1 : vector<1x56x3200xbf16> to vector<56x3200xbf16>
    %cst = arith.constant dense<0.000000e+00> : vector<56x128xf32>
    %3 = tpu.matmul %2, %0, %cst {dimension_numbers = #tpu.dot_dimension_numbers<[1], [0], [0], [1], [0, 0, 1, 1], [], []>} : vector<56x3200xbf16>, vector<3200x128xbf16>, vector<56x128xf32> -> vector<56x128xf32>
    %c1 = arith.constant 1 : index
    %c0_4 = arith.constant 0 : index
    %c0_5 = arith.constant 0 : index
    %4 = vector.load %arg1[%c1, %c0_4, %c0_5] : memref<4x56x3200xbf16, #tpu.memory_space<vmem>>, vector<1x56x3200xbf16>
    %5 = vector.shape_cast %4 : vector<1x56x3200xbf16> to vector<56x3200xbf16>
    %cst_6 = arith.constant dense<0.000000e+00> : vector<56x128xf32>
    %6 = tpu.matmul %5, %0, %cst_6 {dimension_numbers = #tpu.dot_dimension_numbers<[1], [0], [0], [1], [0, 0, 1, 1], [], []>} : vector<56x3200xbf16>, vector<3200x128xbf16>, vector<56x128xf32> -> vector<56x128xf32>
    %7 = arith.maximumf %3, %6 : vector<56x128xf32>
    %c2 = arith.constant 2 : index
    %c0_7 = arith.constant 0 : index
    %c0_8 = arith.constant 0 : index
    %8 = vector.load %arg1[%c2, %c0_7, %c0_8] : memref<4x56x3200xbf16, #tpu.memory_space<vmem>>, vector<1x56x3200xbf16>
    %9 = vector.shape_cast %8 : vector<1x56x3200xbf16> to vector<56x3200xbf16>
    %cst_9 = arith.constant dense<0.000000e+00> : vector<56x128xf32>
    %10 = tpu.matmul %9, %0, %cst_9 {dimension_numbers = #tpu.dot_dimension_numbers<[1], [0], [0], [1], [0, 0, 1, 1], [], []>} : vector<56x3200xbf16>, vector<3200x128xbf16>, vector<56x128xf32> -> vector<56x128xf32>
    %11 = arith.maximumf %7, %10 : vector<56x128xf32>
    %c3 = arith.constant 3 : index
    %c0_10 = arith.constant 0 : index
    %c0_11 = arith.constant 0 : index
    %12 = vector.load %arg1[%c3, %c0_10, %c0_11] : memref<4x56x3200xbf16, #tpu.memory_space<vmem>>, vector<1x56x3200xbf16>
    %13 = vector.shape_cast %12 : vector<1x56x3200xbf16> to vector<56x3200xbf16>
    %cst_12 = arith.constant dense<0.000000e+00> : vector<56x128xf32>
    %14 = tpu.matmul %13, %0, %cst_12 {dimension_numbers = #tpu.dot_dimension_numbers<[1], [0], [0], [1], [0, 0, 1, 1], [], []>} : vector<56x3200xbf16>, vector<3200x128xbf16>, vector<56x128xf32> -> vector<56x128xf32>
    %15 = arith.maximumf %11, %14 : vector<56x128xf32>
    %c0_13 = arith.constant 0 : index
    %c0_14 = arith.constant 0 : index
    %16 = vector.load %arg3[%c0_13, %c0_14] : memref<1x128xf32, #tpu.memory_space<vmem>>, vector<1x128xf32>
    %17 = vector.broadcast %16 : vector<1x128xf32> to vector<56x128xf32>
    %18 = arith.addf %15, %17 : vector<56x128xf32>
    %cst_15 = arith.constant 0.000000e+00 : f32
    %19 = vector.broadcast %cst_15 : f32 to vector<56x128xf32>
    %20 = arith.maximumf %18, %19 : vector<56x128xf32>
    %21 = arith.truncf %20 : vector<56x128xf32> to vector<56x128xbf16>
    %c0_16 = arith.constant 0 : index
    %c0_17 = arith.constant 0 : index
    %22 = vector.load %arg4[%c0_16, %c0_17] : memref<56x128xbf16, #tpu.memory_space<vmem>>, vector<56x128xbf16>
    tpu.vector_store %arg4[%c0_16, %c0_17], %21 {strides = array<i32>} : memref<56x128xbf16, #tpu.memory_space<vmem>>, vector<56x128xbf16>,
    return
  }
  func.func @transform_0(%arg0: i32) -> (i32, i32, i32) {
    %c0_i32 = arith.constant 0 : i32
    %c0_i32_0 = arith.constant 0 : i32
    %c0_i32_1 = arith.constant 0 : i32
    return %c0_i32, %arg0, %c0_i32_0 : i32, i32, i32
  }
  func.func @transform_1(%arg0: i32) -> (i32, i32) {
    %c0_i32 = arith.constant 0 : i32
    %c0_i32_0 = arith.constant 0 : i32
    %c0_i32_1 = arith.constant 0 : i32
    return %c0_i32, %c0_i32_0 : i32, i32
  }
  func.func @transform_2(%arg0: i32) -> (i32, i32) {
    %c0_i32 = arith.constant 0 : i32
    %c0_i32_0 = arith.constant 0 : i32
    %c0_i32_1 = arith.constant 0 : i32
    return %c0_i32, %c0_i32_0 : i32, i32
  }
  func.func @transform_3(%arg0: i32) -> (i32, i32) {
    %c0_i32 = arith.constant 0 : i32
    %c0_i32_0 = arith.constant 0 : i32
    return %arg0, %c0_i32 : i32, i32
  }
}

</mosaic_0001>

<llo_original>
// kernel: net_forward.3
$region0: #{net_forward.3}
  #allocation0 [shape = 'u32[]', space=smem, size = 0x4, offset = 0x4, fixed_abs, tag = 'smem constant byte address 0x4 - core index']
  #allocation1 [shape = 'u32[72,128]{1,0:T(1,128)}', space=vmem, size = 0x9000, scoped, tag = 'internal scratch']
  %s0 = inlined_call_operand.vmem [shape: bf16[4,392,128], index: 0, kind: input, shape index: {}]
  %s1 = inlined_call_operand.vmem [shape: bf16[128,128], index: 1, kind: input, shape index: {}]
  %s2 = inlined_call_operand.vmem [shape: f32[1,128], index: 2, kind: input, shape index: {}]
  %s3 = inlined_call_operand.vmem [shape: bf16[392,128], index: 3, kind: output, shape index: {}]
  %s4 = sld [smem:[#allocation0]]
  $region22: #{net_forward.3} parent=0
    _
  %s6 = ssub.s32 1, %s4
  %s7 = scalar_select 0, %s6, %s4
  // Predicated region
  $region2: #{net_forward.3} parent=0 // pred_check
    _
  $region3: #{net_forward.3} parent=0 // pred_check_branch
    %9 = sbr.rel (0) target = $region5
  $region4: #{net_forward.3} parent=0 // pred_region
    _
  $region5: #{net_forward.3} parent=0 // pred_fallthru
    _
  // Predicated region
  $region6: #{net_forward.3} parent=0 // pred_check
    _
  $region7: #{net_forward.3} parent=0 // pred_check_branch
    %11 = sbr.rel (0) target = $region9
  $region8: #{net_forward.3} parent=0 // pred_region
    _
  $region9: #{net_forward.3} parent=0 // pred_fallthru
    _
  // Predicated region
  $region10: #{net_forward.3} parent=0 // pred_check
    _
  $region11: #{net_forward.3} parent=0 // pred_check_branch
    %13 = sbr.rel (0) target = $region13
  $region12: #{net_forward.3} parent=0 // pred_region
    _
  $region13: #{net_forward.3} parent=0 // pred_fallthru
    _
  %v14 = vld [vmem:[%s1] sm:$0xf]
  %v15 = vld [vmem:[%s1 + $0x4] sm:$0xf]
  %v16 = vld [vmem:[%s1 + $0x8] sm:$0xf]
  %v17 = vld [vmem:[%s1 + $0xc] sm:$0xf]
  %v18 = vld [vmem:[%s1 + $0x10] sm:$0xf]
  %v19 = vld [vmem:[%s1 + $0x14] sm:$0xf]
  %v20 = vld [vmem:[%s1 + $0x18] sm:$0xf]
  %v21 = vld [vmem:[%s1 + $0x1c] sm:$0xf]
  %v22 = vld [vmem:[%s1 + $0x20] sm:$0xf]
  %v23 = vld [vmem:[%s1 + $0x24] sm:$0xf]
  %v24 = vld [vmem:[%s1 + $0x28] sm:$0xf]
  %v25 = vld [vmem:[%s1 + $0x2c] sm:$0xf]
  %v26 = vld [vmem:[%s1 + $0x30] sm:$0xf]
  %v27 = vld [vmem:[%s1 + $0x34] sm:$0xf]
  %v28 = vld [vmem:[%s1 + $0x38] sm:$0xf]
  %v29 = vld [vmem:[%s1 + $0x3c] sm:$0xf]
  %v30 = vld [vmem:[%s0] sm:$0xf]
  %v31 = vld [vmem:[%s0 + $0x4] sm:$0xf]
  %v32 = vld [vmem:[%s0 + $0x8] sm:$0xf]
  %v33 = vld [vmem:[%s0 + $0xc] sm:$0xf]
  %v34 = vld [vmem:[%s0 + $0x10] sm:$0xf]
  %v35 = vld [vmem:[%s0 + $0x14] sm:$0xf]
  %v36 = vld [vmem:[%s0 + $0x18] sm:$0xf]
  %v37 = vld [vmem:[%s0 + $0x1c] sm:$0xf]
  %v38 = vld [vmem:[%s0 + $0x20] sm:$0xf]
  %v39 = vld [vmem:[%s0 + $0x24] sm:$0xf]
  %v40 = vld [vmem:[%s0 + $0x28] sm:$0xf]
  %v41 = vld [vmem:[%s0 + $0x2c] sm:$0xf]
  %v42 = vld [vmem:[%s0 + $0x30] sm:$0xf]
  %v43 = vld [vmem:[%s0 + $0x34] sm:$0xf]
  %v44 = vld [vmem:[%s0 + $0x38] sm:$0xf]
  %v45 = vld [vmem:[%s0 + $0x3c] sm:$0xf]
  %v46 = vld [vmem:[%s0 + $0x40] sm:$0xf]
  %v47 = vld [vmem:[%s0 + $0x44] sm:$0xf]
  %v48 = vld [vmem:[%s0 + $0x48] sm:$0xf]
  %v49 = vld [vmem:[%s0 + $0x4c] sm:$0xf]
  %v50 = vld [vmem:[%s0 + $0x50] sm:$0xf]
  %v51 = vld [vmem:[%s0 + $0x54] sm:$0xf]
  %v52 = vld [vmem:[%s0 + $0x58] sm:$0xf]
  %v53 = vld [vmem:[%s0 + $0x5c] sm:$0xf]
  %v54 = vld [vmem:[%s0 + $0x60] sm:$0xf]
  %v55 = vld [vmem:[%s0 + $0x64] sm:$0xf]
  %v56 = vld [vmem:[%s0 + $0x68] sm:$0xf]
  %v57 = vld [vmem:[%s0 + $0x6c] sm:$0xf]
  %v58 = vld [vmem:[%s0 + $0x70] sm:$0xf]
  %v59 = vld [vmem:[%s0 + $0x74] sm:$0xf]
  %v60 = vld [vmem:[%s0 + $0x78] sm:$0xf]
  %v61 = vld [vmem:[%s0 + $0x7c] sm:$0xf]
  %v62 = vld [vmem:[%s0 + $0x80] sm:$0xf]
  %v63 = vld [vmem:[%s0 + $0x84] sm:$0xf]
  %v64 = vld [vmem:[%s0 + $0x88] sm:$0xf]
  %v65 = vld [vmem:[%s0 + $0x8c] sm:$0xf]
  %v66 = vld [vmem:[%s0 + $0x90] sm:$0xf]
  %v67 = vld [vmem:[%s0 + $0x94] sm:$0xf]
  %v68 = vld [vmem:[%s0 + $0x98] sm:$0xf]
  %v69 = vld [vmem:[%s0 + $0x9c] sm:$0xf]
  %v70 = vld [vmem:[%s0 + $0xa0] sm:$0xf]
  %v71 = vld [vmem:[%s0 + $0xa4] sm:$0xf]
  %v72 = vld [vmem:[%s0 + $0xa8] sm:$0xf]
  %v73 = vld [vmem:[%s0 + $0xac] sm:$0xf]
  %v74 = vld [vmem:[%s0 + $0xb0] sm:$0xf]
  %v75 = vld [vmem:[%s0 + $0xb4] sm:$0xf]
  %v76 = vld [vmem:[%s0 + $0xb8] sm:$0xf]
  %v77 = vld [vmem:[%s0 + $0xbc] sm:$0xf]
  %v78 = vld [vmem:[%s0 + $0xc0] sm:$0xf]
  %v128 = vunpack.c.l.b16 %v30
  %v129 = vunpack.c.l.b16 %v31
  %v130 = vunpack.c.l.b16 %v32
  %v131 = vunpack.c.l.b16 %v33
  %v132 = vunpack.c.l.b16 %v34
  %v133 = vunpack.c.l.b16 %v35
  %v134 = vunpack.c.l.b16 %v36
  %v135 = vunpack.c.l.b16 %v37
  %v136 = vunpack.c.l.b16 %v38
  %v137 = vunpack.c.l.b16 %v39
  %v138 = vunpack.c.l.b16 %v40
  %v139 = vunpack.c.l.b16 %v41
  %v140 = vunpack.c.l.b16 %v42
  %v141 = vunpack.c.l.b16 %v43
  %v142 = vunpack.c.l.b16 %v44
  %v143 = vunpack.c.l.b16 %v45
  %v144 = vunpack.c.l.b16 %v46
  %v145 = vunpack.c.l.b16 %v47
  %v146 = vunpack.c.l.b16 %v48
  %v147 = vunpack.c.l.b16 %v49
  %v148 = vunpack.c.l.b16 %v50
  %v149 = vunpack.c.l.b16 %v51
  %v150 = vunpack.c.l.b16 %v52
  %v151 = vunpack.c.l.b16 %v53
  %v152 = vunpack.c.l.b16 %v54
  %v153 = vunpack.c.l.b16 %v55
  %v154 = vunpack.c.l.b16 %v56
  %v155 = vunpack.c.l.b16 %v57
  %v156 = vunpack.c.l.b16 %v58
  %v157 = vunpack.c.l.b16 %v59
  %v158 = vunpack.c.l.b16 %v60
  %v159 = vunpack.c.l.b16 %v61
  %v160 = vunpack.c.l.b16 %v62
  %v161 = vunpack.c.l.b16 %v63
  %v162 = vunpack.c.l.b16 %v64
  %v163 = vunpack.c.l.b16 %v65
  %v164 = vunpack.c.l.b16 %v66
  %v165 = vunpack.c.l.b16 %v67
  %v166 = vunpack.c.l.b16 %v68
  %v167 = vunpack.c.l.b16 %v69
  %v168 = vunpack.c.l.b16 %v70
  %v169 = vunpack.c.l.b16 %v71
  %v170 = vunpack.c.l.b16 %v72
  %v171 = vunpack.c.l.b16 %v73
  %v172 = vunpack.c.l.b16 %v74
  %v173 = vunpack.c.l.b16 %v75
  %v174 = vunpack.c.l.b16 %v76
  %v175 = vunpack.c.l.b16 %v77
  %v176 = vunpack.c.l.b16 %v78
  %v177 = vpack.c.b16 %v129, %v128
  %v178 = vpack.c.b16 %v131, %v130
  %v179 = vpack.c.b16 %v133, %v132
  %v180 = vpack.c.b16 %v135, %v134
  %v181 = vpack.c.b16 %v137, %v136
  %v182 = vpack.c.b16 %v139, %v138
  %v183 = vpack.c.b16 %v141, %v140
  %v184 = vpack.c.b16 %v143, %v142
  %v185 = vpack.c.b16 %v145, %v144
  %v186 = vpack.c.b16 %v147, %v146
  %v187 = vpack.c.b16 %v149, %v148
  %v188 = vpack.c.b16 %v151, %v150
  %v189 = vpack.c.b16 %v153, %v152
  %v190 = vpack.c.b16 %v155, %v154
  %v191 = vpack.c.b16 %v157, %v156
  %v192 = vpack.c.b16 %v159, %v158
  %v193 = vpack.c.b16 %v161, %v160
  %v194 = vpack.c.b16 %v163, %v162
  %v195 = vpack.c.b16 %v165, %v164
  %v196 = vpack.c.b16 %v167, %v166
  %v197 = vpack.c.b16 %v169, %v168
  %v198 = vpack.c.b16 %v171, %v170
  %v199 = vpack.c.b16 %v173, %v172
  %v200 = vpack.c.b16 %v175, %v174
  %v201 = vpack.c.b16 %v176, %v176
  %v243 = vunpack.c.l.b16 %v14
  %v244 = vunpack.c.l.b16 %v15
  %v245 = vunpack.c.l.b16 %v16
  %v246 = vunpack.c.l.b16 %v17
  %v247 = vunpack.c.l.b16 %v18
  %v248 = vunpack.c.l.b16 %v19
  %v249 = vunpack.c.l.b16 %v20
  %v250 = vunpack.c.l.b16 %v21
  %v251 = vunpack.c.l.b16 %v22
  %v252 = vunpack.c.l.b16 %v23
  %v253 = vunpack.c.l.b16 %v24
  %v254 = vunpack.c.l.b16 %v25
  %v255 = vunpack.c.l.b16 %v26
  %v256 = vunpack.c.l.b16 %v27
  %v257 = vunpack.c.l.b16 %v28
  %v258 = vunpack.c.l.b16 %v29
  %v259 = vpack.c.b16 %v244, %v243
  %v260 = vpack.c.b16 %v246, %v245
  %v261 = vpack.c.b16 %v248, %v247
  %v262 = vpack.c.b16 %v250, %v249
  %v263 = vpack.c.b16 %v252, %v251
  %v264 = vpack.c.b16 %v254, %v253
  %v265 = vpack.c.b16 %v256, %v255
  %v266 = vpack.c.b16 %v258, %v257
  %275 = vmatpush.bf16.msra.mxu0 %v266
  %276 = vmatpush.bf16.msra.mxu0 %v265
  %277 = vmatpush.bf16.msra.mxu0 %v264
  %278 = vmatpush.bf16.msra.mxu0 %v263
  %279 = vmatpush.bf16.msra.mxu0 %v262
  %280 = vmatpush.bf16.msra.mxu0 %v261
  %281 = vmatpush.bf16.msra.mxu0 %v260
  %282 = vmatpush.bf16.msra.mxu0 %v259
  %283 = vmatmul.bf16.gmra.mxu0 %v177
  %v284 = vpop.f32.mrf.mxu0
  %v285 = vadd.f32 0.0, %v284
  %v286 = vpop.f32.mrf.mxu0
  %v287 = vadd.f32 0.0, %v286
  %288 = vmatmul.bf16.gmra.mxu0 %v178
  %v289 = vpop.f32.mrf.mxu0
  %v290 = vadd.f32 0.0, %v289
  %v291 = vpop.f32.mrf.mxu0
  %v292 = vadd.f32 0.0, %v291
  %293 = vmatmul.bf16.gmra.mxu0 %v179
  %v294 = vpop.f32.mrf.mxu0
  %v295 = vadd.f32 0.0, %v294
  %v296 = vpop.f32.mrf.mxu0
  %v297 = vadd.f32 0.0, %v296
  %298 = vmatmul.bf16.gmra.mxu0 %v180
  %v299 = vpop.f32.mrf.mxu0
  %v300 = vadd.f32 0.0, %v299
  %v301 = vpop.f32.mrf.mxu0
  %v302 = vadd.f32 0.0, %v301
  %303 = vmatmul.bf16.gmra.mxu0 %v181
  %v304 = vpop.f32.mrf.mxu0
  %v305 = vadd.f32 0.0, %v304
  %v306 = vpop.f32.mrf.mxu0
  %v307 = vadd.f32 0.0, %v306
  %308 = vmatmul.bf16.gmra.mxu0 %v182
  %v309 = vpop.f32.mrf.mxu0
  %v310 = vadd.f32 0.0, %v309
  %v311 = vpop.f32.mrf.mxu0
  %v312 = vadd.f32 0.0, %v311
  %313 = vmatmul.bf16.gmra.mxu0 %v183
  %v314 = vpop.f32.mrf.mxu0
  %v315 = vadd.f32 0.0, %v314
  %v316 = vpop.f32.mrf.mxu0
  %v317 = vadd.f32 0.0, %v316
  %318 = vmatmul.bf16.gmra.mxu0 %v184
  %v319 = vpop.f32.mrf.mxu0
  %v320 = vadd.f32 0.0, %v319
  %v321 = vpop.f32.mrf.mxu0
  %v322 = vadd.f32 0.0, %v321
  %323 = vmatmul.bf16.gmra.mxu0 %v185
  %v324 = vpop.f32.mrf.mxu0
  %v325 = vadd.f32 0.0, %v324
  %v326 = vpop.f32.mrf.mxu0
  %v327 = vadd.f32 0.0, %v326
  %328 = vmatmul.bf16.gmra.mxu0 %v186
  %v329 = vpop.f32.mrf.mxu0
  %v330 = vadd.f32 0.0, %v329
  %v331 = vpop.f32.mrf.mxu0
  %v332 = vadd.f32 0.0, %v331
  %333 = vmatmul.bf16.gmra.mxu0 %v187
  %v334 = vpop.f32.mrf.mxu0
  %v335 = vadd.f32 0.0, %v334
  %v336 = vpop.f32.mrf.mxu0
  %v337 = vadd.f32 0.0, %v336
  %338 = vmatmul.bf16.gmra.mxu0 %v188
  %v339 = vpop.f32.mrf.mxu0
  %v340 = vadd.f32 0.0, %v339
  %v341 = vpop.f32.mrf.mxu0
  %v342 = vadd.f32 0.0, %v341
  %343 = vmatmul.bf16.gmra.mxu0 %v189
  %v344 = vpop.f32.mrf.mxu0
  %v345 = vadd.f32 0.0, %v344
  %v346 = vpop.f32.mrf.mxu0
  %v347 = vadd.f32 0.0, %v346
  %348 = vmatmul.bf16.gmra.mxu0 %v190
  %v349 = vpop.f32.mrf.mxu0
  %v350 = vadd.f32 0.0, %v349
  %v351 = vpop.f32.mrf.mxu0
  %v352 = vadd.f32 0.0, %v351
  %353 = vmatmul.bf16.gmra.mxu0 %v191
  %v354 = vpop.f32.mrf.mxu0
  %v355 = vadd.f32 0.0, %v354
  %v356 = vpop.f32.mrf.mxu0
  %v357 = vadd.f32 0.0, %v356
  %358 = vmatmul.bf16.gmra.mxu0 %v192
  %v359 = vpop.f32.mrf.mxu0
  %v360 = vadd.f32 0.0, %v359
  %v361 = vpop.f32.mrf.mxu0
  %v362 = vadd.f32 0.0, %v361
  %363 = vmatmul.bf16.gmra.mxu0 %v193
  %v364 = vpop.f32.mrf.mxu0
  %v365 = vadd.f32 0.0, %v364
  %v366 = vpop.f32.mrf.mxu0
  %v367 = vadd.f32 0.0, %v366
  %368 = vmatmul.bf16.gmra.mxu0 %v194
  %v369 = vpop.f32.mrf.mxu0
  %v370 = vadd.f32 0.0, %v369
  %v371 = vpop.f32.mrf.mxu0
  %v372 = vadd.f32 0.0, %v371
  %373 = vmatmul.bf16.gmra.mxu0 %v195
  %v374 = vpop.f32.mrf.mxu0
  %v375 = vadd.f32 0.0, %v374
  %v376 = vpop.f32.mrf.mxu0
  %v377 = vadd.f32 0.0, %v376
  %378 = vmatmul.bf16.gmra.mxu0 %v196
  %v379 = vpop.f32.mrf.mxu0
  %v380 = vadd.f32 0.0, %v379
  %v381 = vpop.f32.mrf.mxu0
  %v382 = vadd.f32 0.0, %v381
  %383 = vmatmul.bf16.gmra.mxu0 %v197
  %v384 = vpop.f32.mrf.mxu0
  %v385 = vadd.f32 0.0, %v384
  %v386 = vpop.f32.mrf.mxu0
  %v387 = vadd.f32 0.0, %v386
  %388 = vmatmul.bf16.gmra.mxu0 %v198
  %v389 = vpop.f32.mrf.mxu0
  %v390 = vadd.f32 0.0, %v389
  %v391 = vpop.f32.mrf.mxu0
  %v392 = vadd.f32 0.0, %v391
  %393 = vmatmul.bf16.gmra.mxu0 %v199
  %v394 = vpop.f32.mrf.mxu0
  %v395 = vadd.f32 0.0, %v394
  %v396 = vpop.f32.mrf.mxu0
  %v397 = vadd.f32 0.0, %v396
  %398 = vmatmul.bf16.gmra.mxu0 %v200
  %v399 = vpop.f32.mrf.mxu0
  %v400 = vadd.f32 0.0, %v399
  %v401 = vpop.f32.mrf.mxu0
  %v402 = vadd.f32 0.0, %v401
  %403 = vmatmul.bf16.gmra.mxu0 %v201
  %v404 = vpop.f32.mrf.mxu0
  %v405 = vadd.f32 0.0, %v404
  %v406 = vpop.f32.mrf.mxu0
  %407 = vdwg.mxu0
  %s408 = scalar_lea.vmem %s0, 196
  %v409 = vld [vmem:[%s408] sm:$0xf]
  %v410 = vld [vmem:[%s408 + $0x4] sm:$0xf]
  %v411 = vld [vmem:[%s408 + $0x8] sm:$0xf]
  %v412 = vld [vmem:[%s408 + $0xc] sm:$0xf]
  %v413 = vld [vmem:[%s408 + $0x10] sm:$0xf]
  %v414 = vld [vmem:[%s408 + $0x14] sm:$0xf]
  %v415 = vld [vmem:[%s408 + $0x18] sm:$0xf]
  %v416 = vld [vmem:[%s408 + $0x1c] sm:$0xf]
  %v417 = vld [vmem:[%s408 + $0x20] sm:$0xf]
  %v418 = vld [vmem:[%s408 + $0x24] sm:$0xf]
  %v419 = vld [vmem:[%s408 + $0x28] sm:$0xf]
  %v420 = vld [vmem:[%s408 + $0x2c] sm:$0xf]
  %v421 = vld [vmem:[%s408 + $0x30] sm:$0xf]
  %v422 = vld [vmem:[%s408 + $0x34] sm:$0xf]
  %v423 = vld [vmem:[%s408 + $0x38] sm:$0xf]
  %v424 = vld [vmem:[%s408 + $0x3c] sm:$0xf]
  %v425 = vld [vmem:[%s408 + $0x40] sm:$0xf]
  %v426 = vld [vmem:[%s408 + $0x44] sm:$0xf]
  %v427 = vld [vmem:[%s408 + $0x48] sm:$0xf]
  %v428 = vld [vmem:[%s408 + $0x4c] sm:$0xf]
  %v429 = vld [vmem:[%s408 + $0x50] sm:$0xf]
  %v430 = vld [vmem:[%s408 + $0x54] sm:$0xf]
  %v431 = vld [vmem:[%s408 + $0x58] sm:$0xf]
  %v432 = vld [vmem:[%s408 + $0x5c] sm:$0xf]
  %v433 = vld [vmem:[%s408 + $0x60] sm:$0xf]
  %v434 = vld [vmem:[%s408 + $0x64] sm:$0xf]
  %v435 = vld [vmem:[%s408 + $0x68] sm:$0xf]
  %v436 = vld [vmem:[%s408 + $0x6c] sm:$0xf]
  %v437 = vld [vmem:[%s408 + $0x70] sm:$0xf]
  %v438 = vld [vmem:[%s408 + $0x74] sm:$0xf]
  %v439 = vld [vmem:[%s408 + $0x78] sm:$0xf]
  %v440 = vld [vmem:[%s408 + $0x7c] sm:$0xf]
  %v441 = vld [vmem:[%s408 + $0x80] sm:$0xf]
  %v442 = vld [vmem:[%s408 + $0x84] sm:$0xf]
  %v443 = vld [vmem:[%s408 + $0x88] sm:$0xf]
  %v444 = vld [vmem:[%s408 + $0x8c] sm:$0xf]
  %v445 = vld [vmem:[%s408 + $0x90] sm:$0xf]
  %v446 = vld [vmem:[%s408 + $0x94] sm:$0xf]
  %v447 = vld [vmem:[%s408 + $0x98] sm:$0xf]
  %v448 = vld [vmem:[%s408 + $0x9c] sm:$0xf]
  %v449 = vld [vmem:[%s408 + $0xa0] sm:$0xf]
  %v450 = vld [vmem:[%s408 + $0xa4] sm:$0xf]
  %v451 = vld [vmem:[%s408 + $0xa8] sm:$0xf]
  %v452 = vld [vmem:[%s408 + $0xac] sm:$0xf]
  %v453 = vld [vmem:[%s408 + $0xb0] sm:$0xf]
  %v454 = vld [vmem:[%s408 + $0xb4] sm:$0xf]
  %v455 = vld [vmem:[%s408 + $0xb8] sm:$0xf]
  %v456 = vld [vmem:[%s408 + $0xbc] sm:$0xf]
  %v457 = vld [vmem:[%s408 + $0xc0] sm:$0xf]
  %v507 = vunpack.c.l.b16 %v409
  %v508 = vunpack.c.l.b16 %v410
  %v509 = vunpack.c.l.b16 %v411
  %v510 = vunpack.c.l.b16 %v412
  %v511 = vunpack.c.l.b16 %v413
  %v512 = vunpack.c.l.b16 %v414
  %v513 = vunpack.c.l.b16 %v415
  %v514 = vunpack.c.l.b16 %v416
  %v515 = vunpack.c.l.b16 %v417
  %v516 = vunpack.c.l.b16 %v418
  %v517 = vunpack.c.l.b16 %v419
  %v518 = vunpack.c.l.b16 %v420
  %v519 = vunpack.c.l.b16 %v421
  %v520 = vunpack.c.l.b16 %v422
  %v521 = vunpack.c.l.b16 %v423
  %v522 = vunpack.c.l.b16 %v424
  %v523 = vunpack.c.l.b16 %v425
  %v524 = vunpack.c.l.b16 %v426
  %v525 = vunpack.c.l.b16 %v427
  %v526 = vunpack.c.l.b16 %v428
  %v527 = vunpack.c.l.b16 %v429
  %v528 = vunpack.c.l.b16 %v430
  %v529 = vunpack.c.l.b16 %v431
  %v530 = vunpack.c.l.b16 %v432
  %v531 = vunpack.c.l.b16 %v433
  %v532 = vunpack.c.l.b16 %v434
  %v533 = vunpack.c.l.b16 %v435
  %v534 = vunpack.c.l.b16 %v436
  %v535 = vunpack.c.l.b16 %v437
  %v536 = vunpack.c.l.b16 %v438
  %v537 = vunpack.c.l.b16 %v439
  %v538 = vunpack.c.l.b16 %v440
  %v539 = vunpack.c.l.b16 %v441
  %v540 = vunpack.c.l.b16 %v442
  %v541 = vunpack.c.l.b16 %v443
  %v542 = vunpack.c.l.b16 %v444
  %v543 = vunpack.c.l.b16 %v445
  %v544 = vunpack.c.l.b16 %v446
  %v545 = vunpack.c.l.b16 %v447
  %v546 = vunpack.c.l.b16 %v448
  %v547 = vunpack.c.l.b16 %v449
  %v548 = vunpack.c.l.b16 %v450
  %v549 = vunpack.c.l.b16 %v451
  %v550 = vunpack.c.l.b16 %v452
  %v551 = vunpack.c.l.b16 %v453
  %v552 = vunpack.c.l.b16 %v454
  %v553 = vunpack.c.l.b16 %v455
  %v554 = vunpack.c.l.b16 %v456
  %v555 = vunpack.c.l.b16 %v457
  %v556 = vpack.c.b16 %v508, %v507
  %v557 = vpack.c.b16 %v510, %v509
  %v558 = vpack.c.b16 %v512, %v511
  %v559 = vpack.c.b16 %v514, %v513
  %v560 = vpack.c.b16 %v516, %v515
  %v561 = vpack.c.b16 %v518, %v517
  %v562 = vpack.c.b16 %v520, %v519
  %v563 = vpack.c.b16 %v522, %v521
  %v564 = vpack.c.b16 %v524, %v523
  %v565 = vpack.c.b16 %v526, %v525
  %v566 = vpack.c.b16 %v528, %v527
  %v567 = vpack.c.b16 %v530, %v529
  %v568 = vpack.c.b16 %v532, %v531
  %v569 = vpack.c.b16 %v534, %v533
  %v570 = vpack.c.b16 %v536, %v535
  %v571 = vpack.c.b16 %v538, %v537
  %v572 = vpack.c.b16 %v540, %v539
  %v573 = vpack.c.b16 %v542, %v541
  %v574 = vpack.c.b16 %v544, %v543
  %v575 = vpack.c.b16 %v546, %v545
  %v576 = vpack.c.b16 %v548, %v547
  %v577 = vpack.c.b16 %v550, %v549
  %v578 = vpack.c.b16 %v552, %v551
  %v579 = vpack.c.b16 %v554, %v553
  %v580 = vpack.c.b16 %v555, %v555
  %606 = vmatpush.bf16.msra.mxu0 %v266
  %607 = vmatpush.bf16.msra.mxu0 %v265
  %608 = vmatpush.bf16.msra.mxu0 %v264
  %609 = vmatpush.bf16.msra.mxu0 %v263
  %610 = vmatpush.bf16.msra.mxu0 %v262
  %611 = vmatpush.bf16.msra.mxu0 %v261
  %612 = vmatpush.bf16.msra.mxu0 %v260
  %613 = vmatpush.bf16.msra.mxu0 %v259
  %614 = vmatmul.bf16.gmra.mxu0 %v556
  %v615 = vpop.f32.mrf.mxu0
  %v616 = vadd.f32 0.0, %v615
  %v617 = vpop.f32.mrf.mxu0
  %v618 = vadd.f32 0.0, %v617
  %619 = vmatmul.bf16.gmra.mxu0 %v557
  %v620 = vpop.f32.mrf.mxu0
  %v621 = vadd.f32 0.0, %v620
  %v622 = vpop.f32.mrf.mxu0
  %v623 = vadd.f32 0.0, %v622
  %624 = vmatmul.bf16.gmra.mxu0 %v558
  %v625 = vpop.f32.mrf.mxu0
  %v626 = vadd.f32 0.0, %v625
  %v627 = vpop.f32.mrf.mxu0
  %v628 = vadd.f32 0.0, %v627
  %629 = vmatmul.bf16.gmra.mxu0 %v559
  %v630 = vpop.f32.mrf.mxu0
  %v631 = vadd.f32 0.0, %v630
  %v632 = vpop.f32.mrf.mxu0
  %v633 = vadd.f32 0.0, %v632
  %634 = vmatmul.bf16.gmra.mxu0 %v560
  %v635 = vpop.f32.mrf.mxu0
  %v636 = vadd.f32 0.0, %v635
  %v637 = vpop.f32.mrf.mxu0
  %v638 = vadd.f32 0.0, %v637
  %639 = vmatmul.bf16.gmra.mxu0 %v561
  %v640 = vpop.f32.mrf.mxu0
  %v641 = vadd.f32 0.0, %v640
  %v642 = vpop.f32.mrf.mxu0
  %v643 = vadd.f32 0.0, %v642
  %644 = vmatmul.bf16.gmra.mxu0 %v562
  %v645 = vpop.f32.mrf.mxu0
  %v646 = vadd.f32 0.0, %v645
  %v647 = vpop.f32.mrf.mxu0
  %v648 = vadd.f32 0.0, %v647
  %649 = vmatmul.bf16.gmra.mxu0 %v563
  %v650 = vpop.f32.mrf.mxu0
  %v651 = vadd.f32 0.0, %v650
  %v652 = vpop.f32.mrf.mxu0
  %v653 = vadd.f32 0.0, %v652
  %654 = vmatmul.bf16.gmra.mxu0 %v564
  %v655 = vpop.f32.mrf.mxu0
  %v656 = vadd.f32 0.0, %v655
  %v657 = vpop.f32.mrf.mxu0
  %v658 = vadd.f32 0.0, %v657
  %659 = vmatmul.bf16.gmra.mxu0 %v565
  %v660 = vpop.f32.mrf.mxu0
  %v661 = vadd.f32 0.0, %v660
  %v662 = vpop.f32.mrf.mxu0
  %v663 = vadd.f32 0.0, %v662
  %664 = vmatmul.bf16.gmra.mxu0 %v566
  %v665 = vpop.f32.mrf.mxu0
  %v666 = vadd.f32 0.0, %v665
  %v667 = vpop.f32.mrf.mxu0
  %v668 = vadd.f32 0.0, %v667
  %669 = vmatmul.bf16.gmra.mxu0 %v567
  %v670 = vpop.f32.mrf.mxu0
  %v671 = vadd.f32 0.0, %v670
  %v672 = vpop.f32.mrf.mxu0
  %v673 = vadd.f32 0.0, %v672
  %674 = vmatmul.bf16.gmra.mxu0 %v568
  %v675 = vpop.f32.mrf.mxu0
  %v676 = vadd.f32 0.0, %v675
  %v677 = vpop.f32.mrf.mxu0
  %v678 = vadd.f32 0.0, %v677
  %679 = vmatmul.bf16.gmra.mxu0 %v569
  %v680 = vpop.f32.mrf.mxu0
  %v681 = vadd.f32 0.0, %v680
  %v682 = vpop.f32.mrf.mxu0
  %v683 = vadd.f32 0.0, %v682
  %684 = vmatmul.bf16.gmra.mxu0 %v570
  %v685 = vpop.f32.mrf.mxu0
  %v686 = vadd.f32 0.0, %v685
  %v687 = vpop.f32.mrf.mxu0
  %v688 = vadd.f32 0.0, %v687
  %689 = vmatmul.bf16.gmra.mxu0 %v571
  %v690 = vpop.f32.mrf.mxu0
  %v691 = vadd.f32 0.0, %v690
  %v692 = vpop.f32.mrf.mxu0
  %v693 = vadd.f32 0.0, %v692
  %694 = vmatmul.bf16.gmra.mxu0 %v572
  %v695 = vpop.f32.mrf.mxu0
  %v696 = vadd.f32 0.0, %v695
  %v697 = vpop.f32.mrf.mxu0
  %v698 = vadd.f32 0.0, %v697
  %699 = vmatmul.bf16.gmra.mxu0 %v573
  %v700 = vpop.f32.mrf.mxu0
  %v701 = vadd.f32 0.0, %v700
  %v702 = vpop.f32.mrf.mxu0
  %v703 = vadd.f32 0.0, %v702
  %704 = vmatmul.bf16.gmra.mxu0 %v574
  %v705 = vpop.f32.mrf.mxu0
  %v706 = vadd.f32 0.0, %v705
  %v707 = vpop.f32.mrf.mxu0
  %v708 = vadd.f32 0.0, %v707
  %709 = vmatmul.bf16.gmra.mxu0 %v575
  %v710 = vpop.f32.mrf.mxu0
  %v711 = vadd.f32 0.0, %v710
  %v712 = vpop.f32.mrf.mxu0
  %v713 = vadd.f32 0.0, %v712
  %714 = vmatmul.bf16.gmra.mxu0 %v576
  %v715 = vpop.f32.mrf.mxu0
  %v716 = vadd.f32 0.0, %v715
  %v717 = vpop.f32.mrf.mxu0
  %v718 = vadd.f32 0.0, %v717
  %719 = vmatmul.bf16.gmra.mxu0 %v577
  %v720 = vpop.f32.mrf.mxu0
  %v721 = vadd.f32 0.0, %v720
  %v722 = vpop.f32.mrf.mxu0
  %v723 = vadd.f32 0.0, %v722
  %724 = vmatmul.bf16.gmra.mxu0 %v578
  %v725 = vpop.f32.mrf.mxu0
  %v726 = vadd.f32 0.0, %v725
  %v727 = vpop.f32.mrf.mxu0
  %v728 = vadd.f32 0.0, %v727
  %729 = vmatmul.bf16.gmra.mxu0 %v579
  %v730 = vpop.f32.mrf.mxu0
  %v731 = vadd.f32 0.0, %v730
  %v732 = vpop.f32.mrf.mxu0
  %v733 = vadd.f32 0.0, %v732
  %734 = vmatmul.bf16.gmra.mxu0 %v580
  %v735 = vpop.f32.mrf.mxu0
  %v736 = vadd.f32 0.0, %v735
  %v737 = vpop.f32.mrf.mxu0
  %738 = vdwg.mxu0
  %v739 = vmax.f32 %v285, %v616
  %v740 = vmax.f32 %v287, %v618
  %v741 = vmax.f32 %v290, %v621
  %v742 = vmax.f32 %v292, %v623
  %v743 = vmax.f32 %v295, %v626
  %v744 = vmax.f32 %v297, %v628
  %v745 = vmax.f32 %v300, %v631
  %v746 = vmax.f32 %v302, %v633
  %v747 = vmax.f32 %v305, %v636
  %v748 = vmax.f32 %v307, %v638
  %v749 = vmax.f32 %v310, %v641
  %v750 = vmax.f32 %v312, %v643
  %v751 = vmax.f32 %v315, %v646
  %v752 = vmax.f32 %v317, %v648
  %v753 = vmax.f32 %v320, %v651
  %v754 = vmax.f32 %v322, %v653
  %v755 = vmax.f32 %v325, %v656
  %v756 = vmax.f32 %v327, %v658
  %v757 = vmax.f32 %v330, %v661
  %v758 = vmax.f32 %v332, %v663
  %v759 = vmax.f32 %v335, %v666
  %v760 = vmax.f32 %v337, %v668
  %v761 = vmax.f32 %v340, %v671
  %v762 = vmax.f32 %v342, %v673
  %v763 = vmax.f32 %v345, %v676
  %v764 = vmax.f32 %v347, %v678
  %v765 = vmax.f32 %v350, %v681
  %v766 = vmax.f32 %v352, %v683
  %v767 = vmax.f32 %v355, %v686
  %v768 = vmax.f32 %v357, %v688
  %v769 = vmax.f32 %v360, %v691
  %v770 = vmax.f32 %v362, %v693
  %v771 = vmax.f32 %v365, %v696
  %v772 = vmax.f32 %v367, %v698
  %v773 = vmax.f32 %v370, %v701
  %v774 = vmax.f32 %v372, %v703
  %v775 = vmax.f32 %v375, %v706
  %v776 = vmax.f32 %v377, %v708
  %v777 = vmax.f32 %v380, %v711
  %v778 = vmax.f32 %v382, %v713
  %v779 = vmax.f32 %v385, %v716
  %v780 = vmax.f32 %v387, %v718
  %v781 = vmax.f32 %v390, %v721
  %v782 = vmax.f32 %v392, %v723
  %v783 = vmax.f32 %v395, %v726
  %v784 = vmax.f32 %v397, %v728
  %v785 = vmax.f32 %v400, %v731
  %v786 = vmax.f32 %v402, %v733
  %v787 = vmax.f32 %v405, %v736
  %s788 = scalar_lea.vmem %s0, 392
  %v789 = vld [vmem:[%s788] sm:$0xf]
  %v790 = vld [vmem:[%s788 + $0x4] sm:$0xf]
  %v791 = vld [vmem:[%s788 + $0x8] sm:$0xf]
  %v792 = vld [vmem:[%s788 + $0xc] sm:$0xf]
  %v793 = vld [vmem:[%s788 + $0x10] sm:$0xf]
  %v794 = vld [vmem:[%s788 + $0x14] sm:$0xf]
  %v795 = vld [vmem:[%s788 + $0x18] sm:$0xf]
  %v796 = vld [vmem:[%s788 + $0x1c] sm:$0xf]
  %v797 = vld [vmem:[%s788 + $0x20] sm:$0xf]
  %v798 = vld [vmem:[%s788 + $0x24] sm:$0xf]
  %v799 = vld [vmem:[%s788 + $0x28] sm:$0xf]
  %v800 = vld [vmem:[%s788 + $0x2c] sm:$0xf]
  %v801 = vld [vmem:[%s788 + $0x30] sm:$0xf]
  %v802 = vld [vmem:[%s788 + $0x34] sm:$0xf]
  %v803 = vld [vmem:[%s788 + $0x38] sm:$0xf]
  %v804 = vld [vmem:[%s788 + $0x3c] sm:$0xf]
  %v805 = vld [vmem:[%s788 + $0x40] sm:$0xf]
  %v806 = vld [vmem:[%s788 + $0x44] sm:$0xf]
  %v807 = vld [vmem:[%s788 + $0x48] sm:$0xf]
  %v808 = vld [vmem:[%s788 + $0x4c] sm:$0xf]
  %v809 = vld [vmem:[%s788 + $0x50] sm:$0xf]
  %v810 = vld [vmem:[%s788 + $0x54] sm:$0xf]
  %v811 = vld [vmem:[%s788 + $0x58] sm:$0xf]
  %v812 = vld [vmem:[%s788 + $0x5c] sm:$0xf]
  %v813 = vld [vmem:[%s788 + $0x60] sm:$0xf]
  %v814 = vld [vmem:[%s788 + $0x64] sm:$0xf]
  %v815 = vld [vmem:[%s788 + $0x68] sm:$0xf]
  %v816 = vld [vmem:[%s788 + $0x6c] sm:$0xf]
  %v817 = vld [vmem:[%s788 + $0x70] sm:$0xf]
  %v818 = vld [vmem:[%s788 + $0x74] sm:$0xf]
  %v819 = vld [vmem:[%s788 + $0x78] sm:$0xf]
  %v820 = vld [vmem:[%s788 + $0x7c] sm:$0xf]
  %v821 = vld [vmem:[%s788 + $0x80] sm:$0xf]
  %v822 = vld [vmem:[%s788 + $0x84] sm:$0xf]
  %v823 = vld [vmem:[%s788 + $0x88] sm:$0xf]
  %v824 = vld [vmem:[%s788 + $0x8c] sm:$0xf]
  %v825 = vld [vmem:[%s788 + $0x90] sm:$0xf]
  %v826 = vld [vmem:[%s788 + $0x94] sm:$0xf]
  %v827 = vld [vmem:[%s788 + $0x98] sm:$0xf]
  %v828 = vld [vmem:[%s788 + $0x9c] sm:$0xf]
  %v829 = vld [vmem:[%s788 + $0xa0] sm:$0xf]
  %v830 = vld [vmem:[%s788 + $0xa4] sm:$0xf]
  %v831 = vld [vmem:[%s788 + $0xa8] sm:$0xf]
  %v832 = vld [vmem:[%s788 + $0xac] sm:$0xf]
  %v833 = vld [vmem:[%s788 + $0xb0] sm:$0xf]
  %v834 = vld [vmem:[%s788 + $0xb4] sm:$0xf]
  %v835 = vld [vmem:[%s788 + $0xb8] sm:$0xf]
  %v836 = vld [vmem:[%s788 + $0xbc] sm:$0xf]
  %v837 = vld [vmem:[%s788 + $0xc0] sm:$0xf]
  %v887 = vunpack.c.l.b16 %v789
  %v888 = vunpack.c.l.b16 %v790
  %v889 = vunpack.c.l.b16 %v791
  %v890 = vunpack.c.l.b16 %v792
  %v891 = vunpack.c.l.b16 %v793
  %v892 = vunpack.c.l.b16 %v794
  %v893 = vunpack.c.l.b16 %v795
  %v894 = vunpack.c.l.b16 %v796
  %v895 = vunpack.c.l.b16 %v797
  %v896 = vunpack.c.l.b16 %v798
  %v897 = vunpack.c.l.b16 %v799
  %v898 = vunpack.c.l.b16 %v800
  %v899 = vunpack.c.l.b16 %v801
  %v900 = vunpack.c.l.b16 %v802
  %v901 = vunpack.c.l.b16 %v803
  %v902 = vunpack.c.l.b16 %v804
  %v903 = vunpack.c.l.b16 %v805
  %v904 = vunpack.c.l.b16 %v806
  %v905 = vunpack.c.l.b16 %v807
  %v906 = vunpack.c.l.b16 %v808
  %v907 = vunpack.c.l.b16 %v809
  %v908 = vunpack.c.l.b16 %v810
  %v909 = vunpack.c.l.b16 %v811
  %v910 = vunpack.c.l.b16 %v812
  %v911 = vunpack.c.l.b16 %v813
  %v912 = vunpack.c.l.b16 %v814
  %v913 = vunpack.c.l.b16 %v815
  %v914 = vunpack.c.l.b16 %v816
  %v915 = vunpack.c.l.b16 %v817
  %v916 = vunpack.c.l.b16 %v818
  %v917 = vunpack.c.l.b16 %v819
  %v918 = vunpack.c.l.b16 %v820
  %v919 = vunpack.c.l.b16 %v821
  %v920 = vunpack.c.l.b16 %v822
  %v921 = vunpack.c.l.b16 %v823
  %v922 = vunpack.c.l.b16 %v824
  %v923 = vunpack.c.l.b16 %v825
  %v924 = vunpack.c.l.b16 %v826
  %v925 = vunpack.c.l.b16 %v827
  %v926 = vunpack.c.l.b16 %v828
  %v927 = vunpack.c.l.b16 %v829
  %v928 = vunpack.c.l.b16 %v830
  %v929 = vunpack.c.l.b16 %v831
  %v930 = vunpack.c.l.b16 %v832
  %v931 = vunpack.c.l.b16 %v833
  %v932 = vunpack.c.l.b16 %v834
  %v933 = vunpack.c.l.b16 %v835
  %v934 = vunpack.c.l.b16 %v836
  %v935 = vunpack.c.l.b16 %v837
  %v936 = vpack.c.b16 %v888, %v887
  %v937 = vpack.c.b16 %v890, %v889
  %v938 = vpack.c.b16 %v892, %v891
  %v939 = vpack.c.b16 %v894, %v893
  %v940 = vpack.c.b16 %v896, %v895
  %v941 = vpack.c.b16 %v898, %v897
  %v942 = vpack.c.b16 %v900, %v899
  %v943 = vpack.c.b16 %v902, %v901
  %v944 = vpack.c.b16 %v904, %v903
  %v945 = vpack.c.b16 %v906, %v905
  %v946 = vpack.c.b16 %v908, %v907
  %v947 = vpack.c.b16 %v910, %v909
  %v948 = vpack.c.b16 %v912, %v911
  %v949 = vpack.c.b16 %v914, %v913
  %v950 = vpack.c.b16 %v916, %v915
  %v951 = vpack.c.b16 %v918, %v917
  %v952 = vpack.c.b16 %v920, %v919
  %v953 = vpack.c.b16 %v922, %v921
  %v954 = vpack.c.b16 %v924, %v923
  %v955 = vpack.c.b16 %v926, %v925
  %v956 = vpack.c.b16 %v928, %v927
  %v957 = vpack.c.b16 %v930, %v929
  %v958 = vpack.c.b16 %v932, %v931
  %v959 = vpack.c.b16 %v934, %v933
  %v960 = vpack.c.b16 %v935, %v935
  %986 = vmatpush.bf16.msra.mxu0 %v266
  %987 = vmatpush.bf16.msra.mxu0 %v265
  %988 = vmatpush.bf16.msra.mxu0 %v264
  %989 = vmatpush.bf16.msra.mxu0 %v263
  %990 = vmatpush.bf16.msra.mxu0 %v262
  %991 = vmatpush.bf16.msra.mxu0 %v261
  %992 = vmatpush.bf16.msra.mxu0 %v260
  %993 = vmatpush.bf16.msra.mxu0 %v259
  %994 = vmatmul.bf16.gmra.mxu0 %v936
  %v995 = vpop.f32.mrf.mxu0
  %v996 = vadd.f32 0.0, %v995
  %v997 = vpop.f32.mrf.mxu0
  %v998 = vadd.f32 0.0, %v997
  %999 = vmatmul.bf16.gmra.mxu0 %v937
  %v1000 = vpop.f32.mrf.mxu0
  %v1001 = vadd.f32 0.0, %v1000
  %v1002 = vpop.f32.mrf.mxu0
  %v1003 = vadd.f32 0.0, %v1002
  %1004 = vmatmul.bf16.gmra.mxu0 %v938
  %v1005 = vpop.f32.mrf.mxu0
  %v1006 = vadd.f32 0.0, %v1005
  %v1007 = vpop.f32.mrf.mxu0
  %v1008 = vadd.f32 0.0, %v1007
  %1009 = vmatmul.bf16.gmra.mxu0 %v939
  %v1010 = vpop.f32.mrf.mxu0
  %v1011 = vadd.f32 0.0, %v1010
  %v1012 = vpop.f32.mrf.mxu0
  %v1013 = vadd.f32 0.0, %v1012
  %1014 = vmatmul.bf16.gmra.mxu0 %v940
  %v1015 = vpop.f32.mrf.mxu0
  %v1016 = vadd.f32 0.0, %v1015
  %v1017 = vpop.f32.mrf.mxu0
  %v1018 = vadd.f32 0.0, %v1017
  %1019 = vmatmul.bf16.gmra.mxu0 %v941
  %v1020 = vpop.f32.mrf.mxu0
  %v1021 = vadd.f32 0.0, %v1020
  %v1022 = vpop.f32.mrf.mxu0
  %v1023 = vadd.f32 0.0, %v1022
  %1024 = vmatmul.bf16.gmra.mxu0 %v942
  %v1025 = vpop.f32.mrf.mxu0
  %v1026 = vadd.f32 0.0, %v1025
  %v1027 = vpop.f32.mrf.mxu0
  %v1028 = vadd.f32 0.0, %v1027
  %1029 = vmatmul.bf16.gmra.mxu0 %v943
  %v1030 = vpop.f32.mrf.mxu0
  %v1031 = vadd.f32 0.0, %v1030
  %v1032 = vpop.f32.mrf.mxu0
  %v1033 = vadd.f32 0.0, %v1032
  %1034 = vmatmul.bf16.gmra.mxu0 %v944
  %v1035 = vpop.f32.mrf.mxu0
  %v1036 = vadd.f32 0.0, %v1035
  %v1037 = vpop.f32.mrf.mxu0
  %v1038 = vadd.f32 0.0, %v1037
  %1039 = vmatmul.bf16.gmra.mxu0 %v945
  %v1040 = vpop.f32.mrf.mxu0
  %v1041 = vadd.f32 0.0, %v1040
  %v1042 = vpop.f32.mrf.mxu0
  %v1043 = vadd.f32 0.0, %v1042
  %1044 = vmatmul.bf16.gmra.mxu0 %v946
  %v1045 = vpop.f32.mrf.mxu0
  %v1046 = vadd.f32 0.0, %v1045
  %v1047 = vpop.f32.mrf.mxu0
  %v1048 = vadd.f32 0.0, %v1047
  %1049 = vmatmul.bf16.gmra.mxu0 %v947
  %v1050 = vpop.f32.mrf.mxu0
  %v1051 = vadd.f32 0.0, %v1050
  %v1052 = vpop.f32.mrf.mxu0
  %v1053 = vadd.f32 0.0, %v1052
  %1054 = vmatmul.bf16.gmra.mxu0 %v948
  %v1055 = vpop.f32.mrf.mxu0
  %v1056 = vadd.f32 0.0, %v1055
  %v1057 = vpop.f32.mrf.mxu0
  %v1058 = vadd.f32 0.0, %v1057
  %1059 = vmatmul.bf16.gmra.mxu0 %v949
  %v1060 = vpop.f32.mrf.mxu0
  %v1061 = vadd.f32 0.0, %v1060
  %v1062 = vpop.f32.mrf.mxu0
  %v1063 = vadd.f32 0.0, %v1062
  %1064 = vmatmul.bf16.gmra.mxu0 %v950
  %v1065 = vpop.f32.mrf.mxu0
  %v1066 = vadd.f32 0.0, %v1065
  %v1067 = vpop.f32.mrf.mxu0
  %v1068 = vadd.f32 0.0, %v1067
  %1069 = vmatmul.bf16.gmra.mxu0 %v951
  %v1070 = vpop.f32.mrf.mxu0
  %v1071 = vadd.f32 0.0, %v1070
  %v1072 = vpop.f32.mrf.mxu0
  %v1073 = vadd.f32 0.0, %v1072
  %1074 = vmatmul.bf16.gmra.mxu0 %v952
  %v1075 = vpop.f32.mrf.mxu0
  %v1076 = vadd.f32 0.0, %v1075
  %v1077 = vpop.f32.mrf.mxu0
  %v1078 = vadd.f32 0.0, %v1077
  %1079 = vmatmul.bf16.gmra.mxu0 %v953
  %v1080 = vpop.f32.mrf.mxu0
  %v1081 = vadd.f32 0.0, %v1080
  %v1082 = vpop.f32.mrf.mxu0
  %v1083 = vadd.f32 0.0, %v1082
  %1084 = vmatmul.bf16.gmra.mxu0 %v954
  %v1085 = vpop.f32.mrf.mxu0
  %v1086 = vadd.f32 0.0, %v1085
  %v1087 = vpop.f32.mrf.mxu0
  %v1088 = vadd.f32 0.0, %v1087
  %1089 = vmatmul.bf16.gmra.mxu0 %v955
  %v1090 = vpop.f32.mrf.mxu0
  %v1091 = vadd.f32 0.0, %v1090
  %v1092 = vpop.f32.mrf.mxu0
  %v1093 = vadd.f32 0.0, %v1092
  %1094 = vmatmul.bf16.gmra.mxu0 %v956
  %v1095 = vpop.f32.mrf.mxu0
  %v1096 = vadd.f32 0.0, %v1095
  %v1097 = vpop.f32.mrf.mxu0
  %v1098 = vadd.f32 0.0, %v1097
  %1099 = vmatmul.bf16.gmra.mxu0 %v957
  %v1100 = vpop.f32.mrf.mxu0
  %v1101 = vadd.f32 0.0, %v1100
  %v1102 = vpop.f32.mrf.mxu0
  %v1103 = vadd.f32 0.0, %v1102
  %1104 = vmatmul.bf16.gmra.mxu0 %v958
  %v1105 = vpop.f32.mrf.mxu0
  %v1106 = vadd.f32 0.0, %v1105
  %v1107 = vpop.f32.mrf.mxu0
  %v1108 = vadd.f32 0.0, %v1107
  %1109 = vmatmul.bf16.gmra.mxu0 %v959
  %v1110 = vpop.f32.mrf.mxu0
  %v1111 = vadd.f32 0.0, %v1110
  %v1112 = vpop.f32.mrf.mxu0
  %v1113 = vadd.f32 0.0, %v1112
  %1114 = vmatmul.bf16.gmra.mxu0 %v960
  %v1115 = vpop.f32.mrf.mxu0
  %v1116 = vadd.f32 0.0, %v1115
  %v1117 = vpop.f32.mrf.mxu0
  %1118 = vdwg.mxu0
  %v1119 = vmax.f32 %v739, %v996
  %v1120 = vmax.f32 %v740, %v998
  %v1121 = vmax.f32 %v741, %v1001
  %v1122 = vmax.f32 %v742, %v1003
  %v1123 = vmax.f32 %v743, %v1006
  %v1124 = vmax.f32 %v744, %v1008
  %v1125 = vmax.f32 %v745, %v1011
  %v1126 = vmax.f32 %v746, %v1013
  %v1127 = vmax.f32 %v747, %v1016
  %v1128 = vmax.f32 %v748, %v1018
  %v1129 = vmax.f32 %v749, %v1021
  %v1130 = vmax.f32 %v750, %v1023
  %v1131 = vmax.f32 %v751, %v1026
  %v1132 = vmax.f32 %v752, %v1028
  %v1133 = vmax.f32 %v753, %v1031
  %v1134 = vmax.f32 %v754, %v1033
  %v1135 = vmax.f32 %v755, %v1036
  %v1136 = vmax.f32 %v756, %v1038
  %v1137 = vmax.f32 %v757, %v1041
  %v1138 = vmax.f32 %v758, %v1043
  %v1139 = vmax.f32 %v759, %v1046
  %v1140 = vmax.f32 %v760, %v1048
  %v1141 = vmax.f32 %v761, %v1051
  %v1142 = vmax.f32 %v762, %v1053
  %v1143 = vmax.f32 %v763, %v1056
  %v1144 = vmax.f32 %v764, %v1058
  %v1145 = vmax.f32 %v765, %v1061
  %v1146 = vmax.f32 %v766, %v1063
  %v1147 = vmax.f32 %v767, %v1066
  %v1148 = vmax.f32 %v768, %v1068
  %v1149 = vmax.f32 %v769, %v1071
  %v1150 = vmax.f32 %v770, %v1073
  %v1151 = vmax.f32 %v771, %v1076
  %v1152 = vmax.f32 %v772, %v1078
  %v1153 = vmax.f32 %v773, %v1081
  %v1154 = vmax.f32 %v774, %v1083
  %v1155 = vmax.f32 %v775, %v1086
  %v1156 = vmax.f32 %v776, %v1088
  %v1157 = vmax.f32 %v777, %v1091
  %v1158 = vmax.f32 %v778, %v1093
  %v1159 = vmax.f32 %v779, %v1096
  %v1160 = vmax.f32 %v780, %v1098
  %v1161 = vmax.f32 %v781, %v1101
  %v1162 = vmax.f32 %v782, %v1103
  %v1163 = vmax.f32 %v783, %v1106
  %v1164 = vmax.f32 %v784, %v1108
  %v1165 = vmax.f32 %v785, %v1111
  %v1166 = vmax.f32 %v786, %v1113
  %v1167 = vmax.f32 %v787, %v1116
  %s1168 = scalar_lea.vmem %s0, 588
  %v1169 = vld [vmem:[%s1168] sm:$0xf]
  %v1170 = vld [vmem:[%s1168 + $0x4] sm:$0xf]
  %v1171 = vld [vmem:[%s1168 + $0x8] sm:$0xf]
  %v1172 = vld [vmem:[%s1168 + $0xc] sm:$0xf]
  %v1173 = vld [vmem:[%s1168 + $0x10] sm:$0xf]
  %v1174 = vld [vmem:[%s1168 + $0x14] sm:$0xf]
  %v1175 = vld [vmem:[%s1168 + $0x18] sm:$0xf]
  %v1176 = vld [vmem:[%s1168 + $0x1c] sm:$0xf]
  %v1177 = vld [vmem:[%s1168 + $0x20] sm:$0xf]
  %v1178 = vld [vmem:[%s1168 + $0x24] sm:$0xf]
  %v1179 = vld [vmem:[%s1168 + $0x28] sm:$0xf]
  %v1180 = vld [vmem:[%s1168 + $0x2c] sm:$0xf]
  %v1181 = vld [vmem:[%s1168 + $0x30] sm:$0xf]
  %v1182 = vld [vmem:[%s1168 + $0x34] sm:$0xf]
  %v1183 = vld [vmem:[%s1168 + $0x38] sm:$0xf]
  %v1184 = vld [vmem:[%s1168 + $0x3c] sm:$0xf]
  %v1185 = vld [vmem:[%s1168 + $0x40] sm:$0xf]
  %v1186 = vld [vmem:[%s1168 + $0x44] sm:$0xf]
  %v1187 = vld [vmem:[%s1168 + $0x48] sm:$0xf]
  %v1188 = vld [vmem:[%s1168 + $0x4c] sm:$0xf]
  %v1189 = vld [vmem:[%s1168 + $0x50] sm:$0xf]
  %v1190 = vld [vmem:[%s1168 + $0x54] sm:$0xf]
  %v1191 = vld [vmem:[%s1168 + $0x58] sm:$0xf]
  %v1192 = vld [vmem:[%s1168 + $0x5c] sm:$0xf]
  %v1193 = vld [vmem:[%s1168 + $0x60] sm:$0xf]
  %v1194 = vld [vmem:[%s1168 + $0x64] sm:$0xf]
  %v1195 = vld [vmem:[%s1168 + $0x68] sm:$0xf]
  %v1196 = vld [vmem:[%s1168 + $0x6c] sm:$0xf]
  %v1197 = vld [vmem:[%s1168 + $0x70] sm:$0xf]
  %v1198 = vld [vmem:[%s1168 + $0x74] sm:$0xf]
  %v1199 = vld [vmem:[%s1168 + $0x78] sm:$0xf]
  %v1200 = vld [vmem:[%s1168 + $0x7c] sm:$0xf]
  %v1201 = vld [vmem:[%s1168 + $0x80] sm:$0xf]
  %v1202 = vld [vmem:[%s1168 + $0x84] sm:$0xf]
  %v1203 = vld [vmem:[%s1168 + $0x88] sm:$0xf]
  %v1204 = vld [vmem:[%s1168 + $0x8c] sm:$0xf]
  %v1205 = vld [vmem:[%s1168 + $0x90] sm:$0xf]
  %v1206 = vld [vmem:[%s1168 + $0x94] sm:$0xf]
  %v1207 = vld [vmem:[%s1168 + $0x98] sm:$0xf]
  %v1208 = vld [vmem:[%s1168 + $0x9c] sm:$0xf]
  %v1209 = vld [vmem:[%s1168 + $0xa0] sm:$0xf]
  %v1210 = vld [vmem:[%s1168 + $0xa4] sm:$0xf]
  %v1211 = vld [vmem:[%s1168 + $0xa8] sm:$0xf]
  %v1212 = vld [vmem:[%s1168 + $0xac] sm:$0xf]
  %v1213 = vld [vmem:[%s1168 + $0xb0] sm:$0xf]
  %v1214 = vld [vmem:[%s1168 + $0xb4] sm:$0xf]
  %v1215 = vld [vmem:[%s1168 + $0xb8] sm:$0xf]
  %v1216 = vld [vmem:[%s1168 + $0xbc] sm:$0xf]
  %v1217 = vld [vmem:[%s1168 + $0xc0] sm:$0xf]
  %v1267 = vunpack.c.l.b16 %v1169
  %v1268 = vunpack.c.l.b16 %v1170
  %v1269 = vunpack.c.l.b16 %v1171
  %v1270 = vunpack.c.l.b16 %v1172
  %v1271 = vunpack.c.l.b16 %v1173
  %v1272 = vunpack.c.l.b16 %v1174
  %v1273 = vunpack.c.l.b16 %v1175
  %v1274 = vunpack.c.l.b16 %v1176
  %v1275 = vunpack.c.l.b16 %v1177
  %v1276 = vunpack.c.l.b16 %v1178
  %v1277 = vunpack.c.l.b16 %v1179
  %v1278 = vunpack.c.l.b16 %v1180
  %v1279 = vunpack.c.l.b16 %v1181
  %v1280 = vunpack.c.l.b16 %v1182
  %v1281 = vunpack.c.l.b16 %v1183
  %v1282 = vunpack.c.l.b16 %v1184
  %v1283 = vunpack.c.l.b16 %v1185
  %v1284 = vunpack.c.l.b16 %v1186
  %v1285 = vunpack.c.l.b16 %v1187
  %v1286 = vunpack.c.l.b16 %v1188
  %v1287 = vunpack.c.l.b16 %v1189
  %v1288 = vunpack.c.l.b16 %v1190
  %v1289 = vunpack.c.l.b16 %v1191
  %v1290 = vunpack.c.l.b16 %v1192
  %v1291 = vunpack.c.l.b16 %v1193
  %v1292 = vunpack.c.l.b16 %v1194
  %v1293 = vunpack.c.l.b16 %v1195
  %v1294 = vunpack.c.l.b16 %v1196
  %v1295 = vunpack.c.l.b16 %v1197
  %v1296 = vunpack.c.l.b16 %v1198
  %v1297 = vunpack.c.l.b16 %v1199
  %v1298 = vunpack.c.l.b16 %v1200
  %v1299 = vunpack.c.l.b16 %v1201
  %v1300 = vunpack.c.l.b16 %v1202
  %v1301 = vunpack.c.l.b16 %v1203
  %v1302 = vunpack.c.l.b16 %v1204
  %v1303 = vunpack.c.l.b16 %v1205
  %v1304 = vunpack.c.l.b16 %v1206
  %v1305 = vunpack.c.l.b16 %v1207
  %v1306 = vunpack.c.l.b16 %v1208
  %v1307 = vunpack.c.l.b16 %v1209
  %v1308 = vunpack.c.l.b16 %v1210
  %v1309 = vunpack.c.l.b16 %v1211
  %v1310 = vunpack.c.l.b16 %v1212
  %v1311 = vunpack.c.l.b16 %v1213
  %v1312 = vunpack.c.l.b16 %v1214
  %v1313 = vunpack.c.l.b16 %v1215
  %v1314 = vunpack.c.l.b16 %v1216
  %v1315 = vunpack.c.l.b16 %v1217
  %v1316 = vpack.c.b16 %v1268, %v1267
  %v1317 = vpack.c.b16 %v1270, %v1269
  %v1318 = vpack.c.b16 %v1272, %v1271
  %v1319 = vpack.c.b16 %v1274, %v1273
  %v1320 = vpack.c.b16 %v1276, %v1275
  %v1321 = vpack.c.b16 %v1278, %v1277
  %v1322 = vpack.c.b16 %v1280, %v1279
  %v1323 = vpack.c.b16 %v1282, %v1281
  %v1324 = vpack.c.b16 %v1284, %v1283
  %v1325 = vpack.c.b16 %v1286, %v1285
  %v1326 = vpack.c.b16 %v1288, %v1287
  %v1327 = vpack.c.b16 %v1290, %v1289
  %v1328 = vpack.c.b16 %v1292, %v1291
  %v1329 = vpack.c.b16 %v1294, %v1293
  %v1330 = vpack.c.b16 %v1296, %v1295
  %v1331 = vpack.c.b16 %v1298, %v1297
  %v1332 = vpack.c.b16 %v1300, %v1299
  %v1333 = vpack.c.b16 %v1302, %v1301
  %v1334 = vpack.c.b16 %v1304, %v1303
  %v1335 = vpack.c.b16 %v1306, %v1305
  %v1336 = vpack.c.b16 %v1308, %v1307
  %v1337 = vpack.c.b16 %v1310, %v1309
  %v1338 = vpack.c.b16 %v1312, %v1311
  %v1339 = vpack.c.b16 %v1314, %v1313
  %v1340 = vpack.c.b16 %v1315, %v1315
  %1366 = vmatpush.bf16.msra.mxu0 %v266
  %1367 = vmatpush.bf16.msra.mxu0 %v265
  %1368 = vmatpush.bf16.msra.mxu0 %v264
  %1369 = vmatpush.bf16.msra.mxu0 %v263
  %1370 = vmatpush.bf16.msra.mxu0 %v262
  %1371 = vmatpush.bf16.msra.mxu0 %v261
  %1372 = vmatpush.bf16.msra.mxu0 %v260
  %1373 = vmatpush.bf16.msra.mxu0 %v259
  %1374 = vmatmul.bf16.gmra.mxu0 %v1316
  %v1375 = vpop.f32.mrf.mxu0
  %v1376 = vadd.f32 0.0, %v1375
  %v1377 = vpop.f32.mrf.mxu0
  %v1378 = vadd.f32 0.0, %v1377
  %1379 = vmatmul.bf16.gmra.mxu0 %v1317
  %v1380 = vpop.f32.mrf.mxu0
  %v1381 = vadd.f32 0.0, %v1380
  %v1382 = vpop.f32.mrf.mxu0
  %v1383 = vadd.f32 0.0, %v1382
  %1384 = vmatmul.bf16.gmra.mxu0 %v1318
  %v1385 = vpop.f32.mrf.mxu0
  %v1386 = vadd.f32 0.0, %v1385
  %v1387 = vpop.f32.mrf.mxu0
  %v1388 = vadd.f32 0.0, %v1387
  %1389 = vmatmul.bf16.gmra.mxu0 %v1319
  %v1390 = vpop.f32.mrf.mxu0
  %v1391 = vadd.f32 0.0, %v1390
  %v1392 = vpop.f32.mrf.mxu0
  %v1393 = vadd.f32 0.0, %v1392
  %1394 = vmatmul.bf16.gmra.mxu0 %v1320
  %v1395 = vpop.f32.mrf.mxu0
  %v1396 = vadd.f32 0.0, %v1395
  %v1397 = vpop.f32.mrf.mxu0
  %v1398 = vadd.f32 0.0, %v1397
  %1399 = vmatmul.bf16.gmra.mxu0 %v1321
  %v1400 = vpop.f32.mrf.mxu0
  %v1401 = vadd.f32 0.0, %v1400
  %v1402 = vpop.f32.mrf.mxu0
  %v1403 = vadd.f32 0.0, %v1402
  %1404 = vmatmul.bf16.gmra.mxu0 %v1322
  %v1405 = vpop.f32.mrf.mxu0
  %v1406 = vadd.f32 0.0, %v1405
  %v1407 = vpop.f32.mrf.mxu0
  %v1408 = vadd.f32 0.0, %v1407
  %1409 = vmatmul.bf16.gmra.mxu0 %v1323
  %v1410 = vpop.f32.mrf.mxu0
  %v1411 = vadd.f32 0.0, %v1410
  %v1412 = vpop.f32.mrf.mxu0
  %v1413 = vadd.f32 0.0, %v1412
  %1414 = vmatmul.bf16.gmra.mxu0 %v1324
  %v1415 = vpop.f32.mrf.mxu0
  %v1416 = vadd.f32 0.0, %v1415
  %v1417 = vpop.f32.mrf.mxu0
  %v1418 = vadd.f32 0.0, %v1417
  %1419 = vmatmul.bf16.gmra.mxu0 %v1325
  %v1420 = vpop.f32.mrf.mxu0
  %v1421 = vadd.f32 0.0, %v1420
  %v1422 = vpop.f32.mrf.mxu0
  %v1423 = vadd.f32 0.0, %v1422
  %1424 = vmatmul.bf16.gmra.mxu0 %v1326
  %v1425 = vpop.f32.mrf.mxu0
  %v1426 = vadd.f32 0.0, %v1425
  %v1427 = vpop.f32.mrf.mxu0
  %v1428 = vadd.f32 0.0, %v1427
  %1429 = vmatmul.bf16.gmra.mxu0 %v1327
  %v1430 = vpop.f32.mrf.mxu0
  %v1431 = vadd.f32 0.0, %v1430
  %v1432 = vpop.f32.mrf.mxu0
  %v1433 = vadd.f32 0.0, %v1432
  %1434 = vmatmul.bf16.gmra.mxu0 %v1328
  %v1435 = vpop.f32.mrf.mxu0
  %v1436 = vadd.f32 0.0, %v1435
  %v1437 = vpop.f32.mrf.mxu0
  %v1438 = vadd.f32 0.0, %v1437
  %1439 = vmatmul.bf16.gmra.mxu0 %v1329
  %v1440 = vpop.f32.mrf.mxu0
  %v1441 = vadd.f32 0.0, %v1440
  %v1442 = vpop.f32.mrf.mxu0
  %v1443 = vadd.f32 0.0, %v1442
  %1444 = vmatmul.bf16.gmra.mxu0 %v1330
  %v1445 = vpop.f32.mrf.mxu0
  %v1446 = vadd.f32 0.0, %v1445
  %v1447 = vpop.f32.mrf.mxu0
  %v1448 = vadd.f32 0.0, %v1447
  %1449 = vmatmul.bf16.gmra.mxu0 %v1331
  %v1450 = vpop.f32.mrf.mxu0
  %v1451 = vadd.f32 0.0, %v1450
  %v1452 = vpop.f32.mrf.mxu0
  %v1453 = vadd.f32 0.0, %v1452
  %1454 = vmatmul.bf16.gmra.mxu0 %v1332
  %v1455 = vpop.f32.mrf.mxu0
  %v1456 = vadd.f32 0.0, %v1455
  %v1457 = vpop.f32.mrf.mxu0
  %v1458 = vadd.f32 0.0, %v1457
  %1459 = vmatmul.bf16.gmra.mxu0 %v1333
  %v1460 = vpop.f32.mrf.mxu0
  %v1461 = vadd.f32 0.0, %v1460
  %v1462 = vpop.f32.mrf.mxu0
  %v1463 = vadd.f32 0.0, %v1462
  %1464 = vmatmul.bf16.gmra.mxu0 %v1334
  %v1465 = vpop.f32.mrf.mxu0
  %v1466 = vadd.f32 0.0, %v1465
  %v1467 = vpop.f32.mrf.mxu0
  %v1468 = vadd.f32 0.0, %v1467
  %1469 = vmatmul.bf16.gmra.mxu0 %v1335
  %v1470 = vpop.f32.mrf.mxu0
  %v1471 = vadd.f32 0.0, %v1470
  %v1472 = vpop.f32.mrf.mxu0
  %v1473 = vadd.f32 0.0, %v1472
  %1474 = vmatmul.bf16.gmra.mxu0 %v1336
  %v1475 = vpop.f32.mrf.mxu0
  %v1476 = vadd.f32 0.0, %v1475
  %v1477 = vpop.f32.mrf.mxu0
  %v1478 = vadd.f32 0.0, %v1477
  %1479 = vmatmul.bf16.gmra.mxu0 %v1337
  %v1480 = vpop.f32.mrf.mxu0
  %v1481 = vadd.f32 0.0, %v1480
  %v1482 = vpop.f32.mrf.mxu0
  %v1483 = vadd.f32 0.0, %v1482
  %1484 = vmatmul.bf16.gmra.mxu0 %v1338
  %v1485 = vpop.f32.mrf.mxu0
  %v1486 = vadd.f32 0.0, %v1485
  %v1487 = vpop.f32.mrf.mxu0
  %v1488 = vadd.f32 0.0, %v1487
  %1489 = vmatmul.bf16.gmra.mxu0 %v1339
  %v1490 = vpop.f32.mrf.mxu0
  %v1491 = vadd.f32 0.0, %v1490
  %v1492 = vpop.f32.mrf.mxu0
  %v1493 = vadd.f32 0.0, %v1492
  %1494 = vmatmul.bf16.gmra.mxu0 %v1340
  %v1495 = vpop.f32.mrf.mxu0
  %v1496 = vadd.f32 0.0, %v1495
  %v1497 = vpop.f32.mrf.mxu0
  %1498 = vdwg.mxu0
  %v1499 = vmax.f32 %v1119, %v1376
  %v1500 = vmax.f32 %v1120, %v1378
  %v1501 = vmax.f32 %v1121, %v1381
  %v1502 = vmax.f32 %v1122, %v1383
  %v1503 = vmax.f32 %v1123, %v1386
  %v1504 = vmax.f32 %v1124, %v1388
  %v1505 = vmax.f32 %v1125, %v1391
  %v1506 = vmax.f32 %v1126, %v1393
  %v1507 = vmax.f32 %v1127, %v1396
  %v1508 = vmax.f32 %v1128, %v1398
  %v1509 = vmax.f32 %v1129, %v1401
  %v1510 = vmax.f32 %v1130, %v1403
  %v1511 = vmax.f32 %v1131, %v1406
  %v1512 = vmax.f32 %v1132, %v1408
  %v1513 = vmax.f32 %v1133, %v1411
  %v1514 = vmax.f32 %v1134, %v1413
  %v1515 = vmax.f32 %v1135, %v1416
  %v1516 = vmax.f32 %v1136, %v1418
  %v1517 = vmax.f32 %v1137, %v1421
  %v1518 = vmax.f32 %v1138, %v1423
  %v1519 = vmax.f32 %v1139, %v1426
  %v1520 = vmax.f32 %v1140, %v1428
  %v1521 = vmax.f32 %v1141, %v1431
  %v1522 = vmax.f32 %v1142, %v1433
  %v1523 = vmax.f32 %v1143, %v1436
  %v1524 = vmax.f32 %v1144, %v1438
  %v1525 = vmax.f32 %v1145, %v1441
  %v1526 = vmax.f32 %v1146, %v1443
  %v1527 = vmax.f32 %v1147, %v1446
  %v1528 = vmax.f32 %v1148, %v1448
  %v1529 = vmax.f32 %v1149, %v1451
  %v1530 = vmax.f32 %v1150, %v1453
  %v1531 = vmax.f32 %v1151, %v1456
  %v1532 = vmax.f32 %v1152, %v1458
  %v1533 = vmax.f32 %v1153, %v1461
  %v1534 = vmax.f32 %v1154, %v1463
  %v1535 = vmax.f32 %v1155, %v1466
  %v1536 = vmax.f32 %v1156, %v1468
  %v1537 = vmax.f32 %v1157, %v1471
  %v1538 = vmax.f32 %v1158, %v1473
  %v1539 = vmax.f32 %v1159, %v1476
  %v1540 = vmax.f32 %v1160, %v1478
  %v1541 = vmax.f32 %v1161, %v1481
  %v1542 = vmax.f32 %v1162, %v1483
  %v1543 = vmax.f32 %v1163, %v1486
  %v1544 = vmax.f32 %v1164, %v1488
  %v1545 = vmax.f32 %v1165, %v1491
  %v1546 = vmax.f32 %v1166, %v1493
  %v1547 = vmax.f32 %v1167, %v1496
  %v1548 = vld [vmem:[%s2] sm:$0x1]
  %v1550 = vperm.slane %v1548, 0
  %v1552 = vadd.f32 %v1499, %v1550
  %v1553 = vadd.f32 %v1500, %v1550
  %v1554 = vadd.f32 %v1501, %v1550
  %v1555 = vadd.f32 %v1502, %v1550
  %v1556 = vadd.f32 %v1503, %v1550
  %v1557 = vadd.f32 %v1504, %v1550
  %v1558 = vadd.f32 %v1505, %v1550
  %v1559 = vadd.f32 %v1506, %v1550
  %v1560 = vadd.f32 %v1507, %v1550
  %v1561 = vadd.f32 %v1508, %v1550
  %v1562 = vadd.f32 %v1509, %v1550
  %v1563 = vadd.f32 %v1510, %v1550
  %v1564 = vadd.f32 %v1511, %v1550
  %v1565 = vadd.f32 %v1512, %v1550
  %v1566 = vadd.f32 %v1513, %v1550
  %v1567 = vadd.f32 %v1514, %v1550
  %v1568 = vadd.f32 %v1515, %v1550
  %v1569 = vadd.f32 %v1516, %v1550
  %v1570 = vadd.f32 %v1517, %v1550
  %v1571 = vadd.f32 %v1518, %v1550
  %v1572 = vadd.f32 %v1519, %v1550
  %v1573 = vadd.f32 %v1520, %v1550
  %v1574 = vadd.f32 %v1521, %v1550
  %v1575 = vadd.f32 %v1522, %v1550
  %v1576 = vadd.f32 %v1523, %v1550
  %v1577 = vadd.f32 %v1524, %v1550
  %v1578 = vadd.f32 %v1525, %v1550
  %v1579 = vadd.f32 %v1526, %v1550
  %v1580 = vadd.f32 %v1527, %v1550
  %v1581 = vadd.f32 %v1528, %v1550
  %v1582 = vadd.f32 %v1529, %v1550
  %v1583 = vadd.f32 %v1530, %v1550
  %v1584 = vadd.f32 %v1531, %v1550
  %v1585 = vadd.f32 %v1532, %v1550
  %v1586 = vadd.f32 %v1533, %v1550
  %v1587 = vadd.f32 %v1534, %v1550
  %v1588 = vadd.f32 %v1535, %v1550
  %v1589 = vadd.f32 %v1536, %v1550
  %v1590 = vadd.f32 %v1537, %v1550
  %v1591 = vadd.f32 %v1538, %v1550
  %v1592 = vadd.f32 %v1539, %v1550
  %v1593 = vadd.f32 %v1540, %v1550
  %v1594 = vadd.f32 %v1541, %v1550
  %v1595 = vadd.f32 %v1542, %v1550
  %v1596 = vadd.f32 %v1543, %v1550
  %v1597 = vadd.f32 %v1544, %v1550
  %v1598 = vadd.f32 %v1545, %v1550
  %v1599 = vadd.f32 %v1546, %v1550
  %v1600 = vadd.f32 %v1547, %v1550
  %v1601 = vmax.f32 %v1552, 0.0
  %v1602 = vmax.f32 %v1553, 0.0
  %v1603 = vmax.f32 %v1554, 0.0
  %v1604 = vmax.f32 %v1555, 0.0
  %v1605 = vmax.f32 %v1556, 0.0
  %v1606 = vmax.f32 %v1557, 0.0
  %v1607 = vmax.f32 %v1558, 0.0
  %v1608 = vmax.f32 %v1559, 0.0
  %v1609 = vmax.f32 %v1560, 0.0
  %v1610 = vmax.f32 %v1561, 0.0
  %v1611 = vmax.f32 %v1562, 0.0
  %v1612 = vmax.f32 %v1563, 0.0
  %v1613 = vmax.f32 %v1564, 0.0
  %v1614 = vmax.f32 %v1565, 0.0
  %v1615 = vmax.f32 %v1566, 0.0
  %v1616 = vmax.f32 %v1567, 0.0
  %v1617 = vmax.f32 %v1568, 0.0
  %v1618 = vmax.f32 %v1569, 0.0
  %v1619 = vmax.f32 %v1570, 0.0
  %v1620 = vmax.f32 %v1571, 0.0
  %v1621 = vmax.f32 %v1572, 0.0
  %v1622 = vmax.f32 %v1573, 0.0
  %v1623 = vmax.f32 %v1574, 0.0
  %v1624 = vmax.f32 %v1575, 0.0
  %v1625 = vmax.f32 %v1576, 0.0
  %v1626 = vmax.f32 %v1577, 0.0
  %v1627 = vmax.f32 %v1578, 0.0
  %v1628 = vmax.f32 %v1579, 0.0
  %v1629 = vmax.f32 %v1580, 0.0
  %v1630 = vmax.f32 %v1581, 0.0
  %v1631 = vmax.f32 %v1582, 0.0
  %v1632 = vmax.f32 %v1583, 0.0
  %v1633 = vmax.f32 %v1584, 0.0
  %v1634 = vmax.f32 %v1585, 0.0
  %v1635 = vmax.f32 %v1586, 0.0
  %v1636 = vmax.f32 %v1587, 0.0
  %v1637 = vmax.f32 %v1588, 0.0
  %v1638 = vmax.f32 %v1589, 0.0
  %v1639 = vmax.f32 %v1590, 0.0
  %v1640 = vmax.f32 %v1591, 0.0
  %v1641 = vmax.f32 %v1592, 0.0
  %v1642 = vmax.f32 %v1593, 0.0
  %v1643 = vmax.f32 %v1594, 0.0
  %v1644 = vmax.f32 %v1595, 0.0
  %v1645 = vmax.f32 %v1596, 0.0
  %v1646 = vmax.f32 %v1597, 0.0
  %v1647 = vmax.f32 %v1598, 0.0
  %v1648 = vmax.f32 %v1599, 0.0
  %v1649 = vmax.f32 %v1600, 0.0
  %v1650 = vpack.c.bf16 %v1601, %v1601
  %v1651 = vpack.c.bf16 %v1602, %v1602
  %v1652 = vpack.c.bf16 %v1603, %v1603
  %v1653 = vpack.c.bf16 %v1604, %v1604
  %v1654 = vpack.c.bf16 %v1605, %v1605
  %v1655 = vpack.c.bf16 %v1606, %v1606
  %v1656 = vpack.c.bf16 %v1607, %v1607
  %v1657 = vpack.c.bf16 %v1608, %v1608
  %v1658 = vpack.c.bf16 %v1609, %v1609
  %v1659 = vpack.c.bf16 %v1610, %v1610
  %v1660 = vpack.c.bf16 %v1611, %v1611
  %v1661 = vpack.c.bf16 %v1612, %v1612
  %v1662 = vpack.c.bf16 %v1613, %v1613
  %v1663 = vpack.c.bf16 %v1614, %v1614
  %v1664 = vpack.c.bf16 %v1615, %v1615
  %v1665 = vpack.c.bf16 %v1616, %v1616
  %v1666 = vpack.c.bf16 %v1617, %v1617
  %v1667 = vpack.c.bf16 %v1618, %v1618
  %v1668 = vpack.c.bf16 %v1619, %v1619
  %v1669 = vpack.c.bf16 %v1620, %v1620
  %v1670 = vpack.c.bf16 %v1621, %v1621
  %v1671 = vpack.c.bf16 %v1622, %v1622
  %v1672 = vpack.c.bf16 %v1623, %v1623
  %v1673 = vpack.c.bf16 %v1624, %v1624
  %v1674 = vpack.c.bf16 %v1625, %v1625
  %v1675 = vpack.c.bf16 %v1626, %v1626
  %v1676 = vpack.c.bf16 %v1627, %v1627
  %v1677 = vpack.c.bf16 %v1628, %v1628
  %v1678 = vpack.c.bf16 %v1629, %v1629
  %v1679 = vpack.c.bf16 %v1630, %v1630
  %v1680 = vpack.c.bf16 %v1631, %v1631
  %v1681 = vpack.c.bf16 %v1632, %v1632
  %v1682 = vpack.c.bf16 %v1633, %v1633
  %v1683 = vpack.c.bf16 %v1634, %v1634
  %v1684 = vpack.c.bf16 %v1635, %v1635
  %v1685 = vpack.c.bf16 %v1636, %v1636
  %v1686 = vpack.c.bf16 %v1637, %v1637
  %v1687 = vpack.c.bf16 %v1638, %v1638
  %v1688 = vpack.c.bf16 %v1639, %v1639
  %v1689 = vpack.c.bf16 %v1640, %v1640
  %v1690 = vpack.c.bf16 %v1641, %v1641
  %v1691 = vpack.c.bf16 %v1642, %v1642
  %v1692 = vpack.c.bf16 %v1643, %v1643
  %v1693 = vpack.c.bf16 %v1644, %v1644
  %v1694 = vpack.c.bf16 %v1645, %v1645
  %v1695 = vpack.c.bf16 %v1646, %v1646
  %v1696 = vpack.c.bf16 %v1647, %v1647
  %v1697 = vpack.c.bf16 %v1648, %v1648
  %v1698 = vpack.c.bf16 %v1649, %v1649
  %1699 = vst [vmem:[%s3] sm:$0xf] %v1650
  %1700 = vst [vmem:[%s3 + $0x4] sm:$0xf] %v1651
  %1701 = vst [vmem:[%s3 + $0x8] sm:$0xf] %v1652
  %1702 = vst [vmem:[%s3 + $0xc] sm:$0xf] %v1653
  %1703 = vst [vmem:[%s3 + $0x10] sm:$0xf] %v1654
  %1704 = vst [vmem:[%s3 + $0x14] sm:$0xf] %v1655
  %1705 = vst [vmem:[%s3 + $0x18] sm:$0xf] %v1656
  %1706 = vst [vmem:[%s3 + $0x1c] sm:$0xf] %v1657
  %1707 = vst [vmem:[%s3 + $0x20] sm:$0xf] %v1658
  %1708 = vst [vmem:[%s3 + $0x24] sm:$0xf] %v1659
  %1709 = vst [vmem:[%s3 + $0x28] sm:$0xf] %v1660
  %1710 = vst [vmem:[%s3 + $0x2c] sm:$0xf] %v1661
  %1711 = vst [vmem:[%s3 + $0x30] sm:$0xf] %v1662
  %1712 = vst [vmem:[%s3 + $0x34] sm:$0xf] %v1663
  %1713 = vst [vmem:[%s3 + $0x38] sm:$0xf] %v1664
  %1714 = vst [vmem:[%s3 + $0x3c] sm:$0xf] %v1665
  %1715 = vst [vmem:[%s3 + $0x40] sm:$0xf] %v1666
  %1716 = vst [vmem:[%s3 + $0x44] sm:$0xf] %v1667
  %1717 = vst [vmem:[%s3 + $0x48] sm:$0xf] %v1668
  %1718 = vst [vmem:[%s3 + $0x4c] sm:$0xf] %v1669
  %1719 = vst [vmem:[%s3 + $0x50] sm:$0xf] %v1670
  %1720 = vst [vmem:[%s3 + $0x54] sm:$0xf] %v1671
  %1721 = vst [vmem:[%s3 + $0x58] sm:$0xf] %v1672
  %1722 = vst [vmem:[%s3 + $0x5c] sm:$0xf] %v1673
  %1723 = vst [vmem:[%s3 + $0x60] sm:$0xf] %v1674
  %1724 = vst [vmem:[%s3 + $0x64] sm:$0xf] %v1675
  %1725 = vst [vmem:[%s3 + $0x68] sm:$0xf] %v1676
  %1726 = vst [vmem:[%s3 + $0x6c] sm:$0xf] %v1677
  %1727 = vst [vmem:[%s3 + $0x70] sm:$0xf] %v1678
  %1728 = vst [vmem:[%s3 + $0x74] sm:$0xf] %v1679
  %1729 = vst [vmem:[%s3 + $0x78] sm:$0xf] %v1680
  %1730 = vst [vmem:[%s3 + $0x7c] sm:$0xf] %v1681
  %1731 = vst [vmem:[%s3 + $0x80] sm:$0xf] %v1682
  %1732 = vst [vmem:[%s3 + $0x84] sm:$0xf] %v1683
  %1733 = vst [vmem:[%s3 + $0x88] sm:$0xf] %v1684
  %1734 = vst [vmem:[%s3 + $0x8c] sm:$0xf] %v1685
  %1735 = vst [vmem:[%s3 + $0x90] sm:$0xf] %v1686
  %1736 = vst [vmem:[%s3 + $0x94] sm:$0xf] %v1687
  %1737 = vst [vmem:[%s3 + $0x98] sm:$0xf] %v1688
  %1738 = vst [vmem:[%s3 + $0x9c] sm:$0xf] %v1689
  %1739 = vst [vmem:[%s3 + $0xa0] sm:$0xf] %v1690
  %1740 = vst [vmem:[%s3 + $0xa4] sm:$0xf] %v1691
  %1741 = vst [vmem:[%s3 + $0xa8] sm:$0xf] %v1692
  %1742 = vst [vmem:[%s3 + $0xac] sm:$0xf] %v1693
  %1743 = vst [vmem:[%s3 + $0xb0] sm:$0xf] %v1694
  %1744 = vst [vmem:[%s3 + $0xb4] sm:$0xf] %v1695
  %1745 = vst [vmem:[%s3 + $0xb8] sm:$0xf] %v1696
  %1746 = vst [vmem:[%s3 + $0xbc] sm:$0xf] %v1697
  %1747 = vst [vmem:[%s3 + $0xc0] sm:$0xf] %v1698
  // Predicated region
  $region14: #{net_forward.3} parent=0 // pred_check
    _
  $region15: #{net_forward.3} parent=0 // pred_check_branch
    %1749 = sbr.rel (0) target = $region17
  $region16: #{net_forward.3} parent=0 // pred_region
    _
  $region17: #{net_forward.3} parent=0 // pred_fallthru
    _
  // Predicated region
  $region18: #{net_forward.3} parent=0 // pred_check
    _
  $region19: #{net_forward.3} parent=0 // pred_check_branch
    %1751 = sbr.rel (0) target = $region21
  $region20: #{net_forward.3} parent=0 // pred_region
    _
  $region21: #{net_forward.3} parent=0 // pred_fallthru
    _

// kernel: net_forward.5
$region0: #{net_forward.5}
  #allocation0 [shape = 'u32[]', space=smem, size = 0x4, offset = 0x4, fixed_abs, tag = 'smem constant byte address 0x4 - core index']
  #allocation1 [shape = 'u32[72,128]{1,0:T(1,128)}', space=vmem, size = 0x9000, scoped, tag = 'internal scratch']
  %s0 = inlined_call_operand.vmem [shape: bf16[8,3200], index: 0, kind: input, shape index: {}]
  %s1 = inlined_call_operand.vmem [shape: bf16[3200,384], index: 1, kind: input, shape index: {}]
  %s2 = inlined_call_operand.vmem [shape: f32[1,384], index: 2, kind: input, shape index: {}]
  %s3 = inlined_call_operand.vmem [shape: bf16[384,256], index: 3, kind: input, shape index: {}]
  %s4 = inlined_call_operand.vmem [shape: f32[1,256], index: 4, kind: input, shape index: {}]
  %s5 = inlined_call_operand.vmem [shape: bf16[256,128], index: 5, kind: input, shape index: {}]
  %s6 = inlined_call_operand.vmem [shape: f32[1,128], index: 6, kind: input, shape index: {}]
  %s7 = inlined_call_operand.vmem [shape: f32[8,128], index: 7, kind: output, shape index: {}]
  %s8 = sld [smem:[#allocation0]]
  $region38: #{net_forward.5} parent=0
    _
  %s10 = ssub.s32 1, %s8
  %s11 = scalar_select 0, %s10, %s8
  // Predicated region
  $region2: #{net_forward.5} parent=0 // pred_check
    _
  $region3: #{net_forward.5} parent=0 // pred_check_branch
    %13 = sbr.rel (0) target = $region5
  $region4: #{net_forward.5} parent=0 // pred_region
    _
  $region5: #{net_forward.5} parent=0 // pred_fallthru
    _
  // Predicated region
  $region6: #{net_forward.5} parent=0 // pred_check
    _
  $region7: #{net_forward.5} parent=0 // pred_check_branch
    %15 = sbr.rel (0) target = $region9
  $region8: #{net_forward.5} parent=0 // pred_region
    _
  $region9: #{net_forward.5} parent=0 // pred_fallthru
    _
  // Predicated region
  $region10: #{net_forward.5} parent=0 // pred_check
    _
  $region11: #{net_forward.5} parent=0 // pred_check_branch
    %17 = sbr.rel (0) target = $region13
  $region12: #{net_forward.5} parent=0 // pred_region
    _
  $region13: #{net_forward.5} parent=0 // pred_fallthru
    _
  // Predicated region
  $region14: #{net_forward.5} parent=0 // pred_check
    _
  $region15: #{net_forward.5} parent=0 // pred_check_branch
    %19 = sbr.rel (0) target = $region17
  $region16: #{net_forward.5} parent=0 // pred_region
    _
  $region17: #{net_forward.5} parent=0 // pred_fallthru
    _
  // Predicated region
  $region18: #{net_forward.5} parent=0 // pred_check
    _
  $region19: #{net_forward.5} parent=0 // pred_check_branch
    %21 = sbr.rel (0) target = $region21
  $region20: #{net_forward.5} parent=0 // pred_region
    _
  $region21: #{net_forward.5} parent=0 // pred_fallthru
    _
  // Predicated region
  $region22: #{net_forward.5} parent=0 // pred_check
    _
  $region23: #{net_forward.5} parent=0 // pred_check_branch
    %23 = sbr.rel (0) target = $region25
  $region24: #{net_forward.5} parent=0 // pred_region
    _
  $region25: #{net_forward.5} parent=0 // pred_fallthru
    _
  // Predicated region
  $region26: #{net_forward.5} parent=0 // pred_check
    _
  $region27: #{net_forward.5} parent=0 // pred_check_branch
    %25 = sbr.rel (0) target = $region29
  $region28: #{net_forward.5} parent=0 // pred_region
    _
  $region29: #{net_forward.5} parent=0 // pred_fallthru
    _
  %v26 = vld [vmem:[%s0] sm:$0xff]
  %v27 = vld [vmem:[%s0 + $0x8] sm:$0xff]
  %v28 = vld [vmem:[%s0 + $0x10] sm:$0xff]
  %v29 = vld [vmem:[%s0 + $0x18] sm:$0xff]
  %v30 = vld [vmem:[%s0 + $0x20] sm:$0xff]
  %v31 = vld [vmem:[%s0 + $0x28] sm:$0xff]
  %v32 = vld [vmem:[%s0 + $0x30] sm:$0xff]
  %v33 = vld [vmem:[%s0 + $0x38] sm:$0xff]
  %v34 = vld [vmem:[%s0 + $0x40] sm:$0xff]
  %v35 = vld [vmem:[%s0 + $0x48] sm:$0xff]
  %v36 = vld [vmem:[%s0 + $0x50] sm:$0xff]
  %v37 = vld [vmem:[%s0 + $0x58] sm:$0xff]
  %v38 = vld [vmem:[%s0 + $0x60] sm:$0xf]
  %v39 = vld [vmem:[%s1] sm:$0xff]
  %v40 = vld [vmem:[%s1 + $0x8] sm:$0xf]
  %v41 = vld [vmem:[%s1 + $0xc] sm:$0xff]
  %v42 = vld [vmem:[%s1 + $0x14] sm:$0xf]
  %v43 = vld [vmem:[%s1 + $0x18] sm:$0xff]
  %v44 = vld [vmem:[%s1 + $0x20] sm:$0xf]
  %v45 = vld [vmem:[%s1 + $0x24] sm:$0xff]
  %v46 = vld [vmem:[%s1 + $0x2c] sm:$0xf]
  %v47 = vld [vmem:[%s1 + $0x30] sm:$0xff]
  %v48 = vld [vmem:[%s1 + $0x38] sm:$0xf]
  %v49 = vld [vmem:[%s1 + $0x3c] sm:$0xff]
  %v50 = vld [vmem:[%s1 + $0x44] sm:$0xf]
  %v51 = vld [vmem:[%s1 + $0x48] sm:$0xff]
  %v52 = vld [vmem:[%s1 + $0x50] sm:$0xf]
  %v53 = vld [vmem:[%s1 + $0x54] sm:$0xff]
  %v54 = vld [vmem:[%s1 + $0x5c] sm:$0xf]
  %v55 = vld [vmem:[%s1 + $0x60] sm:$0xff]
  %v56 = vld [vmem:[%s1 + $0x68] sm:$0xf]
  %v57 = vld [vmem:[%s1 + $0x6c] sm:$0xff]
  %v58 = vld [vmem:[%s1 + $0x74] sm:$0xf]
  %v59 = vld [vmem:[%s1 + $0x78] sm:$0xff]
  %v60 = vld [vmem:[%s1 + $0x80] sm:$0xf]
  %v61 = vld [vmem:[%s1 + $0x84] sm:$0xff]
  %v62 = vld [vmem:[%s1 + $0x8c] sm:$0xf]
  %v63 = vld [vmem:[%s1 + $0x90] sm:$0xff]
  %v64 = vld [vmem:[%s1 + $0x98] sm:$0xf]
  %v65 = vld [vmem:[%s1 + $0x9c] sm:$0xff]
  %v66 = vld [vmem:[%s1 + $0xa4] sm:$0xf]
  %v67 = vld [vmem:[%s1 + $0xa8] sm:$0xff]
  %v68 = vld [vmem:[%s1 + $0xb0] sm:$0xf]
  %v69 = vld [vmem:[%s1 + $0xb4] sm:$0xff]
  %v70 = vld [vmem:[%s1 + $0xbc] sm:$0xf]
  %v71 = vld [vmem:[%s1 + $0xc0] sm:$0xff]
  %v72 = vld [vmem:[%s1 + $0xc8] sm:$0xf]
  %v73 = vld [vmem:[%s1 + $0xcc] sm:$0xff]
  %v74 = vld [vmem:[%s1 + $0xd4] sm:$0xf]
  %v75 = vld [vmem:[%s1 + $0xd8] sm:$0xff]
  %v76 = vld [vmem:[%s1 + $0xe0] sm:$0xf]
  %v77 = vld [vmem:[%s1 + $0xe4] sm:$0xff]
  %v78 = vld [vmem:[%s1 + $0xec] sm:$0xf]
  %v79 = vld [vmem:[%s1 + $0xf0] sm:$0xff]
  %v80 = vld [vmem:[%s1 + $0xf8] sm:$0xf]
  %v81 = vld [vmem:[%s1 + $0xfc] sm:$0xff]
  %v82 = vld [vmem:[%s1 + $0x104] sm:$0xf]
  %v83 = vld [vmem:[%s1 + $0x108] sm:$0xff]
  %v84 = vld [vmem:[%s1 + $0x110] sm:$0xf]
  %v85 = vld [vmem:[%s1 + $0x114] sm:$0xff]
  %v86 = vld [vmem:[%s1 + $0x11c] sm:$0xf]
  %v87 = vld [vmem:[%s1 + $0x120] sm:$0xff]
  %v88 = vld [vmem:[%s1 + $0x128] sm:$0xf]
  %v89 = vld [vmem:[%s1 + $0x12c] sm:$0xff]
  %v90 = vld [vmem:[%s1 + $0x134] sm:$0xf]
  %v91 = vld [vmem:[%s1 + $0x138] sm:$0xff]
  %v92 = vld [vmem:[%s1 + $0x140] sm:$0xf]
  %v93 = vld [vmem:[%s1 + $0x144] sm:$0xff]
  %v94 = vld [vmem:[%s1 + $0x14c] sm:$0xf]
  %v95 = vld [vmem:[%s1 + $0x150] sm:$0xff]
  %v96 = vld [vmem:[%s1 + $0x158] sm:$0xf]
  %v97 = vld [vmem:[%s1 + $0x15c] sm:$0xff]
  %v98 = vld [vmem:[%s1 + $0x164] sm:$0xf]
  %v99 = vld [vmem:[%s1 + $0x168] sm:$0xff]
  %v100 = vld [vmem:[%s1 + $0x170] sm:$0xf]
  %v101 = vld [vmem:[%s1 + $0x174] sm:$0xff]
  %v102 = vld [vmem:[%s1 + $0x17c] sm:$0xf]
  %v103 = vld [vmem:[%s1 + $0x180] sm:$0xff]
  %v104 = vld [vmem:[%s1 + $0x188] sm:$0xf]
  %v105 = vld [vmem:[%s1 + $0x18c] sm:$0xff]
  %v106 = vld [vmem:[%s1 + $0x194] sm:$0xf]
  %v107 = vld [vmem:[%s1 + $0x198] sm:$0xff]
  %v108 = vld [vmem:[%s1 + $0x1a0] sm:$0xf]
  %v109 = vld [vmem:[%s1 + $0x1a4] sm:$0xff]
  %v110 = vld [vmem:[%s1 + $0x1ac] sm:$0xf]
  %v111 = vld [vmem:[%s1 + $0x1b0] sm:$0xff]
  %v112 = vld [vmem:[%s1 + $0x1b8] sm:$0xf]
  %v113 = vld [vmem:[%s1 + $0x1bc] sm:$0xff]
  %v114 = vld [vmem:[%s1 + $0x1c4] sm:$0xf]
  %v115 = vld [vmem:[%s1 + $0x1c8] sm:$0xff]
  %v116 = vld [vmem:[%s1 + $0x1d0] sm:$0xf]
  %v117 = vld [vmem:[%s1 + $0x1d4] sm:$0xff]
  %v118 = vld [vmem:[%s1 + $0x1dc] sm:$0xf]
  %v119 = vld [vmem:[%s1 + $0x1e0] sm:$0xff]
  %v120 = vld [vmem:[%s1 + $0x1e8] sm:$0xf]
  %v121 = vld [vmem:[%s1 + $0x1ec] sm:$0xff]
  %v122 = vld [vmem:[%s1 + $0x1f4] sm:$0xf]
  %v123 = vld [vmem:[%s1 + $0x1f8] sm:$0xff]
  %v124 = vld [vmem:[%s1 + $0x200] sm:$0xf]
  %v125 = vld [vmem:[%s1 + $0x204] sm:$0xff]
  %v126 = vld [vmem:[%s1 + $0x20c] sm:$0xf]
  %v127 = vld [vmem:[%s1 + $0x210] sm:$0xff]
  %v128 = vld [vmem:[%s1 + $0x218] sm:$0xf]
  %v129 = vld [vmem:[%s1 + $0x21c] sm:$0xff]
  %v130 = vld [vmem:[%s1 + $0x224] sm:$0xf]
  %v131 = vld [vmem:[%s1 + $0x228] sm:$0xff]
  %v132 = vld [vmem:[%s1 + $0x230] sm:$0xf]
  %v133 = vld [vmem:[%s1 + $0x234] sm:$0xff]
  %v134 = vld [vmem:[%s1 + $0x23c] sm:$0xf]
  %v135 = vld [vmem:[%s1 + $0x240] sm:$0xff]
  %v136 = vld [vmem:[%s1 + $0x248] sm:$0xf]
  %v137 = vld [vmem:[%s1 + $0x24c] sm:$0xff]
  %v138 = vld [vmem:[%s1 + $0x254] sm:$0xf]
  %v139 = vld [vmem:[%s1 + $0x258] sm:$0xff]
  %v140 = vld [vmem:[%s1 + $0x260] sm:$0xf]
  %v141 = vld [vmem:[%s1 + $0x264] sm:$0xff]
  %v142 = vld [vmem:[%s1 + $0x26c] sm:$0xf]
  %v143 = vld [vmem:[%s1 + $0x270] sm:$0xff]
  %v144 = vld [vmem:[%s1 + $0x278] sm:$0xf]
  %v145 = vld [vmem:[%s1 + $0x27c] sm:$0xff]
  %v146 = vld [vmem:[%s1 + $0x284] sm:$0xf]
  %v147 = vld [vmem:[%s1 + $0x288] sm:$0xff]
  %v148 = vld [vmem:[%s1 + $0x290] sm:$0xf]
  %v149 = vld [vmem:[%s1 + $0x294] sm:$0xff]
  %v150 = vld [vmem:[%s1 + $0x29c] sm:$0xf]
  %v151 = vld [vmem:[%s1 + $0x2a0] sm:$0xff]
  %v152 = vld [vmem:[%s1 + $0x2a8] sm:$0xf]
  %v153 = vld [vmem:[%s1 + $0x2ac] sm:$0xff]
  %v154 = vld [vmem:[%s1 + $0x2b4] sm:$0xf]
  %v155 = vld [vmem:[%s1 + $0x2b8] sm:$0xff]
  %v156 = vld [vmem:[%s1 + $0x2c0] sm:$0xf]
  %v157 = vld [vmem:[%s1 + $0x2c4] sm:$0xff]
  %v158 = vld [vmem:[%s1 + $0x2cc] sm:$0xf]
  %v159 = vld [vmem:[%s1 + $0x2d0] sm:$0xff]
  %v160 = vld [vmem:[%s1 + $0x2d8] sm:$0xf]
  %v161 = vld [vmem:[%s1 + $0x2dc] sm:$0xff]
  %v162 = vld [vmem:[%s1 + $0x2e4] sm:$0xf]
  %v163 = vld [vmem:[%s1 + $0x2e8] sm:$0xff]
  %v164 = vld [vmem:[%s1 + $0x2f0] sm:$0xf]
  %v165 = vld [vmem:[%s1 + $0x2f4] sm:$0xff]
  %v166 = vld [vmem:[%s1 + $0x2fc] sm:$0xf]
  %v167 = vld [vmem:[%s1 + $0x300] sm:$0xff]
  %v168 = vld [vmem:[%s1 + $0x308] sm:$0xf]
  %v169 = vld [vmem:[%s1 + $0x30c] sm:$0xff]
  %v170 = vld [vmem:[%s1 + $0x314] sm:$0xf]
  %v171 = vld [vmem:[%s1 + $0x318] sm:$0xff]
  %v172 = vld [vmem:[%s1 + $0x320] sm:$0xf]
  %v173 = vld [vmem:[%s1 + $0x324] sm:$0xff]
  %v174 = vld [vmem:[%s1 + $0x32c] sm:$0xf]
  %v175 = vld [vmem:[%s1 + $0x330] sm:$0xff]
  %v176 = vld [vmem:[%s1 + $0x338] sm:$0xf]
  %v177 = vld [vmem:[%s1 + $0x33c] sm:$0xff]
  %v178 = vld [vmem:[%s1 + $0x344] sm:$0xf]
  %v179 = vld [vmem:[%s1 + $0x348] sm:$0xff]
  %v180 = vld [vmem:[%s1 + $0x350] sm:$0xf]
  %v181 = vld [vmem:[%s1 + $0x354] sm:$0xff]
  %v182 = vld [vmem:[%s1 + $0x35c] sm:$0xf]
  %v183 = vld [vmem:[%s1 + $0x360] sm:$0xff]
  %v184 = vld [vmem:[%s1 + $0x368] sm:$0xf]
  %v185 = vld [vmem:[%s1 + $0x36c] sm:$0xff]
  %v186 = vld [vmem:[%s1 + $0x374] sm:$0xf]
  %v187 = vld [vmem:[%s1 + $0x378] sm:$0xff]
  %v188 = vld [vmem:[%s1 + $0x380] sm:$0xf]
  %v189 = vld [vmem:[%s1 + $0x384] sm:$0xff]
  %v190 = vld [vmem:[%s1 + $0x38c] sm:$0xf]
  %v191 = vld [vmem:[%s1 + $0x390] sm:$0xff]
  %v192 = vld [vmem:[%s1 + $0x398] sm:$0xf]
  %v193 = vld [vmem:[%s1 + $0x39c] sm:$0xff]
  %v194 = vld [vmem:[%s1 + $0x3a4] sm:$0xf]
  %v195 = vld [vmem:[%s1 + $0x3a8] sm:$0xff]
  %v196 = vld [vmem:[%s1 + $0x3b0] sm:$0xf]
  %v197 = vld [vmem:[%s1 + $0x3b4] sm:$0xff]
  %v198 = vld [vmem:[%s1 + $0x3bc] sm:$0xf]
  %v199 = vld [vmem:[%s1 + $0x3c0] sm:$0xff]
  %v200 = vld [vmem:[%s1 + $0x3c8] sm:$0xf]
  %v201 = vld [vmem:[%s1 + $0x3cc] sm:$0xff]
  %v202 = vld [vmem:[%s1 + $0x3d4] sm:$0xf]
  %v203 = vld [vmem:[%s1 + $0x3d8] sm:$0xff]
  %v204 = vld [vmem:[%s1 + $0x3e0] sm:$0xf]
  %v205 = vld [vmem:[%s1 + $0x3e4] sm:$0xff]
  %v206 = vld [vmem:[%s1 + $0x3ec] sm:$0xf]
  %v207 = vld [vmem:[%s1 + $0x3f0] sm:$0xff]
  %v208 = vld [vmem:[%s1 + $0x3f8] sm:$0xf]
  %v209 = vld [vmem:[%s1 + $0x3fc] sm:$0xff]
  %v210 = vld [vmem:[%s1 + $0x404] sm:$0xf]
  %v211 = vld [vmem:[%s1 + $0x408] sm:$0xff]
  %v212 = vld [vmem:[%s1 + $0x410] sm:$0xf]
  %v213 = vld [vmem:[%s1 + $0x414] sm:$0xff]
  %v214 = vld [vmem:[%s1 + $0x41c] sm:$0xf]
  %v215 = vld [vmem:[%s1 + $0x420] sm:$0xff]
  %v216 = vld [vmem:[%s1 + $0x428] sm:$0xf]
  %v217 = vld [vmem:[%s1 + $0x42c] sm:$0xff]
  %v218 = vld [vmem:[%s1 + $0x434] sm:$0xf]
  %v219 = vld [vmem:[%s1 + $0x438] sm:$0xff]
  %v220 = vld [vmem:[%s1 + $0x440] sm:$0xf]
  %v221 = vld [vmem:[%s1 + $0x444] sm:$0xff]
  %v222 = vld [vmem:[%s1 + $0x44c] sm:$0xf]
  %v223 = vld [vmem:[%s1 + $0x450] sm:$0xff]
  %v224 = vld [vmem:[%s1 + $0x458] sm:$0xf]
  %v225 = vld [vmem:[%s1 + $0x45c] sm:$0xff]
  %v226 = vld [vmem:[%s1 + $0x464] sm:$0xf]
  %v227 = vld [vmem:[%s1 + $0x468] sm:$0xff]
  %v228 = vld [vmem:[%s1 + $0x470] sm:$0xf]
  %v229 = vld [vmem:[%s1 + $0x474] sm:$0xff]
  %v230 = vld [vmem:[%s1 + $0x47c] sm:$0xf]
  %v231 = vld [vmem:[%s1 + $0x480] sm:$0xff]
  %v232 = vld [vmem:[%s1 + $0x488] sm:$0xf]
  %v233 = vld [vmem:[%s1 + $0x48c] sm:$0xff]
  %v234 = vld [vmem:[%s1 + $0x494] sm:$0xf]
  %v235 = vld [vmem:[%s1 + $0x498] sm:$0xff]
  %v236 = vld [vmem:[%s1 + $0x4a0] sm:$0xf]
  %v237 = vld [vmem:[%s1 + $0x4a4] sm:$0xff]
  %v238 = vld [vmem:[%s1 + $0x4ac] sm:$0xf]
  %v239 = vld [vmem:[%s1 + $0x4b0] sm:$0xff]
  %v240 = vld [vmem:[%s1 + $0x4b8] sm:$0xf]
  %v241 = vld [vmem:[%s1 + $0x4bc] sm:$0xff]
  %v242 = vld [vmem:[%s1 + $0x4c4] sm:$0xf]
  %v243 = vld [vmem:[%s1 + $0x4c8] sm:$0xff]
  %v244 = vld [vmem:[%s1 + $0x4d0] sm:$0xf]
  %v245 = vld [vmem:[%s1 + $0x4d4] sm:$0xff]
  %v246 = vld [vmem:[%s1 + $0x4dc] sm:$0xf]
  %v247 = vld [vmem:[%s1 + $0x4e0] sm:$0xff]
  %v248 = vld [vmem:[%s1 + $0x4e8] sm:$0xf]
  %v249 = vld [vmem:[%s1 + $0x4ec] sm:$0xff]
  %v250 = vld [vmem:[%s1 + $0x4f4] sm:$0xf]
  %v251 = vld [vmem:[%s1 + $0x4f8] sm:$0xff]
  %v252 = vld [vmem:[%s1 + $0x500] sm:$0xf]
  %v253 = vld [vmem:[%s1 + $0x504] sm:$0xff]
  %v254 = vld [vmem:[%s1 + $0x50c] sm:$0xf]
  %v255 = vld [vmem:[%s1 + $0x510] sm:$0xff]
  %v256 = vld [vmem:[%s1 + $0x518] sm:$0xf]
  %v257 = vld [vmem:[%s1 + $0x51c] sm:$0xff]
  %v258 = vld [vmem:[%s1 + $0x524] sm:$0xf]
  %v259 = vld [vmem:[%s1 + $0x528] sm:$0xff]
  %v260 = vld [vmem:[%s1 + $0x530] sm:$0xf]
  %v261 = vld [vmem:[%s1 + $0x534] sm:$0xff]
  %v262 = vld [vmem:[%s1 + $0x53c] sm:$0xf]
  %v263 = vld [vmem:[%s1 + $0x540] sm:$0xff]
  %v264 = vld [vmem:[%s1 + $0x548] sm:$0xf]
  %v265 = vld [vmem:[%s1 + $0x54c] sm:$0xff]
  %v266 = vld [vmem:[%s1 + $0x554] sm:$0xf]
  %v267 = vld [vmem:[%s1 + $0x558] sm:$0xff]
  %v268 = vld [vmem:[%s1 + $0x560] sm:$0xf]
  %v269 = vld [vmem:[%s1 + $0x564] sm:$0xff]
  %v270 = vld [vmem:[%s1 + $0x56c] sm:$0xf]
  %v271 = vld [vmem:[%s1 + $0x570] sm:$0xff]
  %v272 = vld [vmem:[%s1 + $0x578] sm:$0xf]
  %v273 = vld [vmem:[%s1 + $0x57c] sm:$0xff]
  %v274 = vld [vmem:[%s1 + $0x584] sm:$0xf]
  %v275 = vld [vmem:[%s1 + $0x588] sm:$0xff]
  %v276 = vld [vmem:[%s1 + $0x590] sm:$0xf]
  %v277 = vld [vmem:[%s1 + $0x594] sm:$0xff]
  %v278 = vld [vmem:[%s1 + $0x59c] sm:$0xf]
  %v279 = vld [vmem:[%s1 + $0x5a0] sm:$0xff]
  %v280 = vld [vmem:[%s1 + $0x5a8] sm:$0xf]
  %v281 = vld [vmem:[%s1 + $0x5ac] sm:$0xff]
  %v282 = vld [vmem:[%s1 + $0x5b4] sm:$0xf]
  %v283 = vld [vmem:[%s1 + $0x5b8] sm:$0xff]
  %v284 = vld [vmem:[%s1 + $0x5c0] sm:$0xf]
  %v285 = vld [vmem:[%s1 + $0x5c4] sm:$0xff]
  %v286 = vld [vmem:[%s1 + $0x5cc] sm:$0xf]
  %v287 = vld [vmem:[%s1 + $0x5d0] sm:$0xff]
  %v288 = vld [vmem:[%s1 + $0x5d8] sm:$0xf]
  %v289 = vld [vmem:[%s1 + $0x5dc] sm:$0xff]
  %v290 = vld [vmem:[%s1 + $0x5e4] sm:$0xf]
  %v291 = vld [vmem:[%s1 + $0x5e8] sm:$0xff]
  %v292 = vld [vmem:[%s1 + $0x5f0] sm:$0xf]
  %v293 = vld [vmem:[%s1 + $0x5f4] sm:$0xff]
  %v294 = vld [vmem:[%s1 + $0x5fc] sm:$0xf]
  %v295 = vld [vmem:[%s1 + $0x600] sm:$0xff]
  %v296 = vld [vmem:[%s1 + $0x608] sm:$0xf]
  %v297 = vld [vmem:[%s1 + $0x60c] sm:$0xff]
  %v298 = vld [vmem:[%s1 + $0x614] sm:$0xf]
  %v299 = vld [vmem:[%s1 + $0x618] sm:$0xff]
  %v300 = vld [vmem:[%s1 + $0x620] sm:$0xf]
  %v301 = vld [vmem:[%s1 + $0x624] sm:$0xff]
  %v302 = vld [vmem:[%s1 + $0x62c] sm:$0xf]
  %v303 = vld [vmem:[%s1 + $0x630] sm:$0xff]
  %v304 = vld [vmem:[%s1 + $0x638] sm:$0xf]
  %v305 = vld [vmem:[%s1 + $0x63c] sm:$0xff]
  %v306 = vld [vmem:[%s1 + $0x644] sm:$0xf]
  %v307 = vld [vmem:[%s1 + $0x648] sm:$0xff]
  %v308 = vld [vmem:[%s1 + $0x650] sm:$0xf]
  %v309 = vld [vmem:[%s1 + $0x654] sm:$0xff]
  %v310 = vld [vmem:[%s1 + $0x65c] sm:$0xf]
  %v311 = vld [vmem:[%s1 + $0x660] sm:$0xff]
  %v312 = vld [vmem:[%s1 + $0x668] sm:$0xf]
  %v313 = vld [vmem:[%s1 + $0x66c] sm:$0xff]
  %v314 = vld [vmem:[%s1 + $0x674] sm:$0xf]
  %v315 = vld [vmem:[%s1 + $0x678] sm:$0xff]
  %v316 = vld [vmem:[%s1 + $0x680] sm:$0xf]
  %v317 = vld [vmem:[%s1 + $0x684] sm:$0xff]
  %v318 = vld [vmem:[%s1 + $0x68c] sm:$0xf]
  %v319 = vld [vmem:[%s1 + $0x690] sm:$0xff]
  %v320 = vld [vmem:[%s1 + $0x698] sm:$0xf]
  %v321 = vld [vmem:[%s1 + $0x69c] sm:$0xff]
  %v322 = vld [vmem:[%s1 + $0x6a4] sm:$0xf]
  %v323 = vld [vmem:[%s1 + $0x6a8] sm:$0xff]
  %v324 = vld [vmem:[%s1 + $0x6b0] sm:$0xf]
  %v325 = vld [vmem:[%s1 + $0x6b4] sm:$0xff]
  %v326 = vld [vmem:[%s1 + $0x6bc] sm:$0xf]
  %v327 = vld [vmem:[%s1 + $0x6c0] sm:$0xff]
  %v328 = vld [vmem:[%s1 + $0x6c8] sm:$0xf]
  %v329 = vld [vmem:[%s1 + $0x6cc] sm:$0xff]
  %v330 = vld [vmem:[%s1 + $0x6d4] sm:$0xf]
  %v331 = vld [vmem:[%s1 + $0x6d8] sm:$0xff]
  %v332 = vld [vmem:[%s1 + $0x6e0] sm:$0xf]
  %v333 = vld [vmem:[%s1 + $0x6e4] sm:$0xff]
  %v334 = vld [vmem:[%s1 + $0x6ec] sm:$0xf]
  %v335 = vld [vmem:[%s1 + $0x6f0] sm:$0xff]
  %v336 = vld [vmem:[%s1 + $0x6f8] sm:$0xf]
  %v337 = vld [vmem:[%s1 + $0x6fc] sm:$0xff]
  %v338 = vld [vmem:[%s1 + $0x704] sm:$0xf]
  %v339 = vld [vmem:[%s1 + $0x708] sm:$0xff]
  %v340 = vld [vmem:[%s1 + $0x710] sm:$0xf]
  %v341 = vld [vmem:[%s1 + $0x714] sm:$0xff]
  %v342 = vld [vmem:[%s1 + $0x71c] sm:$0xf]
  %v343 = vld [vmem:[%s1 + $0x720] sm:$0xff]
  %v344 = vld [vmem:[%s1 + $0x728] sm:$0xf]
  %v345 = vld [vmem:[%s1 + $0x72c] sm:$0xff]
  %v346 = vld [vmem:[%s1 + $0x734] sm:$0xf]
  %v347 = vld [vmem:[%s1 + $0x738] sm:$0xff]
  %v348 = vld [vmem:[%s1 + $0x740] sm:$0xf]
  %v349 = vld [vmem:[%s1 + $0x744] sm:$0xff]
  %v350 = vld [vmem:[%s1 + $0x74c] sm:$0xf]
  %v351 = vld [vmem:[%s1 + $0x750] sm:$0xff]
  %v352 = vld [vmem:[%s1 + $0x758] sm:$0xf]
  %v353 = vld [vmem:[%s1 + $0x75c] sm:$0xff]
  %v354 = vld [vmem:[%s1 + $0x764] sm:$0xf]
  %v355 = vld [vmem:[%s1 + $0x768] sm:$0xff]
  %v356 = vld [vmem:[%s1 + $0x770] sm:$0xf]
  %v357 = vld [vmem:[%s1 + $0x774] sm:$0xff]
  %v358 = vld [vmem:[%s1 + $0x77c] sm:$0xf]
  %v359 = vld [vmem:[%s1 + $0x780] sm:$0xff]
  %v360 = vld [vmem:[%s1 + $0x788] sm:$0xf]
  %v361 = vld [vmem:[%s1 + $0x78c] sm:$0xff]
  %v362 = vld [vmem:[%s1 + $0x794] sm:$0xf]
  %v363 = vld [vmem:[%s1 + $0x798] sm:$0xff]
  %v364 = vld [vmem:[%s1 + $0x7a0] sm:$0xf]
  %v365 = vld [vmem:[%s1 + $0x7a4] sm:$0xff]
  %v366 = vld [vmem:[%s1 + $0x7ac] sm:$0xf]
  %v367 = vld [vmem:[%s1 + $0x7b0] sm:$0xff]
  %v368 = vld [vmem:[%s1 + $0x7b8] sm:$0xf]
  %v369 = vld [vmem:[%s1 + $0x7bc] sm:$0xff]
  %v370 = vld [vmem:[%s1 + $0x7c4] sm:$0xf]
  %v371 = vld [vmem:[%s1 + $0x7c8] sm:$0xff]
  %v372 = vld [vmem:[%s1 + $0x7d0] sm:$0xf]
  %v373 = vld [vmem:[%s1 + $0x7d4] sm:$0xff]
  %v374 = vld [vmem:[%s1 + $0x7dc] sm:$0xf]
  %v375 = vld [vmem:[%s1 + $0x7e0] sm:$0xff]
  %v376 = vld [vmem:[%s1 + $0x7e8] sm:$0xf]
  %v377 = vld [vmem:[%s1 + $0x7ec] sm:$0xff]
  %v378 = vld [vmem:[%s1 + $0x7f4] sm:$0xf]
  %v379 = vld [vmem:[%s1 + $0x7f8] sm:$0xff]
  %v380 = vld [vmem:[%s1 + $0x800] sm:$0xf]
  %v381 = vld [vmem:[%s1 + $0x804] sm:$0xff]
  %v382 = vld [vmem:[%s1 + $0x80c] sm:$0xf]
  %v383 = vld [vmem:[%s1 + $0x810] sm:$0xff]
  %v384 = vld [vmem:[%s1 + $0x818] sm:$0xf]
  %v385 = vld [vmem:[%s1 + $0x81c] sm:$0xff]
  %v386 = vld [vmem:[%s1 + $0x824] sm:$0xf]
  %v387 = vld [vmem:[%s1 + $0x828] sm:$0xff]
  %v388 = vld [vmem:[%s1 + $0x830] sm:$0xf]
  %v389 = vld [vmem:[%s1 + $0x834] sm:$0xff]
  %v390 = vld [vmem:[%s1 + $0x83c] sm:$0xf]
  %v391 = vld [vmem:[%s1 + $0x840] sm:$0xff]
  %v392 = vld [vmem:[%s1 + $0x848] sm:$0xf]
  %v393 = vld [vmem:[%s1 + $0x84c] sm:$0xff]
  %v394 = vld [vmem:[%s1 + $0x854] sm:$0xf]
  %v395 = vld [vmem:[%s1 + $0x858] sm:$0xff]
  %v396 = vld [vmem:[%s1 + $0x860] sm:$0xf]
  %v397 = vld [vmem:[%s1 + $0x864] sm:$0xff]
  %v398 = vld [vmem:[%s1 + $0x86c] sm:$0xf]
  %v399 = vld [vmem:[%s1 + $0x870] sm:$0xff]
  %v400 = vld [vmem:[%s1 + $0x878] sm:$0xf]
  %v401 = vld [vmem:[%s1 + $0x87c] sm:$0xff]
  %v402 = vld [vmem:[%s1 + $0x884] sm:$0xf]
  %v403 = vld [vmem:[%s1 + $0x888] sm:$0xff]
  %v404 = vld [vmem:[%s1 + $0x890] sm:$0xf]
  %v405 = vld [vmem:[%s1 + $0x894] sm:$0xff]
  %v406 = vld [vmem:[%s1 + $0x89c] sm:$0xf]
  %v407 = vld [vmem:[%s1 + $0x8a0] sm:$0xff]
  %v408 = vld [vmem:[%s1 + $0x8a8] sm:$0xf]
  %v409 = vld [vmem:[%s1 + $0x8ac] sm:$0xff]
  %v410 = vld [vmem:[%s1 + $0x8b4] sm:$0xf]
  %v411 = vld [vmem:[%s1 + $0x8b8] sm:$0xff]
  %v412 = vld [vmem:[%s1 + $0x8c0] sm:$0xf]
  %v413 = vld [vmem:[%s1 + $0x8c4] sm:$0xff]
  %v414 = vld [vmem:[%s1 + $0x8cc] sm:$0xf]
  %v415 = vld [vmem:[%s1 + $0x8d0] sm:$0xff]
  %v416 = vld [vmem:[%s1 + $0x8d8] sm:$0xf]
  %v417 = vld [vmem:[%s1 + $0x8dc] sm:$0xff]
  %v418 = vld [vmem:[%s1 + $0x8e4] sm:$0xf]
  %v419 = vld [vmem:[%s1 + $0x8e8] sm:$0xff]
  %v420 = vld [vmem:[%s1 + $0x8f0] sm:$0xf]
  %v421 = vld [vmem:[%s1 + $0x8f4] sm:$0xff]
  %v422 = vld [vmem:[%s1 + $0x8fc] sm:$0xf]
  %v423 = vld [vmem:[%s1 + $0x900] sm:$0xff]
  %v424 = vld [vmem:[%s1 + $0x908] sm:$0xf]
  %v425 = vld [vmem:[%s1 + $0x90c] sm:$0xff]
  %v426 = vld [vmem:[%s1 + $0x914] sm:$0xf]
  %v427 = vld [vmem:[%s1 + $0x918] sm:$0xff]
  %v428 = vld [vmem:[%s1 + $0x920] sm:$0xf]
  %v429 = vld [vmem:[%s1 + $0x924] sm:$0xff]
  %v430 = vld [vmem:[%s1 + $0x92c] sm:$0xf]
  %v431 = vld [vmem:[%s1 + $0x930] sm:$0xff]
  %v432 = vld [vmem:[%s1 + $0x938] sm:$0xf]
  %v433 = vld [vmem:[%s1 + $0x93c] sm:$0xff]
  %v434 = vld [vmem:[%s1 + $0x944] sm:$0xf]
  %v435 = vld [vmem:[%s1 + $0x948] sm:$0xff]
  %v436 = vld [vmem:[%s1 + $0x950] sm:$0xf]
  %v437 = vld [vmem:[%s1 + $0x954] sm:$0xff]
  %v438 = vld [vmem:[%s1 + $0x95c] sm:$0xf]
  %v439 = vld [vmem:[%s1 + $0x960] sm:$0xff]
  %v440 = vld [vmem:[%s1 + $0x968] sm:$0xf]
  %v441 = vld [vmem:[%s1 + $0x96c] sm:$0xff]
  %v442 = vld [vmem:[%s1 + $0x974] sm:$0xf]
  %v443 = vld [vmem:[%s1 + $0x978] sm:$0xff]
  %v444 = vld [vmem:[%s1 + $0x980] sm:$0xf]
  %v445 = vld [vmem:[%s1 + $0x984] sm:$0xff]
  %v446 = vld [vmem:[%s1 + $0x98c] sm:$0xf]
  %v447 = vld [vmem:[%s1 + $0x990] sm:$0xff]
  %v448 = vld [vmem:[%s1 + $0x998] sm:$0xf]
  %v449 = vld [vmem:[%s1 + $0x99c] sm:$0xff]
  %v450 = vld [vmem:[%s1 + $0x9a4] sm:$0xf]
  %v451 = vld [vmem:[%s1 + $0x9a8] sm:$0xff]
  %v452 = vld [vmem:[%s1 + $0x9b0] sm:$0xf]
  %v453 = vld [vmem:[%s1 + $0x9b4] sm:$0xff]
  %v454 = vld [vmem:[%s1 + $0x9bc] sm:$0xf]
  %v455 = vld [vmem:[%s1 + $0x9c0] sm:$0xff]
  %v456 = vld [vmem:[%s1 + $0x9c8] sm:$0xf]
  %v457 = vld [vmem:[%s1 + $0x9cc] sm:$0xff]
  %v458 = vld [vmem:[%s1 + $0x9d4] sm:$0xf]
  %v459 = vld [vmem:[%s1 + $0x9d8] sm:$0xff]
  %v460 = vld [vmem:[%s1 + $0x9e0] sm:$0xf]
  %v461 = vld [vmem:[%s1 + $0x9e4] sm:$0xff]
  %v462 = vld [vmem:[%s1 + $0x9ec] sm:$0xf]
  %v463 = vld [vmem:[%s1 + $0x9f0] sm:$0xff]
  %v464 = vld [vmem:[%s1 + $0x9f8] sm:$0xf]
  %v465 = vld [vmem:[%s1 + $0x9fc] sm:$0xff]
  %v466 = vld [vmem:[%s1 + $0xa04] sm:$0xf]
  %v467 = vld [vmem:[%s1 + $0xa08] sm:$0xff]
  %v468 = vld [vmem:[%s1 + $0xa10] sm:$0xf]
  %v469 = vld [vmem:[%s1 + $0xa14] sm:$0xff]
  %v470 = vld [vmem:[%s1 + $0xa1c] sm:$0xf]
  %v471 = vld [vmem:[%s1 + $0xa20] sm:$0xff]
  %v472 = vld [vmem:[%s1 + $0xa28] sm:$0xf]
  %v473 = vld [vmem:[%s1 + $0xa2c] sm:$0xff]
  %v474 = vld [vmem:[%s1 + $0xa34] sm:$0xf]
  %v475 = vld [vmem:[%s1 + $0xa38] sm:$0xff]
  %v476 = vld [vmem:[%s1 + $0xa40] sm:$0xf]
  %v477 = vld [vmem:[%s1 + $0xa44] sm:$0xff]
  %v478 = vld [vmem:[%s1 + $0xa4c] sm:$0xf]
  %v479 = vld [vmem:[%s1 + $0xa50] sm:$0xff]
  %v480 = vld [vmem:[%s1 + $0xa58] sm:$0xf]
  %v481 = vld [vmem:[%s1 + $0xa5c] sm:$0xff]
  %v482 = vld [vmem:[%s1 + $0xa64] sm:$0xf]
  %v483 = vld [vmem:[%s1 + $0xa68] sm:$0xff]
  %v484 = vld [vmem:[%s1 + $0xa70] sm:$0xf]
  %v485 = vld [vmem:[%s1 + $0xa74] sm:$0xff]
  %v486 = vld [vmem:[%s1 + $0xa7c] sm:$0xf]
  %v487 = vld [vmem:[%s1 + $0xa80] sm:$0xff]
  %v488 = vld [vmem:[%s1 + $0xa88] sm:$0xf]
  %v489 = vld [vmem:[%s1 + $0xa8c] sm:$0xff]
  %v490 = vld [vmem:[%s1 + $0xa94] sm:$0xf]
  %v491 = vld [vmem:[%s1 + $0xa98] sm:$0xff]
  %v492 = vld [vmem:[%s1 + $0xaa0] sm:$0xf]
  %v493 = vld [vmem:[%s1 + $0xaa4] sm:$0xff]
  %v494 = vld [vmem:[%s1 + $0xaac] sm:$0xf]
  %v495 = vld [vmem:[%s1 + $0xab0] sm:$0xff]
  %v496 = vld [vmem:[%s1 + $0xab8] sm:$0xf]
  %v497 = vld [vmem:[%s1 + $0xabc] sm:$0xff]
  %v498 = vld [vmem:[%s1 + $0xac4] sm:$0xf]
  %v499 = vld [vmem:[%s1 + $0xac8] sm:$0xff]
  %v500 = vld [vmem:[%s1 + $0xad0] sm:$0xf]
  %v501 = vld [vmem:[%s1 + $0xad4] sm:$0xff]
  %v502 = vld [vmem:[%s1 + $0xadc] sm:$0xf]
  %v503 = vld [vmem:[%s1 + $0xae0] sm:$0xff]
  %v504 = vld [vmem:[%s1 + $0xae8] sm:$0xf]
  %v505 = vld [vmem:[%s1 + $0xaec] sm:$0xff]
  %v506 = vld [vmem:[%s1 + $0xaf4] sm:$0xf]
  %v507 = vld [vmem:[%s1 + $0xaf8] sm:$0xff]
  %v508 = vld [vmem:[%s1 + $0xb00] sm:$0xf]
  %v509 = vld [vmem:[%s1 + $0xb04] sm:$0xff]
  %v510 = vld [vmem:[%s1 + $0xb0c] sm:$0xf]
  %v511 = vld [vmem:[%s1 + $0xb10] sm:$0xff]
  %v512 = vld [vmem:[%s1 + $0xb18] sm:$0xf]
  %v513 = vld [vmem:[%s1 + $0xb1c] sm:$0xff]
  %v514 = vld [vmem:[%s1 + $0xb24] sm:$0xf]
  %v515 = vld [vmem:[%s1 + $0xb28] sm:$0xff]
  %v516 = vld [vmem:[%s1 + $0xb30] sm:$0xf]
  %v517 = vld [vmem:[%s1 + $0xb34] sm:$0xff]
  %v518 = vld [vmem:[%s1 + $0xb3c] sm:$0xf]
  %v519 = vld [vmem:[%s1 + $0xb40] sm:$0xff]
  %v520 = vld [vmem:[%s1 + $0xb48] sm:$0xf]
  %v521 = vld [vmem:[%s1 + $0xb4c] sm:$0xff]
  %v522 = vld [vmem:[%s1 + $0xb54] sm:$0xf]
  %v523 = vld [vmem:[%s1 + $0xb58] sm:$0xff]
  %v524 = vld [vmem:[%s1 + $0xb60] sm:$0xf]
  %v525 = vld [vmem:[%s1 + $0xb64] sm:$0xff]
  %v526 = vld [vmem:[%s1 + $0xb6c] sm:$0xf]
  %v527 = vld [vmem:[%s1 + $0xb70] sm:$0xff]
  %v528 = vld [vmem:[%s1 + $0xb78] sm:$0xf]
  %v529 = vld [vmem:[%s1 + $0xb7c] sm:$0xff]
  %v530 = vld [vmem:[%s1 + $0xb84] sm:$0xf]
  %v531 = vld [vmem:[%s1 + $0xb88] sm:$0xff]
  %v532 = vld [vmem:[%s1 + $0xb90] sm:$0xf]
  %v533 = vld [vmem:[%s1 + $0xb94] sm:$0xff]
  %v534 = vld [vmem:[%s1 + $0xb9c] sm:$0xf]
  %v535 = vld [vmem:[%s1 + $0xba0] sm:$0xff]
  %v536 = vld [vmem:[%s1 + $0xba8] sm:$0xf]
  %v537 = vld [vmem:[%s1 + $0xbac] sm:$0xff]
  %v538 = vld [vmem:[%s1 + $0xbb4] sm:$0xf]
  %v539 = vld [vmem:[%s1 + $0xbb8] sm:$0xff]
  %v540 = vld [vmem:[%s1 + $0xbc0] sm:$0xf]
  %v541 = vld [vmem:[%s1 + $0xbc4] sm:$0xff]
  %v542 = vld [vmem:[%s1 + $0xbcc] sm:$0xf]
  %v543 = vld [vmem:[%s1 + $0xbd0] sm:$0xff]
  %v544 = vld [vmem:[%s1 + $0xbd8] sm:$0xf]
  %v545 = vld [vmem:[%s1 + $0xbdc] sm:$0xff]
  %v546 = vld [vmem:[%s1 + $0xbe4] sm:$0xf]
  %v547 = vld [vmem:[%s1 + $0xbe8] sm:$0xff]
  %v548 = vld [vmem:[%s1 + $0xbf0] sm:$0xf]
  %v549 = vld [vmem:[%s1 + $0xbf4] sm:$0xff]
  %v550 = vld [vmem:[%s1 + $0xbfc] sm:$0xf]
  %v551 = vld [vmem:[%s1 + $0xc00] sm:$0xff]
  %v552 = vld [vmem:[%s1 + $0xc08] sm:$0xf]
  %v553 = vld [vmem:[%s1 + $0xc0c] sm:$0xff]
  %v554 = vld [vmem:[%s1 + $0xc14] sm:$0xf]
  %v555 = vld [vmem:[%s1 + $0xc18] sm:$0xff]
  %v556 = vld [vmem:[%s1 + $0xc20] sm:$0xf]
  %v557 = vld [vmem:[%s1 + $0xc24] sm:$0xff]
  %v558 = vld [vmem:[%s1 + $0xc2c] sm:$0xf]
  %v559 = vld [vmem:[%s1 + $0xc30] sm:$0xff]
  %v560 = vld [vmem:[%s1 + $0xc38] sm:$0xf]
  %v561 = vld [vmem:[%s1 + $0xc3c] sm:$0xff]
  %v562 = vld [vmem:[%s1 + $0xc44] sm:$0xf]
  %v563 = vld [vmem:[%s1 + $0xc48] sm:$0xff]
  %v564 = vld [vmem:[%s1 + $0xc50] sm:$0xf]
  %v565 = vld [vmem:[%s1 + $0xc54] sm:$0xff]
  %v566 = vld [vmem:[%s1 + $0xc5c] sm:$0xf]
  %v567 = vld [vmem:[%s1 + $0xc60] sm:$0xff]
  %v568 = vld [vmem:[%s1 + $0xc68] sm:$0xf]
  %v569 = vld [vmem:[%s1 + $0xc6c] sm:$0xff]
  %v570 = vld [vmem:[%s1 + $0xc74] sm:$0xf]
  %v571 = vld [vmem:[%s1 + $0xc78] sm:$0xff]
  %v572 = vld [vmem:[%s1 + $0xc80] sm:$0xf]
  %v573 = vld [vmem:[%s1 + $0xc84] sm:$0xff]
  %v574 = vld [vmem:[%s1 + $0xc8c] sm:$0xf]
  %v575 = vld [vmem:[%s1 + $0xc90] sm:$0xff]
  %v576 = vld [vmem:[%s1 + $0xc98] sm:$0xf]
  %v577 = vld [vmem:[%s1 + $0xc9c] sm:$0xff]
  %v578 = vld [vmem:[%s1 + $0xca4] sm:$0xf]
  %v579 = vld [vmem:[%s1 + $0xca8] sm:$0xff]
  %v580 = vld [vmem:[%s1 + $0xcb0] sm:$0xf]
  %v581 = vld [vmem:[%s1 + $0xcb4] sm:$0xff]
  %v582 = vld [vmem:[%s1 + $0xcbc] sm:$0xf]
  %v583 = vld [vmem:[%s1 + $0xcc0] sm:$0xff]
  %v584 = vld [vmem:[%s1 + $0xcc8] sm:$0xf]
  %v585 = vld [vmem:[%s1 + $0xccc] sm:$0xff]
  %v586 = vld [vmem:[%s1 + $0xcd4] sm:$0xf]
  %v587 = vld [vmem:[%s1 + $0xcd8] sm:$0xff]
  %v588 = vld [vmem:[%s1 + $0xce0] sm:$0xf]
  %v589 = vld [vmem:[%s1 + $0xce4] sm:$0xff]
  %v590 = vld [vmem:[%s1 + $0xcec] sm:$0xf]
  %v591 = vld [vmem:[%s1 + $0xcf0] sm:$0xff]
  %v592 = vld [vmem:[%s1 + $0xcf8] sm:$0xf]
  %v593 = vld [vmem:[%s1 + $0xcfc] sm:$0xff]
  %v594 = vld [vmem:[%s1 + $0xd04] sm:$0xf]
  %v595 = vld [vmem:[%s1 + $0xd08] sm:$0xff]
  %v596 = vld [vmem:[%s1 + $0xd10] sm:$0xf]
  %v597 = vld [vmem:[%s1 + $0xd14] sm:$0xff]
  %v598 = vld [vmem:[%s1 + $0xd1c] sm:$0xf]
  %v599 = vld [vmem:[%s1 + $0xd20] sm:$0xff]
  %v600 = vld [vmem:[%s1 + $0xd28] sm:$0xf]
  %v601 = vld [vmem:[%s1 + $0xd2c] sm:$0xff]
  %v602 = vld [vmem:[%s1 + $0xd34] sm:$0xf]
  %v603 = vld [vmem:[%s1 + $0xd38] sm:$0xff]
  %v604 = vld [vmem:[%s1 + $0xd40] sm:$0xf]
  %v605 = vld [vmem:[%s1 + $0xd44] sm:$0xff]
  %v606 = vld [vmem:[%s1 + $0xd4c] sm:$0xf]
  %v607 = vld [vmem:[%s1 + $0xd50] sm:$0xff]
  %v608 = vld [vmem:[%s1 + $0xd58] sm:$0xf]
  %v609 = vld [vmem:[%s1 + $0xd5c] sm:$0xff]
  %v610 = vld [vmem:[%s1 + $0xd64] sm:$0xf]
  %v611 = vld [vmem:[%s1 + $0xd68] sm:$0xff]
  %v612 = vld [vmem:[%s1 + $0xd70] sm:$0xf]
  %v613 = vld [vmem:[%s1 + $0xd74] sm:$0xff]
  %v614 = vld [vmem:[%s1 + $0xd7c] sm:$0xf]
  %v615 = vld [vmem:[%s1 + $0xd80] sm:$0xff]
  %v616 = vld [vmem:[%s1 + $0xd88] sm:$0xf]
  %v617 = vld [vmem:[%s1 + $0xd8c] sm:$0xff]
  %v618 = vld [vmem:[%s1 + $0xd94] sm:$0xf]
  %v619 = vld [vmem:[%s1 + $0xd98] sm:$0xff]
  %v620 = vld [vmem:[%s1 + $0xda0] sm:$0xf]
  %v621 = vld [vmem:[%s1 + $0xda4] sm:$0xff]
  %v622 = vld [vmem:[%s1 + $0xdac] sm:$0xf]
  %v623 = vld [vmem:[%s1 + $0xdb0] sm:$0xff]
  %v624 = vld [vmem:[%s1 + $0xdb8] sm:$0xf]
  %v625 = vld [vmem:[%s1 + $0xdbc] sm:$0xff]
  %v626 = vld [vmem:[%s1 + $0xdc4] sm:$0xf]
  %v627 = vld [vmem:[%s1 + $0xdc8] sm:$0xff]
  %v628 = vld [vmem:[%s1 + $0xdd0] sm:$0xf]
  %v629 = vld [vmem:[%s1 + $0xdd4] sm:$0xff]
  %v630 = vld [vmem:[%s1 + $0xddc] sm:$0xf]
  %v631 = vld [vmem:[%s1 + $0xde0] sm:$0xff]
  %v632 = vld [vmem:[%s1 + $0xde8] sm:$0xf]
  %v633 = vld [vmem:[%s1 + $0xdec] sm:$0xff]
  %v634 = vld [vmem:[%s1 + $0xdf4] sm:$0xf]
  %v635 = vld [vmem:[%s1 + $0xdf8] sm:$0xff]
  %v636 = vld [vmem:[%s1 + $0xe00] sm:$0xf]
  %v637 = vld [vmem:[%s1 + $0xe04] sm:$0xff]
  %v638 = vld [vmem:[%s1 + $0xe0c] sm:$0xf]
  %v639 = vld [vmem:[%s1 + $0xe10] sm:$0xff]
  %v640 = vld [vmem:[%s1 + $0xe18] sm:$0xf]
  %v641 = vld [vmem:[%s1 + $0xe1c] sm:$0xff]
  %v642 = vld [vmem:[%s1 + $0xe24] sm:$0xf]
  %v643 = vld [vmem:[%s1 + $0xe28] sm:$0xff]
  %v644 = vld [vmem:[%s1 + $0xe30] sm:$0xf]
  %v645 = vld [vmem:[%s1 + $0xe34] sm:$0xff]
  %v646 = vld [vmem:[%s1 + $0xe3c] sm:$0xf]
  %v647 = vld [vmem:[%s1 + $0xe40] sm:$0xff]
  %v648 = vld [vmem:[%s1 + $0xe48] sm:$0xf]
  %v649 = vld [vmem:[%s1 + $0xe4c] sm:$0xff]
  %v650 = vld [vmem:[%s1 + $0xe54] sm:$0xf]
  %v651 = vld [vmem:[%s1 + $0xe58] sm:$0xff]
  %v652 = vld [vmem:[%s1 + $0xe60] sm:$0xf]
  %v653 = vld [vmem:[%s1 + $0xe64] sm:$0xff]
  %v654 = vld [vmem:[%s1 + $0xe6c] sm:$0xf]
  %v655 = vld [vmem:[%s1 + $0xe70] sm:$0xff]
  %v656 = vld [vmem:[%s1 + $0xe78] sm:$0xf]
  %v657 = vld [vmem:[%s1 + $0xe7c] sm:$0xff]
  %v658 = vld [vmem:[%s1 + $0xe84] sm:$0xf]
  %v659 = vld [vmem:[%s1 + $0xe88] sm:$0xff]
  %v660 = vld [vmem:[%s1 + $0xe90] sm:$0xf]
  %v661 = vld [vmem:[%s1 + $0xe94] sm:$0xff]
  %v662 = vld [vmem:[%s1 + $0xe9c] sm:$0xf]
  %v663 = vld [vmem:[%s1 + $0xea0] sm:$0xff]
  %v664 = vld [vmem:[%s1 + $0xea8] sm:$0xf]
  %v665 = vld [vmem:[%s1 + $0xeac] sm:$0xff]
  %v666 = vld [vmem:[%s1 + $0xeb4] sm:$0xf]
  %v667 = vld [vmem:[%s1 + $0xeb8] sm:$0xff]
  %v668 = vld [vmem:[%s1 + $0xec0] sm:$0xf]
  %v669 = vld [vmem:[%s1 + $0xec4] sm:$0xff]
  %v670 = vld [vmem:[%s1 + $0xecc] sm:$0xf]
  %v671 = vld [vmem:[%s1 + $0xed0] sm:$0xff]
  %v672 = vld [vmem:[%s1 + $0xed8] sm:$0xf]
  %v673 = vld [vmem:[%s1 + $0xedc] sm:$0xff]
  %v674 = vld [vmem:[%s1 + $0xee4] sm:$0xf]
  %v675 = vld [vmem:[%s1 + $0xee8] sm:$0xff]
  %v676 = vld [vmem:[%s1 + $0xef0] sm:$0xf]
  %v677 = vld [vmem:[%s1 + $0xef4] sm:$0xff]
  %v678 = vld [vmem:[%s1 + $0xefc] sm:$0xf]
  %v679 = vld [vmem:[%s1 + $0xf00] sm:$0xff]
  %v680 = vld [vmem:[%s1 + $0xf08] sm:$0xf]
  %v681 = vld [vmem:[%s1 + $0xf0c] sm:$0xff]
  %v682 = vld [vmem:[%s1 + $0xf14] sm:$0xf]
  %v683 = vld [vmem:[%s1 + $0xf18] sm:$0xff]
  %v684 = vld [vmem:[%s1 + $0xf20] sm:$0xf]
  %v685 = vld [vmem:[%s1 + $0xf24] sm:$0xff]
  %v686 = vld [vmem:[%s1 + $0xf2c] sm:$0xf]
  %v687 = vld [vmem:[%s1 + $0xf30] sm:$0xff]
  %v688 = vld [vmem:[%s1 + $0xf38] sm:$0xf]
  %v689 = vld [vmem:[%s1 + $0xf3c] sm:$0xff]
  %v690 = vld [vmem:[%s1 + $0xf44] sm:$0xf]
  %v691 = vld [vmem:[%s1 + $0xf48] sm:$0xff]
  %v692 = vld [vmem:[%s1 + $0xf50] sm:$0xf]
  %v693 = vld [vmem:[%s1 + $0xf54] sm:$0xff]
  %v694 = vld [vmem:[%s1 + $0xf5c] sm:$0xf]
  %v695 = vld [vmem:[%s1 + $0xf60] sm:$0xff]
  %v696 = vld [vmem:[%s1 + $0xf68] sm:$0xf]
  %v697 = vld [vmem:[%s1 + $0xf6c] sm:$0xff]
  %v698 = vld [vmem:[%s1 + $0xf74] sm:$0xf]
  %v699 = vld [vmem:[%s1 + $0xf78] sm:$0xff]
  %v700 = vld [vmem:[%s1 + $0xf80] sm:$0xf]
  %v701 = vld [vmem:[%s1 + $0xf84] sm:$0xff]
  %v702 = vld [vmem:[%s1 + $0xf8c] sm:$0xf]
  %v703 = vld [vmem:[%s1 + $0xf90] sm:$0xff]
  %v704 = vld [vmem:[%s1 + $0xf98] sm:$0xf]
  %v705 = vld [vmem:[%s1 + $0xf9c] sm:$0xff]
  %v706 = vld [vmem:[%s1 + $0xfa4] sm:$0xf]
  %v707 = vld [vmem:[%s1 + $0xfa8] sm:$0xff]
  %v708 = vld [vmem:[%s1 + $0xfb0] sm:$0xf]
  %v709 = vld [vmem:[%s1 + $0xfb4] sm:$0xff]
  %v710 = vld [vmem:[%s1 + $0xfbc] sm:$0xf]
  %v711 = vld [vmem:[%s1 + $0xfc0] sm:$0xff]
  %v712 = vld [vmem:[%s1 + $0xfc8] sm:$0xf]
  %v713 = vld [vmem:[%s1 + $0xfcc] sm:$0xff]
  %v714 = vld [vmem:[%s1 + $0xfd4] sm:$0xf]
  %v715 = vld [vmem:[%s1 + $0xfd8] sm:$0xff]
  %v716 = vld [vmem:[%s1 + $0xfe0] sm:$0xf]
  %v717 = vld [vmem:[%s1 + $0xfe4] sm:$0xff]
  %v718 = vld [vmem:[%s1 + $0xfec] sm:$0xf]
  %v719 = vld [vmem:[%s1 + $0xff0] sm:$0xff]
  %v720 = vld [vmem:[%s1 + $0xff8] sm:$0xf]
  %v721 = vld [vmem:[%s1 + $0xffc] sm:$0xff]
  %v722 = vld [vmem:[%s1 + $0x1004] sm:$0xf]
  %v723 = vld [vmem:[%s1 + $0x1008] sm:$0xff]
  %v724 = vld [vmem:[%s1 + $0x1010] sm:$0xf]
  %v725 = vld [vmem:[%s1 + $0x1014] sm:$0xff]
  %v726 = vld [vmem:[%s1 + $0x101c] sm:$0xf]
  %v727 = vld [vmem:[%s1 + $0x1020] sm:$0xff]
  %v728 = vld [vmem:[%s1 + $0x1028] sm:$0xf]
  %v729 = vld [vmem:[%s1 + $0x102c] sm:$0xff]
  %v730 = vld [vmem:[%s1 + $0x1034] sm:$0xf]
  %v731 = vld [vmem:[%s1 + $0x1038] sm:$0xff]
  %v732 = vld [vmem:[%s1 + $0x1040] sm:$0xf]
  %v733 = vld [vmem:[%s1 + $0x1044] sm:$0xff]
  %v734 = vld [vmem:[%s1 + $0x104c] sm:$0xf]
  %v735 = vld [vmem:[%s1 + $0x1050] sm:$0xff]
  %v736 = vld [vmem:[%s1 + $0x1058] sm:$0xf]
  %v737 = vld [vmem:[%s1 + $0x105c] sm:$0xff]
  %v738 = vld [vmem:[%s1 + $0x1064] sm:$0xf]
  %v739 = vld [vmem:[%s1 + $0x1068] sm:$0xff]
  %v740 = vld [vmem:[%s1 + $0x1070] sm:$0xf]
  %v741 = vld [vmem:[%s1 + $0x1074] sm:$0xff]
  %v742 = vld [vmem:[%s1 + $0x107c] sm:$0xf]
  %v743 = vld [vmem:[%s1 + $0x1080] sm:$0xff]
  %v744 = vld [vmem:[%s1 + $0x1088] sm:$0xf]
  %v745 = vld [vmem:[%s1 + $0x108c] sm:$0xff]
  %v746 = vld [vmem:[%s1 + $0x1094] sm:$0xf]
  %v747 = vld [vmem:[%s1 + $0x1098] sm:$0xff]
  %v748 = vld [vmem:[%s1 + $0x10a0] sm:$0xf]
  %v749 = vld [vmem:[%s1 + $0x10a4] sm:$0xff]
  %v750 = vld [vmem:[%s1 + $0x10ac] sm:$0xf]
  %v751 = vld [vmem:[%s1 + $0x10b0] sm:$0xff]
  %v752 = vld [vmem:[%s1 + $0x10b8] sm:$0xf]
  %v753 = vld [vmem:[%s1 + $0x10bc] sm:$0xff]
  %v754 = vld [vmem:[%s1 + $0x10c4] sm:$0xf]
  %v755 = vld [vmem:[%s1 + $0x10c8] sm:$0xff]
  %v756 = vld [vmem:[%s1 + $0x10d0] sm:$0xf]
  %v757 = vld [vmem:[%s1 + $0x10d4] sm:$0xff]
  %v758 = vld [vmem:[%s1 + $0x10dc] sm:$0xf]
  %v759 = vld [vmem:[%s1 + $0x10e0] sm:$0xff]
  %v760 = vld [vmem:[%s1 + $0x10e8] sm:$0xf]
  %v761 = vld [vmem:[%s1 + $0x10ec] sm:$0xff]
  %v762 = vld [vmem:[%s1 + $0x10f4] sm:$0xf]
  %v763 = vld [vmem:[%s1 + $0x10f8] sm:$0xff]
  %v764 = vld [vmem:[%s1 + $0x1100] sm:$0xf]
  %v765 = vld [vmem:[%s1 + $0x1104] sm:$0xff]
  %v766 = vld [vmem:[%s1 + $0x110c] sm:$0xf]
  %v767 = vld [vmem:[%s1 + $0x1110] sm:$0xff]
  %v768 = vld [vmem:[%s1 + $0x1118] sm:$0xf]
  %v769 = vld [vmem:[%s1 + $0x111c] sm:$0xff]
  %v770 = vld [vmem:[%s1 + $0x1124] sm:$0xf]
  %v771 = vld [vmem:[%s1 + $0x1128] sm:$0xff]
  %v772 = vld [vmem:[%s1 + $0x1130] sm:$0xf]
  %v773 = vld [vmem:[%s1 + $0x1134] sm:$0xff]
  %v774 = vld [vmem:[%s1 + $0x113c] sm:$0xf]
  %v775 = vld [vmem:[%s1 + $0x1140] sm:$0xff]
  %v776 = vld [vmem:[%s1 + $0x1148] sm:$0xf]
  %v777 = vld [vmem:[%s1 + $0x114c] sm:$0xff]
  %v778 = vld [vmem:[%s1 + $0x1154] sm:$0xf]
  %v779 = vld [vmem:[%s1 + $0x1158] sm:$0xff]
  %v780 = vld [vmem:[%s1 + $0x1160] sm:$0xf]
  %v781 = vld [vmem:[%s1 + $0x1164] sm:$0xff]
  %v782 = vld [vmem:[%s1 + $0x116c] sm:$0xf]
  %v783 = vld [vmem:[%s1 + $0x1170] sm:$0xff]
  %v784 = vld [vmem:[%s1 + $0x1178] sm:$0xf]
  %v785 = vld [vmem:[%s1 + $0x117c] sm:$0xff]
  %v786 = vld [vmem:[%s1 + $0x1184] sm:$0xf]
  %v787 = vld [vmem:[%s1 + $0x1188] sm:$0xff]
  %v788 = vld [vmem:[%s1 + $0x1190] sm:$0xf]
  %v789 = vld [vmem:[%s1 + $0x1194] sm:$0xff]
  %v790 = vld [vmem:[%s1 + $0x119c] sm:$0xf]
  %v791 = vld [vmem:[%s1 + $0x11a0] sm:$0xff]
  %v792 = vld [vmem:[%s1 + $0x11a8] sm:$0xf]
  %v793 = vld [vmem:[%s1 + $0x11ac] sm:$0xff]
  %v794 = vld [vmem:[%s1 + $0x11b4] sm:$0xf]
  %v795 = vld [vmem:[%s1 + $0x11b8] sm:$0xff]
  %v796 = vld [vmem:[%s1 + $0x11c0] sm:$0xf]
  %v797 = vld [vmem:[%s1 + $0x11c4] sm:$0xff]
  %v798 = vld [vmem:[%s1 + $0x11cc] sm:$0xf]
  %v799 = vld [vmem:[%s1 + $0x11d0] sm:$0xff]
  %v800 = vld [vmem:[%s1 + $0x11d8] sm:$0xf]
  %v801 = vld [vmem:[%s1 + $0x11dc] sm:$0xff]
  %v802 = vld [vmem:[%s1 + $0x11e4] sm:$0xf]
  %v803 = vld [vmem:[%s1 + $0x11e8] sm:$0xff]
  %v804 = vld [vmem:[%s1 + $0x11f0] sm:$0xf]
  %v805 = vld [vmem:[%s1 + $0x11f4] sm:$0xff]
  %v806 = vld [vmem:[%s1 + $0x11fc] sm:$0xf]
  %v807 = vld [vmem:[%s1 + $0x1200] sm:$0xff]
  %v808 = vld [vmem:[%s1 + $0x1208] sm:$0xf]
  %v809 = vld [vmem:[%s1 + $0x120c] sm:$0xff]
  %v810 = vld [vmem:[%s1 + $0x1214] sm:$0xf]
  %v811 = vld [vmem:[%s1 + $0x1218] sm:$0xff]
  %v812 = vld [vmem:[%s1 + $0x1220] sm:$0xf]
  %v813 = vld [vmem:[%s1 + $0x1224] sm:$0xff]
  %v814 = vld [vmem:[%s1 + $0x122c] sm:$0xf]
  %v815 = vld [vmem:[%s1 + $0x1230] sm:$0xff]
  %v816 = vld [vmem:[%s1 + $0x1238] sm:$0xf]
  %v817 = vld [vmem:[%s1 + $0x123c] sm:$0xff]
  %v818 = vld [vmem:[%s1 + $0x1244] sm:$0xf]
  %v819 = vld [vmem:[%s1 + $0x1248] sm:$0xff]
  %v820 = vld [vmem:[%s1 + $0x1250] sm:$0xf]
  %v821 = vld [vmem:[%s1 + $0x1254] sm:$0xff]
  %v822 = vld [vmem:[%s1 + $0x125c] sm:$0xf]
  %v823 = vld [vmem:[%s1 + $0x1260] sm:$0xff]
  %v824 = vld [vmem:[%s1 + $0x1268] sm:$0xf]
  %v825 = vld [vmem:[%s1 + $0x126c] sm:$0xff]
  %v826 = vld [vmem:[%s1 + $0x1274] sm:$0xf]
  %v827 = vld [vmem:[%s1 + $0x1278] sm:$0xff]
  %v828 = vld [vmem:[%s1 + $0x1280] sm:$0xf]
  %v829 = vld [vmem:[%s1 + $0x1284] sm:$0xff]
  %v830 = vld [vmem:[%s1 + $0x128c] sm:$0xf]
  %v831 = vld [vmem:[%s1 + $0x1290] sm:$0xff]
  %v832 = vld [vmem:[%s1 + $0x1298] sm:$0xf]
  %v833 = vld [vmem:[%s1 + $0x129c] sm:$0xff]
  %v834 = vld [vmem:[%s1 + $0x12a4] sm:$0xf]
  %v835 = vld [vmem:[%s1 + $0x12a8] sm:$0xff]
  %v836 = vld [vmem:[%s1 + $0x12b0] sm:$0xf]
  %v837 = vld [vmem:[%s1 + $0x12b4] sm:$0xff]
  %v838 = vld [vmem:[%s1 + $0x12bc] sm:$0xf]
  %v839 = vld [vmem:[%s2] sm:$0x7]
  %v841 = vperm.slane %v839, 0
  %v842 = vperm.slane %v839, 1
  %v843 = vperm.slane %v839, 2
  %v860 = vunpack.c.l.b16 %v26
  %v861 = vunpack.c.h.b16 %v26
  %v862 = vunpack.c.l.b16 %v27
  %v863 = vunpack.c.h.b16 %v27
  %v864 = vunpack.c.l.b16 %v28
  %v865 = vunpack.c.h.b16 %v28
  %v866 = vunpack.c.l.b16 %v29
  %v867 = vunpack.c.h.b16 %v29
  %v868 = vunpack.c.l.b16 %v30
  %v869 = vunpack.c.h.b16 %v30
  %v870 = vunpack.c.l.b16 %v31
  %v871 = vunpack.c.h.b16 %v31
  %v872 = vunpack.c.l.b16 %v32
  %v873 = vunpack.c.h.b16 %v32
  %v874 = vunpack.c.l.b16 %v33
  %v875 = vunpack.c.h.b16 %v33
  %v876 = vunpack.c.l.b16 %v34
  %v877 = vunpack.c.h.b16 %v34
  %v878 = vunpack.c.l.b16 %v35
  %v879 = vunpack.c.h.b16 %v35
  %v880 = vunpack.c.l.b16 %v36
  %v881 = vunpack.c.h.b16 %v36
  %v882 = vunpack.c.l.b16 %v37
  %v883 = vunpack.c.h.b16 %v37
  %v884 = vunpack.c.l.b16 %v38
  %v885 = vpack.c.b16 %v860, %v860
  %v886 = vpack.c.b16 %v861, %v861
  %v887 = vpack.c.b16 %v862, %v862
  %v888 = vpack.c.b16 %v863, %v863
  %v889 = vpack.c.b16 %v864, %v864
  %v890 = vpack.c.b16 %v865, %v865
  %v891 = vpack.c.b16 %v866, %v866
  %v892 = vpack.c.b16 %v867, %v867
  %v893 = vpack.c.b16 %v868, %v868
  %v894 = vpack.c.b16 %v869, %v869
  %v895 = vpack.c.b16 %v870, %v870
  %v896 = vpack.c.b16 %v871, %v871
  %v897 = vpack.c.b16 %v872, %v872
  %v898 = vpack.c.b16 %v873, %v873
  %v899 = vpack.c.b16 %v874, %v874
  %v900 = vpack.c.b16 %v875, %v875
  %v901 = vpack.c.b16 %v876, %v876
  %v902 = vpack.c.b16 %v877, %v877
  %v903 = vpack.c.b16 %v878, %v878
  %v904 = vpack.c.b16 %v879, %v879
  %v905 = vpack.c.b16 %v880, %v880
  %v906 = vpack.c.b16 %v881, %v881
  %v907 = vpack.c.b16 %v882, %v882
  %v908 = vpack.c.b16 %v883, %v883
  %v909 = vpack.c.b16 %v884, %v884
  %v1735 = vunpack.c.l.b16 %v39
  %v1736 = vunpack.c.h.b16 %v39
  %v1737 = vunpack.c.l.b16 %v40
  %v1738 = vunpack.c.l.b16 %v41
  %v1739 = vunpack.c.h.b16 %v41
  %v1740 = vunpack.c.l.b16 %v42
  %v1741 = vunpack.c.l.b16 %v43
  %v1742 = vunpack.c.h.b16 %v43
  %v1743 = vunpack.c.l.b16 %v44
  %v1744 = vunpack.c.l.b16 %v45
  %v1745 = vunpack.c.h.b16 %v45
  %v1746 = vunpack.c.l.b16 %v46
  %v1747 = vunpack.c.l.b16 %v47
  %v1748 = vunpack.c.h.b16 %v47
  %v1749 = vunpack.c.l.b16 %v48
  %v1750 = vunpack.c.l.b16 %v49
  %v1751 = vunpack.c.h.b16 %v49
  %v1752 = vunpack.c.l.b16 %v50
  %v1753 = vunpack.c.l.b16 %v51
  %v1754 = vunpack.c.h.b16 %v51
  %v1755 = vunpack.c.l.b16 %v52
  %v1756 = vunpack.c.l.b16 %v53
  %v1757 = vunpack.c.h.b16 %v53
  %v1758 = vunpack.c.l.b16 %v54
  %v1759 = vunpack.c.l.b16 %v55
  %v1760 = vunpack.c.h.b16 %v55
  %v1761 = vunpack.c.l.b16 %v56
  %v1762 = vunpack.c.l.b16 %v57
  %v1763 = vunpack.c.h.b16 %v57
  %v1764 = vunpack.c.l.b16 %v58
  %v1765 = vunpack.c.l.b16 %v59
  %v1766 = vunpack.c.h.b16 %v59
  %v1767 = vunpack.c.l.b16 %v60
  %v1768 = vunpack.c.l.b16 %v61
  %v1769 = vunpack.c.h.b16 %v61
  %v1770 = vunpack.c.l.b16 %v62
  %v1771 = vunpack.c.l.b16 %v63
  %v1772 = vunpack.c.h.b16 %v63
  %v1773 = vunpack.c.l.b16 %v64
  %v1774 = vunpack.c.l.b16 %v65
  %v1775 = vunpack.c.h.b16 %v65
  %v1776 = vunpack.c.l.b16 %v66
  %v1777 = vunpack.c.l.b16 %v67
  %v1778 = vunpack.c.h.b16 %v67
  %v1779 = vunpack.c.l.b16 %v68
  %v1780 = vunpack.c.l.b16 %v69
  %v1781 = vunpack.c.h.b16 %v69
  %v1782 = vunpack.c.l.b16 %v70
  %v1783 = vunpack.c.l.b16 %v71
  %v1784 = vunpack.c.h.b16 %v71
  %v1785 = vunpack.c.l.b16 %v72
  %v1786 = vunpack.c.l.b16 %v73
  %v1787 = vunpack.c.h.b16 %v73
  %v1788 = vunpack.c.l.b16 %v74
  %v1789 = vunpack.c.l.b16 %v75
  %v1790 = vunpack.c.h.b16 %v75
  %v1791 = vunpack.c.l.b16 %v76
  %v1792 = vunpack.c.l.b16 %v77
  %v1793 = vunpack.c.h.b16 %v77
  %v1794 = vunpack.c.l.b16 %v78
  %v1795 = vunpack.c.l.b16 %v79
  %v1796 = vunpack.c.h.b16 %v79
  %v1797 = vunpack.c.l.b16 %v80
  %v1798 = vunpack.c.l.b16 %v81
  %v1799 = vunpack.c.h.b16 %v81
  %v1800 = vunpack.c.l.b16 %v82
  %v1801 = vunpack.c.l.b16 %v83
  %v1802 = vunpack.c.h.b16 %v83
  %v1803 = vunpack.c.l.b16 %v84
  %v1804 = vunpack.c.l.b16 %v85
  %v1805 = vunpack.c.h.b16 %v85
  %v1806 = vunpack.c.l.b16 %v86
  %v1807 = vunpack.c.l.b16 %v87
  %v1808 = vunpack.c.h.b16 %v87
  %v1809 = vunpack.c.l.b16 %v88
  %v1810 = vunpack.c.l.b16 %v89
  %v1811 = vunpack.c.h.b16 %v89
  %v1812 = vunpack.c.l.b16 %v90
  %v1813 = vunpack.c.l.b16 %v91
  %v1814 = vunpack.c.h.b16 %v91
  %v1815 = vunpack.c.l.b16 %v92
  %v1816 = vunpack.c.l.b16 %v93
  %v1817 = vunpack.c.h.b16 %v93
  %v1818 = vunpack.c.l.b16 %v94
  %v1819 = vunpack.c.l.b16 %v95
  %v1820 = vunpack.c.h.b16 %v95
  %v1821 = vunpack.c.l.b16 %v96
  %v1822 = vunpack.c.l.b16 %v97
  %v1823 = vunpack.c.h.b16 %v97
  %v1824 = vunpack.c.l.b16 %v98
  %v1825 = vunpack.c.l.b16 %v99
  %v1826 = vunpack.c.h.b16 %v99
  %v1827 = vunpack.c.l.b16 %v100
  %v1828 = vunpack.c.l.b16 %v101
  %v1829 = vunpack.c.h.b16 %v101
  %v1830 = vunpack.c.l.b16 %v102
  %v1831 = vunpack.c.l.b16 %v103
  %v1832 = vunpack.c.h.b16 %v103
  %v1833 = vunpack.c.l.b16 %v104
  %v1834 = vunpack.c.l.b16 %v105
  %v1835 = vunpack.c.h.b16 %v105
  %v1836 = vunpack.c.l.b16 %v106
  %v1837 = vunpack.c.l.b16 %v107
  %v1838 = vunpack.c.h.b16 %v107
  %v1839 = vunpack.c.l.b16 %v108
  %v1840 = vunpack.c.l.b16 %v109
  %v1841 = vunpack.c.h.b16 %v109
  %v1842 = vunpack.c.l.b16 %v110
  %v1843 = vunpack.c.l.b16 %v111
  %v1844 = vunpack.c.h.b16 %v111
  %v1845 = vunpack.c.l.b16 %v112
  %v1846 = vunpack.c.l.b16 %v113
  %v1847 = vunpack.c.h.b16 %v113
  %v1848 = vunpack.c.l.b16 %v114
  %v1849 = vunpack.c.l.b16 %v115
  %v1850 = vunpack.c.h.b16 %v115
  %v1851 = vunpack.c.l.b16 %v116
  %v1852 = vunpack.c.l.b16 %v117
  %v1853 = vunpack.c.h.b16 %v117
  %v1854 = vunpack.c.l.b16 %v118
  %v1855 = vunpack.c.l.b16 %v119
  %v1856 = vunpack.c.h.b16 %v119
  %v1857 = vunpack.c.l.b16 %v120
  %v1858 = vunpack.c.l.b16 %v121
  %v1859 = vunpack.c.h.b16 %v121
  %v1860 = vunpack.c.l.b16 %v122
  %v1861 = vunpack.c.l.b16 %v123
  %v1862 = vunpack.c.h.b16 %v123
  %v1863 = vunpack.c.l.b16 %v124
  %v1864 = vunpack.c.l.b16 %v125
  %v1865 = vunpack.c.h.b16 %v125
  %v1866 = vunpack.c.l.b16 %v126
  %v1867 = vunpack.c.l.b16 %v127
  %v1868 = vunpack.c.h.b16 %v127
  %v1869 = vunpack.c.l.b16 %v128
  %v1870 = vunpack.c.l.b16 %v129
  %v1871 = vunpack.c.h.b16 %v129
  %v1872 = vunpack.c.l.b16 %v130
  %v1873 = vunpack.c.l.b16 %v131
  %v1874 = vunpack.c.h.b16 %v131
  %v1875 = vunpack.c.l.b16 %v132
  %v1876 = vunpack.c.l.b16 %v133
  %v1877 = vunpack.c.h.b16 %v133
  %v1878 = vunpack.c.l.b16 %v134
  %v1879 = vunpack.c.l.b16 %v135
  %v1880 = vunpack.c.h.b16 %v135
  %v1881 = vunpack.c.l.b16 %v136
  %v1882 = vunpack.c.l.b16 %v137
  %v1883 = vunpack.c.h.b16 %v137
  %v1884 = vunpack.c.l.b16 %v138
  %v1885 = vunpack.c.l.b16 %v139
  %v1886 = vunpack.c.h.b16 %v139
  %v1887 = vunpack.c.l.b16 %v140
  %v1888 = vunpack.c.l.b16 %v141
  %v1889 = vunpack.c.h.b16 %v141
  %v1890 = vunpack.c.l.b16 %v142
  %v1891 = vunpack.c.l.b16 %v143
  %v1892 = vunpack.c.h.b16 %v143
  %v1893 = vunpack.c.l.b16 %v144
  %v1894 = vunpack.c.l.b16 %v145
  %v1895 = vunpack.c.h.b16 %v145
  %v1896 = vunpack.c.l.b16 %v146
  %v1897 = vunpack.c.l.b16 %v147
  %v1898 = vunpack.c.h.b16 %v147
  %v1899 = vunpack.c.l.b16 %v148
  %v1900 = vunpack.c.l.b16 %v149
  %v1901 = vunpack.c.h.b16 %v149
  %v1902 = vunpack.c.l.b16 %v150
  %v1903 = vunpack.c.l.b16 %v151
  %v1904 = vunpack.c.h.b16 %v151
  %v1905 = vunpack.c.l.b16 %v152
  %v1906 = vunpack.c.l.b16 %v153
  %v1907 = vunpack.c.h.b16 %v153
  %v1908 = vunpack.c.l.b16 %v154
  %v1909 = vunpack.c.l.b16 %v155
  %v1910 = vunpack.c.h.b16 %v155
  %v1911 = vunpack.c.l.b16 %v156
  %v1912 = vunpack.c.l.b16 %v157
  %v1913 = vunpack.c.h.b16 %v157
  %v1914 = vunpack.c.l.b16 %v158
  %v1915 = vunpack.c.l.b16 %v159
  %v1916 = vunpack.c.h.b16 %v159
  %v1917 = vunpack.c.l.b16 %v160
  %v1918 = vunpack.c.l.b16 %v161
  %v1919 = vunpack.c.h.b16 %v161
  %v1920 = vunpack.c.l.b16 %v162
  %v1921 = vunpack.c.l.b16 %v163
  %v1922 = vunpack.c.h.b16 %v163
  %v1923 = vunpack.c.l.b16 %v164
  %v1924 = vunpack.c.l.b16 %v165
  %v1925 = vunpack.c.h.b16 %v165
  %v1926 = vunpack.c.l.b16 %v166
  %v1927 = vunpack.c.l.b16 %v167
  %v1928 = vunpack.c.h.b16 %v167
  %v1929 = vunpack.c.l.b16 %v168
  %v1930 = vunpack.c.l.b16 %v169
  %v1931 = vunpack.c.h.b16 %v169
  %v1932 = vunpack.c.l.b16 %v170
  %v1933 = vunpack.c.l.b16 %v171
  %v1934 = vunpack.c.h.b16 %v171
  %v1935 = vunpack.c.l.b16 %v172
  %v1936 = vunpack.c.l.b16 %v173
  %v1937 = vunpack.c.h.b16 %v173
  %v1938 = vunpack.c.l.b16 %v174
  %v1939 = vunpack.c.l.b16 %v175
  %v1940 = vunpack.c.h.b16 %v175
  %v1941 = vunpack.c.l.b16 %v176
  %v1942 = vunpack.c.l.b16 %v177
  %v1943 = vunpack.c.h.b16 %v177
  %v1944 = vunpack.c.l.b16 %v178
  %v1945 = vunpack.c.l.b16 %v179
  %v1946 = vunpack.c.h.b16 %v179
  %v1947 = vunpack.c.l.b16 %v180
  %v1948 = vunpack.c.l.b16 %v181
  %v1949 = vunpack.c.h.b16 %v181
  %v1950 = vunpack.c.l.b16 %v182
  %v1951 = vunpack.c.l.b16 %v183
  %v1952 = vunpack.c.h.b16 %v183
  %v1953 = vunpack.c.l.b16 %v184
  %v1954 = vunpack.c.l.b16 %v185
  %v1955 = vunpack.c.h.b16 %v185
  %v1956 = vunpack.c.l.b16 %v186
  %v1957 = vunpack.c.l.b16 %v187
  %v1958 = vunpack.c.h.b16 %v187
  %v1959 = vunpack.c.l.b16 %v188
  %v1960 = vunpack.c.l.b16 %v189
  %v1961 = vunpack.c.h.b16 %v189
  %v1962 = vunpack.c.l.b16 %v190
  %v1963 = vunpack.c.l.b16 %v191
  %v1964 = vunpack.c.h.b16 %v191
  %v1965 = vunpack.c.l.b16 %v192
  %v1966 = vunpack.c.l.b16 %v193
  %v1967 = vunpack.c.h.b16 %v193
  %v1968 = vunpack.c.l.b16 %v194
  %v1969 = vunpack.c.l.b16 %v195
  %v1970 = vunpack.c.h.b16 %v195
  %v1971 = vunpack.c.l.b16 %v196
  %v1972 = vunpack.c.l.b16 %v197
  %v1973 = vunpack.c.h.b16 %v197
  %v1974 = vunpack.c.l.b16 %v198
  %v1975 = vunpack.c.l.b16 %v199
  %v1976 = vunpack.c.h.b16 %v199
  %v1977 = vunpack.c.l.b16 %v200
  %v1978 = vunpack.c.l.b16 %v201
  %v1979 = vunpack.c.h.b16 %v201
  %v1980 = vunpack.c.l.b16 %v202
  %v1981 = vunpack.c.l.b16 %v203
  %v1982 = vunpack.c.h.b16 %v203
  %v1983 = vunpack.c.l.b16 %v204
  %v1984 = vunpack.c.l.b16 %v205
  %v1985 = vunpack.c.h.b16 %v205
  %v1986 = vunpack.c.l.b16 %v206
  %v1987 = vunpack.c.l.b16 %v207
  %v1988 = vunpack.c.h.b16 %v207
  %v1989 = vunpack.c.l.b16 %v208
  %v1990 = vunpack.c.l.b16 %v209
  %v1991 = vunpack.c.h.b16 %v209
  %v1992 = vunpack.c.l.b16 %v210
  %v1993 = vunpack.c.l.b16 %v211
  %v1994 = vunpack.c.h.b16 %v211
  %v1995 = vunpack.c.l.b16 %v212
  %v1996 = vunpack.c.l.b16 %v213
  %v1997 = vunpack.c.h.b16 %v213
  %v1998 = vunpack.c.l.b16 %v214
  %v1999 = vunpack.c.l.b16 %v215
  %v2000 = vunpack.c.h.b16 %v215
  %v2001 = vunpack.c.l.b16 %v216
  %v2002 = vunpack.c.l.b16 %v217
  %v2003 = vunpack.c.h.b16 %v217
  %v2004 = vunpack.c.l.b16 %v218
  %v2005 = vunpack.c.l.b16 %v219
  %v2006 = vunpack.c.h.b16 %v219
  %v2007 = vunpack.c.l.b16 %v220
  %v2008 = vunpack.c.l.b16 %v221
  %v2009 = vunpack.c.h.b16 %v221
  %v2010 = vunpack.c.l.b16 %v222
  %v2011 = vunpack.c.l.b16 %v223
  %v2012 = vunpack.c.h.b16 %v223
  %v2013 = vunpack.c.l.b16 %v224
  %v2014 = vunpack.c.l.b16 %v225
  %v2015 = vunpack.c.h.b16 %v225
  %v2016 = vunpack.c.l.b16 %v226
  %v2017 = vunpack.c.l.b16 %v227
  %v2018 = vunpack.c.h.b16 %v227
  %v2019 = vunpack.c.l.b16 %v228
  %v2020 = vunpack.c.l.b16 %v229
  %v2021 = vunpack.c.h.b16 %v229
  %v2022 = vunpack.c.l.b16 %v230
  %v2023 = vunpack.c.l.b16 %v231
  %v2024 = vunpack.c.h.b16 %v231
  %v2025 = vunpack.c.l.b16 %v232
  %v2026 = vunpack.c.l.b16 %v233
  %v2027 = vunpack.c.h.b16 %v233
  %v2028 = vunpack.c.l.b16 %v234
  %v2029 = vunpack.c.l.b16 %v235
  %v2030 = vunpack.c.h.b16 %v235
  %v2031 = vunpack.c.l.b16 %v236
  %v2032 = vunpack.c.l.b16 %v237
  %v2033 = vunpack.c.h.b16 %v237
  %v2034 = vunpack.c.l.b16 %v238
  %v2035 = vunpack.c.l.b16 %v239
  %v2036 = vunpack.c.h.b16 %v239
  %v2037 = vunpack.c.l.b16 %v240
  %v2038 = vunpack.c.l.b16 %v241
  %v2039 = vunpack.c.h.b16 %v241
  %v2040 = vunpack.c.l.b16 %v242
  %v2041 = vunpack.c.l.b16 %v243
  %v2042 = vunpack.c.h.b16 %v243
  %v2043 = vunpack.c.l.b16 %v244
  %v2044 = vunpack.c.l.b16 %v245
  %v2045 = vunpack.c.h.b16 %v245
  %v2046 = vunpack.c.l.b16 %v246
  %v2047 = vunpack.c.l.b16 %v247
  %v2048 = vunpack.c.h.b16 %v247
  %v2049 = vunpack.c.l.b16 %v248
  %v2050 = vunpack.c.l.b16 %v249
  %v2051 = vunpack.c.h.b16 %v249
  %v2052 = vunpack.c.l.b16 %v250
  %v2053 = vunpack.c.l.b16 %v251
  %v2054 = vunpack.c.h.b16 %v251
  %v2055 = vunpack.c.l.b16 %v252
  %v2056 = vunpack.c.l.b16 %v253
  %v2057 = vunpack.c.h.b16 %v253
  %v2058 = vunpack.c.l.b16 %v254
  %v2059 = vunpack.c.l.b16 %v255
  %v2060 = vunpack.c.h.b16 %v255
  %v2061 = vunpack.c.l.b16 %v256
  %v2062 = vunpack.c.l.b16 %v257
  %v2063 = vunpack.c.h.b16 %v257
  %v2064 = vunpack.c.l.b16 %v258
  %v2065 = vunpack.c.l.b16 %v259
  %v2066 = vunpack.c.h.b16 %v259
  %v2067 = vunpack.c.l.b16 %v260
  %v2068 = vunpack.c.l.b16 %v261
  %v2069 = vunpack.c.h.b16 %v261
  %v2070 = vunpack.c.l.b16 %v262
  %v2071 = vunpack.c.l.b16 %v263
  %v2072 = vunpack.c.h.b16 %v263
  %v2073 = vunpack.c.l.b16 %v264
  %v2074 = vunpack.c.l.b16 %v265
  %v2075 = vunpack.c.h.b16 %v265
  %v2076 = vunpack.c.l.b16 %v266
  %v2077 = vunpack.c.l.b16 %v267
  %v2078 = vunpack.c.h.b16 %v267
  %v2079 = vunpack.c.l.b16 %v268
  %v2080 = vunpack.c.l.b16 %v269
  %v2081 = vunpack.c.h.b16 %v269
  %v2082 = vunpack.c.l.b16 %v270
  %v2083 = vunpack.c.l.b16 %v271
  %v2084 = vunpack.c.h.b16 %v271
  %v2085 = vunpack.c.l.b16 %v272
  %v2086 = vunpack.c.l.b16 %v273
  %v2087 = vunpack.c.h.b16 %v273
  %v2088 = vunpack.c.l.b16 %v274
  %v2089 = vunpack.c.l.b16 %v275
  %v2090 = vunpack.c.h.b16 %v275
  %v2091 = vunpack.c.l.b16 %v276
  %v2092 = vunpack.c.l.b16 %v277
  %v2093 = vunpack.c.h.b16 %v277
  %v2094 = vunpack.c.l.b16 %v278
  %v2095 = vunpack.c.l.b16 %v279
  %v2096 = vunpack.c.h.b16 %v279
  %v2097 = vunpack.c.l.b16 %v280
  %v2098 = vunpack.c.l.b16 %v281
  %v2099 = vunpack.c.h.b16 %v281
  %v2100 = vunpack.c.l.b16 %v282
  %v2101 = vunpack.c.l.b16 %v283
  %v2102 = vunpack.c.h.b16 %v283
  %v2103 = vunpack.c.l.b16 %v284
  %v2104 = vunpack.c.l.b16 %v285
  %v2105 = vunpack.c.h.b16 %v285
  %v2106 = vunpack.c.l.b16 %v286
  %v2107 = vunpack.c.l.b16 %v287
  %v2108 = vunpack.c.h.b16 %v287
  %v2109 = vunpack.c.l.b16 %v288
  %v2110 = vunpack.c.l.b16 %v289
  %v2111 = vunpack.c.h.b16 %v289
  %v2112 = vunpack.c.l.b16 %v290
  %v2113 = vunpack.c.l.b16 %v291
  %v2114 = vunpack.c.h.b16 %v291
  %v2115 = vunpack.c.l.b16 %v292
  %v2116 = vunpack.c.l.b16 %v293
  %v2117 = vunpack.c.h.b16 %v293
  %v2118 = vunpack.c.l.b16 %v294
  %v2119 = vunpack.c.l.b16 %v295
  %v2120 = vunpack.c.h.b16 %v295
  %v2121 = vunpack.c.l.b16 %v296
  %v2122 = vunpack.c.l.b16 %v297
  %v2123 = vunpack.c.h.b16 %v297
  %v2124 = vunpack.c.l.b16 %v298
  %v2125 = vunpack.c.l.b16 %v299
  %v2126 = vunpack.c.h.b16 %v299
  %v2127 = vunpack.c.l.b16 %v300
  %v2128 = vunpack.c.l.b16 %v301
  %v2129 = vunpack.c.h.b16 %v301
  %v2130 = vunpack.c.l.b16 %v302
  %v2131 = vunpack.c.l.b16 %v303
  %v2132 = vunpack.c.h.b16 %v303
  %v2133 = vunpack.c.l.b16 %v304
  %v2134 = vunpack.c.l.b16 %v305
  %v2135 = vunpack.c.h.b16 %v305
  %v2136 = vunpack.c.l.b16 %v306
  %v2137 = vunpack.c.l.b16 %v307
  %v2138 = vunpack.c.h.b16 %v307
  %v2139 = vunpack.c.l.b16 %v308
  %v2140 = vunpack.c.l.b16 %v309
  %v2141 = vunpack.c.h.b16 %v309
  %v2142 = vunpack.c.l.b16 %v310
  %v2143 = vunpack.c.l.b16 %v311
  %v2144 = vunpack.c.h.b16 %v311
  %v2145 = vunpack.c.l.b16 %v312
  %v2146 = vunpack.c.l.b16 %v313
  %v2147 = vunpack.c.h.b16 %v313
  %v2148 = vunpack.c.l.b16 %v314
  %v2149 = vunpack.c.l.b16 %v315
  %v2150 = vunpack.c.h.b16 %v315
  %v2151 = vunpack.c.l.b16 %v316
  %v2152 = vunpack.c.l.b16 %v317
  %v2153 = vunpack.c.h.b16 %v317
  %v2154 = vunpack.c.l.b16 %v318
  %v2155 = vunpack.c.l.b16 %v319
  %v2156 = vunpack.c.h.b16 %v319
  %v2157 = vunpack.c.l.b16 %v320
  %v2158 = vunpack.c.l.b16 %v321
  %v2159 = vunpack.c.h.b16 %v321
  %v2160 = vunpack.c.l.b16 %v322
  %v2161 = vunpack.c.l.b16 %v323
  %v2162 = vunpack.c.h.b16 %v323
  %v2163 = vunpack.c.l.b16 %v324
  %v2164 = vunpack.c.l.b16 %v325
  %v2165 = vunpack.c.h.b16 %v325
  %v2166 = vunpack.c.l.b16 %v326
  %v2167 = vunpack.c.l.b16 %v327
  %v2168 = vunpack.c.h.b16 %v327
  %v2169 = vunpack.c.l.b16 %v328
  %v2170 = vunpack.c.l.b16 %v329
  %v2171 = vunpack.c.h.b16 %v329
  %v2172 = vunpack.c.l.b16 %v330
  %v2173 = vunpack.c.l.b16 %v331
  %v2174 = vunpack.c.h.b16 %v331
  %v2175 = vunpack.c.l.b16 %v332
  %v2176 = vunpack.c.l.b16 %v333
  %v2177 = vunpack.c.h.b16 %v333
  %v2178 = vunpack.c.l.b16 %v334
  %v2179 = vunpack.c.l.b16 %v335
  %v2180 = vunpack.c.h.b16 %v335
  %v2181 = vunpack.c.l.b16 %v336
  %v2182 = vunpack.c.l.b16 %v337
  %v2183 = vunpack.c.h.b16 %v337
  %v2184 = vunpack.c.l.b16 %v338
  %v2185 = vunpack.c.l.b16 %v339
  %v2186 = vunpack.c.h.b16 %v339
  %v2187 = vunpack.c.l.b16 %v340
  %v2188 = vunpack.c.l.b16 %v341
  %v2189 = vunpack.c.h.b16 %v341
  %v2190 = vunpack.c.l.b16 %v342
  %v2191 = vunpack.c.l.b16 %v343
  %v2192 = vunpack.c.h.b16 %v343
  %v2193 = vunpack.c.l.b16 %v344
  %v2194 = vunpack.c.l.b16 %v345
  %v2195 = vunpack.c.h.b16 %v345
  %v2196 = vunpack.c.l.b16 %v346
  %v2197 = vunpack.c.l.b16 %v347
  %v2198 = vunpack.c.h.b16 %v347
  %v2199 = vunpack.c.l.b16 %v348
  %v2200 = vunpack.c.l.b16 %v349
  %v2201 = vunpack.c.h.b16 %v349
  %v2202 = vunpack.c.l.b16 %v350
  %v2203 = vunpack.c.l.b16 %v351
  %v2204 = vunpack.c.h.b16 %v351
  %v2205 = vunpack.c.l.b16 %v352
  %v2206 = vunpack.c.l.b16 %v353
  %v2207 = vunpack.c.h.b16 %v353
  %v2208 = vunpack.c.l.b16 %v354
  %v2209 = vunpack.c.l.b16 %v355
  %v2210 = vunpack.c.h.b16 %v355
  %v2211 = vunpack.c.l.b16 %v356
  %v2212 = vunpack.c.l.b16 %v357
  %v2213 = vunpack.c.h.b16 %v357
  %v2214 = vunpack.c.l.b16 %v358
  %v2215 = vunpack.c.l.b16 %v359
  %v2216 = vunpack.c.h.b16 %v359
  %v2217 = vunpack.c.l.b16 %v360
  %v2218 = vunpack.c.l.b16 %v361
  %v2219 = vunpack.c.h.b16 %v361
  %v2220 = vunpack.c.l.b16 %v362
  %v2221 = vunpack.c.l.b16 %v363
  %v2222 = vunpack.c.h.b16 %v363
  %v2223 = vunpack.c.l.b16 %v364
  %v2224 = vunpack.c.l.b16 %v365
  %v2225 = vunpack.c.h.b16 %v365
  %v2226 = vunpack.c.l.b16 %v366
  %v2227 = vunpack.c.l.b16 %v367
  %v2228 = vunpack.c.h.b16 %v367
  %v2229 = vunpack.c.l.b16 %v368
  %v2230 = vunpack.c.l.b16 %v369
  %v2231 = vunpack.c.h.b16 %v369
  %v2232 = vunpack.c.l.b16 %v370
  %v2233 = vunpack.c.l.b16 %v371
  %v2234 = vunpack.c.h.b16 %v371
  %v2235 = vunpack.c.l.b16 %v372
  %v2236 = vunpack.c.l.b16 %v373
  %v2237 = vunpack.c.h.b16 %v373
  %v2238 = vunpack.c.l.b16 %v374
  %v2239 = vunpack.c.l.b16 %v375
  %v2240 = vunpack.c.h.b16 %v375
  %v2241 = vunpack.c.l.b16 %v376
  %v2242 = vunpack.c.l.b16 %v377
  %v2243 = vunpack.c.h.b16 %v377
  %v2244 = vunpack.c.l.b16 %v378
  %v2245 = vunpack.c.l.b16 %v379
  %v2246 = vunpack.c.h.b16 %v379
  %v2247 = vunpack.c.l.b16 %v380
  %v2248 = vunpack.c.l.b16 %v381
  %v2249 = vunpack.c.h.b16 %v381
  %v2250 = vunpack.c.l.b16 %v382
  %v2251 = vunpack.c.l.b16 %v383
  %v2252 = vunpack.c.h.b16 %v383
  %v2253 = vunpack.c.l.b16 %v384
  %v2254 = vunpack.c.l.b16 %v385
  %v2255 = vunpack.c.h.b16 %v385
  %v2256 = vunpack.c.l.b16 %v386
  %v2257 = vunpack.c.l.b16 %v387
  %v2258 = vunpack.c.h.b16 %v387
  %v2259 = vunpack.c.l.b16 %v388
  %v2260 = vunpack.c.l.b16 %v389
  %v2261 = vunpack.c.h.b16 %v389
  %v2262 = vunpack.c.l.b16 %v390
  %v2263 = vunpack.c.l.b16 %v391
  %v2264 = vunpack.c.h.b16 %v391
  %v2265 = vunpack.c.l.b16 %v392
  %v2266 = vunpack.c.l.b16 %v393
  %v2267 = vunpack.c.h.b16 %v393
  %v2268 = vunpack.c.l.b16 %v394
  %v2269 = vunpack.c.l.b16 %v395
  %v2270 = vunpack.c.h.b16 %v395
  %v2271 = vunpack.c.l.b16 %v396
  %v2272 = vunpack.c.l.b16 %v397
  %v2273 = vunpack.c.h.b16 %v397
  %v2274 = vunpack.c.l.b16 %v398
  %v2275 = vunpack.c.l.b16 %v399
  %v2276 = vunpack.c.h.b16 %v399
  %v2277 = vunpack.c.l.b16 %v400
  %v2278 = vunpack.c.l.b16 %v401
  %v2279 = vunpack.c.h.b16 %v401
  %v2280 = vunpack.c.l.b16 %v402
  %v2281 = vunpack.c.l.b16 %v403
  %v2282 = vunpack.c.h.b16 %v403
  %v2283 = vunpack.c.l.b16 %v404
  %v2284 = vunpack.c.l.b16 %v405
  %v2285 = vunpack.c.h.b16 %v405
  %v2286 = vunpack.c.l.b16 %v406
  %v2287 = vunpack.c.l.b16 %v407
  %v2288 = vunpack.c.h.b16 %v407
  %v2289 = vunpack.c.l.b16 %v408
  %v2290 = vunpack.c.l.b16 %v409
  %v2291 = vunpack.c.h.b16 %v409
  %v2292 = vunpack.c.l.b16 %v410
  %v2293 = vunpack.c.l.b16 %v411
  %v2294 = vunpack.c.h.b16 %v411
  %v2295 = vunpack.c.l.b16 %v412
  %v2296 = vunpack.c.l.b16 %v413
  %v2297 = vunpack.c.h.b16 %v413
  %v2298 = vunpack.c.l.b16 %v414
  %v2299 = vunpack.c.l.b16 %v415
  %v2300 = vunpack.c.h.b16 %v415
  %v2301 = vunpack.c.l.b16 %v416
  %v2302 = vunpack.c.l.b16 %v417
  %v2303 = vunpack.c.h.b16 %v417
  %v2304 = vunpack.c.l.b16 %v418
  %v2305 = vunpack.c.l.b16 %v419
  %v2306 = vunpack.c.h.b16 %v419
  %v2307 = vunpack.c.l.b16 %v420
  %v2308 = vunpack.c.l.b16 %v421
  %v2309 = vunpack.c.h.b16 %v421
  %v2310 = vunpack.c.l.b16 %v422
  %v2311 = vunpack.c.l.b16 %v423
  %v2312 = vunpack.c.h.b16 %v423
  %v2313 = vunpack.c.l.b16 %v424
  %v2314 = vunpack.c.l.b16 %v425
  %v2315 = vunpack.c.h.b16 %v425
  %v2316 = vunpack.c.l.b16 %v426
  %v2317 = vunpack.c.l.b16 %v427
  %v2318 = vunpack.c.h.b16 %v427
  %v2319 = vunpack.c.l.b16 %v428
  %v2320 = vunpack.c.l.b16 %v429
  %v2321 = vunpack.c.h.b16 %v429
  %v2322 = vunpack.c.l.b16 %v430
  %v2323 = vunpack.c.l.b16 %v431
  %v2324 = vunpack.c.h.b16 %v431
  %v2325 = vunpack.c.l.b16 %v432
  %v2326 = vunpack.c.l.b16 %v433
  %v2327 = vunpack.c.h.b16 %v433
  %v2328 = vunpack.c.l.b16 %v434
  %v2329 = vunpack.c.l.b16 %v435
  %v2330 = vunpack.c.h.b16 %v435
  %v2331 = vunpack.c.l.b16 %v436
  %v2332 = vunpack.c.l.b16 %v437
  %v2333 = vunpack.c.h.b16 %v437
  %v2334 = vunpack.c.l.b16 %v438
  %v2335 = vunpack.c.l.b16 %v439
  %v2336 = vunpack.c.h.b16 %v439
  %v2337 = vunpack.c.l.b16 %v440
  %v2338 = vunpack.c.l.b16 %v441
  %v2339 = vunpack.c.h.b16 %v441
  %v2340 = vunpack.c.l.b16 %v442
  %v2341 = vunpack.c.l.b16 %v443
  %v2342 = vunpack.c.h.b16 %v443
  %v2343 = vunpack.c.l.b16 %v444
  %v2344 = vunpack.c.l.b16 %v445
  %v2345 = vunpack.c.h.b16 %v445
  %v2346 = vunpack.c.l.b16 %v446
  %v2347 = vunpack.c.l.b16 %v447
  %v2348 = vunpack.c.h.b16 %v447
  %v2349 = vunpack.c.l.b16 %v448
  %v2350 = vunpack.c.l.b16 %v449
  %v2351 = vunpack.c.h.b16 %v449
  %v2352 = vunpack.c.l.b16 %v450
  %v2353 = vunpack.c.l.b16 %v451
  %v2354 = vunpack.c.h.b16 %v451
  %v2355 = vunpack.c.l.b16 %v452
  %v2356 = vunpack.c.l.b16 %v453
  %v2357 = vunpack.c.h.b16 %v453
  %v2358 = vunpack.c.l.b16 %v454
  %v2359 = vunpack.c.l.b16 %v455
  %v2360 = vunpack.c.h.b16 %v455
  %v2361 = vunpack.c.l.b16 %v456
  %v2362 = vunpack.c.l.b16 %v457
  %v2363 = vunpack.c.h.b16 %v457
  %v2364 = vunpack.c.l.b16 %v458
  %v2365 = vunpack.c.l.b16 %v459
  %v2366 = vunpack.c.h.b16 %v459
  %v2367 = vunpack.c.l.b16 %v460
  %v2368 = vunpack.c.l.b16 %v461
  %v2369 = vunpack.c.h.b16 %v461
  %v2370 = vunpack.c.l.b16 %v462
  %v2371 = vunpack.c.l.b16 %v463
  %v2372 = vunpack.c.h.b16 %v463
  %v2373 = vunpack.c.l.b16 %v464
  %v2374 = vunpack.c.l.b16 %v465
  %v2375 = vunpack.c.h.b16 %v465
  %v2376 = vunpack.c.l.b16 %v466
  %v2377 = vunpack.c.l.b16 %v467
  %v2378 = vunpack.c.h.b16 %v467
  %v2379 = vunpack.c.l.b16 %v468
  %v2380 = vunpack.c.l.b16 %v469
  %v2381 = vunpack.c.h.b16 %v469
  %v2382 = vunpack.c.l.b16 %v470
  %v2383 = vunpack.c.l.b16 %v471
  %v2384 = vunpack.c.h.b16 %v471
  %v2385 = vunpack.c.l.b16 %v472
  %v2386 = vunpack.c.l.b16 %v473
  %v2387 = vunpack.c.h.b16 %v473
  %v2388 = vunpack.c.l.b16 %v474
  %v2389 = vunpack.c.l.b16 %v475
  %v2390 = vunpack.c.h.b16 %v475
  %v2391 = vunpack.c.l.b16 %v476
  %v2392 = vunpack.c.l.b16 %v477
  %v2393 = vunpack.c.h.b16 %v477
  %v2394 = vunpack.c.l.b16 %v478
  %v2395 = vunpack.c.l.b16 %v479
  %v2396 = vunpack.c.h.b16 %v479
  %v2397 = vunpack.c.l.b16 %v480
  %v2398 = vunpack.c.l.b16 %v481
  %v2399 = vunpack.c.h.b16 %v481
  %v2400 = vunpack.c.l.b16 %v482
  %v2401 = vunpack.c.l.b16 %v483
  %v2402 = vunpack.c.h.b16 %v483
  %v2403 = vunpack.c.l.b16 %v484
  %v2404 = vunpack.c.l.b16 %v485
  %v2405 = vunpack.c.h.b16 %v485
  %v2406 = vunpack.c.l.b16 %v486
  %v2407 = vunpack.c.l.b16 %v487
  %v2408 = vunpack.c.h.b16 %v487
  %v2409 = vunpack.c.l.b16 %v488
  %v2410 = vunpack.c.l.b16 %v489
  %v2411 = vunpack.c.h.b16 %v489
  %v2412 = vunpack.c.l.b16 %v490
  %v2413 = vunpack.c.l.b16 %v491
  %v2414 = vunpack.c.h.b16 %v491
  %v2415 = vunpack.c.l.b16 %v492
  %v2416 = vunpack.c.l.b16 %v493
  %v2417 = vunpack.c.h.b16 %v493
  %v2418 = vunpack.c.l.b16 %v494
  %v2419 = vunpack.c.l.b16 %v495
  %v2420 = vunpack.c.h.b16 %v495
  %v2421 = vunpack.c.l.b16 %v496
  %v2422 = vunpack.c.l.b16 %v497
  %v2423 = vunpack.c.h.b16 %v497
  %v2424 = vunpack.c.l.b16 %v498
  %v2425 = vunpack.c.l.b16 %v499
  %v2426 = vunpack.c.h.b16 %v499
  %v2427 = vunpack.c.l.b16 %v500
  %v2428 = vunpack.c.l.b16 %v501
  %v2429 = vunpack.c.h.b16 %v501
  %v2430 = vunpack.c.l.b16 %v502
  %v2431 = vunpack.c.l.b16 %v503
  %v2432 = vunpack.c.h.b16 %v503
  %v2433 = vunpack.c.l.b16 %v504
  %v2434 = vunpack.c.l.b16 %v505
  %v2435 = vunpack.c.h.b16 %v505
  %v2436 = vunpack.c.l.b16 %v506
  %v2437 = vunpack.c.l.b16 %v507
  %v2438 = vunpack.c.h.b16 %v507
  %v2439 = vunpack.c.l.b16 %v508
  %v2440 = vunpack.c.l.b16 %v509
  %v2441 = vunpack.c.h.b16 %v509
  %v2442 = vunpack.c.l.b16 %v510
  %v2443 = vunpack.c.l.b16 %v511
  %v2444 = vunpack.c.h.b16 %v511
  %v2445 = vunpack.c.l.b16 %v512
  %v2446 = vunpack.c.l.b16 %v513
  %v2447 = vunpack.c.h.b16 %v513
  %v2448 = vunpack.c.l.b16 %v514
  %v2449 = vunpack.c.l.b16 %v515
  %v2450 = vunpack.c.h.b16 %v515
  %v2451 = vunpack.c.l.b16 %v516
  %v2452 = vunpack.c.l.b16 %v517
  %v2453 = vunpack.c.h.b16 %v517
  %v2454 = vunpack.c.l.b16 %v518
  %v2455 = vunpack.c.l.b16 %v519
  %v2456 = vunpack.c.h.b16 %v519
  %v2457 = vunpack.c.l.b16 %v520
  %v2458 = vunpack.c.l.b16 %v521
  %v2459 = vunpack.c.h.b16 %v521
  %v2460 = vunpack.c.l.b16 %v522
  %v2461 = vunpack.c.l.b16 %v523
  %v2462 = vunpack.c.h.b16 %v523
  %v2463 = vunpack.c.l.b16 %v524
  %v2464 = vunpack.c.l.b16 %v525
  %v2465 = vunpack.c.h.b16 %v525
  %v2466 = vunpack.c.l.b16 %v526
  %v2467 = vunpack.c.l.b16 %v527
  %v2468 = vunpack.c.h.b16 %v527
  %v2469 = vunpack.c.l.b16 %v528
  %v2470 = vunpack.c.l.b16 %v529
  %v2471 = vunpack.c.h.b16 %v529
  %v2472 = vunpack.c.l.b16 %v530
  %v2473 = vunpack.c.l.b16 %v531
  %v2474 = vunpack.c.h.b16 %v531
  %v2475 = vunpack.c.l.b16 %v532
  %v2476 = vunpack.c.l.b16 %v533
  %v2477 = vunpack.c.h.b16 %v533
  %v2478 = vunpack.c.l.b16 %v534
  %v2479 = vunpack.c.l.b16 %v535
  %v2480 = vunpack.c.h.b16 %v535
  %v2481 = vunpack.c.l.b16 %v536
  %v2482 = vunpack.c.l.b16 %v537
  %v2483 = vunpack.c.h.b16 %v537
  %v2484 = vunpack.c.l.b16 %v538
  %v2485 = vunpack.c.l.b16 %v539
  %v2486 = vunpack.c.h.b16 %v539
  %v2487 = vunpack.c.l.b16 %v540
  %v2488 = vunpack.c.l.b16 %v541
  %v2489 = vunpack.c.h.b16 %v541
  %v2490 = vunpack.c.l.b16 %v542
  %v2491 = vunpack.c.l.b16 %v543
  %v2492 = vunpack.c.h.b16 %v543
  %v2493 = vunpack.c.l.b16 %v544
  %v2494 = vunpack.c.l.b16 %v545
  %v2495 = vunpack.c.h.b16 %v545
  %v2496 = vunpack.c.l.b16 %v546
  %v2497 = vunpack.c.l.b16 %v547
  %v2498 = vunpack.c.h.b16 %v547
  %v2499 = vunpack.c.l.b16 %v548
  %v2500 = vunpack.c.l.b16 %v549
  %v2501 = vunpack.c.h.b16 %v549
  %v2502 = vunpack.c.l.b16 %v550
  %v2503 = vunpack.c.l.b16 %v551
  %v2504 = vunpack.c.h.b16 %v551
  %v2505 = vunpack.c.l.b16 %v552
  %v2506 = vunpack.c.l.b16 %v553
  %v2507 = vunpack.c.h.b16 %v553
  %v2508 = vunpack.c.l.b16 %v554
  %v2509 = vunpack.c.l.b16 %v555
  %v2510 = vunpack.c.h.b16 %v555
  %v2511 = vunpack.c.l.b16 %v556
  %v2512 = vunpack.c.l.b16 %v557
  %v2513 = vunpack.c.h.b16 %v557
  %v2514 = vunpack.c.l.b16 %v558
  %v2515 = vunpack.c.l.b16 %v559
  %v2516 = vunpack.c.h.b16 %v559
  %v2517 = vunpack.c.l.b16 %v560
  %v2518 = vunpack.c.l.b16 %v561
  %v2519 = vunpack.c.h.b16 %v561
  %v2520 = vunpack.c.l.b16 %v562
  %v2521 = vunpack.c.l.b16 %v563
  %v2522 = vunpack.c.h.b16 %v563
  %v2523 = vunpack.c.l.b16 %v564
  %v2524 = vunpack.c.l.b16 %v565
  %v2525 = vunpack.c.h.b16 %v565
  %v2526 = vunpack.c.l.b16 %v566
  %v2527 = vunpack.c.l.b16 %v567
  %v2528 = vunpack.c.h.b16 %v567
  %v2529 = vunpack.c.l.b16 %v568
  %v2530 = vunpack.c.l.b16 %v569
  %v2531 = vunpack.c.h.b16 %v569
  %v2532 = vunpack.c.l.b16 %v570
  %v2533 = vunpack.c.l.b16 %v571
  %v2534 = vunpack.c.h.b16 %v571
  %v2535 = vunpack.c.l.b16 %v572
  %v2536 = vunpack.c.l.b16 %v573
  %v2537 = vunpack.c.h.b16 %v573
  %v2538 = vunpack.c.l.b16 %v574
  %v2539 = vunpack.c.l.b16 %v575
  %v2540 = vunpack.c.h.b16 %v575
  %v2541 = vunpack.c.l.b16 %v576
  %v2542 = vunpack.c.l.b16 %v577
  %v2543 = vunpack.c.h.b16 %v577
  %v2544 = vunpack.c.l.b16 %v578
  %v2545 = vunpack.c.l.b16 %v579
  %v2546 = vunpack.c.h.b16 %v579
  %v2547 = vunpack.c.l.b16 %v580
  %v2548 = vunpack.c.l.b16 %v581
  %v2549 = vunpack.c.h.b16 %v581
  %v2550 = vunpack.c.l.b16 %v582
  %v2551 = vunpack.c.l.b16 %v583
  %v2552 = vunpack.c.h.b16 %v583
  %v2553 = vunpack.c.l.b16 %v584
  %v2554 = vunpack.c.l.b16 %v585
  %v2555 = vunpack.c.h.b16 %v585
  %v2556 = vunpack.c.l.b16 %v586
  %v2557 = vunpack.c.l.b16 %v587
  %v2558 = vunpack.c.h.b16 %v587
  %v2559 = vunpack.c.l.b16 %v588
  %v2560 = vunpack.c.l.b16 %v589
  %v2561 = vunpack.c.h.b16 %v589
  %v2562 = vunpack.c.l.b16 %v590
  %v2563 = vunpack.c.l.b16 %v591
  %v2564 = vunpack.c.h.b16 %v591
  %v2565 = vunpack.c.l.b16 %v592
  %v2566 = vunpack.c.l.b16 %v593
  %v2567 = vunpack.c.h.b16 %v593
  %v2568 = vunpack.c.l.b16 %v594
  %v2569 = vunpack.c.l.b16 %v595
  %v2570 = vunpack.c.h.b16 %v595
  %v2571 = vunpack.c.l.b16 %v596
  %v2572 = vunpack.c.l.b16 %v597
  %v2573 = vunpack.c.h.b16 %v597
  %v2574 = vunpack.c.l.b16 %v598
  %v2575 = vunpack.c.l.b16 %v599
  %v2576 = vunpack.c.h.b16 %v599
  %v2577 = vunpack.c.l.b16 %v600
  %v2578 = vunpack.c.l.b16 %v601
  %v2579 = vunpack.c.h.b16 %v601
  %v2580 = vunpack.c.l.b16 %v602
  %v2581 = vunpack.c.l.b16 %v603
  %v2582 = vunpack.c.h.b16 %v603
  %v2583 = vunpack.c.l.b16 %v604
  %v2584 = vunpack.c.l.b16 %v605
  %v2585 = vunpack.c.h.b16 %v605
  %v2586 = vunpack.c.l.b16 %v606
  %v2587 = vunpack.c.l.b16 %v607
  %v2588 = vunpack.c.h.b16 %v607
  %v2589 = vunpack.c.l.b16 %v608
  %v2590 = vunpack.c.l.b16 %v609
  %v2591 = vunpack.c.h.b16 %v609
  %v2592 = vunpack.c.l.b16 %v610
  %v2593 = vunpack.c.l.b16 %v611
  %v2594 = vunpack.c.h.b16 %v611
  %v2595 = vunpack.c.l.b16 %v612
  %v2596 = vunpack.c.l.b16 %v613
  %v2597 = vunpack.c.h.b16 %v613
  %v2598 = vunpack.c.l.b16 %v614
  %v2599 = vunpack.c.l.b16 %v615
  %v2600 = vunpack.c.h.b16 %v615
  %v2601 = vunpack.c.l.b16 %v616
  %v2602 = vunpack.c.l.b16 %v617
  %v2603 = vunpack.c.h.b16 %v617
  %v2604 = vunpack.c.l.b16 %v618
  %v2605 = vunpack.c.l.b16 %v619
  %v2606 = vunpack.c.h.b16 %v619
  %v2607 = vunpack.c.l.b16 %v620
  %v2608 = vunpack.c.l.b16 %v621
  %v2609 = vunpack.c.h.b16 %v621
  %v2610 = vunpack.c.l.b16 %v622
  %v2611 = vunpack.c.l.b16 %v623
  %v2612 = vunpack.c.h.b16 %v623
  %v2613 = vunpack.c.l.b16 %v624
  %v2614 = vunpack.c.l.b16 %v625
  %v2615 = vunpack.c.h.b16 %v625
  %v2616 = vunpack.c.l.b16 %v626
  %v2617 = vunpack.c.l.b16 %v627
  %v2618 = vunpack.c.h.b16 %v627
  %v2619 = vunpack.c.l.b16 %v628
  %v2620 = vunpack.c.l.b16 %v629
  %v2621 = vunpack.c.h.b16 %v629
  %v2622 = vunpack.c.l.b16 %v630
  %v2623 = vunpack.c.l.b16 %v631
  %v2624 = vunpack.c.h.b16 %v631
  %v2625 = vunpack.c.l.b16 %v632
  %v2626 = vunpack.c.l.b16 %v633
  %v2627 = vunpack.c.h.b16 %v633
  %v2628 = vunpack.c.l.b16 %v634
  %v2629 = vunpack.c.l.b16 %v635
  %v2630 = vunpack.c.h.b16 %v635
  %v2631 = vunpack.c.l.b16 %v636
  %v2632 = vunpack.c.l.b16 %v637
  %v2633 = vunpack.c.h.b16 %v637
  %v2634 = vunpack.c.l.b16 %v638
  %v2635 = vunpack.c.l.b16 %v639
  %v2636 = vunpack.c.h.b16 %v639
  %v2637 = vunpack.c.l.b16 %v640
  %v2638 = vunpack.c.l.b16 %v641
  %v2639 = vunpack.c.h.b16 %v641
  %v2640 = vunpack.c.l.b16 %v642
  %v2641 = vunpack.c.l.b16 %v643
  %v2642 = vunpack.c.h.b16 %v643
  %v2643 = vunpack.c.l.b16 %v644
  %v2644 = vunpack.c.l.b16 %v645
  %v2645 = vunpack.c.h.b16 %v645
  %v2646 = vunpack.c.l.b16 %v646
  %v2647 = vunpack.c.l.b16 %v647
  %v2648 = vunpack.c.h.b16 %v647
  %v2649 = vunpack.c.l.b16 %v648
  %v2650 = vunpack.c.l.b16 %v649
  %v2651 = vunpack.c.h.b16 %v649
  %v2652 = vunpack.c.l.b16 %v650
  %v2653 = vunpack.c.l.b16 %v651
  %v2654 = vunpack.c.h.b16 %v651
  %v2655 = vunpack.c.l.b16 %v652
  %v2656 = vunpack.c.l.b16 %v653
  %v2657 = vunpack.c.h.b16 %v653
  %v2658 = vunpack.c.l.b16 %v654
  %v2659 = vunpack.c.l.b16 %v655
  %v2660 = vunpack.c.h.b16 %v655
  %v2661 = vunpack.c.l.b16 %v656
  %v2662 = vunpack.c.l.b16 %v657
  %v2663 = vunpack.c.h.b16 %v657
  %v2664 = vunpack.c.l.b16 %v658
  %v2665 = vunpack.c.l.b16 %v659
  %v2666 = vunpack.c.h.b16 %v659
  %v2667 = vunpack.c.l.b16 %v660
  %v2668 = vunpack.c.l.b16 %v661
  %v2669 = vunpack.c.h.b16 %v661
  %v2670 = vunpack.c.l.b16 %v662
  %v2671 = vunpack.c.l.b16 %v663
  %v2672 = vunpack.c.h.b16 %v663
  %v2673 = vunpack.c.l.b16 %v664
  %v2674 = vunpack.c.l.b16 %v665
  %v2675 = vunpack.c.h.b16 %v665
  %v2676 = vunpack.c.l.b16 %v666
  %v2677 = vunpack.c.l.b16 %v667
  %v2678 = vunpack.c.h.b16 %v667
  %v2679 = vunpack.c.l.b16 %v668
  %v2680 = vunpack.c.l.b16 %v669
  %v2681 = vunpack.c.h.b16 %v669
  %v2682 = vunpack.c.l.b16 %v670
  %v2683 = vunpack.c.l.b16 %v671
  %v2684 = vunpack.c.h.b16 %v671
  %v2685 = vunpack.c.l.b16 %v672
  %v2686 = vunpack.c.l.b16 %v673
  %v2687 = vunpack.c.h.b16 %v673
  %v2688 = vunpack.c.l.b16 %v674
  %v2689 = vunpack.c.l.b16 %v675
  %v2690 = vunpack.c.h.b16 %v675
  %v2691 = vunpack.c.l.b16 %v676
  %v2692 = vunpack.c.l.b16 %v677
  %v2693 = vunpack.c.h.b16 %v677
  %v2694 = vunpack.c.l.b16 %v678
  %v2695 = vunpack.c.l.b16 %v679
  %v2696 = vunpack.c.h.b16 %v679
  %v2697 = vunpack.c.l.b16 %v680
  %v2698 = vunpack.c.l.b16 %v681
  %v2699 = vunpack.c.h.b16 %v681
  %v2700 = vunpack.c.l.b16 %v682
  %v2701 = vunpack.c.l.b16 %v683
  %v2702 = vunpack.c.h.b16 %v683
  %v2703 = vunpack.c.l.b16 %v684
  %v2704 = vunpack.c.l.b16 %v685
  %v2705 = vunpack.c.h.b16 %v685
  %v2706 = vunpack.c.l.b16 %v686
  %v2707 = vunpack.c.l.b16 %v687
  %v2708 = vunpack.c.h.b16 %v687
  %v2709 = vunpack.c.l.b16 %v688
  %v2710 = vunpack.c.l.b16 %v689
  %v2711 = vunpack.c.h.b16 %v689
  %v2712 = vunpack.c.l.b16 %v690
  %v2713 = vunpack.c.l.b16 %v691
  %v2714 = vunpack.c.h.b16 %v691
  %v2715 = vunpack.c.l.b16 %v692
  %v2716 = vunpack.c.l.b16 %v693
  %v2717 = vunpack.c.h.b16 %v693
  %v2718 = vunpack.c.l.b16 %v694
  %v2719 = vunpack.c.l.b16 %v695
  %v2720 = vunpack.c.h.b16 %v695
  %v2721 = vunpack.c.l.b16 %v696
  %v2722 = vunpack.c.l.b16 %v697
  %v2723 = vunpack.c.h.b16 %v697
  %v2724 = vunpack.c.l.b16 %v698
  %v2725 = vunpack.c.l.b16 %v699
  %v2726 = vunpack.c.h.b16 %v699
  %v2727 = vunpack.c.l.b16 %v700
  %v2728 = vunpack.c.l.b16 %v701
  %v2729 = vunpack.c.h.b16 %v701
  %v2730 = vunpack.c.l.b16 %v702
  %v2731 = vunpack.c.l.b16 %v703
  %v2732 = vunpack.c.h.b16 %v703
  %v2733 = vunpack.c.l.b16 %v704
  %v2734 = vunpack.c.l.b16 %v705
  %v2735 = vunpack.c.h.b16 %v705
  %v2736 = vunpack.c.l.b16 %v706
  %v2737 = vunpack.c.l.b16 %v707
  %v2738 = vunpack.c.h.b16 %v707
  %v2739 = vunpack.c.l.b16 %v708
  %v2740 = vunpack.c.l.b16 %v709
  %v2741 = vunpack.c.h.b16 %v709
  %v2742 = vunpack.c.l.b16 %v710
  %v2743 = vunpack.c.l.b16 %v711
  %v2744 = vunpack.c.h.b16 %v711
  %v2745 = vunpack.c.l.b16 %v712
  %v2746 = vunpack.c.l.b16 %v713
  %v2747 = vunpack.c.h.b16 %v713
  %v2748 = vunpack.c.l.b16 %v714
  %v2749 = vunpack.c.l.b16 %v715
  %v2750 = vunpack.c.h.b16 %v715
  %v2751 = vunpack.c.l.b16 %v716
  %v2752 = vunpack.c.l.b16 %v717
  %v2753 = vunpack.c.h.b16 %v717
  %v2754 = vunpack.c.l.b16 %v718
  %v2755 = vunpack.c.l.b16 %v719
  %v2756 = vunpack.c.h.b16 %v719
  %v2757 = vunpack.c.l.b16 %v720
  %v2758 = vunpack.c.l.b16 %v721
  %v2759 = vunpack.c.h.b16 %v721
  %v2760 = vunpack.c.l.b16 %v722
  %v2761 = vunpack.c.l.b16 %v723
  %v2762 = vunpack.c.h.b16 %v723
  %v2763 = vunpack.c.l.b16 %v724
  %v2764 = vunpack.c.l.b16 %v725
  %v2765 = vunpack.c.h.b16 %v725
  %v2766 = vunpack.c.l.b16 %v726
  %v2767 = vunpack.c.l.b16 %v727
  %v2768 = vunpack.c.h.b16 %v727
  %v2769 = vunpack.c.l.b16 %v728
  %v2770 = vunpack.c.l.b16 %v729
  %v2771 = vunpack.c.h.b16 %v729
  %v2772 = vunpack.c.l.b16 %v730
  %v2773 = vunpack.c.l.b16 %v731
  %v2774 = vunpack.c.h.b16 %v731
  %v2775 = vunpack.c.l.b16 %v732
  %v2776 = vunpack.c.l.b16 %v733
  %v2777 = vunpack.c.h.b16 %v733
  %v2778 = vunpack.c.l.b16 %v734
  %v2779 = vunpack.c.l.b16 %v735
  %v2780 = vunpack.c.h.b16 %v735
  %v2781 = vunpack.c.l.b16 %v736
  %v2782 = vunpack.c.l.b16 %v737
  %v2783 = vunpack.c.h.b16 %v737
  %v2784 = vunpack.c.l.b16 %v738
  %v2785 = vunpack.c.l.b16 %v739
  %v2786 = vunpack.c.h.b16 %v739
  %v2787 = vunpack.c.l.b16 %v740
  %v2788 = vunpack.c.l.b16 %v741
  %v2789 = vunpack.c.h.b16 %v741
  %v2790 = vunpack.c.l.b16 %v742
  %v2791 = vunpack.c.l.b16 %v743
  %v2792 = vunpack.c.h.b16 %v743
  %v2793 = vunpack.c.l.b16 %v744
  %v2794 = vunpack.c.l.b16 %v745
  %v2795 = vunpack.c.h.b16 %v745
  %v2796 = vunpack.c.l.b16 %v746
  %v2797 = vunpack.c.l.b16 %v747
  %v2798 = vunpack.c.h.b16 %v747
  %v2799 = vunpack.c.l.b16 %v748
  %v2800 = vunpack.c.l.b16 %v749
  %v2801 = vunpack.c.h.b16 %v749
  %v2802 = vunpack.c.l.b16 %v750
  %v2803 = vunpack.c.l.b16 %v751
  %v2804 = vunpack.c.h.b16 %v751
  %v2805 = vunpack.c.l.b16 %v752
  %v2806 = vunpack.c.l.b16 %v753
  %v2807 = vunpack.c.h.b16 %v753
  %v2808 = vunpack.c.l.b16 %v754
  %v2809 = vunpack.c.l.b16 %v755
  %v2810 = vunpack.c.h.b16 %v755
  %v2811 = vunpack.c.l.b16 %v756
  %v2812 = vunpack.c.l.b16 %v757
  %v2813 = vunpack.c.h.b16 %v757
  %v2814 = vunpack.c.l.b16 %v758
  %v2815 = vunpack.c.l.b16 %v759
  %v2816 = vunpack.c.h.b16 %v759
  %v2817 = vunpack.c.l.b16 %v760
  %v2818 = vunpack.c.l.b16 %v761
  %v2819 = vunpack.c.h.b16 %v761
  %v2820 = vunpack.c.l.b16 %v762
  %v2821 = vunpack.c.l.b16 %v763
  %v2822 = vunpack.c.h.b16 %v763
  %v2823 = vunpack.c.l.b16 %v764
  %v2824 = vunpack.c.l.b16 %v765
  %v2825 = vunpack.c.h.b16 %v765
  %v2826 = vunpack.c.l.b16 %v766
  %v2827 = vunpack.c.l.b16 %v767
  %v2828 = vunpack.c.h.b16 %v767
  %v2829 = vunpack.c.l.b16 %v768
  %v2830 = vunpack.c.l.b16 %v769
  %v2831 = vunpack.c.h.b16 %v769
  %v2832 = vunpack.c.l.b16 %v770
  %v2833 = vunpack.c.l.b16 %v771
  %v2834 = vunpack.c.h.b16 %v771
  %v2835 = vunpack.c.l.b16 %v772
  %v2836 = vunpack.c.l.b16 %v773
  %v2837 = vunpack.c.h.b16 %v773
  %v2838 = vunpack.c.l.b16 %v774
  %v2839 = vunpack.c.l.b16 %v775
  %v2840 = vunpack.c.h.b16 %v775
  %v2841 = vunpack.c.l.b16 %v776
  %v2842 = vunpack.c.l.b16 %v777
  %v2843 = vunpack.c.h.b16 %v777
  %v2844 = vunpack.c.l.b16 %v778
  %v2845 = vunpack.c.l.b16 %v779
  %v2846 = vunpack.c.h.b16 %v779
  %v2847 = vunpack.c.l.b16 %v780
  %v2848 = vunpack.c.l.b16 %v781
  %v2849 = vunpack.c.h.b16 %v781
  %v2850 = vunpack.c.l.b16 %v782
  %v2851 = vunpack.c.l.b16 %v783
  %v2852 = vunpack.c.h.b16 %v783
  %v2853 = vunpack.c.l.b16 %v784
  %v2854 = vunpack.c.l.b16 %v785
  %v2855 = vunpack.c.h.b16 %v785
  %v2856 = vunpack.c.l.b16 %v786
  %v2857 = vunpack.c.l.b16 %v787
  %v2858 = vunpack.c.h.b16 %v787
  %v2859 = vunpack.c.l.b16 %v788
  %v2860 = vunpack.c.l.b16 %v789
  %v2861 = vunpack.c.h.b16 %v789
  %v2862 = vunpack.c.l.b16 %v790
  %v2863 = vunpack.c.l.b16 %v791
  %v2864 = vunpack.c.h.b16 %v791
  %v2865 = vunpack.c.l.b16 %v792
  %v2866 = vunpack.c.l.b16 %v793
  %v2867 = vunpack.c.h.b16 %v793
  %v2868 = vunpack.c.l.b16 %v794
  %v2869 = vunpack.c.l.b16 %v795
  %v2870 = vunpack.c.h.b16 %v795
  %v2871 = vunpack.c.l.b16 %v796
  %v2872 = vunpack.c.l.b16 %v797
  %v2873 = vunpack.c.h.b16 %v797
  %v2874 = vunpack.c.l.b16 %v798
  %v2875 = vunpack.c.l.b16 %v799
  %v2876 = vunpack.c.h.b16 %v799
  %v2877 = vunpack.c.l.b16 %v800
  %v2878 = vunpack.c.l.b16 %v801
  %v2879 = vunpack.c.h.b16 %v801
  %v2880 = vunpack.c.l.b16 %v802
  %v2881 = vunpack.c.l.b16 %v803
  %v2882 = vunpack.c.h.b16 %v803
  %v2883 = vunpack.c.l.b16 %v804
  %v2884 = vunpack.c.l.b16 %v805
  %v2885 = vunpack.c.h.b16 %v805
  %v2886 = vunpack.c.l.b16 %v806
  %v2887 = vunpack.c.l.b16 %v807
  %v2888 = vunpack.c.h.b16 %v807
  %v2889 = vunpack.c.l.b16 %v808
  %v2890 = vunpack.c.l.b16 %v809
  %v2891 = vunpack.c.h.b16 %v809
  %v2892 = vunpack.c.l.b16 %v810
  %v2893 = vunpack.c.l.b16 %v811
  %v2894 = vunpack.c.h.b16 %v811
  %v2895 = vunpack.c.l.b16 %v812
  %v2896 = vunpack.c.l.b16 %v813
  %v2897 = vunpack.c.h.b16 %v813
  %v2898 = vunpack.c.l.b16 %v814
  %v2899 = vunpack.c.l.b16 %v815
  %v2900 = vunpack.c.h.b16 %v815
  %v2901 = vunpack.c.l.b16 %v816
  %v2902 = vunpack.c.l.b16 %v817
  %v2903 = vunpack.c.h.b16 %v817
  %v2904 = vunpack.c.l.b16 %v818
  %v2905 = vunpack.c.l.b16 %v819
  %v2906 = vunpack.c.h.b16 %v819
  %v2907 = vunpack.c.l.b16 %v820
  %v2908 = vunpack.c.l.b16 %v821
  %v2909 = vunpack.c.h.b16 %v821
  %v2910 = vunpack.c.l.b16 %v822
  %v2911 = vunpack.c.l.b16 %v823
  %v2912 = vunpack.c.h.b16 %v823
  %v2913 = vunpack.c.l.b16 %v824
  %v2914 = vunpack.c.l.b16 %v825
  %v2915 = vunpack.c.h.b16 %v825
  %v2916 = vunpack.c.l.b16 %v826
  %v2917 = vunpack.c.l.b16 %v827
  %v2918 = vunpack.c.h.b16 %v827
  %v2919 = vunpack.c.l.b16 %v828
  %v2920 = vunpack.c.l.b16 %v829
  %v2921 = vunpack.c.h.b16 %v829
  %v2922 = vunpack.c.l.b16 %v830
  %v2923 = vunpack.c.l.b16 %v831
  %v2924 = vunpack.c.h.b16 %v831
  %v2925 = vunpack.c.l.b16 %v832
  %v2926 = vunpack.c.l.b16 %v833
  %v2927 = vunpack.c.h.b16 %v833
  %v2928 = vunpack.c.l.b16 %v834
  %v2929 = vunpack.c.l.b16 %v835
  %v2930 = vunpack.c.h.b16 %v835
  %v2931 = vunpack.c.l.b16 %v836
  %v2932 = vunpack.c.l.b16 %v837
  %v2933 = vunpack.c.h.b16 %v837
  %v2934 = vunpack.c.l.b16 %v838
  %v2935 = vpack.c.b16 %v1738, %v1735
  %v2936 = vpack.c.b16 %v1739, %v1736
  %v2937 = vpack.c.b16 %v1740, %v1737
  %v2938 = vpack.c.b16 %v1744, %v1741
  %v2939 = vpack.c.b16 %v1745, %v1742
  %v2940 = vpack.c.b16 %v1746, %v1743
  %v2941 = vpack.c.b16 %v1750, %v1747
  %v2942 = vpack.c.b16 %v1751, %v1748
  %v2943 = vpack.c.b16 %v1752, %v1749
  %v2944 = vpack.c.b16 %v1756, %v1753
  %v2945 = vpack.c.b16 %v1757, %v1754
  %v2946 = vpack.c.b16 %v1758, %v1755
  %v2947 = vpack.c.b16 %v1762, %v1759
  %v2948 = vpack.c.b16 %v1763, %v1760
  %v2949 = vpack.c.b16 %v1764, %v1761
  %v2950 = vpack.c.b16 %v1768, %v1765
  %v2951 = vpack.c.b16 %v1769, %v1766
  %v2952 = vpack.c.b16 %v1770, %v1767
  %v2953 = vpack.c.b16 %v1774, %v1771
  %v2954 = vpack.c.b16 %v1775, %v1772
  %v2955 = vpack.c.b16 %v1776, %v1773
  %v2956 = vpack.c.b16 %v1780, %v1777
  %v2957 = vpack.c.b16 %v1781, %v1778
  %v2958 = vpack.c.b16 %v1782, %v1779
  %v2959 = vpack.c.b16 %v1786, %v1783
  %v2960 = vpack.c.b16 %v1787, %v1784
  %v2961 = vpack.c.b16 %v1788, %v1785
  %v2962 = vpack.c.b16 %v1792, %v1789
  %v2963 = vpack.c.b16 %v1793, %v1790
  %v2964 = vpack.c.b16 %v1794, %v1791
  %v2965 = vpack.c.b16 %v1798, %v1795
  %v2966 = vpack.c.b16 %v1799, %v1796
  %v2967 = vpack.c.b16 %v1800, %v1797
  %v2968 = vpack.c.b16 %v1804, %v1801
  %v2969 = vpack.c.b16 %v1805, %v1802
  %v2970 = vpack.c.b16 %v1806, %v1803
  %v2971 = vpack.c.b16 %v1810, %v1807
  %v2972 = vpack.c.b16 %v1811, %v1808
  %v2973 = vpack.c.b16 %v1812, %v1809
  %v2974 = vpack.c.b16 %v1816, %v1813
  %v2975 = vpack.c.b16 %v1817, %v1814
  %v2976 = vpack.c.b16 %v1818, %v1815
  %v2977 = vpack.c.b16 %v1822, %v1819
  %v2978 = vpack.c.b16 %v1823, %v1820
  %v2979 = vpack.c.b16 %v1824, %v1821
  %v2980 = vpack.c.b16 %v1828, %v1825
  %v2981 = vpack.c.b16 %v1829, %v1826
  %v2982 = vpack.c.b16 %v1830, %v1827
  %v2983 = vpack.c.b16 %v1834, %v1831
  %v2984 = vpack.c.b16 %v1835, %v1832
  %v2985 = vpack.c.b16 %v1836, %v1833
  %v2986 = vpack.c.b16 %v1840, %v1837
  %v2987 = vpack.c.b16 %v1841, %v1838
  %v2988 = vpack.c.b16 %v1842, %v1839
  %v2989 = vpack.c.b16 %v1846, %v1843
  %v2990 = vpack.c.b16 %v1847, %v1844
  %v2991 = vpack.c.b16 %v1848, %v1845
  %v2992 = vpack.c.b16 %v1852, %v1849
  %v2993 = vpack.c.b16 %v1853, %v1850
  %v2994 = vpack.c.b16 %v1854, %v1851
  %v2995 = vpack.c.b16 %v1858, %v1855
  %v2996 = vpack.c.b16 %v1859, %v1856
  %v2997 = vpack.c.b16 %v1860, %v1857
  %v2998 = vpack.c.b16 %v1864, %v1861
  %v2999 = vpack.c.b16 %v1865, %v1862
  %v3000 = vpack.c.b16 %v1866, %v1863
  %v3001 = vpack.c.b16 %v1870, %v1867
  %v3002 = vpack.c.b16 %v1871, %v1868
  %v3003 = vpack.c.b16 %v1872, %v1869
  %v3004 = vpack.c.b16 %v1876, %v1873
  %v3005 = vpack.c.b16 %v1877, %v1874
  %v3006 = vpack.c.b16 %v1878, %v1875
  %v3007 = vpack.c.b16 %v1882, %v1879
  %v3008 = vpack.c.b16 %v1883, %v1880
  %v3009 = vpack.c.b16 %v1884, %v1881
  %v3010 = vpack.c.b16 %v1888, %v1885
  %v3011 = vpack.c.b16 %v1889, %v1886
  %v3012 = vpack.c.b16 %v1890, %v1887
  %v3013 = vpack.c.b16 %v1894, %v1891
  %v3014 = vpack.c.b16 %v1895, %v1892
  %v3015 = vpack.c.b16 %v1896, %v1893
  %v3016 = vpack.c.b16 %v1900, %v1897
  %v3017 = vpack.c.b16 %v1901, %v1898
  %v3018 = vpack.c.b16 %v1902, %v1899
  %v3019 = vpack.c.b16 %v1906, %v1903
  %v3020 = vpack.c.b16 %v1907, %v1904
  %v3021 = vpack.c.b16 %v1908, %v1905
  %v3022 = vpack.c.b16 %v1912, %v1909
  %v3023 = vpack.c.b16 %v1913, %v1910
  %v3024 = vpack.c.b16 %v1914, %v1911
  %v3025 = vpack.c.b16 %v1918, %v1915
  %v3026 = vpack.c.b16 %v1919, %v1916
  %v3027 = vpack.c.b16 %v1920, %v1917
  %v3028 = vpack.c.b16 %v1924, %v1921
  %v3029 = vpack.c.b16 %v1925, %v1922
  %v3030 = vpack.c.b16 %v1926, %v1923
  %v3031 = vpack.c.b16 %v1930, %v1927
  %v3032 = vpack.c.b16 %v1931, %v1928
  %v3033 = vpack.c.b16 %v1932, %v1929
  %v3034 = vpack.c.b16 %v1936, %v1933
  %v3035 = vpack.c.b16 %v1937, %v1934
  %v3036 = vpack.c.b16 %v1938, %v1935
  %v3037 = vpack.c.b16 %v1942, %v1939
  %v3038 = vpack.c.b16 %v1943, %v1940
  %v3039 = vpack.c.b16 %v1944, %v1941
  %v3040 = vpack.c.b16 %v1948, %v1945
  %v3041 = vpack.c.b16 %v1949, %v1946
  %v3042 = vpack.c.b16 %v1950, %v1947
  %v3043 = vpack.c.b16 %v1954, %v1951
  %v3044 = vpack.c.b16 %v1955, %v1952
  %v3045 = vpack.c.b16 %v1956, %v1953
  %v3046 = vpack.c.b16 %v1960, %v1957
  %v3047 = vpack.c.b16 %v1961, %v1958
  %v3048 = vpack.c.b16 %v1962, %v1959
  %v3049 = vpack.c.b16 %v1966, %v1963
  %v3050 = vpack.c.b16 %v1967, %v1964
  %v3051 = vpack.c.b16 %v1968, %v1965
  %v3052 = vpack.c.b16 %v1972, %v1969
  %v3053 = vpack.c.b16 %v1973, %v1970
  %v3054 = vpack.c.b16 %v1974, %v1971
  %v3055 = vpack.c.b16 %v1978, %v1975
  %v3056 = vpack.c.b16 %v1979, %v1976
  %v3057 = vpack.c.b16 %v1980, %v1977
  %v3058 = vpack.c.b16 %v1984, %v1981
  %v3059 = vpack.c.b16 %v1985, %v1982
  %v3060 = vpack.c.b16 %v1986, %v1983
  %v3061 = vpack.c.b16 %v1990, %v1987
  %v3062 = vpack.c.b16 %v1991, %v1988
  %v3063 = vpack.c.b16 %v1992, %v1989
  %v3064 = vpack.c.b16 %v1996, %v1993
  %v3065 = vpack.c.b16 %v1997, %v1994
  %v3066 = vpack.c.b16 %v1998, %v1995
  %v3067 = vpack.c.b16 %v2002, %v1999
  %v3068 = vpack.c.b16 %v2003, %v2000
  %v3069 = vpack.c.b16 %v2004, %v2001
  %v3070 = vpack.c.b16 %v2008, %v2005
  %v3071 = vpack.c.b16 %v2009, %v2006
  %v3072 = vpack.c.b16 %v2010, %v2007
  %v3073 = vpack.c.b16 %v2014, %v2011
  %v3074 = vpack.c.b16 %v2015, %v2012
  %v3075 = vpack.c.b16 %v2016, %v2013
  %v3076 = vpack.c.b16 %v2020, %v2017
  %v3077 = vpack.c.b16 %v2021, %v2018
  %v3078 = vpack.c.b16 %v2022, %v2019
  %v3079 = vpack.c.b16 %v2026, %v2023
  %v3080 = vpack.c.b16 %v2027, %v2024
  %v3081 = vpack.c.b16 %v2028, %v2025
  %v3082 = vpack.c.b16 %v2032, %v2029
  %v3083 = vpack.c.b16 %v2033, %v2030
  %v3084 = vpack.c.b16 %v2034, %v2031
  %v3085 = vpack.c.b16 %v2038, %v2035
  %v3086 = vpack.c.b16 %v2039, %v2036
  %v3087 = vpack.c.b16 %v2040, %v2037
  %v3088 = vpack.c.b16 %v2044, %v2041
  %v3089 = vpack.c.b16 %v2045, %v2042
  %v3090 = vpack.c.b16 %v2046, %v2043
  %v3091 = vpack.c.b16 %v2050, %v2047
  %v3092 = vpack.c.b16 %v2051, %v2048
  %v3093 = vpack.c.b16 %v2052, %v2049
  %v3094 = vpack.c.b16 %v2056, %v2053
  %v3095 = vpack.c.b16 %v2057, %v2054
  %v3096 = vpack.c.b16 %v2058, %v2055
  %v3097 = vpack.c.b16 %v2062, %v2059
  %v3098 = vpack.c.b16 %v2063, %v2060
  %v3099 = vpack.c.b16 %v2064, %v2061
  %v3100 = vpack.c.b16 %v2068, %v2065
  %v3101 = vpack.c.b16 %v2069, %v2066
  %v3102 = vpack.c.b16 %v2070, %v2067
  %v3103 = vpack.c.b16 %v2074, %v2071
  %v3104 = vpack.c.b16 %v2075, %v2072
  %v3105 = vpack.c.b16 %v2076, %v2073
  %v3106 = vpack.c.b16 %v2080, %v2077
  %v3107 = vpack.c.b16 %v2081, %v2078
  %v3108 = vpack.c.b16 %v2082, %v2079
  %v3109 = vpack.c.b16 %v2086, %v2083
  %v3110 = vpack.c.b16 %v2087, %v2084
  %v3111 = vpack.c.b16 %v2088, %v2085
  %v3112 = vpack.c.b16 %v2092, %v2089
  %v3113 = vpack.c.b16 %v2093, %v2090
  %v3114 = vpack.c.b16 %v2094, %v2091
  %v3115 = vpack.c.b16 %v2098, %v2095
  %v3116 = vpack.c.b16 %v2099, %v2096
  %v3117 = vpack.c.b16 %v2100, %v2097
  %v3118 = vpack.c.b16 %v2104, %v2101
  %v3119 = vpack.c.b16 %v2105, %v2102
  %v3120 = vpack.c.b16 %v2106, %v2103
  %v3121 = vpack.c.b16 %v2110, %v2107
  %v3122 = vpack.c.b16 %v2111, %v2108
  %v3123 = vpack.c.b16 %v2112, %v2109
  %v3124 = vpack.c.b16 %v2116, %v2113
  %v3125 = vpack.c.b16 %v2117, %v2114
  %v3126 = vpack.c.b16 %v2118, %v2115
  %v3127 = vpack.c.b16 %v2122, %v2119
  %v3128 = vpack.c.b16 %v2123, %v2120
  %v3129 = vpack.c.b16 %v2124, %v2121
  %v3130 = vpack.c.b16 %v2128, %v2125
  %v3131 = vpack.c.b16 %v2129, %v2126
  %v3132 = vpack.c.b16 %v2130, %v2127
  %v3133 = vpack.c.b16 %v2134, %v2131
  %v3134 = vpack.c.b16 %v2135, %v2132
  %v3135 = vpack.c.b16 %v2136, %v2133
  %v3136 = vpack.c.b16 %v2140, %v2137
  %v3137 = vpack.c.b16 %v2141, %v2138
  %v3138 = vpack.c.b16 %v2142, %v2139
  %v3139 = vpack.c.b16 %v2146, %v2143
  %v3140 = vpack.c.b16 %v2147, %v2144
  %v3141 = vpack.c.b16 %v2148, %v2145
  %v3142 = vpack.c.b16 %v2152, %v2149
  %v3143 = vpack.c.b16 %v2153, %v2150
  %v3144 = vpack.c.b16 %v2154, %v2151
  %v3145 = vpack.c.b16 %v2158, %v2155
  %v3146 = vpack.c.b16 %v2159, %v2156
  %v3147 = vpack.c.b16 %v2160, %v2157
  %v3148 = vpack.c.b16 %v2164, %v2161
  %v3149 = vpack.c.b16 %v2165, %v2162
  %v3150 = vpack.c.b16 %v2166, %v2163
  %v3151 = vpack.c.b16 %v2170, %v2167
  %v3152 = vpack.c.b16 %v2171, %v2168
  %v3153 = vpack.c.b16 %v2172, %v2169
  %v3154 = vpack.c.b16 %v2176, %v2173
  %v3155 = vpack.c.b16 %v2177, %v2174
  %v3156 = vpack.c.b16 %v2178, %v2175
  %v3157 = vpack.c.b16 %v2182, %v2179
  %v3158 = vpack.c.b16 %v2183, %v2180
  %v3159 = vpack.c.b16 %v2184, %v2181
  %v3160 = vpack.c.b16 %v2188, %v2185
  %v3161 = vpack.c.b16 %v2189, %v2186
  %v3162 = vpack.c.b16 %v2190, %v2187
  %v3163 = vpack.c.b16 %v2194, %v2191
  %v3164 = vpack.c.b16 %v2195, %v2192
  %v3165 = vpack.c.b16 %v2196, %v2193
  %v3166 = vpack.c.b16 %v2200, %v2197
  %v3167 = vpack.c.b16 %v2201, %v2198
  %v3168 = vpack.c.b16 %v2202, %v2199
  %v3169 = vpack.c.b16 %v2206, %v2203
  %v3170 = vpack.c.b16 %v2207, %v2204
  %v3171 = vpack.c.b16 %v2208, %v2205
  %v3172 = vpack.c.b16 %v2212, %v2209
  %v3173 = vpack.c.b16 %v2213, %v2210
  %v3174 = vpack.c.b16 %v2214, %v2211
  %v3175 = vpack.c.b16 %v2218, %v2215
  %v3176 = vpack.c.b16 %v2219, %v2216
  %v3177 = vpack.c.b16 %v2220, %v2217
  %v3178 = vpack.c.b16 %v2224, %v2221
  %v3179 = vpack.c.b16 %v2225, %v2222
  %v3180 = vpack.c.b16 %v2226, %v2223
  %v3181 = vpack.c.b16 %v2230, %v2227
  %v3182 = vpack.c.b16 %v2231, %v2228
  %v3183 = vpack.c.b16 %v2232, %v2229
  %v3184 = vpack.c.b16 %v2236, %v2233
  %v3185 = vpack.c.b16 %v2237, %v2234
  %v3186 = vpack.c.b16 %v2238, %v2235
  %v3187 = vpack.c.b16 %v2242, %v2239
  %v3188 = vpack.c.b16 %v2243, %v2240
  %v3189 = vpack.c.b16 %v2244, %v2241
  %v3190 = vpack.c.b16 %v2248, %v2245
  %v3191 = vpack.c.b16 %v2249, %v2246
  %v3192 = vpack.c.b16 %v2250, %v2247
  %v3193 = vpack.c.b16 %v2254, %v2251
  %v3194 = vpack.c.b16 %v2255, %v2252
  %v3195 = vpack.c.b16 %v2256, %v2253
  %v3196 = vpack.c.b16 %v2260, %v2257
  %v3197 = vpack.c.b16 %v2261, %v2258
  %v3198 = vpack.c.b16 %v2262, %v2259
  %v3199 = vpack.c.b16 %v2266, %v2263
  %v3200 = vpack.c.b16 %v2267, %v2264
  %v3201 = vpack.c.b16 %v2268, %v2265
  %v3202 = vpack.c.b16 %v2272, %v2269
  %v3203 = vpack.c.b16 %v2273, %v2270
  %v3204 = vpack.c.b16 %v2274, %v2271
  %v3205 = vpack.c.b16 %v2278, %v2275
  %v3206 = vpack.c.b16 %v2279, %v2276
  %v3207 = vpack.c.b16 %v2280, %v2277
  %v3208 = vpack.c.b16 %v2284, %v2281
  %v3209 = vpack.c.b16 %v2285, %v2282
  %v3210 = vpack.c.b16 %v2286, %v2283
  %v3211 = vpack.c.b16 %v2290, %v2287
  %v3212 = vpack.c.b16 %v2291, %v2288
  %v3213 = vpack.c.b16 %v2292, %v2289
  %v3214 = vpack.c.b16 %v2296, %v2293
  %v3215 = vpack.c.b16 %v2297, %v2294
  %v3216 = vpack.c.b16 %v2298, %v2295
  %v3217 = vpack.c.b16 %v2302, %v2299
  %v3218 = vpack.c.b16 %v2303, %v2300
  %v3219 = vpack.c.b16 %v2304, %v2301
  %v3220 = vpack.c.b16 %v2308, %v2305
  %v3221 = vpack.c.b16 %v2309, %v2306
  %v3222 = vpack.c.b16 %v2310, %v2307
  %v3223 = vpack.c.b16 %v2314, %v2311
  %v3224 = vpack.c.b16 %v2315, %v2312
  %v3225 = vpack.c.b16 %v2316, %v2313
  %v3226 = vpack.c.b16 %v2320, %v2317
  %v3227 = vpack.c.b16 %v2321, %v2318
  %v3228 = vpack.c.b16 %v2322, %v2319
  %v3229 = vpack.c.b16 %v2326, %v2323
  %v3230 = vpack.c.b16 %v2327, %v2324
  %v3231 = vpack.c.b16 %v2328, %v2325
  %v3232 = vpack.c.b16 %v2332, %v2329
  %v3233 = vpack.c.b16 %v2333, %v2330
  %v3234 = vpack.c.b16 %v2334, %v2331
  %v3235 = vpack.c.b16 %v2338, %v2335
  %v3236 = vpack.c.b16 %v2339, %v2336
  %v3237 = vpack.c.b16 %v2340, %v2337
  %v3238 = vpack.c.b16 %v2344, %v2341
  %v3239 = vpack.c.b16 %v2345, %v2342
  %v3240 = vpack.c.b16 %v2346, %v2343
  %v3241 = vpack.c.b16 %v2350, %v2347
  %v3242 = vpack.c.b16 %v2351, %v2348
  %v3243 = vpack.c.b16 %v2352, %v2349
  %v3244 = vpack.c.b16 %v2356, %v2353
  %v3245 = vpack.c.b16 %v2357, %v2354
  %v3246 = vpack.c.b16 %v2358, %v2355
  %v3247 = vpack.c.b16 %v2362, %v2359
  %v3248 = vpack.c.b16 %v2363, %v2360
  %v3249 = vpack.c.b16 %v2364, %v2361
  %v3250 = vpack.c.b16 %v2368, %v2365
  %v3251 = vpack.c.b16 %v2369, %v2366
  %v3252 = vpack.c.b16 %v2370, %v2367
  %v3253 = vpack.c.b16 %v2374, %v2371
  %v3254 = vpack.c.b16 %v2375, %v2372
  %v3255 = vpack.c.b16 %v2376, %v2373
  %v3256 = vpack.c.b16 %v2380, %v2377
  %v3257 = vpack.c.b16 %v2381, %v2378
  %v3258 = vpack.c.b16 %v2382, %v2379
  %v3259 = vpack.c.b16 %v2386, %v2383
  %v3260 = vpack.c.b16 %v2387, %v2384
  %v3261 = vpack.c.b16 %v2388, %v2385
  %v3262 = vpack.c.b16 %v2392, %v2389
  %v3263 = vpack.c.b16 %v2393, %v2390
  %v3264 = vpack.c.b16 %v2394, %v2391
  %v3265 = vpack.c.b16 %v2398, %v2395
  %v3266 = vpack.c.b16 %v2399, %v2396
  %v3267 = vpack.c.b16 %v2400, %v2397
  %v3268 = vpack.c.b16 %v2404, %v2401
  %v3269 = vpack.c.b16 %v2405, %v2402
  %v3270 = vpack.c.b16 %v2406, %v2403
  %v3271 = vpack.c.b16 %v2410, %v2407
  %v3272 = vpack.c.b16 %v2411, %v2408
  %v3273 = vpack.c.b16 %v2412, %v2409
  %v3274 = vpack.c.b16 %v2416, %v2413
  %v3275 = vpack.c.b16 %v2417, %v2414
  %v3276 = vpack.c.b16 %v2418, %v2415
  %v3277 = vpack.c.b16 %v2422, %v2419
  %v3278 = vpack.c.b16 %v2423, %v2420
  %v3279 = vpack.c.b16 %v2424, %v2421
  %v3280 = vpack.c.b16 %v2428, %v2425
  %v3281 = vpack.c.b16 %v2429, %v2426
  %v3282 = vpack.c.b16 %v2430, %v2427
  %v3283 = vpack.c.b16 %v2434, %v2431
  %v3284 = vpack.c.b16 %v2435, %v2432
  %v3285 = vpack.c.b16 %v2436, %v2433
  %v3286 = vpack.c.b16 %v2440, %v2437
  %v3287 = vpack.c.b16 %v2441, %v2438
  %v3288 = vpack.c.b16 %v2442, %v2439
  %v3289 = vpack.c.b16 %v2446, %v2443
  %v3290 = vpack.c.b16 %v2447, %v2444
  %v3291 = vpack.c.b16 %v2448, %v2445
  %v3292 = vpack.c.b16 %v2452, %v2449
  %v3293 = vpack.c.b16 %v2453, %v2450
  %v3294 = vpack.c.b16 %v2454, %v2451
  %v3295 = vpack.c.b16 %v2458, %v2455
  %v3296 = vpack.c.b16 %v2459, %v2456
  %v3297 = vpack.c.b16 %v2460, %v2457
  %v3298 = vpack.c.b16 %v2464, %v2461
  %v3299 = vpack.c.b16 %v2465, %v2462
  %v3300 = vpack.c.b16 %v2466, %v2463
  %v3301 = vpack.c.b16 %v2470, %v2467
  %v3302 = vpack.c.b16 %v2471, %v2468
  %v3303 = vpack.c.b16 %v2472, %v2469
  %v3304 = vpack.c.b16 %v2476, %v2473
  %v3305 = vpack.c.b16 %v2477, %v2474
  %v3306 = vpack.c.b16 %v2478, %v2475
  %v3307 = vpack.c.b16 %v2482, %v2479
  %v3308 = vpack.c.b16 %v2483, %v2480
  %v3309 = vpack.c.b16 %v2484, %v2481
  %v3310 = vpack.c.b16 %v2488, %v2485
  %v3311 = vpack.c.b16 %v2489, %v2486
  %v3312 = vpack.c.b16 %v2490, %v2487
  %v3313 = vpack.c.b16 %v2494, %v2491
  %v3314 = vpack.c.b16 %v2495, %v2492
  %v3315 = vpack.c.b16 %v2496, %v2493
  %v3316 = vpack.c.b16 %v2500, %v2497
  %v3317 = vpack.c.b16 %v2501, %v2498
  %v3318 = vpack.c.b16 %v2502, %v2499
  %v3319 = vpack.c.b16 %v2506, %v2503
  %v3320 = vpack.c.b16 %v2507, %v2504
  %v3321 = vpack.c.b16 %v2508, %v2505
  %v3322 = vpack.c.b16 %v2512, %v2509
  %v3323 = vpack.c.b16 %v2513, %v2510
  %v3324 = vpack.c.b16 %v2514, %v2511
  %v3325 = vpack.c.b16 %v2518, %v2515
  %v3326 = vpack.c.b16 %v2519, %v2516
  %v3327 = vpack.c.b16 %v2520, %v2517
  %v3328 = vpack.c.b16 %v2524, %v2521
  %v3329 = vpack.c.b16 %v2525, %v2522
  %v3330 = vpack.c.b16 %v2526, %v2523
  %v3331 = vpack.c.b16 %v2530, %v2527
  %v3332 = vpack.c.b16 %v2531, %v2528
  %v3333 = vpack.c.b16 %v2532, %v2529
  %v3334 = vpack.c.b16 %v2536, %v2533
  %v3335 = vpack.c.b16 %v2537, %v2534
  %v3336 = vpack.c.b16 %v2538, %v2535
  %v3337 = vpack.c.b16 %v2542, %v2539
  %v3338 = vpack.c.b16 %v2543, %v2540
  %v3339 = vpack.c.b16 %v2544, %v2541
  %v3340 = vpack.c.b16 %v2548, %v2545
  %v3341 = vpack.c.b16 %v2549, %v2546
  %v3342 = vpack.c.b16 %v2550, %v2547
  %v3343 = vpack.c.b16 %v2554, %v2551
  %v3344 = vpack.c.b16 %v2555, %v2552
  %v3345 = vpack.c.b16 %v2556, %v2553
  %v3346 = vpack.c.b16 %v2560, %v2557
  %v3347 = vpack.c.b16 %v2561, %v2558
  %v3348 = vpack.c.b16 %v2562, %v2559
  %v3349 = vpack.c.b16 %v2566, %v2563
  %v3350 = vpack.c.b16 %v2567, %v2564
  %v3351 = vpack.c.b16 %v2568, %v2565
  %v3352 = vpack.c.b16 %v2572, %v2569
  %v3353 = vpack.c.b16 %v2573, %v2570
  %v3354 = vpack.c.b16 %v2574, %v2571
  %v3355 = vpack.c.b16 %v2578, %v2575
  %v3356 = vpack.c.b16 %v2579, %v2576
  %v3357 = vpack.c.b16 %v2580, %v2577
  %v3358 = vpack.c.b16 %v2584, %v2581
  %v3359 = vpack.c.b16 %v2585, %v2582
  %v3360 = vpack.c.b16 %v2586, %v2583
  %v3361 = vpack.c.b16 %v2590, %v2587
  %v3362 = vpack.c.b16 %v2591, %v2588
  %v3363 = vpack.c.b16 %v2592, %v2589
  %v3364 = vpack.c.b16 %v2596, %v2593
  %v3365 = vpack.c.b16 %v2597, %v2594
  %v3366 = vpack.c.b16 %v2598, %v2595
  %v3367 = vpack.c.b16 %v2602, %v2599
  %v3368 = vpack.c.b16 %v2603, %v2600
  %v3369 = vpack.c.b16 %v2604, %v2601
  %v3370 = vpack.c.b16 %v2608, %v2605
  %v3371 = vpack.c.b16 %v2609, %v2606
  %v3372 = vpack.c.b16 %v2610, %v2607
  %v3373 = vpack.c.b16 %v2614, %v2611
  %v3374 = vpack.c.b16 %v2615, %v2612
  %v3375 = vpack.c.b16 %v2616, %v2613
  %v3376 = vpack.c.b16 %v2620, %v2617
  %v3377 = vpack.c.b16 %v2621, %v2618
  %v3378 = vpack.c.b16 %v2622, %v2619
  %v3379 = vpack.c.b16 %v2626, %v2623
  %v3380 = vpack.c.b16 %v2627, %v2624
  %v3381 = vpack.c.b16 %v2628, %v2625
  %v3382 = vpack.c.b16 %v2632, %v2629
  %v3383 = vpack.c.b16 %v2633, %v2630
  %v3384 = vpack.c.b16 %v2634, %v2631
  %v3385 = vpack.c.b16 %v2638, %v2635
  %v3386 = vpack.c.b16 %v2639, %v2636
  %v3387 = vpack.c.b16 %v2640, %v2637
  %v3388 = vpack.c.b16 %v2644, %v2641
  %v3389 = vpack.c.b16 %v2645, %v2642
  %v3390 = vpack.c.b16 %v2646, %v2643
  %v3391 = vpack.c.b16 %v2650, %v2647
  %v3392 = vpack.c.b16 %v2651, %v2648
  %v3393 = vpack.c.b16 %v2652, %v2649
  %v3394 = vpack.c.b16 %v2656, %v2653
  %v3395 = vpack.c.b16 %v2657, %v2654
  %v3396 = vpack.c.b16 %v2658, %v2655
  %v3397 = vpack.c.b16 %v2662, %v2659
  %v3398 = vpack.c.b16 %v2663, %v2660
  %v3399 = vpack.c.b16 %v2664, %v2661
  %v3400 = vpack.c.b16 %v2668, %v2665
  %v3401 = vpack.c.b16 %v2669, %v2666
  %v3402 = vpack.c.b16 %v2670, %v2667
  %v3403 = vpack.c.b16 %v2674, %v2671
  %v3404 = vpack.c.b16 %v2675, %v2672
  %v3405 = vpack.c.b16 %v2676, %v2673
  %v3406 = vpack.c.b16 %v2680, %v2677
  %v3407 = vpack.c.b16 %v2681, %v2678
  %v3408 = vpack.c.b16 %v2682, %v2679
  %v3409 = vpack.c.b16 %v2686, %v2683
  %v3410 = vpack.c.b16 %v2687, %v2684
  %v3411 = vpack.c.b16 %v2688, %v2685
  %v3412 = vpack.c.b16 %v2692, %v2689
  %v3413 = vpack.c.b16 %v2693, %v2690
  %v3414 = vpack.c.b16 %v2694, %v2691
  %v3415 = vpack.c.b16 %v2698, %v2695
  %v3416 = vpack.c.b16 %v2699, %v2696
  %v3417 = vpack.c.b16 %v2700, %v2697
  %v3418 = vpack.c.b16 %v2704, %v2701
  %v3419 = vpack.c.b16 %v2705, %v2702
  %v3420 = vpack.c.b16 %v2706, %v2703
  %v3421 = vpack.c.b16 %v2710, %v2707
  %v3422 = vpack.c.b16 %v2711, %v2708
  %v3423 = vpack.c.b16 %v2712, %v2709
  %v3424 = vpack.c.b16 %v2716, %v2713
  %v3425 = vpack.c.b16 %v2717, %v2714
  %v3426 = vpack.c.b16 %v2718, %v2715
  %v3427 = vpack.c.b16 %v2722, %v2719
  %v3428 = vpack.c.b16 %v2723, %v2720
  %v3429 = vpack.c.b16 %v2724, %v2721
  %v3430 = vpack.c.b16 %v2728, %v2725
  %v3431 = vpack.c.b16 %v2729, %v2726
  %v3432 = vpack.c.b16 %v2730, %v2727
  %v3433 = vpack.c.b16 %v2734, %v2731
  %v3434 = vpack.c.b16 %v2735, %v2732
  %v3435 = vpack.c.b16 %v2736, %v2733
  %v3436 = vpack.c.b16 %v2740, %v2737
  %v3437 = vpack.c.b16 %v2741, %v2738
  %v3438 = vpack.c.b16 %v2742, %v2739
  %v3439 = vpack.c.b16 %v2746, %v2743
  %v3440 = vpack.c.b16 %v2747, %v2744
  %v3441 = vpack.c.b16 %v2748, %v2745
  %v3442 = vpack.c.b16 %v2752, %v2749
  %v3443 = vpack.c.b16 %v2753, %v2750
  %v3444 = vpack.c.b16 %v2754, %v2751
  %v3445 = vpack.c.b16 %v2758, %v2755
  %v3446 = vpack.c.b16 %v2759, %v2756
  %v3447 = vpack.c.b16 %v2760, %v2757
  %v3448 = vpack.c.b16 %v2764, %v2761
  %v3449 = vpack.c.b16 %v2765, %v2762
  %v3450 = vpack.c.b16 %v2766, %v2763
  %v3451 = vpack.c.b16 %v2770, %v2767
  %v3452 = vpack.c.b16 %v2771, %v2768
  %v3453 = vpack.c.b16 %v2772, %v2769
  %v3454 = vpack.c.b16 %v2776, %v2773
  %v3455 = vpack.c.b16 %v2777, %v2774
  %v3456 = vpack.c.b16 %v2778, %v2775
  %v3457 = vpack.c.b16 %v2782, %v2779
  %v3458 = vpack.c.b16 %v2783, %v2780
  %v3459 = vpack.c.b16 %v2784, %v2781
  %v3460 = vpack.c.b16 %v2788, %v2785
  %v3461 = vpack.c.b16 %v2789, %v2786
  %v3462 = vpack.c.b16 %v2790, %v2787
  %v3463 = vpack.c.b16 %v2794, %v2791
  %v3464 = vpack.c.b16 %v2795, %v2792
  %v3465 = vpack.c.b16 %v2796, %v2793
  %v3466 = vpack.c.b16 %v2800, %v2797
  %v3467 = vpack.c.b16 %v2801, %v2798
  %v3468 = vpack.c.b16 %v2802, %v2799
  %v3469 = vpack.c.b16 %v2806, %v2803
  %v3470 = vpack.c.b16 %v2807, %v2804
  %v3471 = vpack.c.b16 %v2808, %v2805
  %v3472 = vpack.c.b16 %v2812, %v2809
  %v3473 = vpack.c.b16 %v2813, %v2810
  %v3474 = vpack.c.b16 %v2814, %v2811
  %v3475 = vpack.c.b16 %v2818, %v2815
  %v3476 = vpack.c.b16 %v2819, %v2816
  %v3477 = vpack.c.b16 %v2820, %v2817
  %v3478 = vpack.c.b16 %v2824, %v2821
  %v3479 = vpack.c.b16 %v2825, %v2822
  %v3480 = vpack.c.b16 %v2826, %v2823
  %v3481 = vpack.c.b16 %v2830, %v2827
  %v3482 = vpack.c.b16 %v2831, %v2828
  %v3483 = vpack.c.b16 %v2832, %v2829
  %v3484 = vpack.c.b16 %v2836, %v2833
  %v3485 = vpack.c.b16 %v2837, %v2834
  %v3486 = vpack.c.b16 %v2838, %v2835
  %v3487 = vpack.c.b16 %v2842, %v2839
  %v3488 = vpack.c.b16 %v2843, %v2840
  %v3489 = vpack.c.b16 %v2844, %v2841
  %v3490 = vpack.c.b16 %v2848, %v2845
  %v3491 = vpack.c.b16 %v2849, %v2846
  %v3492 = vpack.c.b16 %v2850, %v2847
  %v3493 = vpack.c.b16 %v2854, %v2851
  %v3494 = vpack.c.b16 %v2855, %v2852
  %v3495 = vpack.c.b16 %v2856, %v2853
  %v3496 = vpack.c.b16 %v2860, %v2857
  %v3497 = vpack.c.b16 %v2861, %v2858
  %v3498 = vpack.c.b16 %v2862, %v2859
  %v3499 = vpack.c.b16 %v2866, %v2863
  %v3500 = vpack.c.b16 %v2867, %v2864
  %v3501 = vpack.c.b16 %v2868, %v2865
  %v3502 = vpack.c.b16 %v2872, %v2869
  %v3503 = vpack.c.b16 %v2873, %v2870
  %v3504 = vpack.c.b16 %v2874, %v2871
  %v3505 = vpack.c.b16 %v2878, %v2875
  %v3506 = vpack.c.b16 %v2879, %v2876
  %v3507 = vpack.c.b16 %v2880, %v2877
  %v3508 = vpack.c.b16 %v2884, %v2881
  %v3509 = vpack.c.b16 %v2885, %v2882
  %v3510 = vpack.c.b16 %v2886, %v2883
  %v3511 = vpack.c.b16 %v2890, %v2887
  %v3512 = vpack.c.b16 %v2891, %v2888
  %v3513 = vpack.c.b16 %v2892, %v2889
  %v3514 = vpack.c.b16 %v2896, %v2893
  %v3515 = vpack.c.b16 %v2897, %v2894
  %v3516 = vpack.c.b16 %v2898, %v2895
  %v3517 = vpack.c.b16 %v2902, %v2899
  %v3518 = vpack.c.b16 %v2903, %v2900
  %v3519 = vpack.c.b16 %v2904, %v2901
  %v3520 = vpack.c.b16 %v2908, %v2905
  %v3521 = vpack.c.b16 %v2909, %v2906
  %v3522 = vpack.c.b16 %v2910, %v2907
  %v3523 = vpack.c.b16 %v2914, %v2911
  %v3524 = vpack.c.b16 %v2915, %v2912
  %v3525 = vpack.c.b16 %v2916, %v2913
  %v3526 = vpack.c.b16 %v2920, %v2917
  %v3527 = vpack.c.b16 %v2921, %v2918
  %v3528 = vpack.c.b16 %v2922, %v2919
  %v3529 = vpack.c.b16 %v2926, %v2923
  %v3530 = vpack.c.b16 %v2927, %v2924
  %v3531 = vpack.c.b16 %v2928, %v2925
  %v3532 = vpack.c.b16 %v2932, %v2929
  %v3533 = vpack.c.b16 %v2933, %v2930
  %v3534 = vpack.c.b16 %v2934, %v2931
  %4135 = vmatpush.bf16.msra.mxu0 %v2956
  %4136 = vmatpush.bf16.msra.mxu0 %v2953
  %4137 = vmatpush.bf16.msra.mxu0 %v2950
  %4138 = vmatpush.bf16.msra.mxu0 %v2947
  %4139 = vmatpush.bf16.msra.mxu0 %v2944
  %4140 = vmatpush.bf16.msra.mxu0 %v2941
  %4141 = vmatpush.bf16.msra.mxu0 %v2938
  %4142 = vmatpush.bf16.msra.mxu0 %v2935
  %4143 = vmatmul.bf16.gmra.mxu0 %v885
  %v4144 = vpop.f32.mrf.mxu0
  %v4145 = vadd.f32 %v841, %v4144
  %v4146 = vpop.f32.mrf.mxu0
  %4147 = vdwg.mxu0
  %4148 = vmatpush.bf16.msra.mxu0 %v2980
  %4149 = vmatpush.bf16.msra.mxu0 %v2977
  %4150 = vmatpush.bf16.msra.mxu0 %v2974
  %4151 = vmatpush.bf16.msra.mxu0 %v2971
  %4152 = vmatpush.bf16.msra.mxu0 %v2968
  %4153 = vmatpush.bf16.msra.mxu0 %v2965
  %4154 = vmatpush.bf16.msra.mxu0 %v2962
  %4155 = vmatpush.bf16.msra.mxu0 %v2959
  %4156 = vmatmul.bf16.gmra.mxu0 %v886
  %v4157 = vpop.f32.mrf.mxu0
  %v4158 = vadd.f32 %v4145, %v4157
  %v4159 = vpop.f32.mrf.mxu0
  %4160 = vdwg.mxu0
  %4161 = vmatpush.bf16.msra.mxu0 %v3004
  %4162 = vmatpush.bf16.msra.mxu0 %v3001
  %4163 = vmatpush.bf16.msra.mxu0 %v2998
  %4164 = vmatpush.bf16.msra.mxu0 %v2995
  %4165 = vmatpush.bf16.msra.mxu0 %v2992
  %4166 = vmatpush.bf16.msra.mxu0 %v2989
  %4167 = vmatpush.bf16.msra.mxu0 %v2986
  %4168 = vmatpush.bf16.msra.mxu0 %v2983
  %4169 = vmatmul.bf16.gmra.mxu0 %v887
  %v4170 = vpop.f32.mrf.mxu0
  %v4171 = vadd.f32 %v4158, %v4170
  %v4172 = vpop.f32.mrf.mxu0
  %4173 = vdwg.mxu0
  %4174 = vmatpush.bf16.msra.mxu0 %v3028
  %4175 = vmatpush.bf16.msra.mxu0 %v3025
  %4176 = vmatpush.bf16.msra.mxu0 %v3022
  %4177 = vmatpush.bf16.msra.mxu0 %v3019
  %4178 = vmatpush.bf16.msra.mxu0 %v3016
  %4179 = vmatpush.bf16.msra.mxu0 %v3013
  %4180 = vmatpush.bf16.msra.mxu0 %v3010
  %4181 = vmatpush.bf16.msra.mxu0 %v3007
  %4182 = vmatmul.bf16.gmra.mxu0 %v888
  %v4183 = vpop.f32.mrf.mxu0
  %v4184 = vadd.f32 %v4171, %v4183
  %v4185 = vpop.f32.mrf.mxu0
  %4186 = vdwg.mxu0
  %4187 = vmatpush.bf16.msra.mxu0 %v3052
  %4188 = vmatpush.bf16.msra.mxu0 %v3049
  %4189 = vmatpush.bf16.msra.mxu0 %v3046
  %4190 = vmatpush.bf16.msra.mxu0 %v3043
  %4191 = vmatpush.bf16.msra.mxu0 %v3040
  %4192 = vmatpush.bf16.msra.mxu0 %v3037
  %4193 = vmatpush.bf16.msra.mxu0 %v3034
  %4194 = vmatpush.bf16.msra.mxu0 %v3031
  %4195 = vmatmul.bf16.gmra.mxu0 %v889
  %v4196 = vpop.f32.mrf.mxu0
  %v4197 = vadd.f32 %v4184, %v4196
  %v4198 = vpop.f32.mrf.mxu0
  %4199 = vdwg.mxu0
  %4200 = vmatpush.bf16.msra.mxu0 %v3076
  %4201 = vmatpush.bf16.msra.mxu0 %v3073
  %4202 = vmatpush.bf16.msra.mxu0 %v3070
  %4203 = vmatpush.bf16.msra.mxu0 %v3067
  %4204 = vmatpush.bf16.msra.mxu0 %v3064
  %4205 = vmatpush.bf16.msra.mxu0 %v3061
  %4206 = vmatpush.bf16.msra.mxu0 %v3058
  %4207 = vmatpush.bf16.msra.mxu0 %v3055
  %4208 = vmatmul.bf16.gmra.mxu0 %v890
  %v4209 = vpop.f32.mrf.mxu0
  %v4210 = vadd.f32 %v4197, %v4209
  %v4211 = vpop.f32.mrf.mxu0
  %4212 = vdwg.mxu0
  %4213 = vmatpush.bf16.msra.mxu0 %v3100
  %4214 = vmatpush.bf16.msra.mxu0 %v3097
  %4215 = vmatpush.bf16.msra.mxu0 %v3094
  %4216 = vmatpush.bf16.msra.mxu0 %v3091
  %4217 = vmatpush.bf16.msra.mxu0 %v3088
  %4218 = vmatpush.bf16.msra.mxu0 %v3085
  %4219 = vmatpush.bf16.msra.mxu0 %v3082
  %4220 = vmatpush.bf16.msra.mxu0 %v3079
  %4221 = vmatmul.bf16.gmra.mxu0 %v891
  %v4222 = vpop.f32.mrf.mxu0
  %v4223 = vadd.f32 %v4210, %v4222
  %v4224 = vpop.f32.mrf.mxu0
  %4225 = vdwg.mxu0
  %4226 = vmatpush.bf16.msra.mxu0 %v3124
  %4227 = vmatpush.bf16.msra.mxu0 %v3121
  %4228 = vmatpush.bf16.msra.mxu0 %v3118
  %4229 = vmatpush.bf16.msra.mxu0 %v3115
  %4230 = vmatpush.bf16.msra.mxu0 %v3112
  %4231 = vmatpush.bf16.msra.mxu0 %v3109
  %4232 = vmatpush.bf16.msra.mxu0 %v3106
  %4233 = vmatpush.bf16.msra.mxu0 %v3103
  %4234 = vmatmul.bf16.gmra.mxu0 %v892
  %v4235 = vpop.f32.mrf.mxu0
  %v4236 = vadd.f32 %v4223, %v4235
  %v4237 = vpop.f32.mrf.mxu0
  %4238 = vdwg.mxu0
  %4239 = vmatpush.bf16.msra.mxu0 %v3148
  %4240 = vmatpush.bf16.msra.mxu0 %v3145
  %4241 = vmatpush.bf16.msra.mxu0 %v3142
  %4242 = vmatpush.bf16.msra.mxu0 %v3139
  %4243 = vmatpush.bf16.msra.mxu0 %v3136
  %4244 = vmatpush.bf16.msra.mxu0 %v3133
  %4245 = vmatpush.bf16.msra.mxu0 %v3130
  %4246 = vmatpush.bf16.msra.mxu0 %v3127
  %4247 = vmatmul.bf16.gmra.mxu0 %v893
  %v4248 = vpop.f32.mrf.mxu0
  %v4249 = vadd.f32 %v4236, %v4248
  %v4250 = vpop.f32.mrf.mxu0
  %4251 = vdwg.mxu0
  %4252 = vmatpush.bf16.msra.mxu0 %v3172
  %4253 = vmatpush.bf16.msra.mxu0 %v3169
  %4254 = vmatpush.bf16.msra.mxu0 %v3166
  %4255 = vmatpush.bf16.msra.mxu0 %v3163
  %4256 = vmatpush.bf16.msra.mxu0 %v3160
  %4257 = vmatpush.bf16.msra.mxu0 %v3157
  %4258 = vmatpush.bf16.msra.mxu0 %v3154
  %4259 = vmatpush.bf16.msra.mxu0 %v3151
  %4260 = vmatmul.bf16.gmra.mxu0 %v894
  %v4261 = vpop.f32.mrf.mxu0
  %v4262 = vadd.f32 %v4249, %v4261
  %v4263 = vpop.f32.mrf.mxu0
  %4264 = vdwg.mxu0
  %4265 = vmatpush.bf16.msra.mxu0 %v3196
  %4266 = vmatpush.bf16.msra.mxu0 %v3193
  %4267 = vmatpush.bf16.msra.mxu0 %v3190
  %4268 = vmatpush.bf16.msra.mxu0 %v3187
  %4269 = vmatpush.bf16.msra.mxu0 %v3184
  %4270 = vmatpush.bf16.msra.mxu0 %v3181
  %4271 = vmatpush.bf16.msra.mxu0 %v3178
  %4272 = vmatpush.bf16.msra.mxu0 %v3175
  %4273 = vmatmul.bf16.gmra.mxu0 %v895
  %v4274 = vpop.f32.mrf.mxu0
  %v4275 = vadd.f32 %v4262, %v4274
  %v4276 = vpop.f32.mrf.mxu0
  %4277 = vdwg.mxu0
  %4278 = vmatpush.bf16.msra.mxu0 %v3220
  %4279 = vmatpush.bf16.msra.mxu0 %v3217
  %4280 = vmatpush.bf16.msra.mxu0 %v3214
  %4281 = vmatpush.bf16.msra.mxu0 %v3211
  %4282 = vmatpush.bf16.msra.mxu0 %v3208
  %4283 = vmatpush.bf16.msra.mxu0 %v3205
  %4284 = vmatpush.bf16.msra.mxu0 %v3202
  %4285 = vmatpush.bf16.msra.mxu0 %v3199
  %4286 = vmatmul.bf16.gmra.mxu0 %v896
  %v4287 = vpop.f32.mrf.mxu0
  %v4288 = vadd.f32 %v4275, %v4287
  %v4289 = vpop.f32.mrf.mxu0
  %4290 = vdwg.mxu0
  %4291 = vmatpush.bf16.msra.mxu0 %v3244
  %4292 = vmatpush.bf16.msra.mxu0 %v3241
  %4293 = vmatpush.bf16.msra.mxu0 %v3238
  %4294 = vmatpush.bf16.msra.mxu0 %v3235
  %4295 = vmatpush.bf16.msra.mxu0 %v3232
  %4296 = vmatpush.bf16.msra.mxu0 %v3229
  %4297 = vmatpush.bf16.msra.mxu0 %v3226
  %4298 = vmatpush.bf16.msra.mxu0 %v3223
  %4299 = vmatmul.bf16.gmra.mxu0 %v897
  %v4300 = vpop.f32.mrf.mxu0
  %v4301 = vadd.f32 %v4288, %v4300
  %v4302 = vpop.f32.mrf.mxu0
  %4303 = vdwg.mxu0
  %4304 = vmatpush.bf16.msra.mxu0 %v3268
  %4305 = vmatpush.bf16.msra.mxu0 %v3265
  %4306 = vmatpush.bf16.msra.mxu0 %v3262
  %4307 = vmatpush.bf16.msra.mxu0 %v3259
  %4308 = vmatpush.bf16.msra.mxu0 %v3256
  %4309 = vmatpush.bf16.msra.mxu0 %v3253
  %4310 = vmatpush.bf16.msra.mxu0 %v3250
  %4311 = vmatpush.bf16.msra.mxu0 %v3247
  %4312 = vmatmul.bf16.gmra.mxu0 %v898
  %v4313 = vpop.f32.mrf.mxu0
  %v4314 = vadd.f32 %v4301, %v4313
  %v4315 = vpop.f32.mrf.mxu0
  %4316 = vdwg.mxu0
  %4317 = vmatpush.bf16.msra.mxu0 %v3292
  %4318 = vmatpush.bf16.msra.mxu0 %v3289
  %4319 = vmatpush.bf16.msra.mxu0 %v3286
  %4320 = vmatpush.bf16.msra.mxu0 %v3283
  %4321 = vmatpush.bf16.msra.mxu0 %v3280
  %4322 = vmatpush.bf16.msra.mxu0 %v3277
  %4323 = vmatpush.bf16.msra.mxu0 %v3274
  %4324 = vmatpush.bf16.msra.mxu0 %v3271
  %4325 = vmatmul.bf16.gmra.mxu0 %v899
  %v4326 = vpop.f32.mrf.mxu0
  %v4327 = vadd.f32 %v4314, %v4326
  %v4328 = vpop.f32.mrf.mxu0
  %4329 = vdwg.mxu0
  %4330 = vmatpush.bf16.msra.mxu0 %v3316
  %4331 = vmatpush.bf16.msra.mxu0 %v3313
  %4332 = vmatpush.bf16.msra.mxu0 %v3310
  %4333 = vmatpush.bf16.msra.mxu0 %v3307
  %4334 = vmatpush.bf16.msra.mxu0 %v3304
  %4335 = vmatpush.bf16.msra.mxu0 %v3301
  %4336 = vmatpush.bf16.msra.mxu0 %v3298
  %4337 = vmatpush.bf16.msra.mxu0 %v3295
  %4338 = vmatmul.bf16.gmra.mxu0 %v900
  %v4339 = vpop.f32.mrf.mxu0
  %v4340 = vadd.f32 %v4327, %v4339
  %v4341 = vpop.f32.mrf.mxu0
  %4342 = vdwg.mxu0
  %4343 = vmatpush.bf16.msra.mxu0 %v3340
  %4344 = vmatpush.bf16.msra.mxu0 %v3337
  %4345 = vmatpush.bf16.msra.mxu0 %v3334
  %4346 = vmatpush.bf16.msra.mxu0 %v3331
  %4347 = vmatpush.bf16.msra.mxu0 %v3328
  %4348 = vmatpush.bf16.msra.mxu0 %v3325
  %4349 = vmatpush.bf16.msra.mxu0 %v3322
  %4350 = vmatpush.bf16.msra.mxu0 %v3319
  %4351 = vmatmul.bf16.gmra.mxu0 %v901
  %v4352 = vpop.f32.mrf.mxu0
  %v4353 = vadd.f32 %v4340, %v4352
  %v4354 = vpop.f32.mrf.mxu0
  %4355 = vdwg.mxu0
  %4356 = vmatpush.bf16.msra.mxu0 %v3364
  %4357 = vmatpush.bf16.msra.mxu0 %v3361
  %4358 = vmatpush.bf16.msra.mxu0 %v3358
  %4359 = vmatpush.bf16.msra.mxu0 %v3355
  %4360 = vmatpush.bf16.msra.mxu0 %v3352
  %4361 = vmatpush.bf16.msra.mxu0 %v3349
  %4362 = vmatpush.bf16.msra.mxu0 %v3346
  %4363 = vmatpush.bf16.msra.mxu0 %v3343
  %4364 = vmatmul.bf16.gmra.mxu0 %v902
  %v4365 = vpop.f32.mrf.mxu0
  %v4366 = vadd.f32 %v4353, %v4365
  %v4367 = vpop.f32.mrf.mxu0
  %4368 = vdwg.mxu0
  %4369 = vmatpush.bf16.msra.mxu0 %v3388
  %4370 = vmatpush.bf16.msra.mxu0 %v3385
  %4371 = vmatpush.bf16.msra.mxu0 %v3382
  %4372 = vmatpush.bf16.msra.mxu0 %v3379
  %4373 = vmatpush.bf16.msra.mxu0 %v3376
  %4374 = vmatpush.bf16.msra.mxu0 %v3373
  %4375 = vmatpush.bf16.msra.mxu0 %v3370
  %4376 = vmatpush.bf16.msra.mxu0 %v3367
  %4377 = vmatmul.bf16.gmra.mxu0 %v903
  %v4378 = vpop.f32.mrf.mxu0
  %v4379 = vadd.f32 %v4366, %v4378
  %v4380 = vpop.f32.mrf.mxu0
  %4381 = vdwg.mxu0
  %4382 = vmatpush.bf16.msra.mxu0 %v3412
  %4383 = vmatpush.bf16.msra.mxu0 %v3409
  %4384 = vmatpush.bf16.msra.mxu0 %v3406
  %4385 = vmatpush.bf16.msra.mxu0 %v3403
  %4386 = vmatpush.bf16.msra.mxu0 %v3400
  %4387 = vmatpush.bf16.msra.mxu0 %v3397
  %4388 = vmatpush.bf16.msra.mxu0 %v3394
  %4389 = vmatpush.bf16.msra.mxu0 %v3391
  %4390 = vmatmul.bf16.gmra.mxu0 %v904
  %v4391 = vpop.f32.mrf.mxu0
  %v4392 = vadd.f32 %v4379, %v4391
  %v4393 = vpop.f32.mrf.mxu0
  %4394 = vdwg.mxu0
  %4395 = vmatpush.bf16.msra.mxu0 %v3436
  %4396 = vmatpush.bf16.msra.mxu0 %v3433
  %4397 = vmatpush.bf16.msra.mxu0 %v3430
  %4398 = vmatpush.bf16.msra.mxu0 %v3427
  %4399 = vmatpush.bf16.msra.mxu0 %v3424
  %4400 = vmatpush.bf16.msra.mxu0 %v3421
  %4401 = vmatpush.bf16.msra.mxu0 %v3418
  %4402 = vmatpush.bf16.msra.mxu0 %v3415
  %4403 = vmatmul.bf16.gmra.mxu0 %v905
  %v4404 = vpop.f32.mrf.mxu0
  %v4405 = vadd.f32 %v4392, %v4404
  %v4406 = vpop.f32.mrf.mxu0
  %4407 = vdwg.mxu0
  %4408 = vmatpush.bf16.msra.mxu0 %v3460
  %4409 = vmatpush.bf16.msra.mxu0 %v3457
  %4410 = vmatpush.bf16.msra.mxu0 %v3454
  %4411 = vmatpush.bf16.msra.mxu0 %v3451
  %4412 = vmatpush.bf16.msra.mxu0 %v3448
  %4413 = vmatpush.bf16.msra.mxu0 %v3445
  %4414 = vmatpush.bf16.msra.mxu0 %v3442
  %4415 = vmatpush.bf16.msra.mxu0 %v3439
  %4416 = vmatmul.bf16.gmra.mxu0 %v906
  %v4417 = vpop.f32.mrf.mxu0
  %v4418 = vadd.f32 %v4405, %v4417
  %v4419 = vpop.f32.mrf.mxu0
  %4420 = vdwg.mxu0
  %4421 = vmatpush.bf16.msra.mxu0 %v3484
  %4422 = vmatpush.bf16.msra.mxu0 %v3481
  %4423 = vmatpush.bf16.msra.mxu0 %v3478
  %4424 = vmatpush.bf16.msra.mxu0 %v3475
  %4425 = vmatpush.bf16.msra.mxu0 %v3472
  %4426 = vmatpush.bf16.msra.mxu0 %v3469
  %4427 = vmatpush.bf16.msra.mxu0 %v3466
  %4428 = vmatpush.bf16.msra.mxu0 %v3463
  %4429 = vmatmul.bf16.gmra.mxu0 %v907
  %v4430 = vpop.f32.mrf.mxu0
  %v4431 = vadd.f32 %v4418, %v4430
  %v4432 = vpop.f32.mrf.mxu0
  %4433 = vdwg.mxu0
  %4434 = vmatpush.bf16.msra.mxu0 %v3508
  %4435 = vmatpush.bf16.msra.mxu0 %v3505
  %4436 = vmatpush.bf16.msra.mxu0 %v3502
  %4437 = vmatpush.bf16.msra.mxu0 %v3499
  %4438 = vmatpush.bf16.msra.mxu0 %v3496
  %4439 = vmatpush.bf16.msra.mxu0 %v3493
  %4440 = vmatpush.bf16.msra.mxu0 %v3490
  %4441 = vmatpush.bf16.msra.mxu0 %v3487
  %4442 = vmatmul.bf16.gmra.mxu0 %v908
  %v4443 = vpop.f32.mrf.mxu0
  %v4444 = vadd.f32 %v4431, %v4443
  %v4445 = vpop.f32.mrf.mxu0
  %4446 = vdwg.mxu0
  %4447 = vmatpush.bf16.msra.mxu0 %v3532
  %4448 = vmatpush.bf16.msra.mxu0 %v3529
  %4449 = vmatpush.bf16.msra.mxu0 %v3526
  %4450 = vmatpush.bf16.msra.mxu0 %v3523
  %4451 = vmatpush.bf16.msra.mxu0 %v3520
  %4452 = vmatpush.bf16.msra.mxu0 %v3517
  %4453 = vmatpush.bf16.msra.mxu0 %v3514
  %4454 = vmatpush.bf16.msra.mxu0 %v3511
  %4455 = vmatmul.bf16.gmra.mxu0 %v909
  %v4456 = vpop.f32.mrf.mxu0
  %v4457 = vadd.f32 %v4444, %v4456
  %v4458 = vpop.f32.mrf.mxu0
  %4459 = vdwg.mxu0
  %4460 = vmatpush.bf16.msra.mxu0 %v2957
  %4461 = vmatpush.bf16.msra.mxu0 %v2954
  %4462 = vmatpush.bf16.msra.mxu0 %v2951
  %4463 = vmatpush.bf16.msra.mxu0 %v2948
  %4464 = vmatpush.bf16.msra.mxu0 %v2945
  %4465 = vmatpush.bf16.msra.mxu0 %v2942
  %4466 = vmatpush.bf16.msra.mxu0 %v2939
  %4467 = vmatpush.bf16.msra.mxu0 %v2936
  %4468 = vmatmul.bf16.gmra.mxu0 %v885
  %v4469 = vpop.f32.mrf.mxu0
  %v4470 = vadd.f32 %v842, %v4469
  %v4471 = vpop.f32.mrf.mxu0
  %4472 = vdwg.mxu0
  %4473 = vmatpush.bf16.msra.mxu0 %v2981
  %4474 = vmatpush.bf16.msra.mxu0 %v2978
  %4475 = vmatpush.bf16.msra.mxu0 %v2975
  %4476 = vmatpush.bf16.msra.mxu0 %v2972
  %4477 = vmatpush.bf16.msra.mxu0 %v2969
  %4478 = vmatpush.bf16.msra.mxu0 %v2966
  %4479 = vmatpush.bf16.msra.mxu0 %v2963
  %4480 = vmatpush.bf16.msra.mxu0 %v2960
  %4481 = vmatmul.bf16.gmra.mxu0 %v886
  %v4482 = vpop.f32.mrf.mxu0
  %v4483 = vadd.f32 %v4470, %v4482
  %v4484 = vpop.f32.mrf.mxu0
  %4485 = vdwg.mxu0
  %4486 = vmatpush.bf16.msra.mxu0 %v3005
  %4487 = vmatpush.bf16.msra.mxu0 %v3002
  %4488 = vmatpush.bf16.msra.mxu0 %v2999
  %4489 = vmatpush.bf16.msra.mxu0 %v2996
  %4490 = vmatpush.bf16.msra.mxu0 %v2993
  %4491 = vmatpush.bf16.msra.mxu0 %v2990
  %4492 = vmatpush.bf16.msra.mxu0 %v2987
  %4493 = vmatpush.bf16.msra.mxu0 %v2984
  %4494 = vmatmul.bf16.gmra.mxu0 %v887
  %v4495 = vpop.f32.mrf.mxu0
  %v4496 = vadd.f32 %v4483, %v4495
  %v4497 = vpop.f32.mrf.mxu0
  %4498 = vdwg.mxu0
  %4499 = vmatpush.bf16.msra.mxu0 %v3029
  %4500 = vmatpush.bf16.msra.mxu0 %v3026
  %4501 = vmatpush.bf16.msra.mxu0 %v3023
  %4502 = vmatpush.bf16.msra.mxu0 %v3020
  %4503 = vmatpush.bf16.msra.mxu0 %v3017
  %4504 = vmatpush.bf16.msra.mxu0 %v3014
  %4505 = vmatpush.bf16.msra.mxu0 %v3011
  %4506 = vmatpush.bf16.msra.mxu0 %v3008
  %4507 = vmatmul.bf16.gmra.mxu0 %v888
  %v4508 = vpop.f32.mrf.mxu0
  %v4509 = vadd.f32 %v4496, %v4508
  %v4510 = vpop.f32.mrf.mxu0
  %4511 = vdwg.mxu0
  %4512 = vmatpush.bf16.msra.mxu0 %v3053
  %4513 = vmatpush.bf16.msra.mxu0 %v3050
  %4514 = vmatpush.bf16.msra.mxu0 %v3047
  %4515 = vmatpush.bf16.msra.mxu0 %v3044
  %4516 = vmatpush.bf16.msra.mxu0 %v3041
  %4517 = vmatpush.bf16.msra.mxu0 %v3038
  %4518 = vmatpush.bf16.msra.mxu0 %v3035
  %4519 = vmatpush.bf16.msra.mxu0 %v3032
  %4520 = vmatmul.bf16.gmra.mxu0 %v889
  %v4521 = vpop.f32.mrf.mxu0
  %v4522 = vadd.f32 %v4509, %v4521
  %v4523 = vpop.f32.mrf.mxu0
  %4524 = vdwg.mxu0
  %4525 = vmatpush.bf16.msra.mxu0 %v3077
  %4526 = vmatpush.bf16.msra.mxu0 %v3074
  %4527 = vmatpush.bf16.msra.mxu0 %v3071
  %4528 = vmatpush.bf16.msra.mxu0 %v3068
  %4529 = vmatpush.bf16.msra.mxu0 %v3065
  %4530 = vmatpush.bf16.msra.mxu0 %v3062
  %4531 = vmatpush.bf16.msra.mxu0 %v3059
  %4532 = vmatpush.bf16.msra.mxu0 %v3056
  %4533 = vmatmul.bf16.gmra.mxu0 %v890
  %v4534 = vpop.f32.mrf.mxu0
  %v4535 = vadd.f32 %v4522, %v4534
  %v4536 = vpop.f32.mrf.mxu0
  %4537 = vdwg.mxu0
  %4538 = vmatpush.bf16.msra.mxu0 %v3101
  %4539 = vmatpush.bf16.msra.mxu0 %v3098
  %4540 = vmatpush.bf16.msra.mxu0 %v3095
  %4541 = vmatpush.bf16.msra.mxu0 %v3092
  %4542 = vmatpush.bf16.msra.mxu0 %v3089
  %4543 = vmatpush.bf16.msra.mxu0 %v3086
  %4544 = vmatpush.bf16.msra.mxu0 %v3083
  %4545 = vmatpush.bf16.msra.mxu0 %v3080
  %4546 = vmatmul.bf16.gmra.mxu0 %v891
  %v4547 = vpop.f32.mrf.mxu0
  %v4548 = vadd.f32 %v4535, %v4547
  %v4549 = vpop.f32.mrf.mxu0
  %4550 = vdwg.mxu0
  %4551 = vmatpush.bf16.msra.mxu0 %v3125
  %4552 = vmatpush.bf16.msra.mxu0 %v3122
  %4553 = vmatpush.bf16.msra.mxu0 %v3119
  %4554 = vmatpush.bf16.msra.mxu0 %v3116
  %4555 = vmatpush.bf16.msra.mxu0 %v3113
  %4556 = vmatpush.bf16.msra.mxu0 %v3110
  %4557 = vmatpush.bf16.msra.mxu0 %v3107
  %4558 = vmatpush.bf16.msra.mxu0 %v3104
  %4559 = vmatmul.bf16.gmra.mxu0 %v892
  %v4560 = vpop.f32.mrf.mxu0
  %v4561 = vadd.f32 %v4548, %v4560
  %v4562 = vpop.f32.mrf.mxu0
  %4563 = vdwg.mxu0
  %4564 = vmatpush.bf16.msra.mxu0 %v3149
  %4565 = vmatpush.bf16.msra.mxu0 %v3146
  %4566 = vmatpush.bf16.msra.mxu0 %v3143
  %4567 = vmatpush.bf16.msra.mxu0 %v3140
  %4568 = vmatpush.bf16.msra.mxu0 %v3137
  %4569 = vmatpush.bf16.msra.mxu0 %v3134
  %4570 = vmatpush.bf16.msra.mxu0 %v3131
  %4571 = vmatpush.bf16.msra.mxu0 %v3128
  %4572 = vmatmul.bf16.gmra.mxu0 %v893
  %v4573 = vpop.f32.mrf.mxu0
  %v4574 = vadd.f32 %v4561, %v4573
  %v4575 = vpop.f32.mrf.mxu0
  %4576 = vdwg.mxu0
  %4577 = vmatpush.bf16.msra.mxu0 %v3173
  %4578 = vmatpush.bf16.msra.mxu0 %v3170
  %4579 = vmatpush.bf16.msra.mxu0 %v3167
  %4580 = vmatpush.bf16.msra.mxu0 %v3164
  %4581 = vmatpush.bf16.msra.mxu0 %v3161
  %4582 = vmatpush.bf16.msra.mxu0 %v3158
  %4583 = vmatpush.bf16.msra.mxu0 %v3155
  %4584 = vmatpush.bf16.msra.mxu0 %v3152
  %4585 = vmatmul.bf16.gmra.mxu0 %v894
  %v4586 = vpop.f32.mrf.mxu0
  %v4587 = vadd.f32 %v4574, %v4586
  %v4588 = vpop.f32.mrf.mxu0
  %4589 = vdwg.mxu0
  %4590 = vmatpush.bf16.msra.mxu0 %v3197
  %4591 = vmatpush.bf16.msra.mxu0 %v3194
  %4592 = vmatpush.bf16.msra.mxu0 %v3191
  %4593 = vmatpush.bf16.msra.mxu0 %v3188
  %4594 = vmatpush.bf16.msra.mxu0 %v3185
  %4595 = vmatpush.bf16.msra.mxu0 %v3182
  %4596 = vmatpush.bf16.msra.mxu0 %v3179
  %4597 = vmatpush.bf16.msra.mxu0 %v3176
  %4598 = vmatmul.bf16.gmra.mxu0 %v895
  %v4599 = vpop.f32.mrf.mxu0
  %v4600 = vadd.f32 %v4587, %v4599
  %v4601 = vpop.f32.mrf.mxu0
  %4602 = vdwg.mxu0
  %4603 = vmatpush.bf16.msra.mxu0 %v3221
  %4604 = vmatpush.bf16.msra.mxu0 %v3218
  %4605 = vmatpush.bf16.msra.mxu0 %v3215
  %4606 = vmatpush.bf16.msra.mxu0 %v3212
  %4607 = vmatpush.bf16.msra.mxu0 %v3209
  %4608 = vmatpush.bf16.msra.mxu0 %v3206
  %4609 = vmatpush.bf16.msra.mxu0 %v3203
  %4610 = vmatpush.bf16.msra.mxu0 %v3200
  %4611 = vmatmul.bf16.gmra.mxu0 %v896
  %v4612 = vpop.f32.mrf.mxu0
  %v4613 = vadd.f32 %v4600, %v4612
  %v4614 = vpop.f32.mrf.mxu0
  %4615 = vdwg.mxu0
  %4616 = vmatpush.bf16.msra.mxu0 %v3245
  %4617 = vmatpush.bf16.msra.mxu0 %v3242
  %4618 = vmatpush.bf16.msra.mxu0 %v3239
  %4619 = vmatpush.bf16.msra.mxu0 %v3236
  %4620 = vmatpush.bf16.msra.mxu0 %v3233
  %4621 = vmatpush.bf16.msra.mxu0 %v3230
  %4622 = vmatpush.bf16.msra.mxu0 %v3227
  %4623 = vmatpush.bf16.msra.mxu0 %v3224
  %4624 = vmatmul.bf16.gmra.mxu0 %v897
  %v4625 = vpop.f32.mrf.mxu0
  %v4626 = vadd.f32 %v4613, %v4625
  %v4627 = vpop.f32.mrf.mxu0
  %4628 = vdwg.mxu0
  %4629 = vmatpush.bf16.msra.mxu0 %v3269
  %4630 = vmatpush.bf16.msra.mxu0 %v3266
  %4631 = vmatpush.bf16.msra.mxu0 %v3263
  %4632 = vmatpush.bf16.msra.mxu0 %v3260
  %4633 = vmatpush.bf16.msra.mxu0 %v3257
  %4634 = vmatpush.bf16.msra.mxu0 %v3254
  %4635 = vmatpush.bf16.msra.mxu0 %v3251
  %4636 = vmatpush.bf16.msra.mxu0 %v3248
  %4637 = vmatmul.bf16.gmra.mxu0 %v898
  %v4638 = vpop.f32.mrf.mxu0
  %v4639 = vadd.f32 %v4626, %v4638
  %v4640 = vpop.f32.mrf.mxu0
  %4641 = vdwg.mxu0
  %4642 = vmatpush.bf16.msra.mxu0 %v3293
  %4643 = vmatpush.bf16.msra.mxu0 %v3290
  %4644 = vmatpush.bf16.msra.mxu0 %v3287
  %4645 = vmatpush.bf16.msra.mxu0 %v3284
  %4646 = vmatpush.bf16.msra.mxu0 %v3281
  %4647 = vmatpush.bf16.msra.mxu0 %v3278
  %4648 = vmatpush.bf16.msra.mxu0 %v3275
  %4649 = vmatpush.bf16.msra.mxu0 %v3272
  %4650 = vmatmul.bf16.gmra.mxu0 %v899
  %v4651 = vpop.f32.mrf.mxu0
  %v4652 = vadd.f32 %v4639, %v4651
  %v4653 = vpop.f32.mrf.mxu0
  %4654 = vdwg.mxu0
  %4655 = vmatpush.bf16.msra.mxu0 %v3317
  %4656 = vmatpush.bf16.msra.mxu0 %v3314
  %4657 = vmatpush.bf16.msra.mxu0 %v3311
  %4658 = vmatpush.bf16.msra.mxu0 %v3308
  %4659 = vmatpush.bf16.msra.mxu0 %v3305
  %4660 = vmatpush.bf16.msra.mxu0 %v3302
  %4661 = vmatpush.bf16.msra.mxu0 %v3299
  %4662 = vmatpush.bf16.msra.mxu0 %v3296
  %4663 = vmatmul.bf16.gmra.mxu0 %v900
  %v4664 = vpop.f32.mrf.mxu0
  %v4665 = vadd.f32 %v4652, %v4664
  %v4666 = vpop.f32.mrf.mxu0
  %4667 = vdwg.mxu0
  %4668 = vmatpush.bf16.msra.mxu0 %v3341
  %4669 = vmatpush.bf16.msra.mxu0 %v3338
  %4670 = vmatpush.bf16.msra.mxu0 %v3335
  %4671 = vmatpush.bf16.msra.mxu0 %v3332
  %4672 = vmatpush.bf16.msra.mxu0 %v3329
  %4673 = vmatpush.bf16.msra.mxu0 %v3326
  %4674 = vmatpush.bf16.msra.mxu0 %v3323
  %4675 = vmatpush.bf16.msra.mxu0 %v3320
  %4676 = vmatmul.bf16.gmra.mxu0 %v901
  %v4677 = vpop.f32.mrf.mxu0
  %v4678 = vadd.f32 %v4665, %v4677
  %v4679 = vpop.f32.mrf.mxu0
  %4680 = vdwg.mxu0
  %4681 = vmatpush.bf16.msra.mxu0 %v3365
  %4682 = vmatpush.bf16.msra.mxu0 %v3362
  %4683 = vmatpush.bf16.msra.mxu0 %v3359
  %4684 = vmatpush.bf16.msra.mxu0 %v3356
  %4685 = vmatpush.bf16.msra.mxu0 %v3353
  %4686 = vmatpush.bf16.msra.mxu0 %v3350
  %4687 = vmatpush.bf16.msra.mxu0 %v3347
  %4688 = vmatpush.bf16.msra.mxu0 %v3344
  %4689 = vmatmul.bf16.gmra.mxu0 %v902
  %v4690 = vpop.f32.mrf.mxu0
  %v4691 = vadd.f32 %v4678, %v4690
  %v4692 = vpop.f32.mrf.mxu0
  %4693 = vdwg.mxu0
  %4694 = vmatpush.bf16.msra.mxu0 %v3389
  %4695 = vmatpush.bf16.msra.mxu0 %v3386
  %4696 = vmatpush.bf16.msra.mxu0 %v3383
  %4697 = vmatpush.bf16.msra.mxu0 %v3380
  %4698 = vmatpush.bf16.msra.mxu0 %v3377
  %4699 = vmatpush.bf16.msra.mxu0 %v3374
  %4700 = vmatpush.bf16.msra.mxu0 %v3371
  %4701 = vmatpush.bf16.msra.mxu0 %v3368
  %4702 = vmatmul.bf16.gmra.mxu0 %v903
  %v4703 = vpop.f32.mrf.mxu0
  %v4704 = vadd.f32 %v4691, %v4703
  %v4705 = vpop.f32.mrf.mxu0
  %4706 = vdwg.mxu0
  %4707 = vmatpush.bf16.msra.mxu0 %v3413
  %4708 = vmatpush.bf16.msra.mxu0 %v3410
  %4709 = vmatpush.bf16.msra.mxu0 %v3407
  %4710 = vmatpush.bf16.msra.mxu0 %v3404
  %4711 = vmatpush.bf16.msra.mxu0 %v3401
  %4712 = vmatpush.bf16.msra.mxu0 %v3398
  %4713 = vmatpush.bf16.msra.mxu0 %v3395
  %4714 = vmatpush.bf16.msra.mxu0 %v3392
  %4715 = vmatmul.bf16.gmra.mxu0 %v904
  %v4716 = vpop.f32.mrf.mxu0
  %v4717 = vadd.f32 %v4704, %v4716
  %v4718 = vpop.f32.mrf.mxu0
  %4719 = vdwg.mxu0
  %4720 = vmatpush.bf16.msra.mxu0 %v3437
  %4721 = vmatpush.bf16.msra.mxu0 %v3434
  %4722 = vmatpush.bf16.msra.mxu0 %v3431
  %4723 = vmatpush.bf16.msra.mxu0 %v3428
  %4724 = vmatpush.bf16.msra.mxu0 %v3425
  %4725 = vmatpush.bf16.msra.mxu0 %v3422
  %4726 = vmatpush.bf16.msra.mxu0 %v3419
  %4727 = vmatpush.bf16.msra.mxu0 %v3416
  %4728 = vmatmul.bf16.gmra.mxu0 %v905
  %v4729 = vpop.f32.mrf.mxu0
  %v4730 = vadd.f32 %v4717, %v4729
  %v4731 = vpop.f32.mrf.mxu0
  %4732 = vdwg.mxu0
  %4733 = vmatpush.bf16.msra.mxu0 %v3461
  %4734 = vmatpush.bf16.msra.mxu0 %v3458
  %4735 = vmatpush.bf16.msra.mxu0 %v3455
  %4736 = vmatpush.bf16.msra.mxu0 %v3452
  %4737 = vmatpush.bf16.msra.mxu0 %v3449
  %4738 = vmatpush.bf16.msra.mxu0 %v3446
  %4739 = vmatpush.bf16.msra.mxu0 %v3443
  %4740 = vmatpush.bf16.msra.mxu0 %v3440
  %4741 = vmatmul.bf16.gmra.mxu0 %v906
  %v4742 = vpop.f32.mrf.mxu0
  %v4743 = vadd.f32 %v4730, %v4742
  %v4744 = vpop.f32.mrf.mxu0
  %4745 = vdwg.mxu0
  %4746 = vmatpush.bf16.msra.mxu0 %v3485
  %4747 = vmatpush.bf16.msra.mxu0 %v3482
  %4748 = vmatpush.bf16.msra.mxu0 %v3479
  %4749 = vmatpush.bf16.msra.mxu0 %v3476
  %4750 = vmatpush.bf16.msra.mxu0 %v3473
  %4751 = vmatpush.bf16.msra.mxu0 %v3470
  %4752 = vmatpush.bf16.msra.mxu0 %v3467
  %4753 = vmatpush.bf16.msra.mxu0 %v3464
  %4754 = vmatmul.bf16.gmra.mxu0 %v907
  %v4755 = vpop.f32.mrf.mxu0
  %v4756 = vadd.f32 %v4743, %v4755
  %v4757 = vpop.f32.mrf.mxu0
  %4758 = vdwg.mxu0
  %4759 = vmatpush.bf16.msra.mxu0 %v3509
  %4760 = vmatpush.bf16.msra.mxu0 %v3506
  %4761 = vmatpush.bf16.msra.mxu0 %v3503
  %4762 = vmatpush.bf16.msra.mxu0 %v3500
  %4763 = vmatpush.bf16.msra.mxu0 %v3497
  %4764 = vmatpush.bf16.msra.mxu0 %v3494
  %4765 = vmatpush.bf16.msra.mxu0 %v3491
  %4766 = vmatpush.bf16.msra.mxu0 %v3488
  %4767 = vmatmul.bf16.gmra.mxu0 %v908
  %v4768 = vpop.f32.mrf.mxu0
  %v4769 = vadd.f32 %v4756, %v4768
  %v4770 = vpop.f32.mrf.mxu0
  %4771 = vdwg.mxu0
  %4772 = vmatpush.bf16.msra.mxu0 %v3533
  %4773 = vmatpush.bf16.msra.mxu0 %v3530
  %4774 = vmatpush.bf16.msra.mxu0 %v3527
  %4775 = vmatpush.bf16.msra.mxu0 %v3524
  %4776 = vmatpush.bf16.msra.mxu0 %v3521
  %4777 = vmatpush.bf16.msra.mxu0 %v3518
  %4778 = vmatpush.bf16.msra.mxu0 %v3515
  %4779 = vmatpush.bf16.msra.mxu0 %v3512
  %4780 = vmatmul.bf16.gmra.mxu0 %v909
  %v4781 = vpop.f32.mrf.mxu0
  %v4782 = vadd.f32 %v4769, %v4781
  %v4783 = vpop.f32.mrf.mxu0
  %4784 = vdwg.mxu0
  %4785 = vmatpush.bf16.msra.mxu0 %v2958
  %4786 = vmatpush.bf16.msra.mxu0 %v2955
  %4787 = vmatpush.bf16.msra.mxu0 %v2952
  %4788 = vmatpush.bf16.msra.mxu0 %v2949
  %4789 = vmatpush.bf16.msra.mxu0 %v2946
  %4790 = vmatpush.bf16.msra.mxu0 %v2943
  %4791 = vmatpush.bf16.msra.mxu0 %v2940
  %4792 = vmatpush.bf16.msra.mxu0 %v2937
  %4793 = vmatmul.bf16.gmra.mxu0 %v885
  %v4794 = vpop.f32.mrf.mxu0
  %v4795 = vadd.f32 %v843, %v4794
  %v4796 = vpop.f32.mrf.mxu0
  %4797 = vdwg.mxu0
  %4798 = vmatpush.bf16.msra.mxu0 %v2982
  %4799 = vmatpush.bf16.msra.mxu0 %v2979
  %4800 = vmatpush.bf16.msra.mxu0 %v2976
  %4801 = vmatpush.bf16.msra.mxu0 %v2973
  %4802 = vmatpush.bf16.msra.mxu0 %v2970
  %4803 = vmatpush.bf16.msra.mxu0 %v2967
  %4804 = vmatpush.bf16.msra.mxu0 %v2964
  %4805 = vmatpush.bf16.msra.mxu0 %v2961
  %4806 = vmatmul.bf16.gmra.mxu0 %v886
  %v4807 = vpop.f32.mrf.mxu0
  %v4808 = vadd.f32 %v4795, %v4807
  %v4809 = vpop.f32.mrf.mxu0
  %4810 = vdwg.mxu0
  %4811 = vmatpush.bf16.msra.mxu0 %v3006
  %4812 = vmatpush.bf16.msra.mxu0 %v3003
  %4813 = vmatpush.bf16.msra.mxu0 %v3000
  %4814 = vmatpush.bf16.msra.mxu0 %v2997
  %4815 = vmatpush.bf16.msra.mxu0 %v2994
  %4816 = vmatpush.bf16.msra.mxu0 %v2991
  %4817 = vmatpush.bf16.msra.mxu0 %v2988
  %4818 = vmatpush.bf16.msra.mxu0 %v2985
  %4819 = vmatmul.bf16.gmra.mxu0 %v887
  %v4820 = vpop.f32.mrf.mxu0
  %v4821 = vadd.f32 %v4808, %v4820
  %v4822 = vpop.f32.mrf.mxu0
  %4823 = vdwg.mxu0
  %4824 = vmatpush.bf16.msra.mxu0 %v3030
  %4825 = vmatpush.bf16.msra.mxu0 %v3027
  %4826 = vmatpush.bf16.msra.mxu0 %v3024
  %4827 = vmatpush.bf16.msra.mxu0 %v3021
  %4828 = vmatpush.bf16.msra.mxu0 %v3018
  %4829 = vmatpush.bf16.msra.mxu0 %v3015
  %4830 = vmatpush.bf16.msra.mxu0 %v3012
  %4831 = vmatpush.bf16.msra.mxu0 %v3009
  %4832 = vmatmul.bf16.gmra.mxu0 %v888
  %v4833 = vpop.f32.mrf.mxu0
  %v4834 = vadd.f32 %v4821, %v4833
  %v4835 = vpop.f32.mrf.mxu0
  %4836 = vdwg.mxu0
  %4837 = vmatpush.bf16.msra.mxu0 %v3054
  %4838 = vmatpush.bf16.msra.mxu0 %v3051
  %4839 = vmatpush.bf16.msra.mxu0 %v3048
  %4840 = vmatpush.bf16.msra.mxu0 %v3045
  %4841 = vmatpush.bf16.msra.mxu0 %v3042
  %4842 = vmatpush.bf16.msra.mxu0 %v3039
  %4843 = vmatpush.bf16.msra.mxu0 %v3036
  %4844 = vmatpush.bf16.msra.mxu0 %v3033
  %4845 = vmatmul.bf16.gmra.mxu0 %v889
  %v4846 = vpop.f32.mrf.mxu0
  %v4847 = vadd.f32 %v4834, %v4846
  %v4848 = vpop.f32.mrf.mxu0
  %4849 = vdwg.mxu0
  %4850 = vmatpush.bf16.msra.mxu0 %v3078
  %4851 = vmatpush.bf16.msra.mxu0 %v3075
  %4852 = vmatpush.bf16.msra.mxu0 %v3072
  %4853 = vmatpush.bf16.msra.mxu0 %v3069
  %4854 = vmatpush.bf16.msra.mxu0 %v3066
  %4855 = vmatpush.bf16.msra.mxu0 %v3063
  %4856 = vmatpush.bf16.msra.mxu0 %v3060
  %4857 = vmatpush.bf16.msra.mxu0 %v3057
  %4858 = vmatmul.bf16.gmra.mxu0 %v890
  %v4859 = vpop.f32.mrf.mxu0
  %v4860 = vadd.f32 %v4847, %v4859
  %v4861 = vpop.f32.mrf.mxu0
  %4862 = vdwg.mxu0
  %4863 = vmatpush.bf16.msra.mxu0 %v3102
  %4864 = vmatpush.bf16.msra.mxu0 %v3099
  %4865 = vmatpush.bf16.msra.mxu0 %v3096
  %4866 = vmatpush.bf16.msra.mxu0 %v3093
  %4867 = vmatpush.bf16.msra.mxu0 %v3090
  %4868 = vmatpush.bf16.msra.mxu0 %v3087
  %4869 = vmatpush.bf16.msra.mxu0 %v3084
  %4870 = vmatpush.bf16.msra.mxu0 %v3081
  %4871 = vmatmul.bf16.gmra.mxu0 %v891
  %v4872 = vpop.f32.mrf.mxu0
  %v4873 = vadd.f32 %v4860, %v4872
  %v4874 = vpop.f32.mrf.mxu0
  %4875 = vdwg.mxu0
  %4876 = vmatpush.bf16.msra.mxu0 %v3126
  %4877 = vmatpush.bf16.msra.mxu0 %v3123
  %4878 = vmatpush.bf16.msra.mxu0 %v3120
  %4879 = vmatpush.bf16.msra.mxu0 %v3117
  %4880 = vmatpush.bf16.msra.mxu0 %v3114
  %4881 = vmatpush.bf16.msra.mxu0 %v3111
  %4882 = vmatpush.bf16.msra.mxu0 %v3108
  %4883 = vmatpush.bf16.msra.mxu0 %v3105
  %4884 = vmatmul.bf16.gmra.mxu0 %v892
  %v4885 = vpop.f32.mrf.mxu0
  %v4886 = vadd.f32 %v4873, %v4885
  %v4887 = vpop.f32.mrf.mxu0
  %4888 = vdwg.mxu0
  %4889 = vmatpush.bf16.msra.mxu0 %v3150
  %4890 = vmatpush.bf16.msra.mxu0 %v3147
  %4891 = vmatpush.bf16.msra.mxu0 %v3144
  %4892 = vmatpush.bf16.msra.mxu0 %v3141
  %4893 = vmatpush.bf16.msra.mxu0 %v3138
  %4894 = vmatpush.bf16.msra.mxu0 %v3135
  %4895 = vmatpush.bf16.msra.mxu0 %v3132
  %4896 = vmatpush.bf16.msra.mxu0 %v3129
  %4897 = vmatmul.bf16.gmra.mxu0 %v893
  %v4898 = vpop.f32.mrf.mxu0
  %v4899 = vadd.f32 %v4886, %v4898
  %v4900 = vpop.f32.mrf.mxu0
  %4901 = vdwg.mxu0
  %4902 = vmatpush.bf16.msra.mxu0 %v3174
  %4903 = vmatpush.bf16.msra.mxu0 %v3171
  %4904 = vmatpush.bf16.msra.mxu0 %v3168
  %4905 = vmatpush.bf16.msra.mxu0 %v3165
  %4906 = vmatpush.bf16.msra.mxu0 %v3162
  %4907 = vmatpush.bf16.msra.mxu0 %v3159
  %4908 = vmatpush.bf16.msra.mxu0 %v3156
  %4909 = vmatpush.bf16.msra.mxu0 %v3153
  %4910 = vmatmul.bf16.gmra.mxu0 %v894
  %v4911 = vpop.f32.mrf.mxu0
  %v4912 = vadd.f32 %v4899, %v4911
  %v4913 = vpop.f32.mrf.mxu0
  %4914 = vdwg.mxu0
  %4915 = vmatpush.bf16.msra.mxu0 %v3198
  %4916 = vmatpush.bf16.msra.mxu0 %v3195
  %4917 = vmatpush.bf16.msra.mxu0 %v3192
  %4918 = vmatpush.bf16.msra.mxu0 %v3189
  %4919 = vmatpush.bf16.msra.mxu0 %v3186
  %4920 = vmatpush.bf16.msra.mxu0 %v3183
  %4921 = vmatpush.bf16.msra.mxu0 %v3180
  %4922 = vmatpush.bf16.msra.mxu0 %v3177
  %4923 = vmatmul.bf16.gmra.mxu0 %v895
  %v4924 = vpop.f32.mrf.mxu0
  %v4925 = vadd.f32 %v4912, %v4924
  %v4926 = vpop.f32.mrf.mxu0
  %4927 = vdwg.mxu0
  %4928 = vmatpush.bf16.msra.mxu0 %v3222
  %4929 = vmatpush.bf16.msra.mxu0 %v3219
  %4930 = vmatpush.bf16.msra.mxu0 %v3216
  %4931 = vmatpush.bf16.msra.mxu0 %v3213
  %4932 = vmatpush.bf16.msra.mxu0 %v3210
  %4933 = vmatpush.bf16.msra.mxu0 %v3207
  %4934 = vmatpush.bf16.msra.mxu0 %v3204
  %4935 = vmatpush.bf16.msra.mxu0 %v3201
  %4936 = vmatmul.bf16.gmra.mxu0 %v896
  %v4937 = vpop.f32.mrf.mxu0
  %v4938 = vadd.f32 %v4925, %v4937
  %v4939 = vpop.f32.mrf.mxu0
  %4940 = vdwg.mxu0
  %4941 = vmatpush.bf16.msra.mxu0 %v3246
  %4942 = vmatpush.bf16.msra.mxu0 %v3243
  %4943 = vmatpush.bf16.msra.mxu0 %v3240
  %4944 = vmatpush.bf16.msra.mxu0 %v3237
  %4945 = vmatpush.bf16.msra.mxu0 %v3234
  %4946 = vmatpush.bf16.msra.mxu0 %v3231
  %4947 = vmatpush.bf16.msra.mxu0 %v3228
  %4948 = vmatpush.bf16.msra.mxu0 %v3225
  %4949 = vmatmul.bf16.gmra.mxu0 %v897
  %v4950 = vpop.f32.mrf.mxu0
  %v4951 = vadd.f32 %v4938, %v4950
  %v4952 = vpop.f32.mrf.mxu0
  %4953 = vdwg.mxu0
  %4954 = vmatpush.bf16.msra.mxu0 %v3270
  %4955 = vmatpush.bf16.msra.mxu0 %v3267
  %4956 = vmatpush.bf16.msra.mxu0 %v3264
  %4957 = vmatpush.bf16.msra.mxu0 %v3261
  %4958 = vmatpush.bf16.msra.mxu0 %v3258
  %4959 = vmatpush.bf16.msra.mxu0 %v3255
  %4960 = vmatpush.bf16.msra.mxu0 %v3252
  %4961 = vmatpush.bf16.msra.mxu0 %v3249
  %4962 = vmatmul.bf16.gmra.mxu0 %v898
  %v4963 = vpop.f32.mrf.mxu0
  %v4964 = vadd.f32 %v4951, %v4963
  %v4965 = vpop.f32.mrf.mxu0
  %4966 = vdwg.mxu0
  %4967 = vmatpush.bf16.msra.mxu0 %v3294
  %4968 = vmatpush.bf16.msra.mxu0 %v3291
  %4969 = vmatpush.bf16.msra.mxu0 %v3288
  %4970 = vmatpush.bf16.msra.mxu0 %v3285
  %4971 = vmatpush.bf16.msra.mxu0 %v3282
  %4972 = vmatpush.bf16.msra.mxu0 %v3279
  %4973 = vmatpush.bf16.msra.mxu0 %v3276
  %4974 = vmatpush.bf16.msra.mxu0 %v3273
  %4975 = vmatmul.bf16.gmra.mxu0 %v899
  %v4976 = vpop.f32.mrf.mxu0
  %v4977 = vadd.f32 %v4964, %v4976
  %v4978 = vpop.f32.mrf.mxu0
  %4979 = vdwg.mxu0
  %4980 = vmatpush.bf16.msra.mxu0 %v3318
  %4981 = vmatpush.bf16.msra.mxu0 %v3315
  %4982 = vmatpush.bf16.msra.mxu0 %v3312
  %4983 = vmatpush.bf16.msra.mxu0 %v3309
  %4984 = vmatpush.bf16.msra.mxu0 %v3306
  %4985 = vmatpush.bf16.msra.mxu0 %v3303
  %4986 = vmatpush.bf16.msra.mxu0 %v3300
  %4987 = vmatpush.bf16.msra.mxu0 %v3297
  %4988 = vmatmul.bf16.gmra.mxu0 %v900
  %v4989 = vpop.f32.mrf.mxu0
  %v4990 = vadd.f32 %v4977, %v4989
  %v4991 = vpop.f32.mrf.mxu0
  %4992 = vdwg.mxu0
  %4993 = vmatpush.bf16.msra.mxu0 %v3342
  %4994 = vmatpush.bf16.msra.mxu0 %v3339
  %4995 = vmatpush.bf16.msra.mxu0 %v3336
  %4996 = vmatpush.bf16.msra.mxu0 %v3333
  %4997 = vmatpush.bf16.msra.mxu0 %v3330
  %4998 = vmatpush.bf16.msra.mxu0 %v3327
  %4999 = vmatpush.bf16.msra.mxu0 %v3324
  %5000 = vmatpush.bf16.msra.mxu0 %v3321
  %5001 = vmatmul.bf16.gmra.mxu0 %v901
  %v5002 = vpop.f32.mrf.mxu0
  %v5003 = vadd.f32 %v4990, %v5002
  %v5004 = vpop.f32.mrf.mxu0
  %5005 = vdwg.mxu0
  %5006 = vmatpush.bf16.msra.mxu0 %v3366
  %5007 = vmatpush.bf16.msra.mxu0 %v3363
  %5008 = vmatpush.bf16.msra.mxu0 %v3360
  %5009 = vmatpush.bf16.msra.mxu0 %v3357
  %5010 = vmatpush.bf16.msra.mxu0 %v3354
  %5011 = vmatpush.bf16.msra.mxu0 %v3351
  %5012 = vmatpush.bf16.msra.mxu0 %v3348
  %5013 = vmatpush.bf16.msra.mxu0 %v3345
  %5014 = vmatmul.bf16.gmra.mxu0 %v902
  %v5015 = vpop.f32.mrf.mxu0
  %v5016 = vadd.f32 %v5003, %v5015
  %v5017 = vpop.f32.mrf.mxu0
  %5018 = vdwg.mxu0
  %5019 = vmatpush.bf16.msra.mxu0 %v3390
  %5020 = vmatpush.bf16.msra.mxu0 %v3387
  %5021 = vmatpush.bf16.msra.mxu0 %v3384
  %5022 = vmatpush.bf16.msra.mxu0 %v3381
  %5023 = vmatpush.bf16.msra.mxu0 %v3378
  %5024 = vmatpush.bf16.msra.mxu0 %v3375
  %5025 = vmatpush.bf16.msra.mxu0 %v3372
  %5026 = vmatpush.bf16.msra.mxu0 %v3369
  %5027 = vmatmul.bf16.gmra.mxu0 %v903
  %v5028 = vpop.f32.mrf.mxu0
  %v5029 = vadd.f32 %v5016, %v5028
  %v5030 = vpop.f32.mrf.mxu0
  %5031 = vdwg.mxu0
  %5032 = vmatpush.bf16.msra.mxu0 %v3414
  %5033 = vmatpush.bf16.msra.mxu0 %v3411
  %5034 = vmatpush.bf16.msra.mxu0 %v3408
  %5035 = vmatpush.bf16.msra.mxu0 %v3405
  %5036 = vmatpush.bf16.msra.mxu0 %v3402
  %5037 = vmatpush.bf16.msra.mxu0 %v3399
  %5038 = vmatpush.bf16.msra.mxu0 %v3396
  %5039 = vmatpush.bf16.msra.mxu0 %v3393
  %5040 = vmatmul.bf16.gmra.mxu0 %v904
  %v5041 = vpop.f32.mrf.mxu0
  %v5042 = vadd.f32 %v5029, %v5041
  %v5043 = vpop.f32.mrf.mxu0
  %5044 = vdwg.mxu0
  %5045 = vmatpush.bf16.msra.mxu0 %v3438
  %5046 = vmatpush.bf16.msra.mxu0 %v3435
  %5047 = vmatpush.bf16.msra.mxu0 %v3432
  %5048 = vmatpush.bf16.msra.mxu0 %v3429
  %5049 = vmatpush.bf16.msra.mxu0 %v3426
  %5050 = vmatpush.bf16.msra.mxu0 %v3423
  %5051 = vmatpush.bf16.msra.mxu0 %v3420
  %5052 = vmatpush.bf16.msra.mxu0 %v3417
  %5053 = vmatmul.bf16.gmra.mxu0 %v905
  %v5054 = vpop.f32.mrf.mxu0
  %v5055 = vadd.f32 %v5042, %v5054
  %v5056 = vpop.f32.mrf.mxu0
  %5057 = vdwg.mxu0
  %5058 = vmatpush.bf16.msra.mxu0 %v3462
  %5059 = vmatpush.bf16.msra.mxu0 %v3459
  %5060 = vmatpush.bf16.msra.mxu0 %v3456
  %5061 = vmatpush.bf16.msra.mxu0 %v3453
  %5062 = vmatpush.bf16.msra.mxu0 %v3450
  %5063 = vmatpush.bf16.msra.mxu0 %v3447
  %5064 = vmatpush.bf16.msra.mxu0 %v3444
  %5065 = vmatpush.bf16.msra.mxu0 %v3441
  %5066 = vmatmul.bf16.gmra.mxu0 %v906
  %v5067 = vpop.f32.mrf.mxu0
  %v5068 = vadd.f32 %v5055, %v5067
  %v5069 = vpop.f32.mrf.mxu0
  %5070 = vdwg.mxu0
  %5071 = vmatpush.bf16.msra.mxu0 %v3486
  %5072 = vmatpush.bf16.msra.mxu0 %v3483
  %5073 = vmatpush.bf16.msra.mxu0 %v3480
  %5074 = vmatpush.bf16.msra.mxu0 %v3477
  %5075 = vmatpush.bf16.msra.mxu0 %v3474
  %5076 = vmatpush.bf16.msra.mxu0 %v3471
  %5077 = vmatpush.bf16.msra.mxu0 %v3468
  %5078 = vmatpush.bf16.msra.mxu0 %v3465
  %5079 = vmatmul.bf16.gmra.mxu0 %v907
  %v5080 = vpop.f32.mrf.mxu0
  %v5081 = vadd.f32 %v5068, %v5080
  %v5082 = vpop.f32.mrf.mxu0
  %5083 = vdwg.mxu0
  %5084 = vmatpush.bf16.msra.mxu0 %v3510
  %5085 = vmatpush.bf16.msra.mxu0 %v3507
  %5086 = vmatpush.bf16.msra.mxu0 %v3504
  %5087 = vmatpush.bf16.msra.mxu0 %v3501
  %5088 = vmatpush.bf16.msra.mxu0 %v3498
  %5089 = vmatpush.bf16.msra.mxu0 %v3495
  %5090 = vmatpush.bf16.msra.mxu0 %v3492
  %5091 = vmatpush.bf16.msra.mxu0 %v3489
  %5092 = vmatmul.bf16.gmra.mxu0 %v908
  %v5093 = vpop.f32.mrf.mxu0
  %v5094 = vadd.f32 %v5081, %v5093
  %v5095 = vpop.f32.mrf.mxu0
  %5096 = vdwg.mxu0
  %5097 = vmatpush.bf16.msra.mxu0 %v3534
  %5098 = vmatpush.bf16.msra.mxu0 %v3531
  %5099 = vmatpush.bf16.msra.mxu0 %v3528
  %5100 = vmatpush.bf16.msra.mxu0 %v3525
  %5101 = vmatpush.bf16.msra.mxu0 %v3522
  %5102 = vmatpush.bf16.msra.mxu0 %v3519
  %5103 = vmatpush.bf16.msra.mxu0 %v3516
  %5104 = vmatpush.bf16.msra.mxu0 %v3513
  %5105 = vmatmul.bf16.gmra.mxu0 %v909
  %v5106 = vpop.f32.mrf.mxu0
  %v5107 = vadd.f32 %v5094, %v5106
  %v5108 = vpop.f32.mrf.mxu0
  %5109 = vdwg.mxu0
  %v5110 = vmax.f32 %v4457, 0.0
  %v5111 = vmax.f32 %v4782, 0.0
  %v5112 = vmax.f32 %v5107, 0.0
  %v5113 = vpack.c.bf16 %v5110, %v5110
  %v5114 = vpack.c.bf16 %v5111, %v5111
  %v5115 = vpack.c.bf16 %v5112, %v5112
  %v5116 = vld [vmem:[%s3] sm:$0xff]
  %v5117 = vld [vmem:[%s3 + $0x8] sm:$0xff]
  %v5118 = vld [vmem:[%s3 + $0x10] sm:$0xff]
  %v5119 = vld [vmem:[%s3 + $0x18] sm:$0xff]
  %v5120 = vld [vmem:[%s3 + $0x20] sm:$0xff]
  %v5121 = vld [vmem:[%s3 + $0x28] sm:$0xff]
  %v5122 = vld [vmem:[%s3 + $0x30] sm:$0xff]
  %v5123 = vld [vmem:[%s3 + $0x38] sm:$0xff]
  %v5124 = vld [vmem:[%s3 + $0x40] sm:$0xff]
  %v5125 = vld [vmem:[%s3 + $0x48] sm:$0xff]
  %v5126 = vld [vmem:[%s3 + $0x50] sm:$0xff]
  %v5127 = vld [vmem:[%s3 + $0x58] sm:$0xff]
  %v5128 = vld [vmem:[%s3 + $0x60] sm:$0xff]
  %v5129 = vld [vmem:[%s3 + $0x68] sm:$0xff]
  %v5130 = vld [vmem:[%s3 + $0x70] sm:$0xff]
  %v5131 = vld [vmem:[%s3 + $0x78] sm:$0xff]
  %v5132 = vld [vmem:[%s3 + $0x80] sm:$0xff]
  %v5133 = vld [vmem:[%s3 + $0x88] sm:$0xff]
  %v5134 = vld [vmem:[%s3 + $0x90] sm:$0xff]
  %v5135 = vld [vmem:[%s3 + $0x98] sm:$0xff]
  %v5136 = vld [vmem:[%s3 + $0xa0] sm:$0xff]
  %v5137 = vld [vmem:[%s3 + $0xa8] sm:$0xff]
  %v5138 = vld [vmem:[%s3 + $0xb0] sm:$0xff]
  %v5139 = vld [vmem:[%s3 + $0xb8] sm:$0xff]
  %v5140 = vld [vmem:[%s3 + $0xc0] sm:$0xff]
  %v5141 = vld [vmem:[%s3 + $0xc8] sm:$0xff]
  %v5142 = vld [vmem:[%s3 + $0xd0] sm:$0xff]
  %v5143 = vld [vmem:[%s3 + $0xd8] sm:$0xff]
  %v5144 = vld [vmem:[%s3 + $0xe0] sm:$0xff]
  %v5145 = vld [vmem:[%s3 + $0xe8] sm:$0xff]
  %v5146 = vld [vmem:[%s3 + $0xf0] sm:$0xff]
  %v5147 = vld [vmem:[%s3 + $0xf8] sm:$0xff]
  %v5148 = vld [vmem:[%s3 + $0x100] sm:$0xff]
  %v5149 = vld [vmem:[%s3 + $0x108] sm:$0xff]
  %v5150 = vld [vmem:[%s3 + $0x110] sm:$0xff]
  %v5151 = vld [vmem:[%s3 + $0x118] sm:$0xff]
  %v5152 = vld [vmem:[%s3 + $0x120] sm:$0xff]
  %v5153 = vld [vmem:[%s3 + $0x128] sm:$0xff]
  %v5154 = vld [vmem:[%s3 + $0x130] sm:$0xff]
  %v5155 = vld [vmem:[%s3 + $0x138] sm:$0xff]
  %v5156 = vld [vmem:[%s3 + $0x140] sm:$0xff]
  %v5157 = vld [vmem:[%s3 + $0x148] sm:$0xff]
  %v5158 = vld [vmem:[%s3 + $0x150] sm:$0xff]
  %v5159 = vld [vmem:[%s3 + $0x158] sm:$0xff]
  %v5160 = vld [vmem:[%s3 + $0x160] sm:$0xff]
  %v5161 = vld [vmem:[%s3 + $0x168] sm:$0xff]
  %v5162 = vld [vmem:[%s3 + $0x170] sm:$0xff]
  %v5163 = vld [vmem:[%s3 + $0x178] sm:$0xff]
  %v5164 = vld [vmem:[%s4] sm:$0x3]
  %v5166 = vperm.slane %v5164, 0
  %v5167 = vperm.slane %v5164, 1
  %v5218 = vunpack.c.l.b16 %v5116
  %v5219 = vunpack.c.h.b16 %v5116
  %v5220 = vunpack.c.l.b16 %v5117
  %v5221 = vunpack.c.h.b16 %v5117
  %v5222 = vunpack.c.l.b16 %v5118
  %v5223 = vunpack.c.h.b16 %v5118
  %v5224 = vunpack.c.l.b16 %v5119
  %v5225 = vunpack.c.h.b16 %v5119
  %v5226 = vunpack.c.l.b16 %v5120
  %v5227 = vunpack.c.h.b16 %v5120
  %v5228 = vunpack.c.l.b16 %v5121
  %v5229 = vunpack.c.h.b16 %v5121
  %v5230 = vunpack.c.l.b16 %v5122
  %v5231 = vunpack.c.h.b16 %v5122
  %v5232 = vunpack.c.l.b16 %v5123
  %v5233 = vunpack.c.h.b16 %v5123
  %v5234 = vunpack.c.l.b16 %v5124
  %v5235 = vunpack.c.h.b16 %v5124
  %v5236 = vunpack.c.l.b16 %v5125
  %v5237 = vunpack.c.h.b16 %v5125
  %v5238 = vunpack.c.l.b16 %v5126
  %v5239 = vunpack.c.h.b16 %v5126
  %v5240 = vunpack.c.l.b16 %v5127
  %v5241 = vunpack.c.h.b16 %v5127
  %v5242 = vunpack.c.l.b16 %v5128
  %v5243 = vunpack.c.h.b16 %v5128
  %v5244 = vunpack.c.l.b16 %v5129
  %v5245 = vunpack.c.h.b16 %v5129
  %v5246 = vunpack.c.l.b16 %v5130
  %v5247 = vunpack.c.h.b16 %v5130
  %v5248 = vunpack.c.l.b16 %v5131
  %v5249 = vunpack.c.h.b16 %v5131
  %v5250 = vunpack.c.l.b16 %v5132
  %v5251 = vunpack.c.h.b16 %v5132
  %v5252 = vunpack.c.l.b16 %v5133
  %v5253 = vunpack.c.h.b16 %v5133
  %v5254 = vunpack.c.l.b16 %v5134
  %v5255 = vunpack.c.h.b16 %v5134
  %v5256 = vunpack.c.l.b16 %v5135
  %v5257 = vunpack.c.h.b16 %v5135
  %v5258 = vunpack.c.l.b16 %v5136
  %v5259 = vunpack.c.h.b16 %v5136
  %v5260 = vunpack.c.l.b16 %v5137
  %v5261 = vunpack.c.h.b16 %v5137
  %v5262 = vunpack.c.l.b16 %v5138
  %v5263 = vunpack.c.h.b16 %v5138
  %v5264 = vunpack.c.l.b16 %v5139
  %v5265 = vunpack.c.h.b16 %v5139
  %v5266 = vunpack.c.l.b16 %v5140
  %v5267 = vunpack.c.h.b16 %v5140
  %v5268 = vunpack.c.l.b16 %v5141
  %v5269 = vunpack.c.h.b16 %v5141
  %v5270 = vunpack.c.l.b16 %v5142
  %v5271 = vunpack.c.h.b16 %v5142
  %v5272 = vunpack.c.l.b16 %v5143
  %v5273 = vunpack.c.h.b16 %v5143
  %v5274 = vunpack.c.l.b16 %v5144
  %v5275 = vunpack.c.h.b16 %v5144
  %v5276 = vunpack.c.l.b16 %v5145
  %v5277 = vunpack.c.h.b16 %v5145
  %v5278 = vunpack.c.l.b16 %v5146
  %v5279 = vunpack.c.h.b16 %v5146
  %v5280 = vunpack.c.l.b16 %v5147
  %v5281 = vunpack.c.h.b16 %v5147
  %v5282 = vunpack.c.l.b16 %v5148
  %v5283 = vunpack.c.h.b16 %v5148
  %v5284 = vunpack.c.l.b16 %v5149
  %v5285 = vunpack.c.h.b16 %v5149
  %v5286 = vunpack.c.l.b16 %v5150
  %v5287 = vunpack.c.h.b16 %v5150
  %v5288 = vunpack.c.l.b16 %v5151
  %v5289 = vunpack.c.h.b16 %v5151
  %v5290 = vunpack.c.l.b16 %v5152
  %v5291 = vunpack.c.h.b16 %v5152
  %v5292 = vunpack.c.l.b16 %v5153
  %v5293 = vunpack.c.h.b16 %v5153
  %v5294 = vunpack.c.l.b16 %v5154
  %v5295 = vunpack.c.h.b16 %v5154
  %v5296 = vunpack.c.l.b16 %v5155
  %v5297 = vunpack.c.h.b16 %v5155
  %v5298 = vunpack.c.l.b16 %v5156
  %v5299 = vunpack.c.h.b16 %v5156
  %v5300 = vunpack.c.l.b16 %v5157
  %v5301 = vunpack.c.h.b16 %v5157
  %v5302 = vunpack.c.l.b16 %v5158
  %v5303 = vunpack.c.h.b16 %v5158
  %v5304 = vunpack.c.l.b16 %v5159
  %v5305 = vunpack.c.h.b16 %v5159
  %v5306 = vunpack.c.l.b16 %v5160
  %v5307 = vunpack.c.h.b16 %v5160
  %v5308 = vunpack.c.l.b16 %v5161
  %v5309 = vunpack.c.h.b16 %v5161
  %v5310 = vunpack.c.l.b16 %v5162
  %v5311 = vunpack.c.h.b16 %v5162
  %v5312 = vunpack.c.l.b16 %v5163
  %v5313 = vunpack.c.h.b16 %v5163
  %v5314 = vpack.c.b16 %v5220, %v5218
  %v5315 = vpack.c.b16 %v5221, %v5219
  %v5316 = vpack.c.b16 %v5224, %v5222
  %v5317 = vpack.c.b16 %v5225, %v5223
  %v5318 = vpack.c.b16 %v5228, %v5226
  %v5319 = vpack.c.b16 %v5229, %v5227
  %v5320 = vpack.c.b16 %v5232, %v5230
  %v5321 = vpack.c.b16 %v5233, %v5231
  %v5322 = vpack.c.b16 %v5236, %v5234
  %v5323 = vpack.c.b16 %v5237, %v5235
  %v5324 = vpack.c.b16 %v5240, %v5238
  %v5325 = vpack.c.b16 %v5241, %v5239
  %v5326 = vpack.c.b16 %v5244, %v5242
  %v5327 = vpack.c.b16 %v5245, %v5243
  %v5328 = vpack.c.b16 %v5248, %v5246
  %v5329 = vpack.c.b16 %v5249, %v5247
  %v5330 = vpack.c.b16 %v5252, %v5250
  %v5331 = vpack.c.b16 %v5253, %v5251
  %v5332 = vpack.c.b16 %v5256, %v5254
  %v5333 = vpack.c.b16 %v5257, %v5255
  %v5334 = vpack.c.b16 %v5260, %v5258
  %v5335 = vpack.c.b16 %v5261, %v5259
  %v5336 = vpack.c.b16 %v5264, %v5262
  %v5337 = vpack.c.b16 %v5265, %v5263
  %v5338 = vpack.c.b16 %v5268, %v5266
  %v5339 = vpack.c.b16 %v5269, %v5267
  %v5340 = vpack.c.b16 %v5272, %v5270
  %v5341 = vpack.c.b16 %v5273, %v5271
  %v5342 = vpack.c.b16 %v5276, %v5274
  %v5343 = vpack.c.b16 %v5277, %v5275
  %v5344 = vpack.c.b16 %v5280, %v5278
  %v5345 = vpack.c.b16 %v5281, %v5279
  %v5346 = vpack.c.b16 %v5284, %v5282
  %v5347 = vpack.c.b16 %v5285, %v5283
  %v5348 = vpack.c.b16 %v5288, %v5286
  %v5349 = vpack.c.b16 %v5289, %v5287
  %v5350 = vpack.c.b16 %v5292, %v5290
  %v5351 = vpack.c.b16 %v5293, %v5291
  %v5352 = vpack.c.b16 %v5296, %v5294
  %v5353 = vpack.c.b16 %v5297, %v5295
  %v5354 = vpack.c.b16 %v5300, %v5298
  %v5355 = vpack.c.b16 %v5301, %v5299
  %v5356 = vpack.c.b16 %v5304, %v5302
  %v5357 = vpack.c.b16 %v5305, %v5303
  %v5358 = vpack.c.b16 %v5308, %v5306
  %v5359 = vpack.c.b16 %v5309, %v5307
  %v5360 = vpack.c.b16 %v5312, %v5310
  %v5361 = vpack.c.b16 %v5313, %v5311
  %5410 = vmatpush.bf16.msra.mxu0 %v5328
  %5411 = vmatpush.bf16.msra.mxu0 %v5326
  %5412 = vmatpush.bf16.msra.mxu0 %v5324
  %5413 = vmatpush.bf16.msra.mxu0 %v5322
  %5414 = vmatpush.bf16.msra.mxu0 %v5320
  %5415 = vmatpush.bf16.msra.mxu0 %v5318
  %5416 = vmatpush.bf16.msra.mxu0 %v5316
  %5417 = vmatpush.bf16.msra.mxu0 %v5314
  %5418 = vmatmul.bf16.gmra.mxu0 %v5113
  %v5419 = vpop.f32.mrf.mxu0
  %v5420 = vadd.f32 %v5166, %v5419
  %v5421 = vpop.f32.mrf.mxu0
  %5422 = vdwg.mxu0
  %5423 = vmatpush.bf16.msra.mxu0 %v5344
  %5424 = vmatpush.bf16.msra.mxu0 %v5342
  %5425 = vmatpush.bf16.msra.mxu0 %v5340
  %5426 = vmatpush.bf16.msra.mxu0 %v5338
  %5427 = vmatpush.bf16.msra.mxu0 %v5336
  %5428 = vmatpush.bf16.msra.mxu0 %v5334
  %5429 = vmatpush.bf16.msra.mxu0 %v5332
  %5430 = vmatpush.bf16.msra.mxu0 %v5330
  %5431 = vmatmul.bf16.gmra.mxu0 %v5114
  %v5432 = vpop.f32.mrf.mxu0
  %v5433 = vadd.f32 %v5420, %v5432
  %v5434 = vpop.f32.mrf.mxu0
  %5435 = vdwg.mxu0
  %5436 = vmatpush.bf16.msra.mxu0 %v5360
  %5437 = vmatpush.bf16.msra.mxu0 %v5358
  %5438 = vmatpush.bf16.msra.mxu0 %v5356
  %5439 = vmatpush.bf16.msra.mxu0 %v5354
  %5440 = vmatpush.bf16.msra.mxu0 %v5352
  %5441 = vmatpush.bf16.msra.mxu0 %v5350
  %5442 = vmatpush.bf16.msra.mxu0 %v5348
  %5443 = vmatpush.bf16.msra.mxu0 %v5346
  %5444 = vmatmul.bf16.gmra.mxu0 %v5115
  %v5445 = vpop.f32.mrf.mxu0
  %v5446 = vadd.f32 %v5433, %v5445
  %v5447 = vpop.f32.mrf.mxu0
  %5448 = vdwg.mxu0
  %5449 = vmatpush.bf16.msra.mxu0 %v5329
  %5450 = vmatpush.bf16.msra.mxu0 %v5327
  %5451 = vmatpush.bf16.msra.mxu0 %v5325
  %5452 = vmatpush.bf16.msra.mxu0 %v5323
  %5453 = vmatpush.bf16.msra.mxu0 %v5321
  %5454 = vmatpush.bf16.msra.mxu0 %v5319
  %5455 = vmatpush.bf16.msra.mxu0 %v5317
  %5456 = vmatpush.bf16.msra.mxu0 %v5315
  %5457 = vmatmul.bf16.gmra.mxu0 %v5113
  %v5458 = vpop.f32.mrf.mxu0
  %v5459 = vadd.f32 %v5167, %v5458
  %v5460 = vpop.f32.mrf.mxu0
  %5461 = vdwg.mxu0
  %5462 = vmatpush.bf16.msra.mxu0 %v5345
  %5463 = vmatpush.bf16.msra.mxu0 %v5343
  %5464 = vmatpush.bf16.msra.mxu0 %v5341
  %5465 = vmatpush.bf16.msra.mxu0 %v5339
  %5466 = vmatpush.bf16.msra.mxu0 %v5337
  %5467 = vmatpush.bf16.msra.mxu0 %v5335
  %5468 = vmatpush.bf16.msra.mxu0 %v5333
  %5469 = vmatpush.bf16.msra.mxu0 %v5331
  %5470 = vmatmul.bf16.gmra.mxu0 %v5114
  %v5471 = vpop.f32.mrf.mxu0
  %v5472 = vadd.f32 %v5459, %v5471
  %v5473 = vpop.f32.mrf.mxu0
  %5474 = vdwg.mxu0
  %5475 = vmatpush.bf16.msra.mxu0 %v5361
  %5476 = vmatpush.bf16.msra.mxu0 %v5359
  %5477 = vmatpush.bf16.msra.mxu0 %v5357
  %5478 = vmatpush.bf16.msra.mxu0 %v5355
  %5479 = vmatpush.bf16.msra.mxu0 %v5353
  %5480 = vmatpush.bf16.msra.mxu0 %v5351
  %5481 = vmatpush.bf16.msra.mxu0 %v5349
  %5482 = vmatpush.bf16.msra.mxu0 %v5347
  %5483 = vmatmul.bf16.gmra.mxu0 %v5115
  %v5484 = vpop.f32.mrf.mxu0
  %v5485 = vadd.f32 %v5472, %v5484
  %v5486 = vpop.f32.mrf.mxu0
  %5487 = vdwg.mxu0
  %v5488 = vmax.f32 %v5446, 0.0
  %v5489 = vmax.f32 %v5485, 0.0
  %v5490 = vpack.c.bf16 %v5488, %v5488
  %v5491 = vpack.c.bf16 %v5489, %v5489
  %v5492 = vld [vmem:[%s5] sm:$0xf]
  %v5493 = vld [vmem:[%s5 + $0x4] sm:$0xf]
  %v5494 = vld [vmem:[%s5 + $0x8] sm:$0xf]
  %v5495 = vld [vmem:[%s5 + $0xc] sm:$0xf]
  %v5496 = vld [vmem:[%s5 + $0x10] sm:$0xf]
  %v5497 = vld [vmem:[%s5 + $0x14] sm:$0xf]
  %v5498 = vld [vmem:[%s5 + $0x18] sm:$0xf]
  %v5499 = vld [vmem:[%s5 + $0x1c] sm:$0xf]
  %v5500 = vld [vmem:[%s5 + $0x20] sm:$0xf]
  %v5501 = vld [vmem:[%s5 + $0x24] sm:$0xf]
  %v5502 = vld [vmem:[%s5 + $0x28] sm:$0xf]
  %v5503 = vld [vmem:[%s5 + $0x2c] sm:$0xf]
  %v5504 = vld [vmem:[%s5 + $0x30] sm:$0xf]
  %v5505 = vld [vmem:[%s5 + $0x34] sm:$0xf]
  %v5506 = vld [vmem:[%s5 + $0x38] sm:$0xf]
  %v5507 = vld [vmem:[%s5 + $0x3c] sm:$0xf]
  %v5508 = vld [vmem:[%s5 + $0x40] sm:$0xf]
  %v5509 = vld [vmem:[%s5 + $0x44] sm:$0xf]
  %v5510 = vld [vmem:[%s5 + $0x48] sm:$0xf]
  %v5511 = vld [vmem:[%s5 + $0x4c] sm:$0xf]
  %v5512 = vld [vmem:[%s5 + $0x50] sm:$0xf]
  %v5513 = vld [vmem:[%s5 + $0x54] sm:$0xf]
  %v5514 = vld [vmem:[%s5 + $0x58] sm:$0xf]
  %v5515 = vld [vmem:[%s5 + $0x5c] sm:$0xf]
  %v5516 = vld [vmem:[%s5 + $0x60] sm:$0xf]
  %v5517 = vld [vmem:[%s5 + $0x64] sm:$0xf]
  %v5518 = vld [vmem:[%s5 + $0x68] sm:$0xf]
  %v5519 = vld [vmem:[%s5 + $0x6c] sm:$0xf]
  %v5520 = vld [vmem:[%s5 + $0x70] sm:$0xf]
  %v5521 = vld [vmem:[%s5 + $0x74] sm:$0xf]
  %v5522 = vld [vmem:[%s5 + $0x78] sm:$0xf]
  %v5523 = vld [vmem:[%s5 + $0x7c] sm:$0xf]
  %v5524 = vld [vmem:[%s6] sm:$0x1]
  %v5526 = vperm.slane %v5524, 0
  %v5560 = vunpack.c.l.b16 %v5492
  %v5561 = vunpack.c.l.b16 %v5493
  %v5562 = vunpack.c.l.b16 %v5494
  %v5563 = vunpack.c.l.b16 %v5495
  %v5564 = vunpack.c.l.b16 %v5496
  %v5565 = vunpack.c.l.b16 %v5497
  %v5566 = vunpack.c.l.b16 %v5498
  %v5567 = vunpack.c.l.b16 %v5499
  %v5568 = vunpack.c.l.b16 %v5500
  %v5569 = vunpack.c.l.b16 %v5501
  %v5570 = vunpack.c.l.b16 %v5502
  %v5571 = vunpack.c.l.b16 %v5503
  %v5572 = vunpack.c.l.b16 %v5504
  %v5573 = vunpack.c.l.b16 %v5505
  %v5574 = vunpack.c.l.b16 %v5506
  %v5575 = vunpack.c.l.b16 %v5507
  %v5576 = vunpack.c.l.b16 %v5508
  %v5577 = vunpack.c.l.b16 %v5509
  %v5578 = vunpack.c.l.b16 %v5510
  %v5579 = vunpack.c.l.b16 %v5511
  %v5580 = vunpack.c.l.b16 %v5512
  %v5581 = vunpack.c.l.b16 %v5513
  %v5582 = vunpack.c.l.b16 %v5514
  %v5583 = vunpack.c.l.b16 %v5515
  %v5584 = vunpack.c.l.b16 %v5516
  %v5585 = vunpack.c.l.b16 %v5517
  %v5586 = vunpack.c.l.b16 %v5518
  %v5587 = vunpack.c.l.b16 %v5519
  %v5588 = vunpack.c.l.b16 %v5520
  %v5589 = vunpack.c.l.b16 %v5521
  %v5590 = vunpack.c.l.b16 %v5522
  %v5591 = vunpack.c.l.b16 %v5523
  %v5592 = vpack.c.b16 %v5561, %v5560
  %v5593 = vpack.c.b16 %v5563, %v5562
  %v5594 = vpack.c.b16 %v5565, %v5564
  %v5595 = vpack.c.b16 %v5567, %v5566
  %v5596 = vpack.c.b16 %v5569, %v5568
  %v5597 = vpack.c.b16 %v5571, %v5570
  %v5598 = vpack.c.b16 %v5573, %v5572
  %v5599 = vpack.c.b16 %v5575, %v5574
  %v5600 = vpack.c.b16 %v5577, %v5576
  %v5601 = vpack.c.b16 %v5579, %v5578
  %v5602 = vpack.c.b16 %v5581, %v5580
  %v5603 = vpack.c.b16 %v5583, %v5582
  %v5604 = vpack.c.b16 %v5585, %v5584
  %v5605 = vpack.c.b16 %v5587, %v5586
  %v5606 = vpack.c.b16 %v5589, %v5588
  %v5607 = vpack.c.b16 %v5591, %v5590
  %5624 = vmatpush.bf16.msra.mxu0 %v5599
  %5625 = vmatpush.bf16.msra.mxu0 %v5598
  %5626 = vmatpush.bf16.msra.mxu0 %v5597
  %5627 = vmatpush.bf16.msra.mxu0 %v5596
  %5628 = vmatpush.bf16.msra.mxu0 %v5595
  %5629 = vmatpush.bf16.msra.mxu0 %v5594
  %5630 = vmatpush.bf16.msra.mxu0 %v5593
  %5631 = vmatpush.bf16.msra.mxu0 %v5592
  %5632 = vmatmul.bf16.gmra.mxu0 %v5490
  %v5633 = vpop.f32.mrf.mxu0
  %v5634 = vadd.f32 %v5526, %v5633
  %v5635 = vpop.f32.mrf.mxu0
  %5636 = vdwg.mxu0
  %5637 = vmatpush.bf16.msra.mxu0 %v5607
  %5638 = vmatpush.bf16.msra.mxu0 %v5606
  %5639 = vmatpush.bf16.msra.mxu0 %v5605
  %5640 = vmatpush.bf16.msra.mxu0 %v5604
  %5641 = vmatpush.bf16.msra.mxu0 %v5603
  %5642 = vmatpush.bf16.msra.mxu0 %v5602
  %5643 = vmatpush.bf16.msra.mxu0 %v5601
  %5644 = vmatpush.bf16.msra.mxu0 %v5600
  %5645 = vmatmul.bf16.gmra.mxu0 %v5491
  %v5646 = vpop.f32.mrf.mxu0
  %v5647 = vadd.f32 %v5634, %v5646
  %v5648 = vpop.f32.mrf.mxu0
  %5649 = vdwg.mxu0
  %5650 = vst [vmem:[%s7] sm:$0xff] %v5647
  // Predicated region
  $region30: #{net_forward.5} parent=0 // pred_check
    _
  $region31: #{net_forward.5} parent=0 // pred_check_branch
    %5652 = sbr.rel (0) target = $region33
  $region32: #{net_forward.5} parent=0 // pred_region
    _
  $region33: #{net_forward.5} parent=0 // pred_fallthru
    _
  // Predicated region
  $region34: #{net_forward.5} parent=0 // pred_check
    _
  $region35: #{net_forward.5} parent=0 // pred_check_branch
    %5654 = sbr.rel (0) target = $region37
  $region36: #{net_forward.5} parent=0 // pred_region
    _
  $region37: #{net_forward.5} parent=0 // pred_fallthru
    _

// kernel: net_forward.4
$region0: #{net_forward.4}
  #allocation0 [shape = 'u32[]', space=smem, size = 0x4, offset = 0x4, fixed_abs, tag = 'smem constant byte address 0x4 - core index']
  #allocation1 [shape = 'u32[72,128]{1,0:T(1,128)}', space=vmem, size = 0x9000, scoped, tag = 'internal scratch']
  %s0 = inlined_call_operand.vmem [shape: bf16[4,56,3200], index: 0, kind: input, shape index: {}]
  %s1 = inlined_call_operand.vmem [shape: bf16[3200,128], index: 1, kind: input, shape index: {}]
  %s2 = inlined_call_operand.vmem [shape: f32[1,128], index: 2, kind: input, shape index: {}]
  %s3 = inlined_call_operand.vmem [shape: bf16[56,128], index: 3, kind: output, shape index: {}]
  %s4 = sld [smem:[#allocation0]]
  $region22: #{net_forward.4} parent=0
    _
  %s6 = ssub.s32 1, %s4
  %s7 = scalar_select 0, %s6, %s4
  // Predicated region
  $region2: #{net_forward.4} parent=0 // pred_check
    _
  $region3: #{net_forward.4} parent=0 // pred_check_branch
    %9 = sbr.rel (0) target = $region5
  $region4: #{net_forward.4} parent=0 // pred_region
    _
  $region5: #{net_forward.4} parent=0 // pred_fallthru
    _
  // Predicated region
  $region6: #{net_forward.4} parent=0 // pred_check
    _
  $region7: #{net_forward.4} parent=0 // pred_check_branch
    %11 = sbr.rel (0) target = $region9
  $region8: #{net_forward.4} parent=0 // pred_region
    _
  $region9: #{net_forward.4} parent=0 // pred_fallthru
    _
  // Predicated region
  $region10: #{net_forward.4} parent=0 // pred_check
    _
  $region11: #{net_forward.4} parent=0 // pred_check_branch
    %13 = sbr.rel (0) target = $region13
  $region12: #{net_forward.4} parent=0 // pred_region
    _
  $region13: #{net_forward.4} parent=0 // pred_fallthru
    _
  %v14 = vld [vmem:[%s1] sm:$0xf]
  %v15 = vld [vmem:[%s1 + $0x4] sm:$0xf]
  %v16 = vld [vmem:[%s1 + $0x8] sm:$0xf]
  %v17 = vld [vmem:[%s1 + $0xc] sm:$0xf]
  %v18 = vld [vmem:[%s1 + $0x10] sm:$0xf]
  %v19 = vld [vmem:[%s1 + $0x14] sm:$0xf]
  %v20 = vld [vmem:[%s1 + $0x18] sm:$0xf]
  %v21 = vld [vmem:[%s1 + $0x1c] sm:$0xf]
  %v22 = vld [vmem:[%s1 + $0x20] sm:$0xf]
  %v23 = vld [vmem:[%s1 + $0x24] sm:$0xf]
  %v24 = vld [vmem:[%s1 + $0x28] sm:$0xf]
  %v25 = vld [vmem:[%s1 + $0x2c] sm:$0xf]
  %v26 = vld [vmem:[%s1 + $0x30] sm:$0xf]
  %v27 = vld [vmem:[%s1 + $0x34] sm:$0xf]
  %v28 = vld [vmem:[%s1 + $0x38] sm:$0xf]
  %v29 = vld [vmem:[%s1 + $0x3c] sm:$0xf]
  %v30 = vld [vmem:[%s1 + $0x40] sm:$0xf]
  %v31 = vld [vmem:[%s1 + $0x44] sm:$0xf]
  %v32 = vld [vmem:[%s1 + $0x48] sm:$0xf]
  %v33 = vld [vmem:[%s1 + $0x4c] sm:$0xf]
  %v34 = vld [vmem:[%s1 + $0x50] sm:$0xf]
  %v35 = vld [vmem:[%s1 + $0x54] sm:$0xf]
  %v36 = vld [vmem:[%s1 + $0x58] sm:$0xf]
  %v37 = vld [vmem:[%s1 + $0x5c] sm:$0xf]
  %v38 = vld [vmem:[%s1 + $0x60] sm:$0xf]
  %v39 = vld [vmem:[%s1 + $0x64] sm:$0xf]
  %v40 = vld [vmem:[%s1 + $0x68] sm:$0xf]
  %v41 = vld [vmem:[%s1 + $0x6c] sm:$0xf]
  %v42 = vld [vmem:[%s1 + $0x70] sm:$0xf]
  %v43 = vld [vmem:[%s1 + $0x74] sm:$0xf]
  %v44 = vld [vmem:[%s1 + $0x78] sm:$0xf]
  %v45 = vld [vmem:[%s1 + $0x7c] sm:$0xf]
  %v46 = vld [vmem:[%s1 + $0x80] sm:$0xf]
  %v47 = vld [vmem:[%s1 + $0x84] sm:$0xf]
  %v48 = vld [vmem:[%s1 + $0x88] sm:$0xf]
  %v49 = vld [vmem:[%s1 + $0x8c] sm:$0xf]
  %v50 = vld [vmem:[%s1 + $0x90] sm:$0xf]
  %v51 = vld [vmem:[%s1 + $0x94] sm:$0xf]
  %v52 = vld [vmem:[%s1 + $0x98] sm:$0xf]
  %v53 = vld [vmem:[%s1 + $0x9c] sm:$0xf]
  %v54 = vld [vmem:[%s1 + $0xa0] sm:$0xf]
  %v55 = vld [vmem:[%s1 + $0xa4] sm:$0xf]
  %v56 = vld [vmem:[%s1 + $0xa8] sm:$0xf]
  %v57 = vld [vmem:[%s1 + $0xac] sm:$0xf]
  %v58 = vld [vmem:[%s1 + $0xb0] sm:$0xf]
  %v59 = vld [vmem:[%s1 + $0xb4] sm:$0xf]
  %v60 = vld [vmem:[%s1 + $0xb8] sm:$0xf]
  %v61 = vld [vmem:[%s1 + $0xbc] sm:$0xf]
  %v62 = vld [vmem:[%s1 + $0xc0] sm:$0xf]
  %v63 = vld [vmem:[%s1 + $0xc4] sm:$0xf]
  %v64 = vld [vmem:[%s1 + $0xc8] sm:$0xf]
  %v65 = vld [vmem:[%s1 + $0xcc] sm:$0xf]
  %v66 = vld [vmem:[%s1 + $0xd0] sm:$0xf]
  %v67 = vld [vmem:[%s1 + $0xd4] sm:$0xf]
  %v68 = vld [vmem:[%s1 + $0xd8] sm:$0xf]
  %v69 = vld [vmem:[%s1 + $0xdc] sm:$0xf]
  %v70 = vld [vmem:[%s1 + $0xe0] sm:$0xf]
  %v71 = vld [vmem:[%s1 + $0xe4] sm:$0xf]
  %v72 = vld [vmem:[%s1 + $0xe8] sm:$0xf]
  %v73 = vld [vmem:[%s1 + $0xec] sm:$0xf]
  %v74 = vld [vmem:[%s1 + $0xf0] sm:$0xf]
  %v75 = vld [vmem:[%s1 + $0xf4] sm:$0xf]
  %v76 = vld [vmem:[%s1 + $0xf8] sm:$0xf]
  %v77 = vld [vmem:[%s1 + $0xfc] sm:$0xf]
  %v78 = vld [vmem:[%s1 + $0x100] sm:$0xf]
  %v79 = vld [vmem:[%s1 + $0x104] sm:$0xf]
  %v80 = vld [vmem:[%s1 + $0x108] sm:$0xf]
  %v81 = vld [vmem:[%s1 + $0x10c] sm:$0xf]
  %v82 = vld [vmem:[%s1 + $0x110] sm:$0xf]
  %v83 = vld [vmem:[%s1 + $0x114] sm:$0xf]
  %v84 = vld [vmem:[%s1 + $0x118] sm:$0xf]
  %v85 = vld [vmem:[%s1 + $0x11c] sm:$0xf]
  %v86 = vld [vmem:[%s1 + $0x120] sm:$0xf]
  %v87 = vld [vmem:[%s1 + $0x124] sm:$0xf]
  %v88 = vld [vmem:[%s1 + $0x128] sm:$0xf]
  %v89 = vld [vmem:[%s1 + $0x12c] sm:$0xf]
  %v90 = vld [vmem:[%s1 + $0x130] sm:$0xf]
  %v91 = vld [vmem:[%s1 + $0x134] sm:$0xf]
  %v92 = vld [vmem:[%s1 + $0x138] sm:$0xf]
  %v93 = vld [vmem:[%s1 + $0x13c] sm:$0xf]
  %v94 = vld [vmem:[%s1 + $0x140] sm:$0xf]
  %v95 = vld [vmem:[%s1 + $0x144] sm:$0xf]
  %v96 = vld [vmem:[%s1 + $0x148] sm:$0xf]
  %v97 = vld [vmem:[%s1 + $0x14c] sm:$0xf]
  %v98 = vld [vmem:[%s1 + $0x150] sm:$0xf]
  %v99 = vld [vmem:[%s1 + $0x154] sm:$0xf]
  %v100 = vld [vmem:[%s1 + $0x158] sm:$0xf]
  %v101 = vld [vmem:[%s1 + $0x15c] sm:$0xf]
  %v102 = vld [vmem:[%s1 + $0x160] sm:$0xf]
  %v103 = vld [vmem:[%s1 + $0x164] sm:$0xf]
  %v104 = vld [vmem:[%s1 + $0x168] sm:$0xf]
  %v105 = vld [vmem:[%s1 + $0x16c] sm:$0xf]
  %v106 = vld [vmem:[%s1 + $0x170] sm:$0xf]
  %v107 = vld [vmem:[%s1 + $0x174] sm:$0xf]
  %v108 = vld [vmem:[%s1 + $0x178] sm:$0xf]
  %v109 = vld [vmem:[%s1 + $0x17c] sm:$0xf]
  %v110 = vld [vmem:[%s1 + $0x180] sm:$0xf]
  %v111 = vld [vmem:[%s1 + $0x184] sm:$0xf]
  %v112 = vld [vmem:[%s1 + $0x188] sm:$0xf]
  %v113 = vld [vmem:[%s1 + $0x18c] sm:$0xf]
  %v114 = vld [vmem:[%s1 + $0x190] sm:$0xf]
  %v115 = vld [vmem:[%s1 + $0x194] sm:$0xf]
  %v116 = vld [vmem:[%s1 + $0x198] sm:$0xf]
  %v117 = vld [vmem:[%s1 + $0x19c] sm:$0xf]
  %v118 = vld [vmem:[%s1 + $0x1a0] sm:$0xf]
  %v119 = vld [vmem:[%s1 + $0x1a4] sm:$0xf]
  %v120 = vld [vmem:[%s1 + $0x1a8] sm:$0xf]
  %v121 = vld [vmem:[%s1 + $0x1ac] sm:$0xf]
  %v122 = vld [vmem:[%s1 + $0x1b0] sm:$0xf]
  %v123 = vld [vmem:[%s1 + $0x1b4] sm:$0xf]
  %v124 = vld [vmem:[%s1 + $0x1b8] sm:$0xf]
  %v125 = vld [vmem:[%s1 + $0x1bc] sm:$0xf]
  %v126 = vld [vmem:[%s1 + $0x1c0] sm:$0xf]
  %v127 = vld [vmem:[%s1 + $0x1c4] sm:$0xf]
  %v128 = vld [vmem:[%s1 + $0x1c8] sm:$0xf]
  %v129 = vld [vmem:[%s1 + $0x1cc] sm:$0xf]
  %v130 = vld [vmem:[%s1 + $0x1d0] sm:$0xf]
  %v131 = vld [vmem:[%s1 + $0x1d4] sm:$0xf]
  %v132 = vld [vmem:[%s1 + $0x1d8] sm:$0xf]
  %v133 = vld [vmem:[%s1 + $0x1dc] sm:$0xf]
  %v134 = vld [vmem:[%s1 + $0x1e0] sm:$0xf]
  %v135 = vld [vmem:[%s1 + $0x1e4] sm:$0xf]
  %v136 = vld [vmem:[%s1 + $0x1e8] sm:$0xf]
  %v137 = vld [vmem:[%s1 + $0x1ec] sm:$0xf]
  %v138 = vld [vmem:[%s1 + $0x1f0] sm:$0xf]
  %v139 = vld [vmem:[%s1 + $0x1f4] sm:$0xf]
  %v140 = vld [vmem:[%s1 + $0x1f8] sm:$0xf]
  %v141 = vld [vmem:[%s1 + $0x1fc] sm:$0xf]
  %v142 = vld [vmem:[%s1 + $0x200] sm:$0xf]
  %v143 = vld [vmem:[%s1 + $0x204] sm:$0xf]
  %v144 = vld [vmem:[%s1 + $0x208] sm:$0xf]
  %v145 = vld [vmem:[%s1 + $0x20c] sm:$0xf]
  %v146 = vld [vmem:[%s1 + $0x210] sm:$0xf]
  %v147 = vld [vmem:[%s1 + $0x214] sm:$0xf]
  %v148 = vld [vmem:[%s1 + $0x218] sm:$0xf]
  %v149 = vld [vmem:[%s1 + $0x21c] sm:$0xf]
  %v150 = vld [vmem:[%s1 + $0x220] sm:$0xf]
  %v151 = vld [vmem:[%s1 + $0x224] sm:$0xf]
  %v152 = vld [vmem:[%s1 + $0x228] sm:$0xf]
  %v153 = vld [vmem:[%s1 + $0x22c] sm:$0xf]
  %v154 = vld [vmem:[%s1 + $0x230] sm:$0xf]
  %v155 = vld [vmem:[%s1 + $0x234] sm:$0xf]
  %v156 = vld [vmem:[%s1 + $0x238] sm:$0xf]
  %v157 = vld [vmem:[%s1 + $0x23c] sm:$0xf]
  %v158 = vld [vmem:[%s1 + $0x240] sm:$0xf]
  %v159 = vld [vmem:[%s1 + $0x244] sm:$0xf]
  %v160 = vld [vmem:[%s1 + $0x248] sm:$0xf]
  %v161 = vld [vmem:[%s1 + $0x24c] sm:$0xf]
  %v162 = vld [vmem:[%s1 + $0x250] sm:$0xf]
  %v163 = vld [vmem:[%s1 + $0x254] sm:$0xf]
  %v164 = vld [vmem:[%s1 + $0x258] sm:$0xf]
  %v165 = vld [vmem:[%s1 + $0x25c] sm:$0xf]
  %v166 = vld [vmem:[%s1 + $0x260] sm:$0xf]
  %v167 = vld [vmem:[%s1 + $0x264] sm:$0xf]
  %v168 = vld [vmem:[%s1 + $0x268] sm:$0xf]
  %v169 = vld [vmem:[%s1 + $0x26c] sm:$0xf]
  %v170 = vld [vmem:[%s1 + $0x270] sm:$0xf]
  %v171 = vld [vmem:[%s1 + $0x274] sm:$0xf]
  %v172 = vld [vmem:[%s1 + $0x278] sm:$0xf]
  %v173 = vld [vmem:[%s1 + $0x27c] sm:$0xf]
  %v174 = vld [vmem:[%s1 + $0x280] sm:$0xf]
  %v175 = vld [vmem:[%s1 + $0x284] sm:$0xf]
  %v176 = vld [vmem:[%s1 + $0x288] sm:$0xf]
  %v177 = vld [vmem:[%s1 + $0x28c] sm:$0xf]
  %v178 = vld [vmem:[%s1 + $0x290] sm:$0xf]
  %v179 = vld [vmem:[%s1 + $0x294] sm:$0xf]
  %v180 = vld [vmem:[%s1 + $0x298] sm:$0xf]
  %v181 = vld [vmem:[%s1 + $0x29c] sm:$0xf]
  %v182 = vld [vmem:[%s1 + $0x2a0] sm:$0xf]
  %v183 = vld [vmem:[%s1 + $0x2a4] sm:$0xf]
  %v184 = vld [vmem:[%s1 + $0x2a8] sm:$0xf]
  %v185 = vld [vmem:[%s1 + $0x2ac] sm:$0xf]
  %v186 = vld [vmem:[%s1 + $0x2b0] sm:$0xf]
  %v187 = vld [vmem:[%s1 + $0x2b4] sm:$0xf]
  %v188 = vld [vmem:[%s1 + $0x2b8] sm:$0xf]
  %v189 = vld [vmem:[%s1 + $0x2bc] sm:$0xf]
  %v190 = vld [vmem:[%s1 + $0x2c0] sm:$0xf]
  %v191 = vld [vmem:[%s1 + $0x2c4] sm:$0xf]
  %v192 = vld [vmem:[%s1 + $0x2c8] sm:$0xf]
  %v193 = vld [vmem:[%s1 + $0x2cc] sm:$0xf]
  %v194 = vld [vmem:[%s1 + $0x2d0] sm:$0xf]
  %v195 = vld [vmem:[%s1 + $0x2d4] sm:$0xf]
  %v196 = vld [vmem:[%s1 + $0x2d8] sm:$0xf]
  %v197 = vld [vmem:[%s1 + $0x2dc] sm:$0xf]
  %v198 = vld [vmem:[%s1 + $0x2e0] sm:$0xf]
  %v199 = vld [vmem:[%s1 + $0x2e4] sm:$0xf]
  %v200 = vld [vmem:[%s1 + $0x2e8] sm:$0xf]
  %v201 = vld [vmem:[%s1 + $0x2ec] sm:$0xf]
  %v202 = vld [vmem:[%s1 + $0x2f0] sm:$0xf]
  %v203 = vld [vmem:[%s1 + $0x2f4] sm:$0xf]
  %v204 = vld [vmem:[%s1 + $0x2f8] sm:$0xf]
  %v205 = vld [vmem:[%s1 + $0x2fc] sm:$0xf]
  %v206 = vld [vmem:[%s1 + $0x300] sm:$0xf]
  %v207 = vld [vmem:[%s1 + $0x304] sm:$0xf]
  %v208 = vld [vmem:[%s1 + $0x308] sm:$0xf]
  %v209 = vld [vmem:[%s1 + $0x30c] sm:$0xf]
  %v210 = vld [vmem:[%s1 + $0x310] sm:$0xf]
  %v211 = vld [vmem:[%s1 + $0x314] sm:$0xf]
  %v212 = vld [vmem:[%s1 + $0x318] sm:$0xf]
  %v213 = vld [vmem:[%s1 + $0x31c] sm:$0xf]
  %v214 = vld [vmem:[%s1 + $0x320] sm:$0xf]
  %v215 = vld [vmem:[%s1 + $0x324] sm:$0xf]
  %v216 = vld [vmem:[%s1 + $0x328] sm:$0xf]
  %v217 = vld [vmem:[%s1 + $0x32c] sm:$0xf]
  %v218 = vld [vmem:[%s1 + $0x330] sm:$0xf]
  %v219 = vld [vmem:[%s1 + $0x334] sm:$0xf]
  %v220 = vld [vmem:[%s1 + $0x338] sm:$0xf]
  %v221 = vld [vmem:[%s1 + $0x33c] sm:$0xf]
  %v222 = vld [vmem:[%s1 + $0x340] sm:$0xf]
  %v223 = vld [vmem:[%s1 + $0x344] sm:$0xf]
  %v224 = vld [vmem:[%s1 + $0x348] sm:$0xf]
  %v225 = vld [vmem:[%s1 + $0x34c] sm:$0xf]
  %v226 = vld [vmem:[%s1 + $0x350] sm:$0xf]
  %v227 = vld [vmem:[%s1 + $0x354] sm:$0xf]
  %v228 = vld [vmem:[%s1 + $0x358] sm:$0xf]
  %v229 = vld [vmem:[%s1 + $0x35c] sm:$0xf]
  %v230 = vld [vmem:[%s1 + $0x360] sm:$0xf]
  %v231 = vld [vmem:[%s1 + $0x364] sm:$0xf]
  %v232 = vld [vmem:[%s1 + $0x368] sm:$0xf]
  %v233 = vld [vmem:[%s1 + $0x36c] sm:$0xf]
  %v234 = vld [vmem:[%s1 + $0x370] sm:$0xf]
  %v235 = vld [vmem:[%s1 + $0x374] sm:$0xf]
  %v236 = vld [vmem:[%s1 + $0x378] sm:$0xf]
  %v237 = vld [vmem:[%s1 + $0x37c] sm:$0xf]
  %v238 = vld [vmem:[%s1 + $0x380] sm:$0xf]
  %v239 = vld [vmem:[%s1 + $0x384] sm:$0xf]
  %v240 = vld [vmem:[%s1 + $0x388] sm:$0xf]
  %v241 = vld [vmem:[%s1 + $0x38c] sm:$0xf]
  %v242 = vld [vmem:[%s1 + $0x390] sm:$0xf]
  %v243 = vld [vmem:[%s1 + $0x394] sm:$0xf]
  %v244 = vld [vmem:[%s1 + $0x398] sm:$0xf]
  %v245 = vld [vmem:[%s1 + $0x39c] sm:$0xf]
  %v246 = vld [vmem:[%s1 + $0x3a0] sm:$0xf]
  %v247 = vld [vmem:[%s1 + $0x3a4] sm:$0xf]
  %v248 = vld [vmem:[%s1 + $0x3a8] sm:$0xf]
  %v249 = vld [vmem:[%s1 + $0x3ac] sm:$0xf]
  %v250 = vld [vmem:[%s1 + $0x3b0] sm:$0xf]
  %v251 = vld [vmem:[%s1 + $0x3b4] sm:$0xf]
  %v252 = vld [vmem:[%s1 + $0x3b8] sm:$0xf]
  %v253 = vld [vmem:[%s1 + $0x3bc] sm:$0xf]
  %v254 = vld [vmem:[%s1 + $0x3c0] sm:$0xf]
  %v255 = vld [vmem:[%s1 + $0x3c4] sm:$0xf]
  %v256 = vld [vmem:[%s1 + $0x3c8] sm:$0xf]
  %v257 = vld [vmem:[%s1 + $0x3cc] sm:$0xf]
  %v258 = vld [vmem:[%s1 + $0x3d0] sm:$0xf]
  %v259 = vld [vmem:[%s1 + $0x3d4] sm:$0xf]
  %v260 = vld [vmem:[%s1 + $0x3d8] sm:$0xf]
  %v261 = vld [vmem:[%s1 + $0x3dc] sm:$0xf]
  %v262 = vld [vmem:[%s1 + $0x3e0] sm:$0xf]
  %v263 = vld [vmem:[%s1 + $0x3e4] sm:$0xf]
  %v264 = vld [vmem:[%s1 + $0x3e8] sm:$0xf]
  %v265 = vld [vmem:[%s1 + $0x3ec] sm:$0xf]
  %v266 = vld [vmem:[%s1 + $0x3f0] sm:$0xf]
  %v267 = vld [vmem:[%s1 + $0x3f4] sm:$0xf]
  %v268 = vld [vmem:[%s1 + $0x3f8] sm:$0xf]
  %v269 = vld [vmem:[%s1 + $0x3fc] sm:$0xf]
  %v270 = vld [vmem:[%s1 + $0x400] sm:$0xf]
  %v271 = vld [vmem:[%s1 + $0x404] sm:$0xf]
  %v272 = vld [vmem:[%s1 + $0x408] sm:$0xf]
  %v273 = vld [vmem:[%s1 + $0x40c] sm:$0xf]
  %v274 = vld [vmem:[%s1 + $0x410] sm:$0xf]
  %v275 = vld [vmem:[%s1 + $0x414] sm:$0xf]
  %v276 = vld [vmem:[%s1 + $0x418] sm:$0xf]
  %v277 = vld [vmem:[%s1 + $0x41c] sm:$0xf]
  %v278 = vld [vmem:[%s1 + $0x420] sm:$0xf]
  %v279 = vld [vmem:[%s1 + $0x424] sm:$0xf]
  %v280 = vld [vmem:[%s1 + $0x428] sm:$0xf]
  %v281 = vld [vmem:[%s1 + $0x42c] sm:$0xf]
  %v282 = vld [vmem:[%s1 + $0x430] sm:$0xf]
  %v283 = vld [vmem:[%s1 + $0x434] sm:$0xf]
  %v284 = vld [vmem:[%s1 + $0x438] sm:$0xf]
  %v285 = vld [vmem:[%s1 + $0x43c] sm:$0xf]
  %v286 = vld [vmem:[%s1 + $0x440] sm:$0xf]
  %v287 = vld [vmem:[%s1 + $0x444] sm:$0xf]
  %v288 = vld [vmem:[%s1 + $0x448] sm:$0xf]
  %v289 = vld [vmem:[%s1 + $0x44c] sm:$0xf]
  %v290 = vld [vmem:[%s1 + $0x450] sm:$0xf]
  %v291 = vld [vmem:[%s1 + $0x454] sm:$0xf]
  %v292 = vld [vmem:[%s1 + $0x458] sm:$0xf]
  %v293 = vld [vmem:[%s1 + $0x45c] sm:$0xf]
  %v294 = vld [vmem:[%s1 + $0x460] sm:$0xf]
  %v295 = vld [vmem:[%s1 + $0x464] sm:$0xf]
  %v296 = vld [vmem:[%s1 + $0x468] sm:$0xf]
  %v297 = vld [vmem:[%s1 + $0x46c] sm:$0xf]
  %v298 = vld [vmem:[%s1 + $0x470] sm:$0xf]
  %v299 = vld [vmem:[%s1 + $0x474] sm:$0xf]
  %v300 = vld [vmem:[%s1 + $0x478] sm:$0xf]
  %v301 = vld [vmem:[%s1 + $0x47c] sm:$0xf]
  %v302 = vld [vmem:[%s1 + $0x480] sm:$0xf]
  %v303 = vld [vmem:[%s1 + $0x484] sm:$0xf]
  %v304 = vld [vmem:[%s1 + $0x488] sm:$0xf]
  %v305 = vld [vmem:[%s1 + $0x48c] sm:$0xf]
  %v306 = vld [vmem:[%s1 + $0x490] sm:$0xf]
  %v307 = vld [vmem:[%s1 + $0x494] sm:$0xf]
  %v308 = vld [vmem:[%s1 + $0x498] sm:$0xf]
  %v309 = vld [vmem:[%s1 + $0x49c] sm:$0xf]
  %v310 = vld [vmem:[%s1 + $0x4a0] sm:$0xf]
  %v311 = vld [vmem:[%s1 + $0x4a4] sm:$0xf]
  %v312 = vld [vmem:[%s1 + $0x4a8] sm:$0xf]
  %v313 = vld [vmem:[%s1 + $0x4ac] sm:$0xf]
  %v314 = vld [vmem:[%s1 + $0x4b0] sm:$0xf]
  %v315 = vld [vmem:[%s1 + $0x4b4] sm:$0xf]
  %v316 = vld [vmem:[%s1 + $0x4b8] sm:$0xf]
  %v317 = vld [vmem:[%s1 + $0x4bc] sm:$0xf]
  %v318 = vld [vmem:[%s1 + $0x4c0] sm:$0xf]
  %v319 = vld [vmem:[%s1 + $0x4c4] sm:$0xf]
  %v320 = vld [vmem:[%s1 + $0x4c8] sm:$0xf]
  %v321 = vld [vmem:[%s1 + $0x4cc] sm:$0xf]
  %v322 = vld [vmem:[%s1 + $0x4d0] sm:$0xf]
  %v323 = vld [vmem:[%s1 + $0x4d4] sm:$0xf]
  %v324 = vld [vmem:[%s1 + $0x4d8] sm:$0xf]
  %v325 = vld [vmem:[%s1 + $0x4dc] sm:$0xf]
  %v326 = vld [vmem:[%s1 + $0x4e0] sm:$0xf]
  %v327 = vld [vmem:[%s1 + $0x4e4] sm:$0xf]
  %v328 = vld [vmem:[%s1 + $0x4e8] sm:$0xf]
  %v329 = vld [vmem:[%s1 + $0x4ec] sm:$0xf]
  %v330 = vld [vmem:[%s1 + $0x4f0] sm:$0xf]
  %v331 = vld [vmem:[%s1 + $0x4f4] sm:$0xf]
  %v332 = vld [vmem:[%s1 + $0x4f8] sm:$0xf]
  %v333 = vld [vmem:[%s1 + $0x4fc] sm:$0xf]
  %v334 = vld [vmem:[%s1 + $0x500] sm:$0xf]
  %v335 = vld [vmem:[%s1 + $0x504] sm:$0xf]
  %v336 = vld [vmem:[%s1 + $0x508] sm:$0xf]
  %v337 = vld [vmem:[%s1 + $0x50c] sm:$0xf]
  %v338 = vld [vmem:[%s1 + $0x510] sm:$0xf]
  %v339 = vld [vmem:[%s1 + $0x514] sm:$0xf]
  %v340 = vld [vmem:[%s1 + $0x518] sm:$0xf]
  %v341 = vld [vmem:[%s1 + $0x51c] sm:$0xf]
  %v342 = vld [vmem:[%s1 + $0x520] sm:$0xf]
  %v343 = vld [vmem:[%s1 + $0x524] sm:$0xf]
  %v344 = vld [vmem:[%s1 + $0x528] sm:$0xf]
  %v345 = vld [vmem:[%s1 + $0x52c] sm:$0xf]
  %v346 = vld [vmem:[%s1 + $0x530] sm:$0xf]
  %v347 = vld [vmem:[%s1 + $0x534] sm:$0xf]
  %v348 = vld [vmem:[%s1 + $0x538] sm:$0xf]
  %v349 = vld [vmem:[%s1 + $0x53c] sm:$0xf]
  %v350 = vld [vmem:[%s1 + $0x540] sm:$0xf]
  %v351 = vld [vmem:[%s1 + $0x544] sm:$0xf]
  %v352 = vld [vmem:[%s1 + $0x548] sm:$0xf]
  %v353 = vld [vmem:[%s1 + $0x54c] sm:$0xf]
  %v354 = vld [vmem:[%s1 + $0x550] sm:$0xf]
  %v355 = vld [vmem:[%s1 + $0x554] sm:$0xf]
  %v356 = vld [vmem:[%s1 + $0x558] sm:$0xf]
  %v357 = vld [vmem:[%s1 + $0x55c] sm:$0xf]
  %v358 = vld [vmem:[%s1 + $0x560] sm:$0xf]
  %v359 = vld [vmem:[%s1 + $0x564] sm:$0xf]
  %v360 = vld [vmem:[%s1 + $0x568] sm:$0xf]
  %v361 = vld [vmem:[%s1 + $0x56c] sm:$0xf]
  %v362 = vld [vmem:[%s1 + $0x570] sm:$0xf]
  %v363 = vld [vmem:[%s1 + $0x574] sm:$0xf]
  %v364 = vld [vmem:[%s1 + $0x578] sm:$0xf]
  %v365 = vld [vmem:[%s1 + $0x57c] sm:$0xf]
  %v366 = vld [vmem:[%s1 + $0x580] sm:$0xf]
  %v367 = vld [vmem:[%s1 + $0x584] sm:$0xf]
  %v368 = vld [vmem:[%s1 + $0x588] sm:$0xf]
  %v369 = vld [vmem:[%s1 + $0x58c] sm:$0xf]
  %v370 = vld [vmem:[%s1 + $0x590] sm:$0xf]
  %v371 = vld [vmem:[%s1 + $0x594] sm:$0xf]
  %v372 = vld [vmem:[%s1 + $0x598] sm:$0xf]
  %v373 = vld [vmem:[%s1 + $0x59c] sm:$0xf]
  %v374 = vld [vmem:[%s1 + $0x5a0] sm:$0xf]
  %v375 = vld [vmem:[%s1 + $0x5a4] sm:$0xf]
  %v376 = vld [vmem:[%s1 + $0x5a8] sm:$0xf]
  %v377 = vld [vmem:[%s1 + $0x5ac] sm:$0xf]
  %v378 = vld [vmem:[%s1 + $0x5b0] sm:$0xf]
  %v379 = vld [vmem:[%s1 + $0x5b4] sm:$0xf]
  %v380 = vld [vmem:[%s1 + $0x5b8] sm:$0xf]
  %v381 = vld [vmem:[%s1 + $0x5bc] sm:$0xf]
  %v382 = vld [vmem:[%s1 + $0x5c0] sm:$0xf]
  %v383 = vld [vmem:[%s1 + $0x5c4] sm:$0xf]
  %v384 = vld [vmem:[%s1 + $0x5c8] sm:$0xf]
  %v385 = vld [vmem:[%s1 + $0x5cc] sm:$0xf]
  %v386 = vld [vmem:[%s1 + $0x5d0] sm:$0xf]
  %v387 = vld [vmem:[%s1 + $0x5d4] sm:$0xf]
  %v388 = vld [vmem:[%s1 + $0x5d8] sm:$0xf]
  %v389 = vld [vmem:[%s1 + $0x5dc] sm:$0xf]
  %v390 = vld [vmem:[%s1 + $0x5e0] sm:$0xf]
  %v391 = vld [vmem:[%s1 + $0x5e4] sm:$0xf]
  %v392 = vld [vmem:[%s1 + $0x5e8] sm:$0xf]
  %v393 = vld [vmem:[%s1 + $0x5ec] sm:$0xf]
  %v394 = vld [vmem:[%s1 + $0x5f0] sm:$0xf]
  %v395 = vld [vmem:[%s1 + $0x5f4] sm:$0xf]
  %v396 = vld [vmem:[%s1 + $0x5f8] sm:$0xf]
  %v397 = vld [vmem:[%s1 + $0x5fc] sm:$0xf]
  %v398 = vld [vmem:[%s1 + $0x600] sm:$0xf]
  %v399 = vld [vmem:[%s1 + $0x604] sm:$0xf]
  %v400 = vld [vmem:[%s1 + $0x608] sm:$0xf]
  %v401 = vld [vmem:[%s1 + $0x60c] sm:$0xf]
  %v402 = vld [vmem:[%s1 + $0x610] sm:$0xf]
  %v403 = vld [vmem:[%s1 + $0x614] sm:$0xf]
  %v404 = vld [vmem:[%s1 + $0x618] sm:$0xf]
  %v405 = vld [vmem:[%s1 + $0x61c] sm:$0xf]
  %v406 = vld [vmem:[%s1 + $0x620] sm:$0xf]
  %v407 = vld [vmem:[%s1 + $0x624] sm:$0xf]
  %v408 = vld [vmem:[%s1 + $0x628] sm:$0xf]
  %v409 = vld [vmem:[%s1 + $0x62c] sm:$0xf]
  %v410 = vld [vmem:[%s1 + $0x630] sm:$0xf]
  %v411 = vld [vmem:[%s1 + $0x634] sm:$0xf]
  %v412 = vld [vmem:[%s1 + $0x638] sm:$0xf]
  %v413 = vld [vmem:[%s1 + $0x63c] sm:$0xf]
  %v414 = vld [vmem:[%s0] sm:$0xff]
  %v415 = vld [vmem:[%s0 + $0x8] sm:$0xff]
  %v416 = vld [vmem:[%s0 + $0x10] sm:$0xff]
  %v417 = vld [vmem:[%s0 + $0x18] sm:$0xff]
  %v418 = vld [vmem:[%s0 + $0x20] sm:$0xff]
  %v419 = vld [vmem:[%s0 + $0x28] sm:$0xff]
  %v420 = vld [vmem:[%s0 + $0x30] sm:$0xff]
  %v421 = vld [vmem:[%s0 + $0x38] sm:$0xff]
  %v422 = vld [vmem:[%s0 + $0x40] sm:$0xff]
  %v423 = vld [vmem:[%s0 + $0x48] sm:$0xff]
  %v424 = vld [vmem:[%s0 + $0x50] sm:$0xff]
  %v425 = vld [vmem:[%s0 + $0x58] sm:$0xff]
  %v426 = vld [vmem:[%s0 + $0x60] sm:$0xf]
  %v427 = vld [vmem:[%s0 + $0x64] sm:$0xff]
  %v428 = vld [vmem:[%s0 + $0x6c] sm:$0xff]
  %v429 = vld [vmem:[%s0 + $0x74] sm:$0xff]
  %v430 = vld [vmem:[%s0 + $0x7c] sm:$0xff]
  %v431 = vld [vmem:[%s0 + $0x84] sm:$0xff]
  %v432 = vld [vmem:[%s0 + $0x8c] sm:$0xff]
  %v433 = vld [vmem:[%s0 + $0x94] sm:$0xff]
  %v434 = vld [vmem:[%s0 + $0x9c] sm:$0xff]
  %v435 = vld [vmem:[%s0 + $0xa4] sm:$0xff]
  %v436 = vld [vmem:[%s0 + $0xac] sm:$0xff]
  %v437 = vld [vmem:[%s0 + $0xb4] sm:$0xff]
  %v438 = vld [vmem:[%s0 + $0xbc] sm:$0xff]
  %v439 = vld [vmem:[%s0 + $0xc4] sm:$0xf]
  %v440 = vld [vmem:[%s0 + $0xc8] sm:$0xff]
  %v441 = vld [vmem:[%s0 + $0xd0] sm:$0xff]
  %v442 = vld [vmem:[%s0 + $0xd8] sm:$0xff]
  %v443 = vld [vmem:[%s0 + $0xe0] sm:$0xff]
  %v444 = vld [vmem:[%s0 + $0xe8] sm:$0xff]
  %v445 = vld [vmem:[%s0 + $0xf0] sm:$0xff]
  %v446 = vld [vmem:[%s0 + $0xf8] sm:$0xff]
  %v447 = vld [vmem:[%s0 + $0x100] sm:$0xff]
  %v448 = vld [vmem:[%s0 + $0x108] sm:$0xff]
  %v449 = vld [vmem:[%s0 + $0x110] sm:$0xff]
  %v450 = vld [vmem:[%s0 + $0x118] sm:$0xff]
  %v451 = vld [vmem:[%s0 + $0x120] sm:$0xff]
  %v452 = vld [vmem:[%s0 + $0x128] sm:$0xf]
  %v453 = vld [vmem:[%s0 + $0x12c] sm:$0xff]
  %v454 = vld [vmem:[%s0 + $0x134] sm:$0xff]
  %v455 = vld [vmem:[%s0 + $0x13c] sm:$0xff]
  %v456 = vld [vmem:[%s0 + $0x144] sm:$0xff]
  %v457 = vld [vmem:[%s0 + $0x14c] sm:$0xff]
  %v458 = vld [vmem:[%s0 + $0x154] sm:$0xff]
  %v459 = vld [vmem:[%s0 + $0x15c] sm:$0xff]
  %v460 = vld [vmem:[%s0 + $0x164] sm:$0xff]
  %v461 = vld [vmem:[%s0 + $0x16c] sm:$0xff]
  %v462 = vld [vmem:[%s0 + $0x174] sm:$0xff]
  %v463 = vld [vmem:[%s0 + $0x17c] sm:$0xff]
  %v464 = vld [vmem:[%s0 + $0x184] sm:$0xff]
  %v465 = vld [vmem:[%s0 + $0x18c] sm:$0xf]
  %v466 = vld [vmem:[%s0 + $0x190] sm:$0xff]
  %v467 = vld [vmem:[%s0 + $0x198] sm:$0xff]
  %v468 = vld [vmem:[%s0 + $0x1a0] sm:$0xff]
  %v469 = vld [vmem:[%s0 + $0x1a8] sm:$0xff]
  %v470 = vld [vmem:[%s0 + $0x1b0] sm:$0xff]
  %v471 = vld [vmem:[%s0 + $0x1b8] sm:$0xff]
  %v472 = vld [vmem:[%s0 + $0x1c0] sm:$0xff]
  %v473 = vld [vmem:[%s0 + $0x1c8] sm:$0xff]
  %v474 = vld [vmem:[%s0 + $0x1d0] sm:$0xff]
  %v475 = vld [vmem:[%s0 + $0x1d8] sm:$0xff]
  %v476 = vld [vmem:[%s0 + $0x1e0] sm:$0xff]
  %v477 = vld [vmem:[%s0 + $0x1e8] sm:$0xff]
  %v478 = vld [vmem:[%s0 + $0x1f0] sm:$0xf]
  %v479 = vld [vmem:[%s0 + $0x1f4] sm:$0xff]
  %v480 = vld [vmem:[%s0 + $0x1fc] sm:$0xff]
  %v481 = vld [vmem:[%s0 + $0x204] sm:$0xff]
  %v482 = vld [vmem:[%s0 + $0x20c] sm:$0xff]
  %v483 = vld [vmem:[%s0 + $0x214] sm:$0xff]
  %v484 = vld [vmem:[%s0 + $0x21c] sm:$0xff]
  %v485 = vld [vmem:[%s0 + $0x224] sm:$0xff]
  %v486 = vld [vmem:[%s0 + $0x22c] sm:$0xff]
  %v487 = vld [vmem:[%s0 + $0x234] sm:$0xff]
  %v488 = vld [vmem:[%s0 + $0x23c] sm:$0xff]
  %v489 = vld [vmem:[%s0 + $0x244] sm:$0xff]
  %v490 = vld [vmem:[%s0 + $0x24c] sm:$0xff]
  %v491 = vld [vmem:[%s0 + $0x254] sm:$0xf]
  %v492 = vld [vmem:[%s0 + $0x258] sm:$0xff]
  %v493 = vld [vmem:[%s0 + $0x260] sm:$0xff]
  %v494 = vld [vmem:[%s0 + $0x268] sm:$0xff]
  %v495 = vld [vmem:[%s0 + $0x270] sm:$0xff]
  %v496 = vld [vmem:[%s0 + $0x278] sm:$0xff]
  %v497 = vld [vmem:[%s0 + $0x280] sm:$0xff]
  %v498 = vld [vmem:[%s0 + $0x288] sm:$0xff]
  %v499 = vld [vmem:[%s0 + $0x290] sm:$0xff]
  %v500 = vld [vmem:[%s0 + $0x298] sm:$0xff]
  %v501 = vld [vmem:[%s0 + $0x2a0] sm:$0xff]
  %v502 = vld [vmem:[%s0 + $0x2a8] sm:$0xff]
  %v503 = vld [vmem:[%s0 + $0x2b0] sm:$0xff]
  %v504 = vld [vmem:[%s0 + $0x2b8] sm:$0xf]
  %v596 = vunpack.c.l.b16 %v414
  %v597 = vunpack.c.h.b16 %v414
  %v598 = vunpack.c.l.b16 %v415
  %v599 = vunpack.c.h.b16 %v415
  %v600 = vunpack.c.l.b16 %v416
  %v601 = vunpack.c.h.b16 %v416
  %v602 = vunpack.c.l.b16 %v417
  %v603 = vunpack.c.h.b16 %v417
  %v604 = vunpack.c.l.b16 %v418
  %v605 = vunpack.c.h.b16 %v418
  %v606 = vunpack.c.l.b16 %v419
  %v607 = vunpack.c.h.b16 %v419
  %v608 = vunpack.c.l.b16 %v420
  %v609 = vunpack.c.h.b16 %v420
  %v610 = vunpack.c.l.b16 %v421
  %v611 = vunpack.c.h.b16 %v421
  %v612 = vunpack.c.l.b16 %v422
  %v613 = vunpack.c.h.b16 %v422
  %v614 = vunpack.c.l.b16 %v423
  %v615 = vunpack.c.h.b16 %v423
  %v616 = vunpack.c.l.b16 %v424
  %v617 = vunpack.c.h.b16 %v424
  %v618 = vunpack.c.l.b16 %v425
  %v619 = vunpack.c.h.b16 %v425
  %v620 = vunpack.c.l.b16 %v426
  %v621 = vunpack.c.l.b16 %v427
  %v622 = vunpack.c.h.b16 %v427
  %v623 = vunpack.c.l.b16 %v428
  %v624 = vunpack.c.h.b16 %v428
  %v625 = vunpack.c.l.b16 %v429
  %v626 = vunpack.c.h.b16 %v429
  %v627 = vunpack.c.l.b16 %v430
  %v628 = vunpack.c.h.b16 %v430
  %v629 = vunpack.c.l.b16 %v431
  %v630 = vunpack.c.h.b16 %v431
  %v631 = vunpack.c.l.b16 %v432
  %v632 = vunpack.c.h.b16 %v432
  %v633 = vunpack.c.l.b16 %v433
  %v634 = vunpack.c.h.b16 %v433
  %v635 = vunpack.c.l.b16 %v434
  %v636 = vunpack.c.h.b16 %v434
  %v637 = vunpack.c.l.b16 %v435
  %v638 = vunpack.c.h.b16 %v435
  %v639 = vunpack.c.l.b16 %v436
  %v640 = vunpack.c.h.b16 %v436
  %v641 = vunpack.c.l.b16 %v437
  %v642 = vunpack.c.h.b16 %v437
  %v643 = vunpack.c.l.b16 %v438
  %v644 = vunpack.c.h.b16 %v438
  %v645 = vunpack.c.l.b16 %v439
  %v646 = vunpack.c.l.b16 %v440
  %v647 = vunpack.c.h.b16 %v440
  %v648 = vunpack.c.l.b16 %v441
  %v649 = vunpack.c.h.b16 %v441
  %v650 = vunpack.c.l.b16 %v442
  %v651 = vunpack.c.h.b16 %v442
  %v652 = vunpack.c.l.b16 %v443
  %v653 = vunpack.c.h.b16 %v443
  %v654 = vunpack.c.l.b16 %v444
  %v655 = vunpack.c.h.b16 %v444
  %v656 = vunpack.c.l.b16 %v445
  %v657 = vunpack.c.h.b16 %v445
  %v658 = vunpack.c.l.b16 %v446
  %v659 = vunpack.c.h.b16 %v446
  %v660 = vunpack.c.l.b16 %v447
  %v661 = vunpack.c.h.b16 %v447
  %v662 = vunpack.c.l.b16 %v448
  %v663 = vunpack.c.h.b16 %v448
  %v664 = vunpack.c.l.b16 %v449
  %v665 = vunpack.c.h.b16 %v449
  %v666 = vunpack.c.l.b16 %v450
  %v667 = vunpack.c.h.b16 %v450
  %v668 = vunpack.c.l.b16 %v451
  %v669 = vunpack.c.h.b16 %v451
  %v670 = vunpack.c.l.b16 %v452
  %v671 = vunpack.c.l.b16 %v453
  %v672 = vunpack.c.h.b16 %v453
  %v673 = vunpack.c.l.b16 %v454
  %v674 = vunpack.c.h.b16 %v454
  %v675 = vunpack.c.l.b16 %v455
  %v676 = vunpack.c.h.b16 %v455
  %v677 = vunpack.c.l.b16 %v456
  %v678 = vunpack.c.h.b16 %v456
  %v679 = vunpack.c.l.b16 %v457
  %v680 = vunpack.c.h.b16 %v457
  %v681 = vunpack.c.l.b16 %v458
  %v682 = vunpack.c.h.b16 %v458
  %v683 = vunpack.c.l.b16 %v459
  %v684 = vunpack.c.h.b16 %v459
  %v685 = vunpack.c.l.b16 %v460
  %v686 = vunpack.c.h.b16 %v460
  %v687 = vunpack.c.l.b16 %v461
  %v688 = vunpack.c.h.b16 %v461
  %v689 = vunpack.c.l.b16 %v462
  %v690 = vunpack.c.h.b16 %v462
  %v691 = vunpack.c.l.b16 %v463
  %v692 = vunpack.c.h.b16 %v463
  %v693 = vunpack.c.l.b16 %v464
  %v694 = vunpack.c.h.b16 %v464
  %v695 = vunpack.c.l.b16 %v465
  %v696 = vunpack.c.l.b16 %v466
  %v697 = vunpack.c.h.b16 %v466
  %v698 = vunpack.c.l.b16 %v467
  %v699 = vunpack.c.h.b16 %v467
  %v700 = vunpack.c.l.b16 %v468
  %v701 = vunpack.c.h.b16 %v468
  %v702 = vunpack.c.l.b16 %v469
  %v703 = vunpack.c.h.b16 %v469
  %v704 = vunpack.c.l.b16 %v470
  %v705 = vunpack.c.h.b16 %v470
  %v706 = vunpack.c.l.b16 %v471
  %v707 = vunpack.c.h.b16 %v471
  %v708 = vunpack.c.l.b16 %v472
  %v709 = vunpack.c.h.b16 %v472
  %v710 = vunpack.c.l.b16 %v473
  %v711 = vunpack.c.h.b16 %v473
  %v712 = vunpack.c.l.b16 %v474
  %v713 = vunpack.c.h.b16 %v474
  %v714 = vunpack.c.l.b16 %v475
  %v715 = vunpack.c.h.b16 %v475
  %v716 = vunpack.c.l.b16 %v476
  %v717 = vunpack.c.h.b16 %v476
  %v718 = vunpack.c.l.b16 %v477
  %v719 = vunpack.c.h.b16 %v477
  %v720 = vunpack.c.l.b16 %v478
  %v721 = vunpack.c.l.b16 %v479
  %v722 = vunpack.c.h.b16 %v479
  %v723 = vunpack.c.l.b16 %v480
  %v724 = vunpack.c.h.b16 %v480
  %v725 = vunpack.c.l.b16 %v481
  %v726 = vunpack.c.h.b16 %v481
  %v727 = vunpack.c.l.b16 %v482
  %v728 = vunpack.c.h.b16 %v482
  %v729 = vunpack.c.l.b16 %v483
  %v730 = vunpack.c.h.b16 %v483
  %v731 = vunpack.c.l.b16 %v484
  %v732 = vunpack.c.h.b16 %v484
  %v733 = vunpack.c.l.b16 %v485
  %v734 = vunpack.c.h.b16 %v485
  %v735 = vunpack.c.l.b16 %v486
  %v736 = vunpack.c.h.b16 %v486
  %v737 = vunpack.c.l.b16 %v487
  %v738 = vunpack.c.h.b16 %v487
  %v739 = vunpack.c.l.b16 %v488
  %v740 = vunpack.c.h.b16 %v488
  %v741 = vunpack.c.l.b16 %v489
  %v742 = vunpack.c.h.b16 %v489
  %v743 = vunpack.c.l.b16 %v490
  %v744 = vunpack.c.h.b16 %v490
  %v745 = vunpack.c.l.b16 %v491
  %v746 = vunpack.c.l.b16 %v492
  %v747 = vunpack.c.h.b16 %v492
  %v748 = vunpack.c.l.b16 %v493
  %v749 = vunpack.c.h.b16 %v493
  %v750 = vunpack.c.l.b16 %v494
  %v751 = vunpack.c.h.b16 %v494
  %v752 = vunpack.c.l.b16 %v495
  %v753 = vunpack.c.h.b16 %v495
  %v754 = vunpack.c.l.b16 %v496
  %v755 = vunpack.c.h.b16 %v496
  %v756 = vunpack.c.l.b16 %v497
  %v757 = vunpack.c.h.b16 %v497
  %v758 = vunpack.c.l.b16 %v498
  %v759 = vunpack.c.h.b16 %v498
  %v760 = vunpack.c.l.b16 %v499
  %v761 = vunpack.c.h.b16 %v499
  %v762 = vunpack.c.l.b16 %v500
  %v763 = vunpack.c.h.b16 %v500
  %v764 = vunpack.c.l.b16 %v501
  %v765 = vunpack.c.h.b16 %v501
  %v766 = vunpack.c.l.b16 %v502
  %v767 = vunpack.c.h.b16 %v502
  %v768 = vunpack.c.l.b16 %v503
  %v769 = vunpack.c.h.b16 %v503
  %v770 = vunpack.c.l.b16 %v504
  %v771 = vpack.c.b16 %v621, %v596
  %v772 = vpack.c.b16 %v622, %v597
  %v773 = vpack.c.b16 %v623, %v598
  %v774 = vpack.c.b16 %v624, %v599
  %v775 = vpack.c.b16 %v625, %v600
  %v776 = vpack.c.b16 %v626, %v601
  %v777 = vpack.c.b16 %v627, %v602
  %v778 = vpack.c.b16 %v628, %v603
  %v779 = vpack.c.b16 %v629, %v604
  %v780 = vpack.c.b16 %v630, %v605
  %v781 = vpack.c.b16 %v631, %v606
  %v782 = vpack.c.b16 %v632, %v607
  %v783 = vpack.c.b16 %v633, %v608
  %v784 = vpack.c.b16 %v634, %v609
  %v785 = vpack.c.b16 %v635, %v610
  %v786 = vpack.c.b16 %v636, %v611
  %v787 = vpack.c.b16 %v637, %v612
  %v788 = vpack.c.b16 %v638, %v613
  %v789 = vpack.c.b16 %v639, %v614
  %v790 = vpack.c.b16 %v640, %v615
  %v791 = vpack.c.b16 %v641, %v616
  %v792 = vpack.c.b16 %v642, %v617
  %v793 = vpack.c.b16 %v643, %v618
  %v794 = vpack.c.b16 %v644, %v619
  %v795 = vpack.c.b16 %v645, %v620
  %v796 = vpack.c.b16 %v671, %v646
  %v797 = vpack.c.b16 %v672, %v647
  %v798 = vpack.c.b16 %v673, %v648
  %v799 = vpack.c.b16 %v674, %v649
  %v800 = vpack.c.b16 %v675, %v650
  %v801 = vpack.c.b16 %v676, %v651
  %v802 = vpack.c.b16 %v677, %v652
  %v803 = vpack.c.b16 %v678, %v653
  %v804 = vpack.c.b16 %v679, %v654
  %v805 = vpack.c.b16 %v680, %v655
  %v806 = vpack.c.b16 %v681, %v656
  %v807 = vpack.c.b16 %v682, %v657
  %v808 = vpack.c.b16 %v683, %v658
  %v809 = vpack.c.b16 %v684, %v659
  %v810 = vpack.c.b16 %v685, %v660
  %v811 = vpack.c.b16 %v686, %v661
  %v812 = vpack.c.b16 %v687, %v662
  %v813 = vpack.c.b16 %v688, %v663
  %v814 = vpack.c.b16 %v689, %v664
  %v815 = vpack.c.b16 %v690, %v665
  %v816 = vpack.c.b16 %v691, %v666
  %v817 = vpack.c.b16 %v692, %v667
  %v818 = vpack.c.b16 %v693, %v668
  %v819 = vpack.c.b16 %v694, %v669
  %v820 = vpack.c.b16 %v695, %v670
  %v821 = vpack.c.b16 %v721, %v696
  %v822 = vpack.c.b16 %v722, %v697
  %v823 = vpack.c.b16 %v723, %v698
  %v824 = vpack.c.b16 %v724, %v699
  %v825 = vpack.c.b16 %v725, %v700
  %v826 = vpack.c.b16 %v726, %v701
  %v827 = vpack.c.b16 %v727, %v702
  %v828 = vpack.c.b16 %v728, %v703
  %v829 = vpack.c.b16 %v729, %v704
  %v830 = vpack.c.b16 %v730, %v705
  %v831 = vpack.c.b16 %v731, %v706
  %v832 = vpack.c.b16 %v732, %v707
  %v833 = vpack.c.b16 %v733, %v708
  %v834 = vpack.c.b16 %v734, %v709
  %v835 = vpack.c.b16 %v735, %v710
  %v836 = vpack.c.b16 %v736, %v711
  %v837 = vpack.c.b16 %v737, %v712
  %v838 = vpack.c.b16 %v738, %v713
  %v839 = vpack.c.b16 %v739, %v714
  %v840 = vpack.c.b16 %v740, %v715
  %v841 = vpack.c.b16 %v741, %v716
  %v842 = vpack.c.b16 %v742, %v717
  %v843 = vpack.c.b16 %v743, %v718
  %v844 = vpack.c.b16 %v744, %v719
  %v845 = vpack.c.b16 %v745, %v720
  %v846 = vpack.c.b16 %v746, %v746
  %v847 = vpack.c.b16 %v747, %v747
  %v848 = vpack.c.b16 %v748, %v748
  %v849 = vpack.c.b16 %v749, %v749
  %v850 = vpack.c.b16 %v750, %v750
  %v851 = vpack.c.b16 %v751, %v751
  %v852 = vpack.c.b16 %v752, %v752
  %v853 = vpack.c.b16 %v753, %v753
  %v854 = vpack.c.b16 %v754, %v754
  %v855 = vpack.c.b16 %v755, %v755
  %v856 = vpack.c.b16 %v756, %v756
  %v857 = vpack.c.b16 %v757, %v757
  %v858 = vpack.c.b16 %v758, %v758
  %v859 = vpack.c.b16 %v759, %v759
  %v860 = vpack.c.b16 %v760, %v760
  %v861 = vpack.c.b16 %v761, %v761
  %v862 = vpack.c.b16 %v762, %v762
  %v863 = vpack.c.b16 %v763, %v763
  %v864 = vpack.c.b16 %v764, %v764
  %v865 = vpack.c.b16 %v765, %v765
  %v866 = vpack.c.b16 %v766, %v766
  %v867 = vpack.c.b16 %v767, %v767
  %v868 = vpack.c.b16 %v768, %v768
  %v869 = vpack.c.b16 %v769, %v769
  %v870 = vpack.c.b16 %v770, %v770
  %v1371 = vunpack.c.l.b16 %v14
  %v1372 = vunpack.c.l.b16 %v15
  %v1373 = vunpack.c.l.b16 %v16
  %v1374 = vunpack.c.l.b16 %v17
  %v1375 = vunpack.c.l.b16 %v18
  %v1376 = vunpack.c.l.b16 %v19
  %v1377 = vunpack.c.l.b16 %v20
  %v1378 = vunpack.c.l.b16 %v21
  %v1379 = vunpack.c.l.b16 %v22
  %v1380 = vunpack.c.l.b16 %v23
  %v1381 = vunpack.c.l.b16 %v24
  %v1382 = vunpack.c.l.b16 %v25
  %v1383 = vunpack.c.l.b16 %v26
  %v1384 = vunpack.c.l.b16 %v27
  %v1385 = vunpack.c.l.b16 %v28
  %v1386 = vunpack.c.l.b16 %v29
  %v1387 = vunpack.c.l.b16 %v30
  %v1388 = vunpack.c.l.b16 %v31
  %v1389 = vunpack.c.l.b16 %v32
  %v1390 = vunpack.c.l.b16 %v33
  %v1391 = vunpack.c.l.b16 %v34
  %v1392 = vunpack.c.l.b16 %v35
  %v1393 = vunpack.c.l.b16 %v36
  %v1394 = vunpack.c.l.b16 %v37
  %v1395 = vunpack.c.l.b16 %v38
  %v1396 = vunpack.c.l.b16 %v39
  %v1397 = vunpack.c.l.b16 %v40
  %v1398 = vunpack.c.l.b16 %v41
  %v1399 = vunpack.c.l.b16 %v42
  %v1400 = vunpack.c.l.b16 %v43
  %v1401 = vunpack.c.l.b16 %v44
  %v1402 = vunpack.c.l.b16 %v45
  %v1403 = vunpack.c.l.b16 %v46
  %v1404 = vunpack.c.l.b16 %v47
  %v1405 = vunpack.c.l.b16 %v48
  %v1406 = vunpack.c.l.b16 %v49
  %v1407 = vunpack.c.l.b16 %v50
  %v1408 = vunpack.c.l.b16 %v51
  %v1409 = vunpack.c.l.b16 %v52
  %v1410 = vunpack.c.l.b16 %v53
  %v1411 = vunpack.c.l.b16 %v54
  %v1412 = vunpack.c.l.b16 %v55
  %v1413 = vunpack.c.l.b16 %v56
  %v1414 = vunpack.c.l.b16 %v57
  %v1415 = vunpack.c.l.b16 %v58
  %v1416 = vunpack.c.l.b16 %v59
  %v1417 = vunpack.c.l.b16 %v60
  %v1418 = vunpack.c.l.b16 %v61
  %v1419 = vunpack.c.l.b16 %v62
  %v1420 = vunpack.c.l.b16 %v63
  %v1421 = vunpack.c.l.b16 %v64
  %v1422 = vunpack.c.l.b16 %v65
  %v1423 = vunpack.c.l.b16 %v66
  %v1424 = vunpack.c.l.b16 %v67
  %v1425 = vunpack.c.l.b16 %v68
  %v1426 = vunpack.c.l.b16 %v69
  %v1427 = vunpack.c.l.b16 %v70
  %v1428 = vunpack.c.l.b16 %v71
  %v1429 = vunpack.c.l.b16 %v72
  %v1430 = vunpack.c.l.b16 %v73
  %v1431 = vunpack.c.l.b16 %v74
  %v1432 = vunpack.c.l.b16 %v75
  %v1433 = vunpack.c.l.b16 %v76
  %v1434 = vunpack.c.l.b16 %v77
  %v1435 = vunpack.c.l.b16 %v78
  %v1436 = vunpack.c.l.b16 %v79
  %v1437 = vunpack.c.l.b16 %v80
  %v1438 = vunpack.c.l.b16 %v81
  %v1439 = vunpack.c.l.b16 %v82
  %v1440 = vunpack.c.l.b16 %v83
  %v1441 = vunpack.c.l.b16 %v84
  %v1442 = vunpack.c.l.b16 %v85
  %v1443 = vunpack.c.l.b16 %v86
  %v1444 = vunpack.c.l.b16 %v87
  %v1445 = vunpack.c.l.b16 %v88
  %v1446 = vunpack.c.l.b16 %v89
  %v1447 = vunpack.c.l.b16 %v90
  %v1448 = vunpack.c.l.b16 %v91
  %v1449 = vunpack.c.l.b16 %v92
  %v1450 = vunpack.c.l.b16 %v93
  %v1451 = vunpack.c.l.b16 %v94
  %v1452 = vunpack.c.l.b16 %v95
  %v1453 = vunpack.c.l.b16 %v96
  %v1454 = vunpack.c.l.b16 %v97
  %v1455 = vunpack.c.l.b16 %v98
  %v1456 = vunpack.c.l.b16 %v99
  %v1457 = vunpack.c.l.b16 %v100
  %v1458 = vunpack.c.l.b16 %v101
  %v1459 = vunpack.c.l.b16 %v102
  %v1460 = vunpack.c.l.b16 %v103
  %v1461 = vunpack.c.l.b16 %v104
  %v1462 = vunpack.c.l.b16 %v105
  %v1463 = vunpack.c.l.b16 %v106
  %v1464 = vunpack.c.l.b16 %v107
  %v1465 = vunpack.c.l.b16 %v108
  %v1466 = vunpack.c.l.b16 %v109
  %v1467 = vunpack.c.l.b16 %v110
  %v1468 = vunpack.c.l.b16 %v111
  %v1469 = vunpack.c.l.b16 %v112
  %v1470 = vunpack.c.l.b16 %v113
  %v1471 = vunpack.c.l.b16 %v114
  %v1472 = vunpack.c.l.b16 %v115
  %v1473 = vunpack.c.l.b16 %v116
  %v1474 = vunpack.c.l.b16 %v117
  %v1475 = vunpack.c.l.b16 %v118
  %v1476 = vunpack.c.l.b16 %v119
  %v1477 = vunpack.c.l.b16 %v120
  %v1478 = vunpack.c.l.b16 %v121
  %v1479 = vunpack.c.l.b16 %v122
  %v1480 = vunpack.c.l.b16 %v123
  %v1481 = vunpack.c.l.b16 %v124
  %v1482 = vunpack.c.l.b16 %v125
  %v1483 = vunpack.c.l.b16 %v126
  %v1484 = vunpack.c.l.b16 %v127
  %v1485 = vunpack.c.l.b16 %v128
  %v1486 = vunpack.c.l.b16 %v129
  %v1487 = vunpack.c.l.b16 %v130
  %v1488 = vunpack.c.l.b16 %v131
  %v1489 = vunpack.c.l.b16 %v132
  %v1490 = vunpack.c.l.b16 %v133
  %v1491 = vunpack.c.l.b16 %v134
  %v1492 = vunpack.c.l.b16 %v135
  %v1493 = vunpack.c.l.b16 %v136
  %v1494 = vunpack.c.l.b16 %v137
  %v1495 = vunpack.c.l.b16 %v138
  %v1496 = vunpack.c.l.b16 %v139
  %v1497 = vunpack.c.l.b16 %v140
  %v1498 = vunpack.c.l.b16 %v141
  %v1499 = vunpack.c.l.b16 %v142
  %v1500 = vunpack.c.l.b16 %v143
  %v1501 = vunpack.c.l.b16 %v144
  %v1502 = vunpack.c.l.b16 %v145
  %v1503 = vunpack.c.l.b16 %v146
  %v1504 = vunpack.c.l.b16 %v147
  %v1505 = vunpack.c.l.b16 %v148
  %v1506 = vunpack.c.l.b16 %v149
  %v1507 = vunpack.c.l.b16 %v150
  %v1508 = vunpack.c.l.b16 %v151
  %v1509 = vunpack.c.l.b16 %v152
  %v1510 = vunpack.c.l.b16 %v153
  %v1511 = vunpack.c.l.b16 %v154
  %v1512 = vunpack.c.l.b16 %v155
  %v1513 = vunpack.c.l.b16 %v156
  %v1514 = vunpack.c.l.b16 %v157
  %v1515 = vunpack.c.l.b16 %v158
  %v1516 = vunpack.c.l.b16 %v159
  %v1517 = vunpack.c.l.b16 %v160
  %v1518 = vunpack.c.l.b16 %v161
  %v1519 = vunpack.c.l.b16 %v162
  %v1520 = vunpack.c.l.b16 %v163
  %v1521 = vunpack.c.l.b16 %v164
  %v1522 = vunpack.c.l.b16 %v165
  %v1523 = vunpack.c.l.b16 %v166
  %v1524 = vunpack.c.l.b16 %v167
  %v1525 = vunpack.c.l.b16 %v168
  %v1526 = vunpack.c.l.b16 %v169
  %v1527 = vunpack.c.l.b16 %v170
  %v1528 = vunpack.c.l.b16 %v171
  %v1529 = vunpack.c.l.b16 %v172
  %v1530 = vunpack.c.l.b16 %v173
  %v1531 = vunpack.c.l.b16 %v174
  %v1532 = vunpack.c.l.b16 %v175
  %v1533 = vunpack.c.l.b16 %v176
  %v1534 = vunpack.c.l.b16 %v177
  %v1535 = vunpack.c.l.b16 %v178
  %v1536 = vunpack.c.l.b16 %v179
  %v1537 = vunpack.c.l.b16 %v180
  %v1538 = vunpack.c.l.b16 %v181
  %v1539 = vunpack.c.l.b16 %v182
  %v1540 = vunpack.c.l.b16 %v183
  %v1541 = vunpack.c.l.b16 %v184
  %v1542 = vunpack.c.l.b16 %v185
  %v1543 = vunpack.c.l.b16 %v186
  %v1544 = vunpack.c.l.b16 %v187
  %v1545 = vunpack.c.l.b16 %v188
  %v1546 = vunpack.c.l.b16 %v189
  %v1547 = vunpack.c.l.b16 %v190
  %v1548 = vunpack.c.l.b16 %v191
  %v1549 = vunpack.c.l.b16 %v192
  %v1550 = vunpack.c.l.b16 %v193
  %v1551 = vunpack.c.l.b16 %v194
  %v1552 = vunpack.c.l.b16 %v195
  %v1553 = vunpack.c.l.b16 %v196
  %v1554 = vunpack.c.l.b16 %v197
  %v1555 = vunpack.c.l.b16 %v198
  %v1556 = vunpack.c.l.b16 %v199
  %v1557 = vunpack.c.l.b16 %v200
  %v1558 = vunpack.c.l.b16 %v201
  %v1559 = vunpack.c.l.b16 %v202
  %v1560 = vunpack.c.l.b16 %v203
  %v1561 = vunpack.c.l.b16 %v204
  %v1562 = vunpack.c.l.b16 %v205
  %v1563 = vunpack.c.l.b16 %v206
  %v1564 = vunpack.c.l.b16 %v207
  %v1565 = vunpack.c.l.b16 %v208
  %v1566 = vunpack.c.l.b16 %v209
  %v1567 = vunpack.c.l.b16 %v210
  %v1568 = vunpack.c.l.b16 %v211
  %v1569 = vunpack.c.l.b16 %v212
  %v1570 = vunpack.c.l.b16 %v213
  %v1571 = vunpack.c.l.b16 %v214
  %v1572 = vunpack.c.l.b16 %v215
  %v1573 = vunpack.c.l.b16 %v216
  %v1574 = vunpack.c.l.b16 %v217
  %v1575 = vunpack.c.l.b16 %v218
  %v1576 = vunpack.c.l.b16 %v219
  %v1577 = vunpack.c.l.b16 %v220
  %v1578 = vunpack.c.l.b16 %v221
  %v1579 = vunpack.c.l.b16 %v222
  %v1580 = vunpack.c.l.b16 %v223
  %v1581 = vunpack.c.l.b16 %v224
  %v1582 = vunpack.c.l.b16 %v225
  %v1583 = vunpack.c.l.b16 %v226
  %v1584 = vunpack.c.l.b16 %v227
  %v1585 = vunpack.c.l.b16 %v228
  %v1586 = vunpack.c.l.b16 %v229
  %v1587 = vunpack.c.l.b16 %v230
  %v1588 = vunpack.c.l.b16 %v231
  %v1589 = vunpack.c.l.b16 %v232
  %v1590 = vunpack.c.l.b16 %v233
  %v1591 = vunpack.c.l.b16 %v234
  %v1592 = vunpack.c.l.b16 %v235
  %v1593 = vunpack.c.l.b16 %v236
  %v1594 = vunpack.c.l.b16 %v237
  %v1595 = vunpack.c.l.b16 %v238
  %v1596 = vunpack.c.l.b16 %v239
  %v1597 = vunpack.c.l.b16 %v240
  %v1598 = vunpack.c.l.b16 %v241
  %v1599 = vunpack.c.l.b16 %v242
  %v1600 = vunpack.c.l.b16 %v243
  %v1601 = vunpack.c.l.b16 %v244
  %v1602 = vunpack.c.l.b16 %v245
  %v1603 = vunpack.c.l.b16 %v246
  %v1604 = vunpack.c.l.b16 %v247
  %v1605 = vunpack.c.l.b16 %v248
  %v1606 = vunpack.c.l.b16 %v249
  %v1607 = vunpack.c.l.b16 %v250
  %v1608 = vunpack.c.l.b16 %v251
  %v1609 = vunpack.c.l.b16 %v252
  %v1610 = vunpack.c.l.b16 %v253
  %v1611 = vunpack.c.l.b16 %v254
  %v1612 = vunpack.c.l.b16 %v255
  %v1613 = vunpack.c.l.b16 %v256
  %v1614 = vunpack.c.l.b16 %v257
  %v1615 = vunpack.c.l.b16 %v258
  %v1616 = vunpack.c.l.b16 %v259
  %v1617 = vunpack.c.l.b16 %v260
  %v1618 = vunpack.c.l.b16 %v261
  %v1619 = vunpack.c.l.b16 %v262
  %v1620 = vunpack.c.l.b16 %v263
  %v1621 = vunpack.c.l.b16 %v264
  %v1622 = vunpack.c.l.b16 %v265
  %v1623 = vunpack.c.l.b16 %v266
  %v1624 = vunpack.c.l.b16 %v267
  %v1625 = vunpack.c.l.b16 %v268
  %v1626 = vunpack.c.l.b16 %v269
  %v1627 = vunpack.c.l.b16 %v270
  %v1628 = vunpack.c.l.b16 %v271
  %v1629 = vunpack.c.l.b16 %v272
  %v1630 = vunpack.c.l.b16 %v273
  %v1631 = vunpack.c.l.b16 %v274
  %v1632 = vunpack.c.l.b16 %v275
  %v1633 = vunpack.c.l.b16 %v276
  %v1634 = vunpack.c.l.b16 %v277
  %v1635 = vunpack.c.l.b16 %v278
  %v1636 = vunpack.c.l.b16 %v279
  %v1637 = vunpack.c.l.b16 %v280
  %v1638 = vunpack.c.l.b16 %v281
  %v1639 = vunpack.c.l.b16 %v282
  %v1640 = vunpack.c.l.b16 %v283
  %v1641 = vunpack.c.l.b16 %v284
  %v1642 = vunpack.c.l.b16 %v285
  %v1643 = vunpack.c.l.b16 %v286
  %v1644 = vunpack.c.l.b16 %v287
  %v1645 = vunpack.c.l.b16 %v288
  %v1646 = vunpack.c.l.b16 %v289
  %v1647 = vunpack.c.l.b16 %v290
  %v1648 = vunpack.c.l.b16 %v291
  %v1649 = vunpack.c.l.b16 %v292
  %v1650 = vunpack.c.l.b16 %v293
  %v1651 = vunpack.c.l.b16 %v294
  %v1652 = vunpack.c.l.b16 %v295
  %v1653 = vunpack.c.l.b16 %v296
  %v1654 = vunpack.c.l.b16 %v297
  %v1655 = vunpack.c.l.b16 %v298
  %v1656 = vunpack.c.l.b16 %v299
  %v1657 = vunpack.c.l.b16 %v300
  %v1658 = vunpack.c.l.b16 %v301
  %v1659 = vunpack.c.l.b16 %v302
  %v1660 = vunpack.c.l.b16 %v303
  %v1661 = vunpack.c.l.b16 %v304
  %v1662 = vunpack.c.l.b16 %v305
  %v1663 = vunpack.c.l.b16 %v306
  %v1664 = vunpack.c.l.b16 %v307
  %v1665 = vunpack.c.l.b16 %v308
  %v1666 = vunpack.c.l.b16 %v309
  %v1667 = vunpack.c.l.b16 %v310
  %v1668 = vunpack.c.l.b16 %v311
  %v1669 = vunpack.c.l.b16 %v312
  %v1670 = vunpack.c.l.b16 %v313
  %v1671 = vunpack.c.l.b16 %v314
  %v1672 = vunpack.c.l.b16 %v315
  %v1673 = vunpack.c.l.b16 %v316
  %v1674 = vunpack.c.l.b16 %v317
  %v1675 = vunpack.c.l.b16 %v318
  %v1676 = vunpack.c.l.b16 %v319
  %v1677 = vunpack.c.l.b16 %v320
  %v1678 = vunpack.c.l.b16 %v321
  %v1679 = vunpack.c.l.b16 %v322
  %v1680 = vunpack.c.l.b16 %v323
  %v1681 = vunpack.c.l.b16 %v324
  %v1682 = vunpack.c.l.b16 %v325
  %v1683 = vunpack.c.l.b16 %v326
  %v1684 = vunpack.c.l.b16 %v327
  %v1685 = vunpack.c.l.b16 %v328
  %v1686 = vunpack.c.l.b16 %v329
  %v1687 = vunpack.c.l.b16 %v330
  %v1688 = vunpack.c.l.b16 %v331
  %v1689 = vunpack.c.l.b16 %v332
  %v1690 = vunpack.c.l.b16 %v333
  %v1691 = vunpack.c.l.b16 %v334
  %v1692 = vunpack.c.l.b16 %v335
  %v1693 = vunpack.c.l.b16 %v336
  %v1694 = vunpack.c.l.b16 %v337
  %v1695 = vunpack.c.l.b16 %v338
  %v1696 = vunpack.c.l.b16 %v339
  %v1697 = vunpack.c.l.b16 %v340
  %v1698 = vunpack.c.l.b16 %v341
  %v1699 = vunpack.c.l.b16 %v342
  %v1700 = vunpack.c.l.b16 %v343
  %v1701 = vunpack.c.l.b16 %v344
  %v1702 = vunpack.c.l.b16 %v345
  %v1703 = vunpack.c.l.b16 %v346
  %v1704 = vunpack.c.l.b16 %v347
  %v1705 = vunpack.c.l.b16 %v348
  %v1706 = vunpack.c.l.b16 %v349
  %v1707 = vunpack.c.l.b16 %v350
  %v1708 = vunpack.c.l.b16 %v351
  %v1709 = vunpack.c.l.b16 %v352
  %v1710 = vunpack.c.l.b16 %v353
  %v1711 = vunpack.c.l.b16 %v354
  %v1712 = vunpack.c.l.b16 %v355
  %v1713 = vunpack.c.l.b16 %v356
  %v1714 = vunpack.c.l.b16 %v357
  %v1715 = vunpack.c.l.b16 %v358
  %v1716 = vunpack.c.l.b16 %v359
  %v1717 = vunpack.c.l.b16 %v360
  %v1718 = vunpack.c.l.b16 %v361
  %v1719 = vunpack.c.l.b16 %v362
  %v1720 = vunpack.c.l.b16 %v363
  %v1721 = vunpack.c.l.b16 %v364
  %v1722 = vunpack.c.l.b16 %v365
  %v1723 = vunpack.c.l.b16 %v366
  %v1724 = vunpack.c.l.b16 %v367
  %v1725 = vunpack.c.l.b16 %v368
  %v1726 = vunpack.c.l.b16 %v369
  %v1727 = vunpack.c.l.b16 %v370
  %v1728 = vunpack.c.l.b16 %v371
  %v1729 = vunpack.c.l.b16 %v372
  %v1730 = vunpack.c.l.b16 %v373
  %v1731 = vunpack.c.l.b16 %v374
  %v1732 = vunpack.c.l.b16 %v375
  %v1733 = vunpack.c.l.b16 %v376
  %v1734 = vunpack.c.l.b16 %v377
  %v1735 = vunpack.c.l.b16 %v378
  %v1736 = vunpack.c.l.b16 %v379
  %v1737 = vunpack.c.l.b16 %v380
  %v1738 = vunpack.c.l.b16 %v381
  %v1739 = vunpack.c.l.b16 %v382
  %v1740 = vunpack.c.l.b16 %v383
  %v1741 = vunpack.c.l.b16 %v384
  %v1742 = vunpack.c.l.b16 %v385
  %v1743 = vunpack.c.l.b16 %v386
  %v1744 = vunpack.c.l.b16 %v387
  %v1745 = vunpack.c.l.b16 %v388
  %v1746 = vunpack.c.l.b16 %v389
  %v1747 = vunpack.c.l.b16 %v390
  %v1748 = vunpack.c.l.b16 %v391
  %v1749 = vunpack.c.l.b16 %v392
  %v1750 = vunpack.c.l.b16 %v393
  %v1751 = vunpack.c.l.b16 %v394
  %v1752 = vunpack.c.l.b16 %v395
  %v1753 = vunpack.c.l.b16 %v396
  %v1754 = vunpack.c.l.b16 %v397
  %v1755 = vunpack.c.l.b16 %v398
  %v1756 = vunpack.c.l.b16 %v399
  %v1757 = vunpack.c.l.b16 %v400
  %v1758 = vunpack.c.l.b16 %v401
  %v1759 = vunpack.c.l.b16 %v402
  %v1760 = vunpack.c.l.b16 %v403
  %v1761 = vunpack.c.l.b16 %v404
  %v1762 = vunpack.c.l.b16 %v405
  %v1763 = vunpack.c.l.b16 %v406
  %v1764 = vunpack.c.l.b16 %v407
  %v1765 = vunpack.c.l.b16 %v408
  %v1766 = vunpack.c.l.b16 %v409
  %v1767 = vunpack.c.l.b16 %v410
  %v1768 = vunpack.c.l.b16 %v411
  %v1769 = vunpack.c.l.b16 %v412
  %v1770 = vunpack.c.l.b16 %v413
  %v1771 = vpack.c.b16 %v1372, %v1371
  %v1772 = vpack.c.b16 %v1374, %v1373
  %v1773 = vpack.c.b16 %v1376, %v1375
  %v1774 = vpack.c.b16 %v1378, %v1377
  %v1775 = vpack.c.b16 %v1380, %v1379
  %v1776 = vpack.c.b16 %v1382, %v1381
  %v1777 = vpack.c.b16 %v1384, %v1383
  %v1778 = vpack.c.b16 %v1386, %v1385
  %v1779 = vpack.c.b16 %v1388, %v1387
  %v1780 = vpack.c.b16 %v1390, %v1389
  %v1781 = vpack.c.b16 %v1392, %v1391
  %v1782 = vpack.c.b16 %v1394, %v1393
  %v1783 = vpack.c.b16 %v1396, %v1395
  %v1784 = vpack.c.b16 %v1398, %v1397
  %v1785 = vpack.c.b16 %v1400, %v1399
  %v1786 = vpack.c.b16 %v1402, %v1401
  %v1787 = vpack.c.b16 %v1404, %v1403
  %v1788 = vpack.c.b16 %v1406, %v1405
  %v1789 = vpack.c.b16 %v1408, %v1407
  %v1790 = vpack.c.b16 %v1410, %v1409
  %v1791 = vpack.c.b16 %v1412, %v1411
  %v1792 = vpack.c.b16 %v1414, %v1413
  %v1793 = vpack.c.b16 %v1416, %v1415
  %v1794 = vpack.c.b16 %v1418, %v1417
  %v1795 = vpack.c.b16 %v1420, %v1419
  %v1796 = vpack.c.b16 %v1422, %v1421
  %v1797 = vpack.c.b16 %v1424, %v1423
  %v1798 = vpack.c.b16 %v1426, %v1425
  %v1799 = vpack.c.b16 %v1428, %v1427
  %v1800 = vpack.c.b16 %v1430, %v1429
  %v1801 = vpack.c.b16 %v1432, %v1431
  %v1802 = vpack.c.b16 %v1434, %v1433
  %v1803 = vpack.c.b16 %v1436, %v1435
  %v1804 = vpack.c.b16 %v1438, %v1437
  %v1805 = vpack.c.b16 %v1440, %v1439
  %v1806 = vpack.c.b16 %v1442, %v1441
  %v1807 = vpack.c.b16 %v1444, %v1443
  %v1808 = vpack.c.b16 %v1446, %v1445
  %v1809 = vpack.c.b16 %v1448, %v1447
  %v1810 = vpack.c.b16 %v1450, %v1449
  %v1811 = vpack.c.b16 %v1452, %v1451
  %v1812 = vpack.c.b16 %v1454, %v1453
  %v1813 = vpack.c.b16 %v1456, %v1455
  %v1814 = vpack.c.b16 %v1458, %v1457
  %v1815 = vpack.c.b16 %v1460, %v1459
  %v1816 = vpack.c.b16 %v1462, %v1461
  %v1817 = vpack.c.b16 %v1464, %v1463
  %v1818 = vpack.c.b16 %v1466, %v1465
  %v1819 = vpack.c.b16 %v1468, %v1467
  %v1820 = vpack.c.b16 %v1470, %v1469
  %v1821 = vpack.c.b16 %v1472, %v1471
  %v1822 = vpack.c.b16 %v1474, %v1473
  %v1823 = vpack.c.b16 %v1476, %v1475
  %v1824 = vpack.c.b16 %v1478, %v1477
  %v1825 = vpack.c.b16 %v1480, %v1479
  %v1826 = vpack.c.b16 %v1482, %v1481
  %v1827 = vpack.c.b16 %v1484, %v1483
  %v1828 = vpack.c.b16 %v1486, %v1485
  %v1829 = vpack.c.b16 %v1488, %v1487
  %v1830 = vpack.c.b16 %v1490, %v1489
  %v1831 = vpack.c.b16 %v1492, %v1491
  %v1832 = vpack.c.b16 %v1494, %v1493
  %v1833 = vpack.c.b16 %v1496, %v1495
  %v1834 = vpack.c.b16 %v1498, %v1497
  %v1835 = vpack.c.b16 %v1500, %v1499
  %v1836 = vpack.c.b16 %v1502, %v1501
  %v1837 = vpack.c.b16 %v1504, %v1503
  %v1838 = vpack.c.b16 %v1506, %v1505
  %v1839 = vpack.c.b16 %v1508, %v1507
  %v1840 = vpack.c.b16 %v1510, %v1509
  %v1841 = vpack.c.b16 %v1512, %v1511
  %v1842 = vpack.c.b16 %v1514, %v1513
  %v1843 = vpack.c.b16 %v1516, %v1515
  %v1844 = vpack.c.b16 %v1518, %v1517
  %v1845 = vpack.c.b16 %v1520, %v1519
  %v1846 = vpack.c.b16 %v1522, %v1521
  %v1847 = vpack.c.b16 %v1524, %v1523
  %v1848 = vpack.c.b16 %v1526, %v1525
  %v1849 = vpack.c.b16 %v1528, %v1527
  %v1850 = vpack.c.b16 %v1530, %v1529
  %v1851 = vpack.c.b16 %v1532, %v1531
  %v1852 = vpack.c.b16 %v1534, %v1533
  %v1853 = vpack.c.b16 %v1536, %v1535
  %v1854 = vpack.c.b16 %v1538, %v1537
  %v1855 = vpack.c.b16 %v1540, %v1539
  %v1856 = vpack.c.b16 %v1542, %v1541
  %v1857 = vpack.c.b16 %v1544, %v1543
  %v1858 = vpack.c.b16 %v1546, %v1545
  %v1859 = vpack.c.b16 %v1548, %v1547
  %v1860 = vpack.c.b16 %v1550, %v1549
  %v1861 = vpack.c.b16 %v1552, %v1551
  %v1862 = vpack.c.b16 %v1554, %v1553
  %v1863 = vpack.c.b16 %v1556, %v1555
  %v1864 = vpack.c.b16 %v1558, %v1557
  %v1865 = vpack.c.b16 %v1560, %v1559
  %v1866 = vpack.c.b16 %v1562, %v1561
  %v1867 = vpack.c.b16 %v1564, %v1563
  %v1868 = vpack.c.b16 %v1566, %v1565
  %v1869 = vpack.c.b16 %v1568, %v1567
  %v1870 = vpack.c.b16 %v1570, %v1569
  %v1871 = vpack.c.b16 %v1572, %v1571
  %v1872 = vpack.c.b16 %v1574, %v1573
  %v1873 = vpack.c.b16 %v1576, %v1575
  %v1874 = vpack.c.b16 %v1578, %v1577
  %v1875 = vpack.c.b16 %v1580, %v1579
  %v1876 = vpack.c.b16 %v1582, %v1581
  %v1877 = vpack.c.b16 %v1584, %v1583
  %v1878 = vpack.c.b16 %v1586, %v1585
  %v1879 = vpack.c.b16 %v1588, %v1587
  %v1880 = vpack.c.b16 %v1590, %v1589
  %v1881 = vpack.c.b16 %v1592, %v1591
  %v1882 = vpack.c.b16 %v1594, %v1593
  %v1883 = vpack.c.b16 %v1596, %v1595
  %v1884 = vpack.c.b16 %v1598, %v1597
  %v1885 = vpack.c.b16 %v1600, %v1599
  %v1886 = vpack.c.b16 %v1602, %v1601
  %v1887 = vpack.c.b16 %v1604, %v1603
  %v1888 = vpack.c.b16 %v1606, %v1605
  %v1889 = vpack.c.b16 %v1608, %v1607
  %v1890 = vpack.c.b16 %v1610, %v1609
  %v1891 = vpack.c.b16 %v1612, %v1611
  %v1892 = vpack.c.b16 %v1614, %v1613
  %v1893 = vpack.c.b16 %v1616, %v1615
  %v1894 = vpack.c.b16 %v1618, %v1617
  %v1895 = vpack.c.b16 %v1620, %v1619
  %v1896 = vpack.c.b16 %v1622, %v1621
  %v1897 = vpack.c.b16 %v1624, %v1623
  %v1898 = vpack.c.b16 %v1626, %v1625
  %v1899 = vpack.c.b16 %v1628, %v1627
  %v1900 = vpack.c.b16 %v1630, %v1629
  %v1901 = vpack.c.b16 %v1632, %v1631
  %v1902 = vpack.c.b16 %v1634, %v1633
  %v1903 = vpack.c.b16 %v1636, %v1635
  %v1904 = vpack.c.b16 %v1638, %v1637
  %v1905 = vpack.c.b16 %v1640, %v1639
  %v1906 = vpack.c.b16 %v1642, %v1641
  %v1907 = vpack.c.b16 %v1644, %v1643
  %v1908 = vpack.c.b16 %v1646, %v1645
  %v1909 = vpack.c.b16 %v1648, %v1647
  %v1910 = vpack.c.b16 %v1650, %v1649
  %v1911 = vpack.c.b16 %v1652, %v1651
  %v1912 = vpack.c.b16 %v1654, %v1653
  %v1913 = vpack.c.b16 %v1656, %v1655
  %v1914 = vpack.c.b16 %v1658, %v1657
  %v1915 = vpack.c.b16 %v1660, %v1659
  %v1916 = vpack.c.b16 %v1662, %v1661
  %v1917 = vpack.c.b16 %v1664, %v1663
  %v1918 = vpack.c.b16 %v1666, %v1665
  %v1919 = vpack.c.b16 %v1668, %v1667
  %v1920 = vpack.c.b16 %v1670, %v1669
  %v1921 = vpack.c.b16 %v1672, %v1671
  %v1922 = vpack.c.b16 %v1674, %v1673
  %v1923 = vpack.c.b16 %v1676, %v1675
  %v1924 = vpack.c.b16 %v1678, %v1677
  %v1925 = vpack.c.b16 %v1680, %v1679
  %v1926 = vpack.c.b16 %v1682, %v1681
  %v1927 = vpack.c.b16 %v1684, %v1683
  %v1928 = vpack.c.b16 %v1686, %v1685
  %v1929 = vpack.c.b16 %v1688, %v1687
  %v1930 = vpack.c.b16 %v1690, %v1689
  %v1931 = vpack.c.b16 %v1692, %v1691
  %v1932 = vpack.c.b16 %v1694, %v1693
  %v1933 = vpack.c.b16 %v1696, %v1695
  %v1934 = vpack.c.b16 %v1698, %v1697
  %v1935 = vpack.c.b16 %v1700, %v1699
  %v1936 = vpack.c.b16 %v1702, %v1701
  %v1937 = vpack.c.b16 %v1704, %v1703
  %v1938 = vpack.c.b16 %v1706, %v1705
  %v1939 = vpack.c.b16 %v1708, %v1707
  %v1940 = vpack.c.b16 %v1710, %v1709
  %v1941 = vpack.c.b16 %v1712, %v1711
  %v1942 = vpack.c.b16 %v1714, %v1713
  %v1943 = vpack.c.b16 %v1716, %v1715
  %v1944 = vpack.c.b16 %v1718, %v1717
  %v1945 = vpack.c.b16 %v1720, %v1719
  %v1946 = vpack.c.b16 %v1722, %v1721
  %v1947 = vpack.c.b16 %v1724, %v1723
  %v1948 = vpack.c.b16 %v1726, %v1725
  %v1949 = vpack.c.b16 %v1728, %v1727
  %v1950 = vpack.c.b16 %v1730, %v1729
  %v1951 = vpack.c.b16 %v1732, %v1731
  %v1952 = vpack.c.b16 %v1734, %v1733
  %v1953 = vpack.c.b16 %v1736, %v1735
  %v1954 = vpack.c.b16 %v1738, %v1737
  %v1955 = vpack.c.b16 %v1740, %v1739
  %v1956 = vpack.c.b16 %v1742, %v1741
  %v1957 = vpack.c.b16 %v1744, %v1743
  %v1958 = vpack.c.b16 %v1746, %v1745
  %v1959 = vpack.c.b16 %v1748, %v1747
  %v1960 = vpack.c.b16 %v1750, %v1749
  %v1961 = vpack.c.b16 %v1752, %v1751
  %v1962 = vpack.c.b16 %v1754, %v1753
  %v1963 = vpack.c.b16 %v1756, %v1755
  %v1964 = vpack.c.b16 %v1758, %v1757
  %v1965 = vpack.c.b16 %v1760, %v1759
  %v1966 = vpack.c.b16 %v1762, %v1761
  %v1967 = vpack.c.b16 %v1764, %v1763
  %v1968 = vpack.c.b16 %v1766, %v1765
  %v1969 = vpack.c.b16 %v1768, %v1767
  %v1970 = vpack.c.b16 %v1770, %v1769
  %2171 = vmatpush.bf16.msra.mxu0 %v1778
  %2172 = vmatpush.bf16.msra.mxu0 %v1777
  %2173 = vmatpush.bf16.msra.mxu0 %v1776
  %2174 = vmatpush.bf16.msra.mxu0 %v1775
  %2175 = vmatpush.bf16.msra.mxu0 %v1774
  %2176 = vmatpush.bf16.msra.mxu0 %v1773
  %2177 = vmatpush.bf16.msra.mxu0 %v1772
  %2178 = vmatpush.bf16.msra.mxu0 %v1771
  %2179 = vmatmul.bf16.gmra.mxu0 %v771
  %v2180 = vpop.f32.mrf.mxu0
  %v2181 = vadd.f32 0.0, %v2180
  %v2182 = vpop.f32.mrf.mxu0
  %v2183 = vadd.f32 0.0, %v2182
  %2184 = vmatmul.bf16.gmra.mxu0 %v796
  %v2185 = vpop.f32.mrf.mxu0
  %v2186 = vadd.f32 0.0, %v2185
  %v2187 = vpop.f32.mrf.mxu0
  %v2188 = vadd.f32 0.0, %v2187
  %2189 = vmatmul.bf16.gmra.mxu0 %v821
  %v2190 = vpop.f32.mrf.mxu0
  %v2191 = vadd.f32 0.0, %v2190
  %v2192 = vpop.f32.mrf.mxu0
  %v2193 = vadd.f32 0.0, %v2192
  %2194 = vmatmul.bf16.gmra.mxu0 %v846
  %v2195 = vpop.f32.mrf.mxu0
  %v2196 = vadd.f32 0.0, %v2195
  %v2197 = vpop.f32.mrf.mxu0
  %2198 = vdwg.mxu0
  %2199 = vmatpush.bf16.msra.mxu0 %v1786
  %2200 = vmatpush.bf16.msra.mxu0 %v1785
  %2201 = vmatpush.bf16.msra.mxu0 %v1784
  %2202 = vmatpush.bf16.msra.mxu0 %v1783
  %2203 = vmatpush.bf16.msra.mxu0 %v1782
  %2204 = vmatpush.bf16.msra.mxu0 %v1781
  %2205 = vmatpush.bf16.msra.mxu0 %v1780
  %2206 = vmatpush.bf16.msra.mxu0 %v1779
  %2207 = vmatmul.bf16.gmra.mxu0 %v772
  %v2208 = vpop.f32.mrf.mxu0
  %v2209 = vadd.f32 %v2181, %v2208
  %v2210 = vpop.f32.mrf.mxu0
  %v2211 = vadd.f32 %v2183, %v2210
  %2212 = vmatmul.bf16.gmra.mxu0 %v797
  %v2213 = vpop.f32.mrf.mxu0
  %v2214 = vadd.f32 %v2186, %v2213
  %v2215 = vpop.f32.mrf.mxu0
  %v2216 = vadd.f32 %v2188, %v2215
  %2217 = vmatmul.bf16.gmra.mxu0 %v822
  %v2218 = vpop.f32.mrf.mxu0
  %v2219 = vadd.f32 %v2191, %v2218
  %v2220 = vpop.f32.mrf.mxu0
  %v2221 = vadd.f32 %v2193, %v2220
  %2222 = vmatmul.bf16.gmra.mxu0 %v847
  %v2223 = vpop.f32.mrf.mxu0
  %v2224 = vadd.f32 %v2196, %v2223
  %v2225 = vpop.f32.mrf.mxu0
  %2226 = vdwg.mxu0
  %2227 = vmatpush.bf16.msra.mxu0 %v1794
  %2228 = vmatpush.bf16.msra.mxu0 %v1793
  %2229 = vmatpush.bf16.msra.mxu0 %v1792
  %2230 = vmatpush.bf16.msra.mxu0 %v1791
  %2231 = vmatpush.bf16.msra.mxu0 %v1790
  %2232 = vmatpush.bf16.msra.mxu0 %v1789
  %2233 = vmatpush.bf16.msra.mxu0 %v1788
  %2234 = vmatpush.bf16.msra.mxu0 %v1787
  %2235 = vmatmul.bf16.gmra.mxu0 %v773
  %v2236 = vpop.f32.mrf.mxu0
  %v2237 = vadd.f32 %v2209, %v2236
  %v2238 = vpop.f32.mrf.mxu0
  %v2239 = vadd.f32 %v2211, %v2238
  %2240 = vmatmul.bf16.gmra.mxu0 %v798
  %v2241 = vpop.f32.mrf.mxu0
  %v2242 = vadd.f32 %v2214, %v2241
  %v2243 = vpop.f32.mrf.mxu0
  %v2244 = vadd.f32 %v2216, %v2243
  %2245 = vmatmul.bf16.gmra.mxu0 %v823
  %v2246 = vpop.f32.mrf.mxu0
  %v2247 = vadd.f32 %v2219, %v2246
  %v2248 = vpop.f32.mrf.mxu0
  %v2249 = vadd.f32 %v2221, %v2248
  %2250 = vmatmul.bf16.gmra.mxu0 %v848
  %v2251 = vpop.f32.mrf.mxu0
  %v2252 = vadd.f32 %v2224, %v2251
  %v2253 = vpop.f32.mrf.mxu0
  %2254 = vdwg.mxu0
  %2255 = vmatpush.bf16.msra.mxu0 %v1802
  %2256 = vmatpush.bf16.msra.mxu0 %v1801
  %2257 = vmatpush.bf16.msra.mxu0 %v1800
  %2258 = vmatpush.bf16.msra.mxu0 %v1799
  %2259 = vmatpush.bf16.msra.mxu0 %v1798
  %2260 = vmatpush.bf16.msra.mxu0 %v1797
  %2261 = vmatpush.bf16.msra.mxu0 %v1796
  %2262 = vmatpush.bf16.msra.mxu0 %v1795
  %2263 = vmatmul.bf16.gmra.mxu0 %v774
  %v2264 = vpop.f32.mrf.mxu0
  %v2265 = vadd.f32 %v2237, %v2264
  %v2266 = vpop.f32.mrf.mxu0
  %v2267 = vadd.f32 %v2239, %v2266
  %2268 = vmatmul.bf16.gmra.mxu0 %v799
  %v2269 = vpop.f32.mrf.mxu0
  %v2270 = vadd.f32 %v2242, %v2269
  %v2271 = vpop.f32.mrf.mxu0
  %v2272 = vadd.f32 %v2244, %v2271
  %2273 = vmatmul.bf16.gmra.mxu0 %v824
  %v2274 = vpop.f32.mrf.mxu0
  %v2275 = vadd.f32 %v2247, %v2274
  %v2276 = vpop.f32.mrf.mxu0
  %v2277 = vadd.f32 %v2249, %v2276
  %2278 = vmatmul.bf16.gmra.mxu0 %v849
  %v2279 = vpop.f32.mrf.mxu0
  %v2280 = vadd.f32 %v2252, %v2279
  %v2281 = vpop.f32.mrf.mxu0
  %2282 = vdwg.mxu0
  %2283 = vmatpush.bf16.msra.mxu0 %v1810
  %2284 = vmatpush.bf16.msra.mxu0 %v1809
  %2285 = vmatpush.bf16.msra.mxu0 %v1808
  %2286 = vmatpush.bf16.msra.mxu0 %v1807
  %2287 = vmatpush.bf16.msra.mxu0 %v1806
  %2288 = vmatpush.bf16.msra.mxu0 %v1805
  %2289 = vmatpush.bf16.msra.mxu0 %v1804
  %2290 = vmatpush.bf16.msra.mxu0 %v1803
  %2291 = vmatmul.bf16.gmra.mxu0 %v775
  %v2292 = vpop.f32.mrf.mxu0
  %v2293 = vadd.f32 %v2265, %v2292
  %v2294 = vpop.f32.mrf.mxu0
  %v2295 = vadd.f32 %v2267, %v2294
  %2296 = vmatmul.bf16.gmra.mxu0 %v800
  %v2297 = vpop.f32.mrf.mxu0
  %v2298 = vadd.f32 %v2270, %v2297
  %v2299 = vpop.f32.mrf.mxu0
  %v2300 = vadd.f32 %v2272, %v2299
  %2301 = vmatmul.bf16.gmra.mxu0 %v825
  %v2302 = vpop.f32.mrf.mxu0
  %v2303 = vadd.f32 %v2275, %v2302
  %v2304 = vpop.f32.mrf.mxu0
  %v2305 = vadd.f32 %v2277, %v2304
  %2306 = vmatmul.bf16.gmra.mxu0 %v850
  %v2307 = vpop.f32.mrf.mxu0
  %v2308 = vadd.f32 %v2280, %v2307
  %v2309 = vpop.f32.mrf.mxu0
  %2310 = vdwg.mxu0
  %2311 = vmatpush.bf16.msra.mxu0 %v1818
  %2312 = vmatpush.bf16.msra.mxu0 %v1817
  %2313 = vmatpush.bf16.msra.mxu0 %v1816
  %2314 = vmatpush.bf16.msra.mxu0 %v1815
  %2315 = vmatpush.bf16.msra.mxu0 %v1814
  %2316 = vmatpush.bf16.msra.mxu0 %v1813
  %2317 = vmatpush.bf16.msra.mxu0 %v1812
  %2318 = vmatpush.bf16.msra.mxu0 %v1811
  %2319 = vmatmul.bf16.gmra.mxu0 %v776
  %v2320 = vpop.f32.mrf.mxu0
  %v2321 = vadd.f32 %v2293, %v2320
  %v2322 = vpop.f32.mrf.mxu0
  %v2323 = vadd.f32 %v2295, %v2322
  %2324 = vmatmul.bf16.gmra.mxu0 %v801
  %v2325 = vpop.f32.mrf.mxu0
  %v2326 = vadd.f32 %v2298, %v2325
  %v2327 = vpop.f32.mrf.mxu0
  %v2328 = vadd.f32 %v2300, %v2327
  %2329 = vmatmul.bf16.gmra.mxu0 %v826
  %v2330 = vpop.f32.mrf.mxu0
  %v2331 = vadd.f32 %v2303, %v2330
  %v2332 = vpop.f32.mrf.mxu0
  %v2333 = vadd.f32 %v2305, %v2332
  %2334 = vmatmul.bf16.gmra.mxu0 %v851
  %v2335 = vpop.f32.mrf.mxu0
  %v2336 = vadd.f32 %v2308, %v2335
  %v2337 = vpop.f32.mrf.mxu0
  %2338 = vdwg.mxu0
  %2339 = vmatpush.bf16.msra.mxu0 %v1826
  %2340 = vmatpush.bf16.msra.mxu0 %v1825
  %2341 = vmatpush.bf16.msra.mxu0 %v1824
  %2342 = vmatpush.bf16.msra.mxu0 %v1823
  %2343 = vmatpush.bf16.msra.mxu0 %v1822
  %2344 = vmatpush.bf16.msra.mxu0 %v1821
  %2345 = vmatpush.bf16.msra.mxu0 %v1820
  %2346 = vmatpush.bf16.msra.mxu0 %v1819
  %2347 = vmatmul.bf16.gmra.mxu0 %v777
  %v2348 = vpop.f32.mrf.mxu0
  %v2349 = vadd.f32 %v2321, %v2348
  %v2350 = vpop.f32.mrf.mxu0
  %v2351 = vadd.f32 %v2323, %v2350
  %2352 = vmatmul.bf16.gmra.mxu0 %v802
  %v2353 = vpop.f32.mrf.mxu0
  %v2354 = vadd.f32 %v2326, %v2353
  %v2355 = vpop.f32.mrf.mxu0
  %v2356 = vadd.f32 %v2328, %v2355
  %2357 = vmatmul.bf16.gmra.mxu0 %v827
  %v2358 = vpop.f32.mrf.mxu0
  %v2359 = vadd.f32 %v2331, %v2358
  %v2360 = vpop.f32.mrf.mxu0
  %v2361 = vadd.f32 %v2333, %v2360
  %2362 = vmatmul.bf16.gmra.mxu0 %v852
  %v2363 = vpop.f32.mrf.mxu0
  %v2364 = vadd.f32 %v2336, %v2363
  %v2365 = vpop.f32.mrf.mxu0
  %2366 = vdwg.mxu0
  %2367 = vmatpush.bf16.msra.mxu0 %v1834
  %2368 = vmatpush.bf16.msra.mxu0 %v1833
  %2369 = vmatpush.bf16.msra.mxu0 %v1832
  %2370 = vmatpush.bf16.msra.mxu0 %v1831
  %2371 = vmatpush.bf16.msra.mxu0 %v1830
  %2372 = vmatpush.bf16.msra.mxu0 %v1829
  %2373 = vmatpush.bf16.msra.mxu0 %v1828
  %2374 = vmatpush.bf16.msra.mxu0 %v1827
  %2375 = vmatmul.bf16.gmra.mxu0 %v778
  %v2376 = vpop.f32.mrf.mxu0
  %v2377 = vadd.f32 %v2349, %v2376
  %v2378 = vpop.f32.mrf.mxu0
  %v2379 = vadd.f32 %v2351, %v2378
  %2380 = vmatmul.bf16.gmra.mxu0 %v803
  %v2381 = vpop.f32.mrf.mxu0
  %v2382 = vadd.f32 %v2354, %v2381
  %v2383 = vpop.f32.mrf.mxu0
  %v2384 = vadd.f32 %v2356, %v2383
  %2385 = vmatmul.bf16.gmra.mxu0 %v828
  %v2386 = vpop.f32.mrf.mxu0
  %v2387 = vadd.f32 %v2359, %v2386
  %v2388 = vpop.f32.mrf.mxu0
  %v2389 = vadd.f32 %v2361, %v2388
  %2390 = vmatmul.bf16.gmra.mxu0 %v853
  %v2391 = vpop.f32.mrf.mxu0
  %v2392 = vadd.f32 %v2364, %v2391
  %v2393 = vpop.f32.mrf.mxu0
  %2394 = vdwg.mxu0
  %2395 = vmatpush.bf16.msra.mxu0 %v1842
  %2396 = vmatpush.bf16.msra.mxu0 %v1841
  %2397 = vmatpush.bf16.msra.mxu0 %v1840
  %2398 = vmatpush.bf16.msra.mxu0 %v1839
  %2399 = vmatpush.bf16.msra.mxu0 %v1838
  %2400 = vmatpush.bf16.msra.mxu0 %v1837
  %2401 = vmatpush.bf16.msra.mxu0 %v1836
  %2402 = vmatpush.bf16.msra.mxu0 %v1835
  %2403 = vmatmul.bf16.gmra.mxu0 %v779
  %v2404 = vpop.f32.mrf.mxu0
  %v2405 = vadd.f32 %v2377, %v2404
  %v2406 = vpop.f32.mrf.mxu0
  %v2407 = vadd.f32 %v2379, %v2406
  %2408 = vmatmul.bf16.gmra.mxu0 %v804
  %v2409 = vpop.f32.mrf.mxu0
  %v2410 = vadd.f32 %v2382, %v2409
  %v2411 = vpop.f32.mrf.mxu0
  %v2412 = vadd.f32 %v2384, %v2411
  %2413 = vmatmul.bf16.gmra.mxu0 %v829
  %v2414 = vpop.f32.mrf.mxu0
  %v2415 = vadd.f32 %v2387, %v2414
  %v2416 = vpop.f32.mrf.mxu0
  %v2417 = vadd.f32 %v2389, %v2416
  %2418 = vmatmul.bf16.gmra.mxu0 %v854
  %v2419 = vpop.f32.mrf.mxu0
  %v2420 = vadd.f32 %v2392, %v2419
  %v2421 = vpop.f32.mrf.mxu0
  %2422 = vdwg.mxu0
  %2423 = vmatpush.bf16.msra.mxu0 %v1850
  %2424 = vmatpush.bf16.msra.mxu0 %v1849
  %2425 = vmatpush.bf16.msra.mxu0 %v1848
  %2426 = vmatpush.bf16.msra.mxu0 %v1847
  %2427 = vmatpush.bf16.msra.mxu0 %v1846
  %2428 = vmatpush.bf16.msra.mxu0 %v1845
  %2429 = vmatpush.bf16.msra.mxu0 %v1844
  %2430 = vmatpush.bf16.msra.mxu0 %v1843
  %2431 = vmatmul.bf16.gmra.mxu0 %v780
  %v2432 = vpop.f32.mrf.mxu0
  %v2433 = vadd.f32 %v2405, %v2432
  %v2434 = vpop.f32.mrf.mxu0
  %v2435 = vadd.f32 %v2407, %v2434
  %2436 = vmatmul.bf16.gmra.mxu0 %v805
  %v2437 = vpop.f32.mrf.mxu0
  %v2438 = vadd.f32 %v2410, %v2437
  %v2439 = vpop.f32.mrf.mxu0
  %v2440 = vadd.f32 %v2412, %v2439
  %2441 = vmatmul.bf16.gmra.mxu0 %v830
  %v2442 = vpop.f32.mrf.mxu0
  %v2443 = vadd.f32 %v2415, %v2442
  %v2444 = vpop.f32.mrf.mxu0
  %v2445 = vadd.f32 %v2417, %v2444
  %2446 = vmatmul.bf16.gmra.mxu0 %v855
  %v2447 = vpop.f32.mrf.mxu0
  %v2448 = vadd.f32 %v2420, %v2447
  %v2449 = vpop.f32.mrf.mxu0
  %2450 = vdwg.mxu0
  %2451 = vmatpush.bf16.msra.mxu0 %v1858
  %2452 = vmatpush.bf16.msra.mxu0 %v1857
  %2453 = vmatpush.bf16.msra.mxu0 %v1856
  %2454 = vmatpush.bf16.msra.mxu0 %v1855
  %2455 = vmatpush.bf16.msra.mxu0 %v1854
  %2456 = vmatpush.bf16.msra.mxu0 %v1853
  %2457 = vmatpush.bf16.msra.mxu0 %v1852
  %2458 = vmatpush.bf16.msra.mxu0 %v1851
  %2459 = vmatmul.bf16.gmra.mxu0 %v781
  %v2460 = vpop.f32.mrf.mxu0
  %v2461 = vadd.f32 %v2433, %v2460
  %v2462 = vpop.f32.mrf.mxu0
  %v2463 = vadd.f32 %v2435, %v2462
  %2464 = vmatmul.bf16.gmra.mxu0 %v806
  %v2465 = vpop.f32.mrf.mxu0
  %v2466 = vadd.f32 %v2438, %v2465
  %v2467 = vpop.f32.mrf.mxu0
  %v2468 = vadd.f32 %v2440, %v2467
  %2469 = vmatmul.bf16.gmra.mxu0 %v831
  %v2470 = vpop.f32.mrf.mxu0
  %v2471 = vadd.f32 %v2443, %v2470
  %v2472 = vpop.f32.mrf.mxu0
  %v2473 = vadd.f32 %v2445, %v2472
  %2474 = vmatmul.bf16.gmra.mxu0 %v856
  %v2475 = vpop.f32.mrf.mxu0
  %v2476 = vadd.f32 %v2448, %v2475
  %v2477 = vpop.f32.mrf.mxu0
  %2478 = vdwg.mxu0
  %2479 = vmatpush.bf16.msra.mxu0 %v1866
  %2480 = vmatpush.bf16.msra.mxu0 %v1865
  %2481 = vmatpush.bf16.msra.mxu0 %v1864
  %2482 = vmatpush.bf16.msra.mxu0 %v1863
  %2483 = vmatpush.bf16.msra.mxu0 %v1862
  %2484 = vmatpush.bf16.msra.mxu0 %v1861
  %2485 = vmatpush.bf16.msra.mxu0 %v1860
  %2486 = vmatpush.bf16.msra.mxu0 %v1859
  %2487 = vmatmul.bf16.gmra.mxu0 %v782
  %v2488 = vpop.f32.mrf.mxu0
  %v2489 = vadd.f32 %v2461, %v2488
  %v2490 = vpop.f32.mrf.mxu0
  %v2491 = vadd.f32 %v2463, %v2490
  %2492 = vmatmul.bf16.gmra.mxu0 %v807
  %v2493 = vpop.f32.mrf.mxu0
  %v2494 = vadd.f32 %v2466, %v2493
  %v2495 = vpop.f32.mrf.mxu0
  %v2496 = vadd.f32 %v2468, %v2495
  %2497 = vmatmul.bf16.gmra.mxu0 %v832
  %v2498 = vpop.f32.mrf.mxu0
  %v2499 = vadd.f32 %v2471, %v2498
  %v2500 = vpop.f32.mrf.mxu0
  %v2501 = vadd.f32 %v2473, %v2500
  %2502 = vmatmul.bf16.gmra.mxu0 %v857
  %v2503 = vpop.f32.mrf.mxu0
  %v2504 = vadd.f32 %v2476, %v2503
  %v2505 = vpop.f32.mrf.mxu0
  %2506 = vdwg.mxu0
  %2507 = vmatpush.bf16.msra.mxu0 %v1874
  %2508 = vmatpush.bf16.msra.mxu0 %v1873
  %2509 = vmatpush.bf16.msra.mxu0 %v1872
  %2510 = vmatpush.bf16.msra.mxu0 %v1871
  %2511 = vmatpush.bf16.msra.mxu0 %v1870
  %2512 = vmatpush.bf16.msra.mxu0 %v1869
  %2513 = vmatpush.bf16.msra.mxu0 %v1868
  %2514 = vmatpush.bf16.msra.mxu0 %v1867
  %2515 = vmatmul.bf16.gmra.mxu0 %v783
  %v2516 = vpop.f32.mrf.mxu0
  %v2517 = vadd.f32 %v2489, %v2516
  %v2518 = vpop.f32.mrf.mxu0
  %v2519 = vadd.f32 %v2491, %v2518
  %2520 = vmatmul.bf16.gmra.mxu0 %v808
  %v2521 = vpop.f32.mrf.mxu0
  %v2522 = vadd.f32 %v2494, %v2521
  %v2523 = vpop.f32.mrf.mxu0
  %v2524 = vadd.f32 %v2496, %v2523
  %2525 = vmatmul.bf16.gmra.mxu0 %v833
  %v2526 = vpop.f32.mrf.mxu0
  %v2527 = vadd.f32 %v2499, %v2526
  %v2528 = vpop.f32.mrf.mxu0
  %v2529 = vadd.f32 %v2501, %v2528
  %2530 = vmatmul.bf16.gmra.mxu0 %v858
  %v2531 = vpop.f32.mrf.mxu0
  %v2532 = vadd.f32 %v2504, %v2531
  %v2533 = vpop.f32.mrf.mxu0
  %2534 = vdwg.mxu0
  %2535 = vmatpush.bf16.msra.mxu0 %v1882
  %2536 = vmatpush.bf16.msra.mxu0 %v1881
  %2537 = vmatpush.bf16.msra.mxu0 %v1880
  %2538 = vmatpush.bf16.msra.mxu0 %v1879
  %2539 = vmatpush.bf16.msra.mxu0 %v1878
  %2540 = vmatpush.bf16.msra.mxu0 %v1877
  %2541 = vmatpush.bf16.msra.mxu0 %v1876
  %2542 = vmatpush.bf16.msra.mxu0 %v1875
  %2543 = vmatmul.bf16.gmra.mxu0 %v784
  %v2544 = vpop.f32.mrf.mxu0
  %v2545 = vadd.f32 %v2517, %v2544
  %v2546 = vpop.f32.mrf.mxu0
  %v2547 = vadd.f32 %v2519, %v2546
  %2548 = vmatmul.bf16.gmra.mxu0 %v809
  %v2549 = vpop.f32.mrf.mxu0
  %v2550 = vadd.f32 %v2522, %v2549
  %v2551 = vpop.f32.mrf.mxu0
  %v2552 = vadd.f32 %v2524, %v2551
  %2553 = vmatmul.bf16.gmra.mxu0 %v834
  %v2554 = vpop.f32.mrf.mxu0
  %v2555 = vadd.f32 %v2527, %v2554
  %v2556 = vpop.f32.mrf.mxu0
  %v2557 = vadd.f32 %v2529, %v2556
  %2558 = vmatmul.bf16.gmra.mxu0 %v859
  %v2559 = vpop.f32.mrf.mxu0
  %v2560 = vadd.f32 %v2532, %v2559
  %v2561 = vpop.f32.mrf.mxu0
  %2562 = vdwg.mxu0
  %2563 = vmatpush.bf16.msra.mxu0 %v1890
  %2564 = vmatpush.bf16.msra.mxu0 %v1889
  %2565 = vmatpush.bf16.msra.mxu0 %v1888
  %2566 = vmatpush.bf16.msra.mxu0 %v1887
  %2567 = vmatpush.bf16.msra.mxu0 %v1886
  %2568 = vmatpush.bf16.msra.mxu0 %v1885
  %2569 = vmatpush.bf16.msra.mxu0 %v1884
  %2570 = vmatpush.bf16.msra.mxu0 %v1883
  %2571 = vmatmul.bf16.gmra.mxu0 %v785
  %v2572 = vpop.f32.mrf.mxu0
  %v2573 = vadd.f32 %v2545, %v2572
  %v2574 = vpop.f32.mrf.mxu0
  %v2575 = vadd.f32 %v2547, %v2574
  %2576 = vmatmul.bf16.gmra.mxu0 %v810
  %v2577 = vpop.f32.mrf.mxu0
  %v2578 = vadd.f32 %v2550, %v2577
  %v2579 = vpop.f32.mrf.mxu0
  %v2580 = vadd.f32 %v2552, %v2579
  %2581 = vmatmul.bf16.gmra.mxu0 %v835
  %v2582 = vpop.f32.mrf.mxu0
  %v2583 = vadd.f32 %v2555, %v2582
  %v2584 = vpop.f32.mrf.mxu0
  %v2585 = vadd.f32 %v2557, %v2584
  %2586 = vmatmul.bf16.gmra.mxu0 %v860
  %v2587 = vpop.f32.mrf.mxu0
  %v2588 = vadd.f32 %v2560, %v2587
  %v2589 = vpop.f32.mrf.mxu0
  %2590 = vdwg.mxu0
  %2591 = vmatpush.bf16.msra.mxu0 %v1898
  %2592 = vmatpush.bf16.msra.mxu0 %v1897
  %2593 = vmatpush.bf16.msra.mxu0 %v1896
  %2594 = vmatpush.bf16.msra.mxu0 %v1895
  %2595 = vmatpush.bf16.msra.mxu0 %v1894
  %2596 = vmatpush.bf16.msra.mxu0 %v1893
  %2597 = vmatpush.bf16.msra.mxu0 %v1892
  %2598 = vmatpush.bf16.msra.mxu0 %v1891
  %2599 = vmatmul.bf16.gmra.mxu0 %v786
  %v2600 = vpop.f32.mrf.mxu0
  %v2601 = vadd.f32 %v2573, %v2600
  %v2602 = vpop.f32.mrf.mxu0
  %v2603 = vadd.f32 %v2575, %v2602
  %2604 = vmatmul.bf16.gmra.mxu0 %v811
  %v2605 = vpop.f32.mrf.mxu0
  %v2606 = vadd.f32 %v2578, %v2605
  %v2607 = vpop.f32.mrf.mxu0
  %v2608 = vadd.f32 %v2580, %v2607
  %2609 = vmatmul.bf16.gmra.mxu0 %v836
  %v2610 = vpop.f32.mrf.mxu0
  %v2611 = vadd.f32 %v2583, %v2610
  %v2612 = vpop.f32.mrf.mxu0
  %v2613 = vadd.f32 %v2585, %v2612
  %2614 = vmatmul.bf16.gmra.mxu0 %v861
  %v2615 = vpop.f32.mrf.mxu0
  %v2616 = vadd.f32 %v2588, %v2615
  %v2617 = vpop.f32.mrf.mxu0
  %2618 = vdwg.mxu0
  %2619 = vmatpush.bf16.msra.mxu0 %v1906
  %2620 = vmatpush.bf16.msra.mxu0 %v1905
  %2621 = vmatpush.bf16.msra.mxu0 %v1904
  %2622 = vmatpush.bf16.msra.mxu0 %v1903
  %2623 = vmatpush.bf16.msra.mxu0 %v1902
  %2624 = vmatpush.bf16.msra.mxu0 %v1901
  %2625 = vmatpush.bf16.msra.mxu0 %v1900
  %2626 = vmatpush.bf16.msra.mxu0 %v1899
  %2627 = vmatmul.bf16.gmra.mxu0 %v787
  %v2628 = vpop.f32.mrf.mxu0
  %v2629 = vadd.f32 %v2601, %v2628
  %v2630 = vpop.f32.mrf.mxu0
  %v2631 = vadd.f32 %v2603, %v2630
  %2632 = vmatmul.bf16.gmra.mxu0 %v812
  %v2633 = vpop.f32.mrf.mxu0
  %v2634 = vadd.f32 %v2606, %v2633
  %v2635 = vpop.f32.mrf.mxu0
  %v2636 = vadd.f32 %v2608, %v2635
  %2637 = vmatmul.bf16.gmra.mxu0 %v837
  %v2638 = vpop.f32.mrf.mxu0
  %v2639 = vadd.f32 %v2611, %v2638
  %v2640 = vpop.f32.mrf.mxu0
  %v2641 = vadd.f32 %v2613, %v2640
  %2642 = vmatmul.bf16.gmra.mxu0 %v862
  %v2643 = vpop.f32.mrf.mxu0
  %v2644 = vadd.f32 %v2616, %v2643
  %v2645 = vpop.f32.mrf.mxu0
  %2646 = vdwg.mxu0
  %2647 = vmatpush.bf16.msra.mxu0 %v1914
  %2648 = vmatpush.bf16.msra.mxu0 %v1913
  %2649 = vmatpush.bf16.msra.mxu0 %v1912
  %2650 = vmatpush.bf16.msra.mxu0 %v1911
  %2651 = vmatpush.bf16.msra.mxu0 %v1910
  %2652 = vmatpush.bf16.msra.mxu0 %v1909
  %2653 = vmatpush.bf16.msra.mxu0 %v1908
  %2654 = vmatpush.bf16.msra.mxu0 %v1907
  %2655 = vmatmul.bf16.gmra.mxu0 %v788
  %v2656 = vpop.f32.mrf.mxu0
  %v2657 = vadd.f32 %v2629, %v2656
  %v2658 = vpop.f32.mrf.mxu0
  %v2659 = vadd.f32 %v2631, %v2658
  %2660 = vmatmul.bf16.gmra.mxu0 %v813
  %v2661 = vpop.f32.mrf.mxu0
  %v2662 = vadd.f32 %v2634, %v2661
  %v2663 = vpop.f32.mrf.mxu0
  %v2664 = vadd.f32 %v2636, %v2663
  %2665 = vmatmul.bf16.gmra.mxu0 %v838
  %v2666 = vpop.f32.mrf.mxu0
  %v2667 = vadd.f32 %v2639, %v2666
  %v2668 = vpop.f32.mrf.mxu0
  %v2669 = vadd.f32 %v2641, %v2668
  %2670 = vmatmul.bf16.gmra.mxu0 %v863
  %v2671 = vpop.f32.mrf.mxu0
  %v2672 = vadd.f32 %v2644, %v2671
  %v2673 = vpop.f32.mrf.mxu0
  %2674 = vdwg.mxu0
  %2675 = vmatpush.bf16.msra.mxu0 %v1922
  %2676 = vmatpush.bf16.msra.mxu0 %v1921
  %2677 = vmatpush.bf16.msra.mxu0 %v1920
  %2678 = vmatpush.bf16.msra.mxu0 %v1919
  %2679 = vmatpush.bf16.msra.mxu0 %v1918
  %2680 = vmatpush.bf16.msra.mxu0 %v1917
  %2681 = vmatpush.bf16.msra.mxu0 %v1916
  %2682 = vmatpush.bf16.msra.mxu0 %v1915
  %2683 = vmatmul.bf16.gmra.mxu0 %v789
  %v2684 = vpop.f32.mrf.mxu0
  %v2685 = vadd.f32 %v2657, %v2684
  %v2686 = vpop.f32.mrf.mxu0
  %v2687 = vadd.f32 %v2659, %v2686
  %2688 = vmatmul.bf16.gmra.mxu0 %v814
  %v2689 = vpop.f32.mrf.mxu0
  %v2690 = vadd.f32 %v2662, %v2689
  %v2691 = vpop.f32.mrf.mxu0
  %v2692 = vadd.f32 %v2664, %v2691
  %2693 = vmatmul.bf16.gmra.mxu0 %v839
  %v2694 = vpop.f32.mrf.mxu0
  %v2695 = vadd.f32 %v2667, %v2694
  %v2696 = vpop.f32.mrf.mxu0
  %v2697 = vadd.f32 %v2669, %v2696
  %2698 = vmatmul.bf16.gmra.mxu0 %v864
  %v2699 = vpop.f32.mrf.mxu0
  %v2700 = vadd.f32 %v2672, %v2699
  %v2701 = vpop.f32.mrf.mxu0
  %2702 = vdwg.mxu0
  %2703 = vmatpush.bf16.msra.mxu0 %v1930
  %2704 = vmatpush.bf16.msra.mxu0 %v1929
  %2705 = vmatpush.bf16.msra.mxu0 %v1928
  %2706 = vmatpush.bf16.msra.mxu0 %v1927
  %2707 = vmatpush.bf16.msra.mxu0 %v1926
  %2708 = vmatpush.bf16.msra.mxu0 %v1925
  %2709 = vmatpush.bf16.msra.mxu0 %v1924
  %2710 = vmatpush.bf16.msra.mxu0 %v1923
  %2711 = vmatmul.bf16.gmra.mxu0 %v790
  %v2712 = vpop.f32.mrf.mxu0
  %v2713 = vadd.f32 %v2685, %v2712
  %v2714 = vpop.f32.mrf.mxu0
  %v2715 = vadd.f32 %v2687, %v2714
  %2716 = vmatmul.bf16.gmra.mxu0 %v815
  %v2717 = vpop.f32.mrf.mxu0
  %v2718 = vadd.f32 %v2690, %v2717
  %v2719 = vpop.f32.mrf.mxu0
  %v2720 = vadd.f32 %v2692, %v2719
  %2721 = vmatmul.bf16.gmra.mxu0 %v840
  %v2722 = vpop.f32.mrf.mxu0
  %v2723 = vadd.f32 %v2695, %v2722
  %v2724 = vpop.f32.mrf.mxu0
  %v2725 = vadd.f32 %v2697, %v2724
  %2726 = vmatmul.bf16.gmra.mxu0 %v865
  %v2727 = vpop.f32.mrf.mxu0
  %v2728 = vadd.f32 %v2700, %v2727
  %v2729 = vpop.f32.mrf.mxu0
  %2730 = vdwg.mxu0
  %2731 = vmatpush.bf16.msra.mxu0 %v1938
  %2732 = vmatpush.bf16.msra.mxu0 %v1937
  %2733 = vmatpush.bf16.msra.mxu0 %v1936
  %2734 = vmatpush.bf16.msra.mxu0 %v1935
  %2735 = vmatpush.bf16.msra.mxu0 %v1934
  %2736 = vmatpush.bf16.msra.mxu0 %v1933
  %2737 = vmatpush.bf16.msra.mxu0 %v1932
  %2738 = vmatpush.bf16.msra.mxu0 %v1931
  %2739 = vmatmul.bf16.gmra.mxu0 %v791
  %v2740 = vpop.f32.mrf.mxu0
  %v2741 = vadd.f32 %v2713, %v2740
  %v2742 = vpop.f32.mrf.mxu0
  %v2743 = vadd.f32 %v2715, %v2742
  %2744 = vmatmul.bf16.gmra.mxu0 %v816
  %v2745 = vpop.f32.mrf.mxu0
  %v2746 = vadd.f32 %v2718, %v2745
  %v2747 = vpop.f32.mrf.mxu0
  %v2748 = vadd.f32 %v2720, %v2747
  %2749 = vmatmul.bf16.gmra.mxu0 %v841
  %v2750 = vpop.f32.mrf.mxu0
  %v2751 = vadd.f32 %v2723, %v2750
  %v2752 = vpop.f32.mrf.mxu0
  %v2753 = vadd.f32 %v2725, %v2752
  %2754 = vmatmul.bf16.gmra.mxu0 %v866
  %v2755 = vpop.f32.mrf.mxu0
  %v2756 = vadd.f32 %v2728, %v2755
  %v2757 = vpop.f32.mrf.mxu0
  %2758 = vdwg.mxu0
  %2759 = vmatpush.bf16.msra.mxu0 %v1946
  %2760 = vmatpush.bf16.msra.mxu0 %v1945
  %2761 = vmatpush.bf16.msra.mxu0 %v1944
  %2762 = vmatpush.bf16.msra.mxu0 %v1943
  %2763 = vmatpush.bf16.msra.mxu0 %v1942
  %2764 = vmatpush.bf16.msra.mxu0 %v1941
  %2765 = vmatpush.bf16.msra.mxu0 %v1940
  %2766 = vmatpush.bf16.msra.mxu0 %v1939
  %2767 = vmatmul.bf16.gmra.mxu0 %v792
  %v2768 = vpop.f32.mrf.mxu0
  %v2769 = vadd.f32 %v2741, %v2768
  %v2770 = vpop.f32.mrf.mxu0
  %v2771 = vadd.f32 %v2743, %v2770
  %2772 = vmatmul.bf16.gmra.mxu0 %v817
  %v2773 = vpop.f32.mrf.mxu0
  %v2774 = vadd.f32 %v2746, %v2773
  %v2775 = vpop.f32.mrf.mxu0
  %v2776 = vadd.f32 %v2748, %v2775
  %2777 = vmatmul.bf16.gmra.mxu0 %v842
  %v2778 = vpop.f32.mrf.mxu0
  %v2779 = vadd.f32 %v2751, %v2778
  %v2780 = vpop.f32.mrf.mxu0
  %v2781 = vadd.f32 %v2753, %v2780
  %2782 = vmatmul.bf16.gmra.mxu0 %v867
  %v2783 = vpop.f32.mrf.mxu0
  %v2784 = vadd.f32 %v2756, %v2783
  %v2785 = vpop.f32.mrf.mxu0
  %2786 = vdwg.mxu0
  %2787 = vmatpush.bf16.msra.mxu0 %v1954
  %2788 = vmatpush.bf16.msra.mxu0 %v1953
  %2789 = vmatpush.bf16.msra.mxu0 %v1952
  %2790 = vmatpush.bf16.msra.mxu0 %v1951
  %2791 = vmatpush.bf16.msra.mxu0 %v1950
  %2792 = vmatpush.bf16.msra.mxu0 %v1949
  %2793 = vmatpush.bf16.msra.mxu0 %v1948
  %2794 = vmatpush.bf16.msra.mxu0 %v1947
  %2795 = vmatmul.bf16.gmra.mxu0 %v793
  %v2796 = vpop.f32.mrf.mxu0
  %v2797 = vadd.f32 %v2769, %v2796
  %v2798 = vpop.f32.mrf.mxu0
  %v2799 = vadd.f32 %v2771, %v2798
  %2800 = vmatmul.bf16.gmra.mxu0 %v818
  %v2801 = vpop.f32.mrf.mxu0
  %v2802 = vadd.f32 %v2774, %v2801
  %v2803 = vpop.f32.mrf.mxu0
  %v2804 = vadd.f32 %v2776, %v2803
  %2805 = vmatmul.bf16.gmra.mxu0 %v843
  %v2806 = vpop.f32.mrf.mxu0
  %v2807 = vadd.f32 %v2779, %v2806
  %v2808 = vpop.f32.mrf.mxu0
  %v2809 = vadd.f32 %v2781, %v2808
  %2810 = vmatmul.bf16.gmra.mxu0 %v868
  %v2811 = vpop.f32.mrf.mxu0
  %v2812 = vadd.f32 %v2784, %v2811
  %v2813 = vpop.f32.mrf.mxu0
  %2814 = vdwg.mxu0
  %2815 = vmatpush.bf16.msra.mxu0 %v1962
  %2816 = vmatpush.bf16.msra.mxu0 %v1961
  %2817 = vmatpush.bf16.msra.mxu0 %v1960
  %2818 = vmatpush.bf16.msra.mxu0 %v1959
  %2819 = vmatpush.bf16.msra.mxu0 %v1958
  %2820 = vmatpush.bf16.msra.mxu0 %v1957
  %2821 = vmatpush.bf16.msra.mxu0 %v1956
  %2822 = vmatpush.bf16.msra.mxu0 %v1955
  %2823 = vmatmul.bf16.gmra.mxu0 %v794
  %v2824 = vpop.f32.mrf.mxu0
  %v2825 = vadd.f32 %v2797, %v2824
  %v2826 = vpop.f32.mrf.mxu0
  %v2827 = vadd.f32 %v2799, %v2826
  %2828 = vmatmul.bf16.gmra.mxu0 %v819
  %v2829 = vpop.f32.mrf.mxu0
  %v2830 = vadd.f32 %v2802, %v2829
  %v2831 = vpop.f32.mrf.mxu0
  %v2832 = vadd.f32 %v2804, %v2831
  %2833 = vmatmul.bf16.gmra.mxu0 %v844
  %v2834 = vpop.f32.mrf.mxu0
  %v2835 = vadd.f32 %v2807, %v2834
  %v2836 = vpop.f32.mrf.mxu0
  %v2837 = vadd.f32 %v2809, %v2836
  %2838 = vmatmul.bf16.gmra.mxu0 %v869
  %v2839 = vpop.f32.mrf.mxu0
  %v2840 = vadd.f32 %v2812, %v2839
  %v2841 = vpop.f32.mrf.mxu0
  %2842 = vdwg.mxu0
  %2843 = vmatpush.bf16.msra.mxu0 %v1970
  %2844 = vmatpush.bf16.msra.mxu0 %v1969
  %2845 = vmatpush.bf16.msra.mxu0 %v1968
  %2846 = vmatpush.bf16.msra.mxu0 %v1967
  %2847 = vmatpush.bf16.msra.mxu0 %v1966
  %2848 = vmatpush.bf16.msra.mxu0 %v1965
  %2849 = vmatpush.bf16.msra.mxu0 %v1964
  %2850 = vmatpush.bf16.msra.mxu0 %v1963
  %2851 = vmatmul.bf16.gmra.mxu0 %v795
  %v2852 = vpop.f32.mrf.mxu0
  %v2853 = vadd.f32 %v2825, %v2852
  %v2854 = vpop.f32.mrf.mxu0
  %v2855 = vadd.f32 %v2827, %v2854
  %2856 = vmatmul.bf16.gmra.mxu0 %v820
  %v2857 = vpop.f32.mrf.mxu0
  %v2858 = vadd.f32 %v2830, %v2857
  %v2859 = vpop.f32.mrf.mxu0
  %v2860 = vadd.f32 %v2832, %v2859
  %2861 = vmatmul.bf16.gmra.mxu0 %v845
  %v2862 = vpop.f32.mrf.mxu0
  %v2863 = vadd.f32 %v2835, %v2862
  %v2864 = vpop.f32.mrf.mxu0
  %v2865 = vadd.f32 %v2837, %v2864
  %2866 = vmatmul.bf16.gmra.mxu0 %v870
  %v2867 = vpop.f32.mrf.mxu0
  %v2868 = vadd.f32 %v2840, %v2867
  %v2869 = vpop.f32.mrf.mxu0
  %2870 = vdwg.mxu0
  %s2871 = scalar_lea.vmem %s0, 700
  %v2872 = vld [vmem:[%s2871] sm:$0xff]
  %v2873 = vld [vmem:[%s2871 + $0x8] sm:$0xff]
  %v2874 = vld [vmem:[%s2871 + $0x10] sm:$0xff]
  %v2875 = vld [vmem:[%s2871 + $0x18] sm:$0xff]
  %v2876 = vld [vmem:[%s2871 + $0x20] sm:$0xff]
  %v2877 = vld [vmem:[%s2871 + $0x28] sm:$0xff]
  %v2878 = vld [vmem:[%s2871 + $0x30] sm:$0xff]
  %v2879 = vld [vmem:[%s2871 + $0x38] sm:$0xff]
  %v2880 = vld [vmem:[%s2871 + $0x40] sm:$0xff]
  %v2881 = vld [vmem:[%s2871 + $0x48] sm:$0xff]
  %v2882 = vld [vmem:[%s2871 + $0x50] sm:$0xff]
  %v2883 = vld [vmem:[%s2871 + $0x58] sm:$0xff]
  %v2884 = vld [vmem:[%s2871 + $0x60] sm:$0xf]
  %v2885 = vld [vmem:[%s2871 + $0x64] sm:$0xff]
  %v2886 = vld [vmem:[%s2871 + $0x6c] sm:$0xff]
  %v2887 = vld [vmem:[%s2871 + $0x74] sm:$0xff]
  %v2888 = vld [vmem:[%s2871 + $0x7c] sm:$0xff]
  %v2889 = vld [vmem:[%s2871 + $0x84] sm:$0xff]
  %v2890 = vld [vmem:[%s2871 + $0x8c] sm:$0xff]
  %v2891 = vld [vmem:[%s2871 + $0x94] sm:$0xff]
  %v2892 = vld [vmem:[%s2871 + $0x9c] sm:$0xff]
  %v2893 = vld [vmem:[%s2871 + $0xa4] sm:$0xff]
  %v2894 = vld [vmem:[%s2871 + $0xac] sm:$0xff]
  %v2895 = vld [vmem:[%s2871 + $0xb4] sm:$0xff]
  %v2896 = vld [vmem:[%s2871 + $0xbc] sm:$0xff]
  %v2897 = vld [vmem:[%s2871 + $0xc4] sm:$0xf]
  %v2898 = vld [vmem:[%s2871 + $0xc8] sm:$0xff]
  %v2899 = vld [vmem:[%s2871 + $0xd0] sm:$0xff]
  %v2900 = vld [vmem:[%s2871 + $0xd8] sm:$0xff]
  %v2901 = vld [vmem:[%s2871 + $0xe0] sm:$0xff]
  %v2902 = vld [vmem:[%s2871 + $0xe8] sm:$0xff]
  %v2903 = vld [vmem:[%s2871 + $0xf0] sm:$0xff]
  %v2904 = vld [vmem:[%s2871 + $0xf8] sm:$0xff]
  %v2905 = vld [vmem:[%s2871 + $0x100] sm:$0xff]
  %v2906 = vld [vmem:[%s2871 + $0x108] sm:$0xff]
  %v2907 = vld [vmem:[%s2871 + $0x110] sm:$0xff]
  %v2908 = vld [vmem:[%s2871 + $0x118] sm:$0xff]
  %v2909 = vld [vmem:[%s2871 + $0x120] sm:$0xff]
  %v2910 = vld [vmem:[%s2871 + $0x128] sm:$0xf]
  %v2911 = vld [vmem:[%s2871 + $0x12c] sm:$0xff]
  %v2912 = vld [vmem:[%s2871 + $0x134] sm:$0xff]
  %v2913 = vld [vmem:[%s2871 + $0x13c] sm:$0xff]
  %v2914 = vld [vmem:[%s2871 + $0x144] sm:$0xff]
  %v2915 = vld [vmem:[%s2871 + $0x14c] sm:$0xff]
  %v2916 = vld [vmem:[%s2871 + $0x154] sm:$0xff]
  %v2917 = vld [vmem:[%s2871 + $0x15c] sm:$0xff]
  %v2918 = vld [vmem:[%s2871 + $0x164] sm:$0xff]
  %v2919 = vld [vmem:[%s2871 + $0x16c] sm:$0xff]
  %v2920 = vld [vmem:[%s2871 + $0x174] sm:$0xff]
  %v2921 = vld [vmem:[%s2871 + $0x17c] sm:$0xff]
  %v2922 = vld [vmem:[%s2871 + $0x184] sm:$0xff]
  %v2923 = vld [vmem:[%s2871 + $0x18c] sm:$0xf]
  %v2924 = vld [vmem:[%s2871 + $0x190] sm:$0xff]
  %v2925 = vld [vmem:[%s2871 + $0x198] sm:$0xff]
  %v2926 = vld [vmem:[%s2871 + $0x1a0] sm:$0xff]
  %v2927 = vld [vmem:[%s2871 + $0x1a8] sm:$0xff]
  %v2928 = vld [vmem:[%s2871 + $0x1b0] sm:$0xff]
  %v2929 = vld [vmem:[%s2871 + $0x1b8] sm:$0xff]
  %v2930 = vld [vmem:[%s2871 + $0x1c0] sm:$0xff]
  %v2931 = vld [vmem:[%s2871 + $0x1c8] sm:$0xff]
  %v2932 = vld [vmem:[%s2871 + $0x1d0] sm:$0xff]
  %v2933 = vld [vmem:[%s2871 + $0x1d8] sm:$0xff]
  %v2934 = vld [vmem:[%s2871 + $0x1e0] sm:$0xff]
  %v2935 = vld [vmem:[%s2871 + $0x1e8] sm:$0xff]
  %v2936 = vld [vmem:[%s2871 + $0x1f0] sm:$0xf]
  %v2937 = vld [vmem:[%s2871 + $0x1f4] sm:$0xff]
  %v2938 = vld [vmem:[%s2871 + $0x1fc] sm:$0xff]
  %v2939 = vld [vmem:[%s2871 + $0x204] sm:$0xff]
  %v2940 = vld [vmem:[%s2871 + $0x20c] sm:$0xff]
  %v2941 = vld [vmem:[%s2871 + $0x214] sm:$0xff]
  %v2942 = vld [vmem:[%s2871 + $0x21c] sm:$0xff]
  %v2943 = vld [vmem:[%s2871 + $0x224] sm:$0xff]
  %v2944 = vld [vmem:[%s2871 + $0x22c] sm:$0xff]
  %v2945 = vld [vmem:[%s2871 + $0x234] sm:$0xff]
  %v2946 = vld [vmem:[%s2871 + $0x23c] sm:$0xff]
  %v2947 = vld [vmem:[%s2871 + $0x244] sm:$0xff]
  %v2948 = vld [vmem:[%s2871 + $0x24c] sm:$0xff]
  %v2949 = vld [vmem:[%s2871 + $0x254] sm:$0xf]
  %v2950 = vld [vmem:[%s2871 + $0x258] sm:$0xff]
  %v2951 = vld [vmem:[%s2871 + $0x260] sm:$0xff]
  %v2952 = vld [vmem:[%s2871 + $0x268] sm:$0xff]
  %v2953 = vld [vmem:[%s2871 + $0x270] sm:$0xff]
  %v2954 = vld [vmem:[%s2871 + $0x278] sm:$0xff]
  %v2955 = vld [vmem:[%s2871 + $0x280] sm:$0xff]
  %v2956 = vld [vmem:[%s2871 + $0x288] sm:$0xff]
  %v2957 = vld [vmem:[%s2871 + $0x290] sm:$0xff]
  %v2958 = vld [vmem:[%s2871 + $0x298] sm:$0xff]
  %v2959 = vld [vmem:[%s2871 + $0x2a0] sm:$0xff]
  %v2960 = vld [vmem:[%s2871 + $0x2a8] sm:$0xff]
  %v2961 = vld [vmem:[%s2871 + $0x2b0] sm:$0xff]
  %v2962 = vld [vmem:[%s2871 + $0x2b8] sm:$0xf]
  %v3054 = vunpack.c.l.b16 %v2872
  %v3055 = vunpack.c.h.b16 %v2872
  %v3056 = vunpack.c.l.b16 %v2873
  %v3057 = vunpack.c.h.b16 %v2873
  %v3058 = vunpack.c.l.b16 %v2874
  %v3059 = vunpack.c.h.b16 %v2874
  %v3060 = vunpack.c.l.b16 %v2875
  %v3061 = vunpack.c.h.b16 %v2875
  %v3062 = vunpack.c.l.b16 %v2876
  %v3063 = vunpack.c.h.b16 %v2876
  %v3064 = vunpack.c.l.b16 %v2877
  %v3065 = vunpack.c.h.b16 %v2877
  %v3066 = vunpack.c.l.b16 %v2878
  %v3067 = vunpack.c.h.b16 %v2878
  %v3068 = vunpack.c.l.b16 %v2879
  %v3069 = vunpack.c.h.b16 %v2879
  %v3070 = vunpack.c.l.b16 %v2880
  %v3071 = vunpack.c.h.b16 %v2880
  %v3072 = vunpack.c.l.b16 %v2881
  %v3073 = vunpack.c.h.b16 %v2881
  %v3074 = vunpack.c.l.b16 %v2882
  %v3075 = vunpack.c.h.b16 %v2882
  %v3076 = vunpack.c.l.b16 %v2883
  %v3077 = vunpack.c.h.b16 %v2883
  %v3078 = vunpack.c.l.b16 %v2884
  %v3079 = vunpack.c.l.b16 %v2885
  %v3080 = vunpack.c.h.b16 %v2885
  %v3081 = vunpack.c.l.b16 %v2886
  %v3082 = vunpack.c.h.b16 %v2886
  %v3083 = vunpack.c.l.b16 %v2887
  %v3084 = vunpack.c.h.b16 %v2887
  %v3085 = vunpack.c.l.b16 %v2888
  %v3086 = vunpack.c.h.b16 %v2888
  %v3087 = vunpack.c.l.b16 %v2889
  %v3088 = vunpack.c.h.b16 %v2889
  %v3089 = vunpack.c.l.b16 %v2890
  %v3090 = vunpack.c.h.b16 %v2890
  %v3091 = vunpack.c.l.b16 %v2891
  %v3092 = vunpack.c.h.b16 %v2891
  %v3093 = vunpack.c.l.b16 %v2892
  %v3094 = vunpack.c.h.b16 %v2892
  %v3095 = vunpack.c.l.b16 %v2893
  %v3096 = vunpack.c.h.b16 %v2893
  %v3097 = vunpack.c.l.b16 %v2894
  %v3098 = vunpack.c.h.b16 %v2894
  %v3099 = vunpack.c.l.b16 %v2895
  %v3100 = vunpack.c.h.b16 %v2895
  %v3101 = vunpack.c.l.b16 %v2896
  %v3102 = vunpack.c.h.b16 %v2896
  %v3103 = vunpack.c.l.b16 %v2897
  %v3104 = vunpack.c.l.b16 %v2898
  %v3105 = vunpack.c.h.b16 %v2898
  %v3106 = vunpack.c.l.b16 %v2899
  %v3107 = vunpack.c.h.b16 %v2899
  %v3108 = vunpack.c.l.b16 %v2900
  %v3109 = vunpack.c.h.b16 %v2900
  %v3110 = vunpack.c.l.b16 %v2901
  %v3111 = vunpack.c.h.b16 %v2901
  %v3112 = vunpack.c.l.b16 %v2902
  %v3113 = vunpack.c.h.b16 %v2902
  %v3114 = vunpack.c.l.b16 %v2903
  %v3115 = vunpack.c.h.b16 %v2903
  %v3116 = vunpack.c.l.b16 %v2904
  %v3117 = vunpack.c.h.b16 %v2904
  %v3118 = vunpack.c.l.b16 %v2905
  %v3119 = vunpack.c.h.b16 %v2905
  %v3120 = vunpack.c.l.b16 %v2906
  %v3121 = vunpack.c.h.b16 %v2906
  %v3122 = vunpack.c.l.b16 %v2907
  %v3123 = vunpack.c.h.b16 %v2907
  %v3124 = vunpack.c.l.b16 %v2908
  %v3125 = vunpack.c.h.b16 %v2908
  %v3126 = vunpack.c.l.b16 %v2909
  %v3127 = vunpack.c.h.b16 %v2909
  %v3128 = vunpack.c.l.b16 %v2910
  %v3129 = vunpack.c.l.b16 %v2911
  %v3130 = vunpack.c.h.b16 %v2911
  %v3131 = vunpack.c.l.b16 %v2912
  %v3132 = vunpack.c.h.b16 %v2912
  %v3133 = vunpack.c.l.b16 %v2913
  %v3134 = vunpack.c.h.b16 %v2913
  %v3135 = vunpack.c.l.b16 %v2914
  %v3136 = vunpack.c.h.b16 %v2914
  %v3137 = vunpack.c.l.b16 %v2915
  %v3138 = vunpack.c.h.b16 %v2915
  %v3139 = vunpack.c.l.b16 %v2916
  %v3140 = vunpack.c.h.b16 %v2916
  %v3141 = vunpack.c.l.b16 %v2917
  %v3142 = vunpack.c.h.b16 %v2917
  %v3143 = vunpack.c.l.b16 %v2918
  %v3144 = vunpack.c.h.b16 %v2918
  %v3145 = vunpack.c.l.b16 %v2919
  %v3146 = vunpack.c.h.b16 %v2919
  %v3147 = vunpack.c.l.b16 %v2920
  %v3148 = vunpack.c.h.b16 %v2920
  %v3149 = vunpack.c.l.b16 %v2921
  %v3150 = vunpack.c.h.b16 %v2921
  %v3151 = vunpack.c.l.b16 %v2922
  %v3152 = vunpack.c.h.b16 %v2922
  %v3153 = vunpack.c.l.b16 %v2923
  %v3154 = vunpack.c.l.b16 %v2924
  %v3155 = vunpack.c.h.b16 %v2924
  %v3156 = vunpack.c.l.b16 %v2925
  %v3157 = vunpack.c.h.b16 %v2925
  %v3158 = vunpack.c.l.b16 %v2926
  %v3159 = vunpack.c.h.b16 %v2926
  %v3160 = vunpack.c.l.b16 %v2927
  %v3161 = vunpack.c.h.b16 %v2927
  %v3162 = vunpack.c.l.b16 %v2928
  %v3163 = vunpack.c.h.b16 %v2928
  %v3164 = vunpack.c.l.b16 %v2929
  %v3165 = vunpack.c.h.b16 %v2929
  %v3166 = vunpack.c.l.b16 %v2930
  %v3167 = vunpack.c.h.b16 %v2930
  %v3168 = vunpack.c.l.b16 %v2931
  %v3169 = vunpack.c.h.b16 %v2931
  %v3170 = vunpack.c.l.b16 %v2932
  %v3171 = vunpack.c.h.b16 %v2932
  %v3172 = vunpack.c.l.b16 %v2933
  %v3173 = vunpack.c.h.b16 %v2933
  %v3174 = vunpack.c.l.b16 %v2934
  %v3175 = vunpack.c.h.b16 %v2934
  %v3176 = vunpack.c.l.b16 %v2935
  %v3177 = vunpack.c.h.b16 %v2935
  %v3178 = vunpack.c.l.b16 %v2936
  %v3179 = vunpack.c.l.b16 %v2937
  %v3180 = vunpack.c.h.b16 %v2937
  %v3181 = vunpack.c.l.b16 %v2938
  %v3182 = vunpack.c.h.b16 %v2938
  %v3183 = vunpack.c.l.b16 %v2939
  %v3184 = vunpack.c.h.b16 %v2939
  %v3185 = vunpack.c.l.b16 %v2940
  %v3186 = vunpack.c.h.b16 %v2940
  %v3187 = vunpack.c.l.b16 %v2941
  %v3188 = vunpack.c.h.b16 %v2941
  %v3189 = vunpack.c.l.b16 %v2942
  %v3190 = vunpack.c.h.b16 %v2942
  %v3191 = vunpack.c.l.b16 %v2943
  %v3192 = vunpack.c.h.b16 %v2943
  %v3193 = vunpack.c.l.b16 %v2944
  %v3194 = vunpack.c.h.b16 %v2944
  %v3195 = vunpack.c.l.b16 %v2945
  %v3196 = vunpack.c.h.b16 %v2945
  %v3197 = vunpack.c.l.b16 %v2946
  %v3198 = vunpack.c.h.b16 %v2946
  %v3199 = vunpack.c.l.b16 %v2947
  %v3200 = vunpack.c.h.b16 %v2947
  %v3201 = vunpack.c.l.b16 %v2948
  %v3202 = vunpack.c.h.b16 %v2948
  %v3203 = vunpack.c.l.b16 %v2949
  %v3204 = vunpack.c.l.b16 %v2950
  %v3205 = vunpack.c.h.b16 %v2950
  %v3206 = vunpack.c.l.b16 %v2951
  %v3207 = vunpack.c.h.b16 %v2951
  %v3208 = vunpack.c.l.b16 %v2952
  %v3209 = vunpack.c.h.b16 %v2952
  %v3210 = vunpack.c.l.b16 %v2953
  %v3211 = vunpack.c.h.b16 %v2953
  %v3212 = vunpack.c.l.b16 %v2954
  %v3213 = vunpack.c.h.b16 %v2954
  %v3214 = vunpack.c.l.b16 %v2955
  %v3215 = vunpack.c.h.b16 %v2955
  %v3216 = vunpack.c.l.b16 %v2956
  %v3217 = vunpack.c.h.b16 %v2956
  %v3218 = vunpack.c.l.b16 %v2957
  %v3219 = vunpack.c.h.b16 %v2957
  %v3220 = vunpack.c.l.b16 %v2958
  %v3221 = vunpack.c.h.b16 %v2958
  %v3222 = vunpack.c.l.b16 %v2959
  %v3223 = vunpack.c.h.b16 %v2959
  %v3224 = vunpack.c.l.b16 %v2960
  %v3225 = vunpack.c.h.b16 %v2960
  %v3226 = vunpack.c.l.b16 %v2961
  %v3227 = vunpack.c.h.b16 %v2961
  %v3228 = vunpack.c.l.b16 %v2962
  %v3229 = vpack.c.b16 %v3079, %v3054
  %v3230 = vpack.c.b16 %v3080, %v3055
  %v3231 = vpack.c.b16 %v3081, %v3056
  %v3232 = vpack.c.b16 %v3082, %v3057
  %v3233 = vpack.c.b16 %v3083, %v3058
  %v3234 = vpack.c.b16 %v3084, %v3059
  %v3235 = vpack.c.b16 %v3085, %v3060
  %v3236 = vpack.c.b16 %v3086, %v3061
  %v3237 = vpack.c.b16 %v3087, %v3062
  %v3238 = vpack.c.b16 %v3088, %v3063
  %v3239 = vpack.c.b16 %v3089, %v3064
  %v3240 = vpack.c.b16 %v3090, %v3065
  %v3241 = vpack.c.b16 %v3091, %v3066
  %v3242 = vpack.c.b16 %v3092, %v3067
  %v3243 = vpack.c.b16 %v3093, %v3068
  %v3244 = vpack.c.b16 %v3094, %v3069
  %v3245 = vpack.c.b16 %v3095, %v3070
  %v3246 = vpack.c.b16 %v3096, %v3071
  %v3247 = vpack.c.b16 %v3097, %v3072
  %v3248 = vpack.c.b16 %v3098, %v3073
  %v3249 = vpack.c.b16 %v3099, %v3074
  %v3250 = vpack.c.b16 %v3100, %v3075
  %v3251 = vpack.c.b16 %v3101, %v3076
  %v3252 = vpack.c.b16 %v3102, %v3077
  %v3253 = vpack.c.b16 %v3103, %v3078
  %v3254 = vpack.c.b16 %v3129, %v3104
  %v3255 = vpack.c.b16 %v3130, %v3105
  %v3256 = vpack.c.b16 %v3131, %v3106
  %v3257 = vpack.c.b16 %v3132, %v3107
  %v3258 = vpack.c.b16 %v3133, %v3108
  %v3259 = vpack.c.b16 %v3134, %v3109
  %v3260 = vpack.c.b16 %v3135, %v3110
  %v3261 = vpack.c.b16 %v3136, %v3111
  %v3262 = vpack.c.b16 %v3137, %v3112
  %v3263 = vpack.c.b16 %v3138, %v3113
  %v3264 = vpack.c.b16 %v3139, %v3114
  %v3265 = vpack.c.b16 %v3140, %v3115
  %v3266 = vpack.c.b16 %v3141, %v3116
  %v3267 = vpack.c.b16 %v3142, %v3117
  %v3268 = vpack.c.b16 %v3143, %v3118
  %v3269 = vpack.c.b16 %v3144, %v3119
  %v3270 = vpack.c.b16 %v3145, %v3120
  %v3271 = vpack.c.b16 %v3146, %v3121
  %v3272 = vpack.c.b16 %v3147, %v3122
  %v3273 = vpack.c.b16 %v3148, %v3123
  %v3274 = vpack.c.b16 %v3149, %v3124
  %v3275 = vpack.c.b16 %v3150, %v3125
  %v3276 = vpack.c.b16 %v3151, %v3126
  %v3277 = vpack.c.b16 %v3152, %v3127
  %v3278 = vpack.c.b16 %v3153, %v3128
  %v3279 = vpack.c.b16 %v3179, %v3154
  %v3280 = vpack.c.b16 %v3180, %v3155
  %v3281 = vpack.c.b16 %v3181, %v3156
  %v3282 = vpack.c.b16 %v3182, %v3157
  %v3283 = vpack.c.b16 %v3183, %v3158
  %v3284 = vpack.c.b16 %v3184, %v3159
  %v3285 = vpack.c.b16 %v3185, %v3160
  %v3286 = vpack.c.b16 %v3186, %v3161
  %v3287 = vpack.c.b16 %v3187, %v3162
  %v3288 = vpack.c.b16 %v3188, %v3163
  %v3289 = vpack.c.b16 %v3189, %v3164
  %v3290 = vpack.c.b16 %v3190, %v3165
  %v3291 = vpack.c.b16 %v3191, %v3166
  %v3292 = vpack.c.b16 %v3192, %v3167
  %v3293 = vpack.c.b16 %v3193, %v3168
  %v3294 = vpack.c.b16 %v3194, %v3169
  %v3295 = vpack.c.b16 %v3195, %v3170
  %v3296 = vpack.c.b16 %v3196, %v3171
  %v3297 = vpack.c.b16 %v3197, %v3172
  %v3298 = vpack.c.b16 %v3198, %v3173
  %v3299 = vpack.c.b16 %v3199, %v3174
  %v3300 = vpack.c.b16 %v3200, %v3175
  %v3301 = vpack.c.b16 %v3201, %v3176
  %v3302 = vpack.c.b16 %v3202, %v3177
  %v3303 = vpack.c.b16 %v3203, %v3178
  %v3304 = vpack.c.b16 %v3204, %v3204
  %v3305 = vpack.c.b16 %v3205, %v3205
  %v3306 = vpack.c.b16 %v3206, %v3206
  %v3307 = vpack.c.b16 %v3207, %v3207
  %v3308 = vpack.c.b16 %v3208, %v3208
  %v3309 = vpack.c.b16 %v3209, %v3209
  %v3310 = vpack.c.b16 %v3210, %v3210
  %v3311 = vpack.c.b16 %v3211, %v3211
  %v3312 = vpack.c.b16 %v3212, %v3212
  %v3313 = vpack.c.b16 %v3213, %v3213
  %v3314 = vpack.c.b16 %v3214, %v3214
  %v3315 = vpack.c.b16 %v3215, %v3215
  %v3316 = vpack.c.b16 %v3216, %v3216
  %v3317 = vpack.c.b16 %v3217, %v3217
  %v3318 = vpack.c.b16 %v3218, %v3218
  %v3319 = vpack.c.b16 %v3219, %v3219
  %v3320 = vpack.c.b16 %v3220, %v3220
  %v3321 = vpack.c.b16 %v3221, %v3221
  %v3322 = vpack.c.b16 %v3222, %v3222
  %v3323 = vpack.c.b16 %v3223, %v3223
  %v3324 = vpack.c.b16 %v3224, %v3224
  %v3325 = vpack.c.b16 %v3225, %v3225
  %v3326 = vpack.c.b16 %v3226, %v3226
  %v3327 = vpack.c.b16 %v3227, %v3227
  %v3328 = vpack.c.b16 %v3228, %v3228
  %3429 = vmatpush.bf16.msra.mxu0 %v1778
  %3430 = vmatpush.bf16.msra.mxu0 %v1777
  %3431 = vmatpush.bf16.msra.mxu0 %v1776
  %3432 = vmatpush.bf16.msra.mxu0 %v1775
  %3433 = vmatpush.bf16.msra.mxu0 %v1774
  %3434 = vmatpush.bf16.msra.mxu0 %v1773
  %3435 = vmatpush.bf16.msra.mxu0 %v1772
  %3436 = vmatpush.bf16.msra.mxu0 %v1771
  %3437 = vmatmul.bf16.gmra.mxu0 %v3229
  %v3438 = vpop.f32.mrf.mxu0
  %v3439 = vadd.f32 0.0, %v3438
  %v3440 = vpop.f32.mrf.mxu0
  %v3441 = vadd.f32 0.0, %v3440
  %3442 = vmatmul.bf16.gmra.mxu0 %v3254
  %v3443 = vpop.f32.mrf.mxu0
  %v3444 = vadd.f32 0.0, %v3443
  %v3445 = vpop.f32.mrf.mxu0
  %v3446 = vadd.f32 0.0, %v3445
  %3447 = vmatmul.bf16.gmra.mxu0 %v3279
  %v3448 = vpop.f32.mrf.mxu0
  %v3449 = vadd.f32 0.0, %v3448
  %v3450 = vpop.f32.mrf.mxu0
  %v3451 = vadd.f32 0.0, %v3450
  %3452 = vmatmul.bf16.gmra.mxu0 %v3304
  %v3453 = vpop.f32.mrf.mxu0
  %v3454 = vadd.f32 0.0, %v3453
  %v3455 = vpop.f32.mrf.mxu0
  %3456 = vdwg.mxu0
  %3457 = vmatpush.bf16.msra.mxu0 %v1786
  %3458 = vmatpush.bf16.msra.mxu0 %v1785
  %3459 = vmatpush.bf16.msra.mxu0 %v1784
  %3460 = vmatpush.bf16.msra.mxu0 %v1783
  %3461 = vmatpush.bf16.msra.mxu0 %v1782
  %3462 = vmatpush.bf16.msra.mxu0 %v1781
  %3463 = vmatpush.bf16.msra.mxu0 %v1780
  %3464 = vmatpush.bf16.msra.mxu0 %v1779
  %3465 = vmatmul.bf16.gmra.mxu0 %v3230
  %v3466 = vpop.f32.mrf.mxu0
  %v3467 = vadd.f32 %v3439, %v3466
  %v3468 = vpop.f32.mrf.mxu0
  %v3469 = vadd.f32 %v3441, %v3468
  %3470 = vmatmul.bf16.gmra.mxu0 %v3255
  %v3471 = vpop.f32.mrf.mxu0
  %v3472 = vadd.f32 %v3444, %v3471
  %v3473 = vpop.f32.mrf.mxu0
  %v3474 = vadd.f32 %v3446, %v3473
  %3475 = vmatmul.bf16.gmra.mxu0 %v3280
  %v3476 = vpop.f32.mrf.mxu0
  %v3477 = vadd.f32 %v3449, %v3476
  %v3478 = vpop.f32.mrf.mxu0
  %v3479 = vadd.f32 %v3451, %v3478
  %3480 = vmatmul.bf16.gmra.mxu0 %v3305
  %v3481 = vpop.f32.mrf.mxu0
  %v3482 = vadd.f32 %v3454, %v3481
  %v3483 = vpop.f32.mrf.mxu0
  %3484 = vdwg.mxu0
  %3485 = vmatpush.bf16.msra.mxu0 %v1794
  %3486 = vmatpush.bf16.msra.mxu0 %v1793
  %3487 = vmatpush.bf16.msra.mxu0 %v1792
  %3488 = vmatpush.bf16.msra.mxu0 %v1791
  %3489 = vmatpush.bf16.msra.mxu0 %v1790
  %3490 = vmatpush.bf16.msra.mxu0 %v1789
  %3491 = vmatpush.bf16.msra.mxu0 %v1788
  %3492 = vmatpush.bf16.msra.mxu0 %v1787
  %3493 = vmatmul.bf16.gmra.mxu0 %v3231
  %v3494 = vpop.f32.mrf.mxu0
  %v3495 = vadd.f32 %v3467, %v3494
  %v3496 = vpop.f32.mrf.mxu0
  %v3497 = vadd.f32 %v3469, %v3496
  %3498 = vmatmul.bf16.gmra.mxu0 %v3256
  %v3499 = vpop.f32.mrf.mxu0
  %v3500 = vadd.f32 %v3472, %v3499
  %v3501 = vpop.f32.mrf.mxu0
  %v3502 = vadd.f32 %v3474, %v3501
  %3503 = vmatmul.bf16.gmra.mxu0 %v3281
  %v3504 = vpop.f32.mrf.mxu0
  %v3505 = vadd.f32 %v3477, %v3504
  %v3506 = vpop.f32.mrf.mxu0
  %v3507 = vadd.f32 %v3479, %v3506
  %3508 = vmatmul.bf16.gmra.mxu0 %v3306
  %v3509 = vpop.f32.mrf.mxu0
  %v3510 = vadd.f32 %v3482, %v3509
  %v3511 = vpop.f32.mrf.mxu0
  %3512 = vdwg.mxu0
  %3513 = vmatpush.bf16.msra.mxu0 %v1802
  %3514 = vmatpush.bf16.msra.mxu0 %v1801
  %3515 = vmatpush.bf16.msra.mxu0 %v1800
  %3516 = vmatpush.bf16.msra.mxu0 %v1799
  %3517 = vmatpush.bf16.msra.mxu0 %v1798
  %3518 = vmatpush.bf16.msra.mxu0 %v1797
  %3519 = vmatpush.bf16.msra.mxu0 %v1796
  %3520 = vmatpush.bf16.msra.mxu0 %v1795
  %3521 = vmatmul.bf16.gmra.mxu0 %v3232
  %v3522 = vpop.f32.mrf.mxu0
  %v3523 = vadd.f32 %v3495, %v3522
  %v3524 = vpop.f32.mrf.mxu0
  %v3525 = vadd.f32 %v3497, %v3524
  %3526 = vmatmul.bf16.gmra.mxu0 %v3257
  %v3527 = vpop.f32.mrf.mxu0
  %v3528 = vadd.f32 %v3500, %v3527
  %v3529 = vpop.f32.mrf.mxu0
  %v3530 = vadd.f32 %v3502, %v3529
  %3531 = vmatmul.bf16.gmra.mxu0 %v3282
  %v3532 = vpop.f32.mrf.mxu0
  %v3533 = vadd.f32 %v3505, %v3532
  %v3534 = vpop.f32.mrf.mxu0
  %v3535 = vadd.f32 %v3507, %v3534
  %3536 = vmatmul.bf16.gmra.mxu0 %v3307
  %v3537 = vpop.f32.mrf.mxu0
  %v3538 = vadd.f32 %v3510, %v3537
  %v3539 = vpop.f32.mrf.mxu0
  %3540 = vdwg.mxu0
  %3541 = vmatpush.bf16.msra.mxu0 %v1810
  %3542 = vmatpush.bf16.msra.mxu0 %v1809
  %3543 = vmatpush.bf16.msra.mxu0 %v1808
  %3544 = vmatpush.bf16.msra.mxu0 %v1807
  %3545 = vmatpush.bf16.msra.mxu0 %v1806
  %3546 = vmatpush.bf16.msra.mxu0 %v1805
  %3547 = vmatpush.bf16.msra.mxu0 %v1804
  %3548 = vmatpush.bf16.msra.mxu0 %v1803
  %3549 = vmatmul.bf16.gmra.mxu0 %v3233
  %v3550 = vpop.f32.mrf.mxu0
  %v3551 = vadd.f32 %v3523, %v3550
  %v3552 = vpop.f32.mrf.mxu0
  %v3553 = vadd.f32 %v3525, %v3552
  %3554 = vmatmul.bf16.gmra.mxu0 %v3258
  %v3555 = vpop.f32.mrf.mxu0
  %v3556 = vadd.f32 %v3528, %v3555
  %v3557 = vpop.f32.mrf.mxu0
  %v3558 = vadd.f32 %v3530, %v3557
  %3559 = vmatmul.bf16.gmra.mxu0 %v3283
  %v3560 = vpop.f32.mrf.mxu0
  %v3561 = vadd.f32 %v3533, %v3560
  %v3562 = vpop.f32.mrf.mxu0
  %v3563 = vadd.f32 %v3535, %v3562
  %3564 = vmatmul.bf16.gmra.mxu0 %v3308
  %v3565 = vpop.f32.mrf.mxu0
  %v3566 = vadd.f32 %v3538, %v3565
  %v3567 = vpop.f32.mrf.mxu0
  %3568 = vdwg.mxu0
  %3569 = vmatpush.bf16.msra.mxu0 %v1818
  %3570 = vmatpush.bf16.msra.mxu0 %v1817
  %3571 = vmatpush.bf16.msra.mxu0 %v1816
  %3572 = vmatpush.bf16.msra.mxu0 %v1815
  %3573 = vmatpush.bf16.msra.mxu0 %v1814
  %3574 = vmatpush.bf16.msra.mxu0 %v1813
  %3575 = vmatpush.bf16.msra.mxu0 %v1812
  %3576 = vmatpush.bf16.msra.mxu0 %v1811
  %3577 = vmatmul.bf16.gmra.mxu0 %v3234
  %v3578 = vpop.f32.mrf.mxu0
  %v3579 = vadd.f32 %v3551, %v3578
  %v3580 = vpop.f32.mrf.mxu0
  %v3581 = vadd.f32 %v3553, %v3580
  %3582 = vmatmul.bf16.gmra.mxu0 %v3259
  %v3583 = vpop.f32.mrf.mxu0
  %v3584 = vadd.f32 %v3556, %v3583
  %v3585 = vpop.f32.mrf.mxu0
  %v3586 = vadd.f32 %v3558, %v3585
  %3587 = vmatmul.bf16.gmra.mxu0 %v3284
  %v3588 = vpop.f32.mrf.mxu0
  %v3589 = vadd.f32 %v3561, %v3588
  %v3590 = vpop.f32.mrf.mxu0
  %v3591 = vadd.f32 %v3563, %v3590
  %3592 = vmatmul.bf16.gmra.mxu0 %v3309
  %v3593 = vpop.f32.mrf.mxu0
  %v3594 = vadd.f32 %v3566, %v3593
  %v3595 = vpop.f32.mrf.mxu0
  %3596 = vdwg.mxu0
  %3597 = vmatpush.bf16.msra.mxu0 %v1826
  %3598 = vmatpush.bf16.msra.mxu0 %v1825
  %3599 = vmatpush.bf16.msra.mxu0 %v1824
  %3600 = vmatpush.bf16.msra.mxu0 %v1823
  %3601 = vmatpush.bf16.msra.mxu0 %v1822
  %3602 = vmatpush.bf16.msra.mxu0 %v1821
  %3603 = vmatpush.bf16.msra.mxu0 %v1820
  %3604 = vmatpush.bf16.msra.mxu0 %v1819
  %3605 = vmatmul.bf16.gmra.mxu0 %v3235
  %v3606 = vpop.f32.mrf.mxu0
  %v3607 = vadd.f32 %v3579, %v3606
  %v3608 = vpop.f32.mrf.mxu0
  %v3609 = vadd.f32 %v3581, %v3608
  %3610 = vmatmul.bf16.gmra.mxu0 %v3260
  %v3611 = vpop.f32.mrf.mxu0
  %v3612 = vadd.f32 %v3584, %v3611
  %v3613 = vpop.f32.mrf.mxu0
  %v3614 = vadd.f32 %v3586, %v3613
  %3615 = vmatmul.bf16.gmra.mxu0 %v3285
  %v3616 = vpop.f32.mrf.mxu0
  %v3617 = vadd.f32 %v3589, %v3616
  %v3618 = vpop.f32.mrf.mxu0
  %v3619 = vadd.f32 %v3591, %v3618
  %3620 = vmatmul.bf16.gmra.mxu0 %v3310
  %v3621 = vpop.f32.mrf.mxu0
  %v3622 = vadd.f32 %v3594, %v3621
  %v3623 = vpop.f32.mrf.mxu0
  %3624 = vdwg.mxu0
  %3625 = vmatpush.bf16.msra.mxu0 %v1834
  %3626 = vmatpush.bf16.msra.mxu0 %v1833
  %3627 = vmatpush.bf16.msra.mxu0 %v1832
  %3628 = vmatpush.bf16.msra.mxu0 %v1831
  %3629 = vmatpush.bf16.msra.mxu0 %v1830
  %3630 = vmatpush.bf16.msra.mxu0 %v1829
  %3631 = vmatpush.bf16.msra.mxu0 %v1828
  %3632 = vmatpush.bf16.msra.mxu0 %v1827
  %3633 = vmatmul.bf16.gmra.mxu0 %v3236
  %v3634 = vpop.f32.mrf.mxu0
  %v3635 = vadd.f32 %v3607, %v3634
  %v3636 = vpop.f32.mrf.mxu0
  %v3637 = vadd.f32 %v3609, %v3636
  %3638 = vmatmul.bf16.gmra.mxu0 %v3261
  %v3639 = vpop.f32.mrf.mxu0
  %v3640 = vadd.f32 %v3612, %v3639
  %v3641 = vpop.f32.mrf.mxu0
  %v3642 = vadd.f32 %v3614, %v3641
  %3643 = vmatmul.bf16.gmra.mxu0 %v3286
  %v3644 = vpop.f32.mrf.mxu0
  %v3645 = vadd.f32 %v3617, %v3644
  %v3646 = vpop.f32.mrf.mxu0
  %v3647 = vadd.f32 %v3619, %v3646
  %3648 = vmatmul.bf16.gmra.mxu0 %v3311
  %v3649 = vpop.f32.mrf.mxu0
  %v3650 = vadd.f32 %v3622, %v3649
  %v3651 = vpop.f32.mrf.mxu0
  %3652 = vdwg.mxu0
  %3653 = vmatpush.bf16.msra.mxu0 %v1842
  %3654 = vmatpush.bf16.msra.mxu0 %v1841
  %3655 = vmatpush.bf16.msra.mxu0 %v1840
  %3656 = vmatpush.bf16.msra.mxu0 %v1839
  %3657 = vmatpush.bf16.msra.mxu0 %v1838
  %3658 = vmatpush.bf16.msra.mxu0 %v1837
  %3659 = vmatpush.bf16.msra.mxu0 %v1836
  %3660 = vmatpush.bf16.msra.mxu0 %v1835
  %3661 = vmatmul.bf16.gmra.mxu0 %v3237
  %v3662 = vpop.f32.mrf.mxu0
  %v3663 = vadd.f32 %v3635, %v3662
  %v3664 = vpop.f32.mrf.mxu0
  %v3665 = vadd.f32 %v3637, %v3664
  %3666 = vmatmul.bf16.gmra.mxu0 %v3262
  %v3667 = vpop.f32.mrf.mxu0
  %v3668 = vadd.f32 %v3640, %v3667
  %v3669 = vpop.f32.mrf.mxu0
  %v3670 = vadd.f32 %v3642, %v3669
  %3671 = vmatmul.bf16.gmra.mxu0 %v3287
  %v3672 = vpop.f32.mrf.mxu0
  %v3673 = vadd.f32 %v3645, %v3672
  %v3674 = vpop.f32.mrf.mxu0
  %v3675 = vadd.f32 %v3647, %v3674
  %3676 = vmatmul.bf16.gmra.mxu0 %v3312
  %v3677 = vpop.f32.mrf.mxu0
  %v3678 = vadd.f32 %v3650, %v3677
  %v3679 = vpop.f32.mrf.mxu0
  %3680 = vdwg.mxu0
  %3681 = vmatpush.bf16.msra.mxu0 %v1850
  %3682 = vmatpush.bf16.msra.mxu0 %v1849
  %3683 = vmatpush.bf16.msra.mxu0 %v1848
  %3684 = vmatpush.bf16.msra.mxu0 %v1847
  %3685 = vmatpush.bf16.msra.mxu0 %v1846
  %3686 = vmatpush.bf16.msra.mxu0 %v1845
  %3687 = vmatpush.bf16.msra.mxu0 %v1844
  %3688 = vmatpush.bf16.msra.mxu0 %v1843
  %3689 = vmatmul.bf16.gmra.mxu0 %v3238
  %v3690 = vpop.f32.mrf.mxu0
  %v3691 = vadd.f32 %v3663, %v3690
  %v3692 = vpop.f32.mrf.mxu0
  %v3693 = vadd.f32 %v3665, %v3692
  %3694 = vmatmul.bf16.gmra.mxu0 %v3263
  %v3695 = vpop.f32.mrf.mxu0
  %v3696 = vadd.f32 %v3668, %v3695
  %v3697 = vpop.f32.mrf.mxu0
  %v3698 = vadd.f32 %v3670, %v3697
  %3699 = vmatmul.bf16.gmra.mxu0 %v3288
  %v3700 = vpop.f32.mrf.mxu0
  %v3701 = vadd.f32 %v3673, %v3700
  %v3702 = vpop.f32.mrf.mxu0
  %v3703 = vadd.f32 %v3675, %v3702
  %3704 = vmatmul.bf16.gmra.mxu0 %v3313
  %v3705 = vpop.f32.mrf.mxu0
  %v3706 = vadd.f32 %v3678, %v3705
  %v3707 = vpop.f32.mrf.mxu0
  %3708 = vdwg.mxu0
  %3709 = vmatpush.bf16.msra.mxu0 %v1858
  %3710 = vmatpush.bf16.msra.mxu0 %v1857
  %3711 = vmatpush.bf16.msra.mxu0 %v1856
  %3712 = vmatpush.bf16.msra.mxu0 %v1855
  %3713 = vmatpush.bf16.msra.mxu0 %v1854
  %3714 = vmatpush.bf16.msra.mxu0 %v1853
  %3715 = vmatpush.bf16.msra.mxu0 %v1852
  %3716 = vmatpush.bf16.msra.mxu0 %v1851
  %3717 = vmatmul.bf16.gmra.mxu0 %v3239
  %v3718 = vpop.f32.mrf.mxu0
  %v3719 = vadd.f32 %v3691, %v3718
  %v3720 = vpop.f32.mrf.mxu0
  %v3721 = vadd.f32 %v3693, %v3720
  %3722 = vmatmul.bf16.gmra.mxu0 %v3264
  %v3723 = vpop.f32.mrf.mxu0
  %v3724 = vadd.f32 %v3696, %v3723
  %v3725 = vpop.f32.mrf.mxu0
  %v3726 = vadd.f32 %v3698, %v3725
  %3727 = vmatmul.bf16.gmra.mxu0 %v3289
  %v3728 = vpop.f32.mrf.mxu0
  %v3729 = vadd.f32 %v3701, %v3728
  %v3730 = vpop.f32.mrf.mxu0
  %v3731 = vadd.f32 %v3703, %v3730
  %3732 = vmatmul.bf16.gmra.mxu0 %v3314
  %v3733 = vpop.f32.mrf.mxu0
  %v3734 = vadd.f32 %v3706, %v3733
  %v3735 = vpop.f32.mrf.mxu0
  %3736 = vdwg.mxu0
  %3737 = vmatpush.bf16.msra.mxu0 %v1866
  %3738 = vmatpush.bf16.msra.mxu0 %v1865
  %3739 = vmatpush.bf16.msra.mxu0 %v1864
  %3740 = vmatpush.bf16.msra.mxu0 %v1863
  %3741 = vmatpush.bf16.msra.mxu0 %v1862
  %3742 = vmatpush.bf16.msra.mxu0 %v1861
  %3743 = vmatpush.bf16.msra.mxu0 %v1860
  %3744 = vmatpush.bf16.msra.mxu0 %v1859
  %3745 = vmatmul.bf16.gmra.mxu0 %v3240
  %v3746 = vpop.f32.mrf.mxu0
  %v3747 = vadd.f32 %v3719, %v3746
  %v3748 = vpop.f32.mrf.mxu0
  %v3749 = vadd.f32 %v3721, %v3748
  %3750 = vmatmul.bf16.gmra.mxu0 %v3265
  %v3751 = vpop.f32.mrf.mxu0
  %v3752 = vadd.f32 %v3724, %v3751
  %v3753 = vpop.f32.mrf.mxu0
  %v3754 = vadd.f32 %v3726, %v3753
  %3755 = vmatmul.bf16.gmra.mxu0 %v3290
  %v3756 = vpop.f32.mrf.mxu0
  %v3757 = vadd.f32 %v3729, %v3756
  %v3758 = vpop.f32.mrf.mxu0
  %v3759 = vadd.f32 %v3731, %v3758
  %3760 = vmatmul.bf16.gmra.mxu0 %v3315
  %v3761 = vpop.f32.mrf.mxu0
  %v3762 = vadd.f32 %v3734, %v3761
  %v3763 = vpop.f32.mrf.mxu0
  %3764 = vdwg.mxu0
  %3765 = vmatpush.bf16.msra.mxu0 %v1874
  %3766 = vmatpush.bf16.msra.mxu0 %v1873
  %3767 = vmatpush.bf16.msra.mxu0 %v1872
  %3768 = vmatpush.bf16.msra.mxu0 %v1871
  %3769 = vmatpush.bf16.msra.mxu0 %v1870
  %3770 = vmatpush.bf16.msra.mxu0 %v1869
  %3771 = vmatpush.bf16.msra.mxu0 %v1868
  %3772 = vmatpush.bf16.msra.mxu0 %v1867
  %3773 = vmatmul.bf16.gmra.mxu0 %v3241
  %v3774 = vpop.f32.mrf.mxu0
  %v3775 = vadd.f32 %v3747, %v3774
  %v3776 = vpop.f32.mrf.mxu0
  %v3777 = vadd.f32 %v3749, %v3776
  %3778 = vmatmul.bf16.gmra.mxu0 %v3266
  %v3779 = vpop.f32.mrf.mxu0
  %v3780 = vadd.f32 %v3752, %v3779
  %v3781 = vpop.f32.mrf.mxu0
  %v3782 = vadd.f32 %v3754, %v3781
  %3783 = vmatmul.bf16.gmra.mxu0 %v3291
  %v3784 = vpop.f32.mrf.mxu0
  %v3785 = vadd.f32 %v3757, %v3784
  %v3786 = vpop.f32.mrf.mxu0
  %v3787 = vadd.f32 %v3759, %v3786
  %3788 = vmatmul.bf16.gmra.mxu0 %v3316
  %v3789 = vpop.f32.mrf.mxu0
  %v3790 = vadd.f32 %v3762, %v3789
  %v3791 = vpop.f32.mrf.mxu0
  %3792 = vdwg.mxu0
  %3793 = vmatpush.bf16.msra.mxu0 %v1882
  %3794 = vmatpush.bf16.msra.mxu0 %v1881
  %3795 = vmatpush.bf16.msra.mxu0 %v1880
  %3796 = vmatpush.bf16.msra.mxu0 %v1879
  %3797 = vmatpush.bf16.msra.mxu0 %v1878
  %3798 = vmatpush.bf16.msra.mxu0 %v1877
  %3799 = vmatpush.bf16.msra.mxu0 %v1876
  %3800 = vmatpush.bf16.msra.mxu0 %v1875
  %3801 = vmatmul.bf16.gmra.mxu0 %v3242
  %v3802 = vpop.f32.mrf.mxu0
  %v3803 = vadd.f32 %v3775, %v3802
  %v3804 = vpop.f32.mrf.mxu0
  %v3805 = vadd.f32 %v3777, %v3804
  %3806 = vmatmul.bf16.gmra.mxu0 %v3267
  %v3807 = vpop.f32.mrf.mxu0
  %v3808 = vadd.f32 %v3780, %v3807
  %v3809 = vpop.f32.mrf.mxu0
  %v3810 = vadd.f32 %v3782, %v3809
  %3811 = vmatmul.bf16.gmra.mxu0 %v3292
  %v3812 = vpop.f32.mrf.mxu0
  %v3813 = vadd.f32 %v3785, %v3812
  %v3814 = vpop.f32.mrf.mxu0
  %v3815 = vadd.f32 %v3787, %v3814
  %3816 = vmatmul.bf16.gmra.mxu0 %v3317
  %v3817 = vpop.f32.mrf.mxu0
  %v3818 = vadd.f32 %v3790, %v3817
  %v3819 = vpop.f32.mrf.mxu0
  %3820 = vdwg.mxu0
  %3821 = vmatpush.bf16.msra.mxu0 %v1890
  %3822 = vmatpush.bf16.msra.mxu0 %v1889
  %3823 = vmatpush.bf16.msra.mxu0 %v1888
  %3824 = vmatpush.bf16.msra.mxu0 %v1887
  %3825 = vmatpush.bf16.msra.mxu0 %v1886
  %3826 = vmatpush.bf16.msra.mxu0 %v1885
  %3827 = vmatpush.bf16.msra.mxu0 %v1884
  %3828 = vmatpush.bf16.msra.mxu0 %v1883
  %3829 = vmatmul.bf16.gmra.mxu0 %v3243
  %v3830 = vpop.f32.mrf.mxu0
  %v3831 = vadd.f32 %v3803, %v3830
  %v3832 = vpop.f32.mrf.mxu0
  %v3833 = vadd.f32 %v3805, %v3832
  %3834 = vmatmul.bf16.gmra.mxu0 %v3268
  %v3835 = vpop.f32.mrf.mxu0
  %v3836 = vadd.f32 %v3808, %v3835
  %v3837 = vpop.f32.mrf.mxu0
  %v3838 = vadd.f32 %v3810, %v3837
  %3839 = vmatmul.bf16.gmra.mxu0 %v3293
  %v3840 = vpop.f32.mrf.mxu0
  %v3841 = vadd.f32 %v3813, %v3840
  %v3842 = vpop.f32.mrf.mxu0
  %v3843 = vadd.f32 %v3815, %v3842
  %3844 = vmatmul.bf16.gmra.mxu0 %v3318
  %v3845 = vpop.f32.mrf.mxu0
  %v3846 = vadd.f32 %v3818, %v3845
  %v3847 = vpop.f32.mrf.mxu0
  %3848 = vdwg.mxu0
  %3849 = vmatpush.bf16.msra.mxu0 %v1898
  %3850 = vmatpush.bf16.msra.mxu0 %v1897
  %3851 = vmatpush.bf16.msra.mxu0 %v1896
  %3852 = vmatpush.bf16.msra.mxu0 %v1895
  %3853 = vmatpush.bf16.msra.mxu0 %v1894
  %3854 = vmatpush.bf16.msra.mxu0 %v1893
  %3855 = vmatpush.bf16.msra.mxu0 %v1892
  %3856 = vmatpush.bf16.msra.mxu0 %v1891
  %3857 = vmatmul.bf16.gmra.mxu0 %v3244
  %v3858 = vpop.f32.mrf.mxu0
  %v3859 = vadd.f32 %v3831, %v3858
  %v3860 = vpop.f32.mrf.mxu0
  %v3861 = vadd.f32 %v3833, %v3860
  %3862 = vmatmul.bf16.gmra.mxu0 %v3269
  %v3863 = vpop.f32.mrf.mxu0
  %v3864 = vadd.f32 %v3836, %v3863
  %v3865 = vpop.f32.mrf.mxu0
  %v3866 = vadd.f32 %v3838, %v3865
  %3867 = vmatmul.bf16.gmra.mxu0 %v3294
  %v3868 = vpop.f32.mrf.mxu0
  %v3869 = vadd.f32 %v3841, %v3868
  %v3870 = vpop.f32.mrf.mxu0
  %v3871 = vadd.f32 %v3843, %v3870
  %3872 = vmatmul.bf16.gmra.mxu0 %v3319
  %v3873 = vpop.f32.mrf.mxu0
  %v3874 = vadd.f32 %v3846, %v3873
  %v3875 = vpop.f32.mrf.mxu0
  %3876 = vdwg.mxu0
  %3877 = vmatpush.bf16.msra.mxu0 %v1906
  %3878 = vmatpush.bf16.msra.mxu0 %v1905
  %3879 = vmatpush.bf16.msra.mxu0 %v1904
  %3880 = vmatpush.bf16.msra.mxu0 %v1903
  %3881 = vmatpush.bf16.msra.mxu0 %v1902
  %3882 = vmatpush.bf16.msra.mxu0 %v1901
  %3883 = vmatpush.bf16.msra.mxu0 %v1900
  %3884 = vmatpush.bf16.msra.mxu0 %v1899
  %3885 = vmatmul.bf16.gmra.mxu0 %v3245
  %v3886 = vpop.f32.mrf.mxu0
  %v3887 = vadd.f32 %v3859, %v3886
  %v3888 = vpop.f32.mrf.mxu0
  %v3889 = vadd.f32 %v3861, %v3888
  %3890 = vmatmul.bf16.gmra.mxu0 %v3270
  %v3891 = vpop.f32.mrf.mxu0
  %v3892 = vadd.f32 %v3864, %v3891
  %v3893 = vpop.f32.mrf.mxu0
  %v3894 = vadd.f32 %v3866, %v3893
  %3895 = vmatmul.bf16.gmra.mxu0 %v3295
  %v3896 = vpop.f32.mrf.mxu0
  %v3897 = vadd.f32 %v3869, %v3896
  %v3898 = vpop.f32.mrf.mxu0
  %v3899 = vadd.f32 %v3871, %v3898
  %3900 = vmatmul.bf16.gmra.mxu0 %v3320
  %v3901 = vpop.f32.mrf.mxu0
  %v3902 = vadd.f32 %v3874, %v3901
  %v3903 = vpop.f32.mrf.mxu0
  %3904 = vdwg.mxu0
  %3905 = vmatpush.bf16.msra.mxu0 %v1914
  %3906 = vmatpush.bf16.msra.mxu0 %v1913
  %3907 = vmatpush.bf16.msra.mxu0 %v1912
  %3908 = vmatpush.bf16.msra.mxu0 %v1911
  %3909 = vmatpush.bf16.msra.mxu0 %v1910
  %3910 = vmatpush.bf16.msra.mxu0 %v1909
  %3911 = vmatpush.bf16.msra.mxu0 %v1908
  %3912 = vmatpush.bf16.msra.mxu0 %v1907
  %3913 = vmatmul.bf16.gmra.mxu0 %v3246
  %v3914 = vpop.f32.mrf.mxu0
  %v3915 = vadd.f32 %v3887, %v3914
  %v3916 = vpop.f32.mrf.mxu0
  %v3917 = vadd.f32 %v3889, %v3916
  %3918 = vmatmul.bf16.gmra.mxu0 %v3271
  %v3919 = vpop.f32.mrf.mxu0
  %v3920 = vadd.f32 %v3892, %v3919
  %v3921 = vpop.f32.mrf.mxu0
  %v3922 = vadd.f32 %v3894, %v3921
  %3923 = vmatmul.bf16.gmra.mxu0 %v3296
  %v3924 = vpop.f32.mrf.mxu0
  %v3925 = vadd.f32 %v3897, %v3924
  %v3926 = vpop.f32.mrf.mxu0
  %v3927 = vadd.f32 %v3899, %v3926
  %3928 = vmatmul.bf16.gmra.mxu0 %v3321
  %v3929 = vpop.f32.mrf.mxu0
  %v3930 = vadd.f32 %v3902, %v3929
  %v3931 = vpop.f32.mrf.mxu0
  %3932 = vdwg.mxu0
  %3933 = vmatpush.bf16.msra.mxu0 %v1922
  %3934 = vmatpush.bf16.msra.mxu0 %v1921
  %3935 = vmatpush.bf16.msra.mxu0 %v1920
  %3936 = vmatpush.bf16.msra.mxu0 %v1919
  %3937 = vmatpush.bf16.msra.mxu0 %v1918
  %3938 = vmatpush.bf16.msra.mxu0 %v1917
  %3939 = vmatpush.bf16.msra.mxu0 %v1916
  %3940 = vmatpush.bf16.msra.mxu0 %v1915
  %3941 = vmatmul.bf16.gmra.mxu0 %v3247
  %v3942 = vpop.f32.mrf.mxu0
  %v3943 = vadd.f32 %v3915, %v3942
  %v3944 = vpop.f32.mrf.mxu0
  %v3945 = vadd.f32 %v3917, %v3944
  %3946 = vmatmul.bf16.gmra.mxu0 %v3272
  %v3947 = vpop.f32.mrf.mxu0
  %v3948 = vadd.f32 %v3920, %v3947
  %v3949 = vpop.f32.mrf.mxu0
  %v3950 = vadd.f32 %v3922, %v3949
  %3951 = vmatmul.bf16.gmra.mxu0 %v3297
  %v3952 = vpop.f32.mrf.mxu0
  %v3953 = vadd.f32 %v3925, %v3952
  %v3954 = vpop.f32.mrf.mxu0
  %v3955 = vadd.f32 %v3927, %v3954
  %3956 = vmatmul.bf16.gmra.mxu0 %v3322
  %v3957 = vpop.f32.mrf.mxu0
  %v3958 = vadd.f32 %v3930, %v3957
  %v3959 = vpop.f32.mrf.mxu0
  %3960 = vdwg.mxu0
  %3961 = vmatpush.bf16.msra.mxu0 %v1930
  %3962 = vmatpush.bf16.msra.mxu0 %v1929
  %3963 = vmatpush.bf16.msra.mxu0 %v1928
  %3964 = vmatpush.bf16.msra.mxu0 %v1927
  %3965 = vmatpush.bf16.msra.mxu0 %v1926
  %3966 = vmatpush.bf16.msra.mxu0 %v1925
  %3967 = vmatpush.bf16.msra.mxu0 %v1924
  %3968 = vmatpush.bf16.msra.mxu0 %v1923
  %3969 = vmatmul.bf16.gmra.mxu0 %v3248
  %v3970 = vpop.f32.mrf.mxu0
  %v3971 = vadd.f32 %v3943, %v3970
  %v3972 = vpop.f32.mrf.mxu0
  %v3973 = vadd.f32 %v3945, %v3972
  %3974 = vmatmul.bf16.gmra.mxu0 %v3273
  %v3975 = vpop.f32.mrf.mxu0
  %v3976 = vadd.f32 %v3948, %v3975
  %v3977 = vpop.f32.mrf.mxu0
  %v3978 = vadd.f32 %v3950, %v3977
  %3979 = vmatmul.bf16.gmra.mxu0 %v3298
  %v3980 = vpop.f32.mrf.mxu0
  %v3981 = vadd.f32 %v3953, %v3980
  %v3982 = vpop.f32.mrf.mxu0
  %v3983 = vadd.f32 %v3955, %v3982
  %3984 = vmatmul.bf16.gmra.mxu0 %v3323
  %v3985 = vpop.f32.mrf.mxu0
  %v3986 = vadd.f32 %v3958, %v3985
  %v3987 = vpop.f32.mrf.mxu0
  %3988 = vdwg.mxu0
  %3989 = vmatpush.bf16.msra.mxu0 %v1938
  %3990 = vmatpush.bf16.msra.mxu0 %v1937
  %3991 = vmatpush.bf16.msra.mxu0 %v1936
  %3992 = vmatpush.bf16.msra.mxu0 %v1935
  %3993 = vmatpush.bf16.msra.mxu0 %v1934
  %3994 = vmatpush.bf16.msra.mxu0 %v1933
  %3995 = vmatpush.bf16.msra.mxu0 %v1932
  %3996 = vmatpush.bf16.msra.mxu0 %v1931
  %3997 = vmatmul.bf16.gmra.mxu0 %v3249
  %v3998 = vpop.f32.mrf.mxu0
  %v3999 = vadd.f32 %v3971, %v3998
  %v4000 = vpop.f32.mrf.mxu0
  %v4001 = vadd.f32 %v3973, %v4000
  %4002 = vmatmul.bf16.gmra.mxu0 %v3274
  %v4003 = vpop.f32.mrf.mxu0
  %v4004 = vadd.f32 %v3976, %v4003
  %v4005 = vpop.f32.mrf.mxu0
  %v4006 = vadd.f32 %v3978, %v4005
  %4007 = vmatmul.bf16.gmra.mxu0 %v3299
  %v4008 = vpop.f32.mrf.mxu0
  %v4009 = vadd.f32 %v3981, %v4008
  %v4010 = vpop.f32.mrf.mxu0
  %v4011 = vadd.f32 %v3983, %v4010
  %4012 = vmatmul.bf16.gmra.mxu0 %v3324
  %v4013 = vpop.f32.mrf.mxu0
  %v4014 = vadd.f32 %v3986, %v4013
  %v4015 = vpop.f32.mrf.mxu0
  %4016 = vdwg.mxu0
  %4017 = vmatpush.bf16.msra.mxu0 %v1946
  %4018 = vmatpush.bf16.msra.mxu0 %v1945
  %4019 = vmatpush.bf16.msra.mxu0 %v1944
  %4020 = vmatpush.bf16.msra.mxu0 %v1943
  %4021 = vmatpush.bf16.msra.mxu0 %v1942
  %4022 = vmatpush.bf16.msra.mxu0 %v1941
  %4023 = vmatpush.bf16.msra.mxu0 %v1940
  %4024 = vmatpush.bf16.msra.mxu0 %v1939
  %4025 = vmatmul.bf16.gmra.mxu0 %v3250
  %v4026 = vpop.f32.mrf.mxu0
  %v4027 = vadd.f32 %v3999, %v4026
  %v4028 = vpop.f32.mrf.mxu0
  %v4029 = vadd.f32 %v4001, %v4028
  %4030 = vmatmul.bf16.gmra.mxu0 %v3275
  %v4031 = vpop.f32.mrf.mxu0
  %v4032 = vadd.f32 %v4004, %v4031
  %v4033 = vpop.f32.mrf.mxu0
  %v4034 = vadd.f32 %v4006, %v4033
  %4035 = vmatmul.bf16.gmra.mxu0 %v3300
  %v4036 = vpop.f32.mrf.mxu0
  %v4037 = vadd.f32 %v4009, %v4036
  %v4038 = vpop.f32.mrf.mxu0
  %v4039 = vadd.f32 %v4011, %v4038
  %4040 = vmatmul.bf16.gmra.mxu0 %v3325
  %v4041 = vpop.f32.mrf.mxu0
  %v4042 = vadd.f32 %v4014, %v4041
  %v4043 = vpop.f32.mrf.mxu0
  %4044 = vdwg.mxu0
  %4045 = vmatpush.bf16.msra.mxu0 %v1954
  %4046 = vmatpush.bf16.msra.mxu0 %v1953
  %4047 = vmatpush.bf16.msra.mxu0 %v1952
  %4048 = vmatpush.bf16.msra.mxu0 %v1951
  %4049 = vmatpush.bf16.msra.mxu0 %v1950
  %4050 = vmatpush.bf16.msra.mxu0 %v1949
  %4051 = vmatpush.bf16.msra.mxu0 %v1948
  %4052 = vmatpush.bf16.msra.mxu0 %v1947
  %4053 = vmatmul.bf16.gmra.mxu0 %v3251
  %v4054 = vpop.f32.mrf.mxu0
  %v4055 = vadd.f32 %v4027, %v4054
  %v4056 = vpop.f32.mrf.mxu0
  %v4057 = vadd.f32 %v4029, %v4056
  %4058 = vmatmul.bf16.gmra.mxu0 %v3276
  %v4059 = vpop.f32.mrf.mxu0
  %v4060 = vadd.f32 %v4032, %v4059
  %v4061 = vpop.f32.mrf.mxu0
  %v4062 = vadd.f32 %v4034, %v4061
  %4063 = vmatmul.bf16.gmra.mxu0 %v3301
  %v4064 = vpop.f32.mrf.mxu0
  %v4065 = vadd.f32 %v4037, %v4064
  %v4066 = vpop.f32.mrf.mxu0
  %v4067 = vadd.f32 %v4039, %v4066
  %4068 = vmatmul.bf16.gmra.mxu0 %v3326
  %v4069 = vpop.f32.mrf.mxu0
  %v4070 = vadd.f32 %v4042, %v4069
  %v4071 = vpop.f32.mrf.mxu0
  %4072 = vdwg.mxu0
  %4073 = vmatpush.bf16.msra.mxu0 %v1962
  %4074 = vmatpush.bf16.msra.mxu0 %v1961
  %4075 = vmatpush.bf16.msra.mxu0 %v1960
  %4076 = vmatpush.bf16.msra.mxu0 %v1959
  %4077 = vmatpush.bf16.msra.mxu0 %v1958
  %4078 = vmatpush.bf16.msra.mxu0 %v1957
  %4079 = vmatpush.bf16.msra.mxu0 %v1956
  %4080 = vmatpush.bf16.msra.mxu0 %v1955
  %4081 = vmatmul.bf16.gmra.mxu0 %v3252
  %v4082 = vpop.f32.mrf.mxu0
  %v4083 = vadd.f32 %v4055, %v4082
  %v4084 = vpop.f32.mrf.mxu0
  %v4085 = vadd.f32 %v4057, %v4084
  %4086 = vmatmul.bf16.gmra.mxu0 %v3277
  %v4087 = vpop.f32.mrf.mxu0
  %v4088 = vadd.f32 %v4060, %v4087
  %v4089 = vpop.f32.mrf.mxu0
  %v4090 = vadd.f32 %v4062, %v4089
  %4091 = vmatmul.bf16.gmra.mxu0 %v3302
  %v4092 = vpop.f32.mrf.mxu0
  %v4093 = vadd.f32 %v4065, %v4092
  %v4094 = vpop.f32.mrf.mxu0
  %v4095 = vadd.f32 %v4067, %v4094
  %4096 = vmatmul.bf16.gmra.mxu0 %v3327
  %v4097 = vpop.f32.mrf.mxu0
  %v4098 = vadd.f32 %v4070, %v4097
  %v4099 = vpop.f32.mrf.mxu0
  %4100 = vdwg.mxu0
  %4101 = vmatpush.bf16.msra.mxu0 %v1970
  %4102 = vmatpush.bf16.msra.mxu0 %v1969
  %4103 = vmatpush.bf16.msra.mxu0 %v1968
  %4104 = vmatpush.bf16.msra.mxu0 %v1967
  %4105 = vmatpush.bf16.msra.mxu0 %v1966
  %4106 = vmatpush.bf16.msra.mxu0 %v1965
  %4107 = vmatpush.bf16.msra.mxu0 %v1964
  %4108 = vmatpush.bf16.msra.mxu0 %v1963
  %4109 = vmatmul.bf16.gmra.mxu0 %v3253
  %v4110 = vpop.f32.mrf.mxu0
  %v4111 = vadd.f32 %v4083, %v4110
  %v4112 = vpop.f32.mrf.mxu0
  %v4113 = vadd.f32 %v4085, %v4112
  %4114 = vmatmul.bf16.gmra.mxu0 %v3278
  %v4115 = vpop.f32.mrf.mxu0
  %v4116 = vadd.f32 %v4088, %v4115
  %v4117 = vpop.f32.mrf.mxu0
  %v4118 = vadd.f32 %v4090, %v4117
  %4119 = vmatmul.bf16.gmra.mxu0 %v3303
  %v4120 = vpop.f32.mrf.mxu0
  %v4121 = vadd.f32 %v4093, %v4120
  %v4122 = vpop.f32.mrf.mxu0
  %v4123 = vadd.f32 %v4095, %v4122
  %4124 = vmatmul.bf16.gmra.mxu0 %v3328
  %v4125 = vpop.f32.mrf.mxu0
  %v4126 = vadd.f32 %v4098, %v4125
  %v4127 = vpop.f32.mrf.mxu0
  %4128 = vdwg.mxu0
  %v4129 = vmax.f32 %v2853, %v4111
  %v4130 = vmax.f32 %v2855, %v4113
  %v4131 = vmax.f32 %v2858, %v4116
  %v4132 = vmax.f32 %v2860, %v4118
  %v4133 = vmax.f32 %v2863, %v4121
  %v4134 = vmax.f32 %v2865, %v4123
  %v4135 = vmax.f32 %v2868, %v4126
  %s4136 = scalar_lea.vmem %s0, 1400
  %v4137 = vld [vmem:[%s4136] sm:$0xff]
  %v4138 = vld [vmem:[%s4136 + $0x8] sm:$0xff]
  %v4139 = vld [vmem:[%s4136 + $0x10] sm:$0xff]
  %v4140 = vld [vmem:[%s4136 + $0x18] sm:$0xff]
  %v4141 = vld [vmem:[%s4136 + $0x20] sm:$0xff]
  %v4142 = vld [vmem:[%s4136 + $0x28] sm:$0xff]
  %v4143 = vld [vmem:[%s4136 + $0x30] sm:$0xff]
  %v4144 = vld [vmem:[%s4136 + $0x38] sm:$0xff]
  %v4145 = vld [vmem:[%s4136 + $0x40] sm:$0xff]
  %v4146 = vld [vmem:[%s4136 + $0x48] sm:$0xff]
  %v4147 = vld [vmem:[%s4136 + $0x50] sm:$0xff]
  %v4148 = vld [vmem:[%s4136 + $0x58] sm:$0xff]
  %v4149 = vld [vmem:[%s4136 + $0x60] sm:$0xf]
  %v4150 = vld [vmem:[%s4136 + $0x64] sm:$0xff]
  %v4151 = vld [vmem:[%s4136 + $0x6c] sm:$0xff]
  %v4152 = vld [vmem:[%s4136 + $0x74] sm:$0xff]
  %v4153 = vld [vmem:[%s4136 + $0x7c] sm:$0xff]
  %v4154 = vld [vmem:[%s4136 + $0x84] sm:$0xff]
  %v4155 = vld [vmem:[%s4136 + $0x8c] sm:$0xff]
  %v4156 = vld [vmem:[%s4136 + $0x94] sm:$0xff]
  %v4157 = vld [vmem:[%s4136 + $0x9c] sm:$0xff]
  %v4158 = vld [vmem:[%s4136 + $0xa4] sm:$0xff]
  %v4159 = vld [vmem:[%s4136 + $0xac] sm:$0xff]
  %v4160 = vld [vmem:[%s4136 + $0xb4] sm:$0xff]
  %v4161 = vld [vmem:[%s4136 + $0xbc] sm:$0xff]
  %v4162 = vld [vmem:[%s4136 + $0xc4] sm:$0xf]
  %v4163 = vld [vmem:[%s4136 + $0xc8] sm:$0xff]
  %v4164 = vld [vmem:[%s4136 + $0xd0] sm:$0xff]
  %v4165 = vld [vmem:[%s4136 + $0xd8] sm:$0xff]
  %v4166 = vld [vmem:[%s4136 + $0xe0] sm:$0xff]
  %v4167 = vld [vmem:[%s4136 + $0xe8] sm:$0xff]
  %v4168 = vld [vmem:[%s4136 + $0xf0] sm:$0xff]
  %v4169 = vld [vmem:[%s4136 + $0xf8] sm:$0xff]
  %v4170 = vld [vmem:[%s4136 + $0x100] sm:$0xff]
  %v4171 = vld [vmem:[%s4136 + $0x108] sm:$0xff]
  %v4172 = vld [vmem:[%s4136 + $0x110] sm:$0xff]
  %v4173 = vld [vmem:[%s4136 + $0x118] sm:$0xff]
  %v4174 = vld [vmem:[%s4136 + $0x120] sm:$0xff]
  %v4175 = vld [vmem:[%s4136 + $0x128] sm:$0xf]
  %v4176 = vld [vmem:[%s4136 + $0x12c] sm:$0xff]
  %v4177 = vld [vmem:[%s4136 + $0x134] sm:$0xff]
  %v4178 = vld [vmem:[%s4136 + $0x13c] sm:$0xff]
  %v4179 = vld [vmem:[%s4136 + $0x144] sm:$0xff]
  %v4180 = vld [vmem:[%s4136 + $0x14c] sm:$0xff]
  %v4181 = vld [vmem:[%s4136 + $0x154] sm:$0xff]
  %v4182 = vld [vmem:[%s4136 + $0x15c] sm:$0xff]
  %v4183 = vld [vmem:[%s4136 + $0x164] sm:$0xff]
  %v4184 = vld [vmem:[%s4136 + $0x16c] sm:$0xff]
  %v4185 = vld [vmem:[%s4136 + $0x174] sm:$0xff]
  %v4186 = vld [vmem:[%s4136 + $0x17c] sm:$0xff]
  %v4187 = vld [vmem:[%s4136 + $0x184] sm:$0xff]
  %v4188 = vld [vmem:[%s4136 + $0x18c] sm:$0xf]
  %v4189 = vld [vmem:[%s4136 + $0x190] sm:$0xff]
  %v4190 = vld [vmem:[%s4136 + $0x198] sm:$0xff]
  %v4191 = vld [vmem:[%s4136 + $0x1a0] sm:$0xff]
  %v4192 = vld [vmem:[%s4136 + $0x1a8] sm:$0xff]
  %v4193 = vld [vmem:[%s4136 + $0x1b0] sm:$0xff]
  %v4194 = vld [vmem:[%s4136 + $0x1b8] sm:$0xff]
  %v4195 = vld [vmem:[%s4136 + $0x1c0] sm:$0xff]
  %v4196 = vld [vmem:[%s4136 + $0x1c8] sm:$0xff]
  %v4197 = vld [vmem:[%s4136 + $0x1d0] sm:$0xff]
  %v4198 = vld [vmem:[%s4136 + $0x1d8] sm:$0xff]
  %v4199 = vld [vmem:[%s4136 + $0x1e0] sm:$0xff]
  %v4200 = vld [vmem:[%s4136 + $0x1e8] sm:$0xff]
  %v4201 = vld [vmem:[%s4136 + $0x1f0] sm:$0xf]
  %v4202 = vld [vmem:[%s4136 + $0x1f4] sm:$0xff]
  %v4203 = vld [vmem:[%s4136 + $0x1fc] sm:$0xff]
  %v4204 = vld [vmem:[%s4136 + $0x204] sm:$0xff]
  %v4205 = vld [vmem:[%s4136 + $0x20c] sm:$0xff]
  %v4206 = vld [vmem:[%s4136 + $0x214] sm:$0xff]
  %v4207 = vld [vmem:[%s4136 + $0x21c] sm:$0xff]
  %v4208 = vld [vmem:[%s4136 + $0x224] sm:$0xff]
  %v4209 = vld [vmem:[%s4136 + $0x22c] sm:$0xff]
  %v4210 = vld [vmem:[%s4136 + $0x234] sm:$0xff]
  %v4211 = vld [vmem:[%s4136 + $0x23c] sm:$0xff]
  %v4212 = vld [vmem:[%s4136 + $0x244] sm:$0xff]
  %v4213 = vld [vmem:[%s4136 + $0x24c] sm:$0xff]
  %v4214 = vld [vmem:[%s4136 + $0x254] sm:$0xf]
  %v4215 = vld [vmem:[%s4136 + $0x258] sm:$0xff]
  %v4216 = vld [vmem:[%s4136 + $0x260] sm:$0xff]
  %v4217 = vld [vmem:[%s4136 + $0x268] sm:$0xff]
  %v4218 = vld [vmem:[%s4136 + $0x270] sm:$0xff]
  %v4219 = vld [vmem:[%s4136 + $0x278] sm:$0xff]
  %v4220 = vld [vmem:[%s4136 + $0x280] sm:$0xff]
  %v4221 = vld [vmem:[%s4136 + $0x288] sm:$0xff]
  %v4222 = vld [vmem:[%s4136 + $0x290] sm:$0xff]
  %v4223 = vld [vmem:[%s4136 + $0x298] sm:$0xff]
  %v4224 = vld [vmem:[%s4136 + $0x2a0] sm:$0xff]
  %v4225 = vld [vmem:[%s4136 + $0x2a8] sm:$0xff]
  %v4226 = vld [vmem:[%s4136 + $0x2b0] sm:$0xff]
  %v4227 = vld [vmem:[%s4136 + $0x2b8] sm:$0xf]
  %v4319 = vunpack.c.l.b16 %v4137
  %v4320 = vunpack.c.h.b16 %v4137
  %v4321 = vunpack.c.l.b16 %v4138
  %v4322 = vunpack.c.h.b16 %v4138
  %v4323 = vunpack.c.l.b16 %v4139
  %v4324 = vunpack.c.h.b16 %v4139
  %v4325 = vunpack.c.l.b16 %v4140
  %v4326 = vunpack.c.h.b16 %v4140
  %v4327 = vunpack.c.l.b16 %v4141
  %v4328 = vunpack.c.h.b16 %v4141
  %v4329 = vunpack.c.l.b16 %v4142
  %v4330 = vunpack.c.h.b16 %v4142
  %v4331 = vunpack.c.l.b16 %v4143
  %v4332 = vunpack.c.h.b16 %v4143
  %v4333 = vunpack.c.l.b16 %v4144
  %v4334 = vunpack.c.h.b16 %v4144
  %v4335 = vunpack.c.l.b16 %v4145
  %v4336 = vunpack.c.h.b16 %v4145
  %v4337 = vunpack.c.l.b16 %v4146
  %v4338 = vunpack.c.h.b16 %v4146
  %v4339 = vunpack.c.l.b16 %v4147
  %v4340 = vunpack.c.h.b16 %v4147
  %v4341 = vunpack.c.l.b16 %v4148
  %v4342 = vunpack.c.h.b16 %v4148
  %v4343 = vunpack.c.l.b16 %v4149
  %v4344 = vunpack.c.l.b16 %v4150
  %v4345 = vunpack.c.h.b16 %v4150
  %v4346 = vunpack.c.l.b16 %v4151
  %v4347 = vunpack.c.h.b16 %v4151
  %v4348 = vunpack.c.l.b16 %v4152
  %v4349 = vunpack.c.h.b16 %v4152
  %v4350 = vunpack.c.l.b16 %v4153
  %v4351 = vunpack.c.h.b16 %v4153
  %v4352 = vunpack.c.l.b16 %v4154
  %v4353 = vunpack.c.h.b16 %v4154
  %v4354 = vunpack.c.l.b16 %v4155
  %v4355 = vunpack.c.h.b16 %v4155
  %v4356 = vunpack.c.l.b16 %v4156
  %v4357 = vunpack.c.h.b16 %v4156
  %v4358 = vunpack.c.l.b16 %v4157
  %v4359 = vunpack.c.h.b16 %v4157
  %v4360 = vunpack.c.l.b16 %v4158
  %v4361 = vunpack.c.h.b16 %v4158
  %v4362 = vunpack.c.l.b16 %v4159
  %v4363 = vunpack.c.h.b16 %v4159
  %v4364 = vunpack.c.l.b16 %v4160
  %v4365 = vunpack.c.h.b16 %v4160
  %v4366 = vunpack.c.l.b16 %v4161
  %v4367 = vunpack.c.h.b16 %v4161
  %v4368 = vunpack.c.l.b16 %v4162
  %v4369 = vunpack.c.l.b16 %v4163
  %v4370 = vunpack.c.h.b16 %v4163
  %v4371 = vunpack.c.l.b16 %v4164
  %v4372 = vunpack.c.h.b16 %v4164
  %v4373 = vunpack.c.l.b16 %v4165
  %v4374 = vunpack.c.h.b16 %v4165
  %v4375 = vunpack.c.l.b16 %v4166
  %v4376 = vunpack.c.h.b16 %v4166
  %v4377 = vunpack.c.l.b16 %v4167
  %v4378 = vunpack.c.h.b16 %v4167
  %v4379 = vunpack.c.l.b16 %v4168
  %v4380 = vunpack.c.h.b16 %v4168
  %v4381 = vunpack.c.l.b16 %v4169
  %v4382 = vunpack.c.h.b16 %v4169
  %v4383 = vunpack.c.l.b16 %v4170
  %v4384 = vunpack.c.h.b16 %v4170
  %v4385 = vunpack.c.l.b16 %v4171
  %v4386 = vunpack.c.h.b16 %v4171
  %v4387 = vunpack.c.l.b16 %v4172
  %v4388 = vunpack.c.h.b16 %v4172
  %v4389 = vunpack.c.l.b16 %v4173
  %v4390 = vunpack.c.h.b16 %v4173
  %v4391 = vunpack.c.l.b16 %v4174
  %v4392 = vunpack.c.h.b16 %v4174
  %v4393 = vunpack.c.l.b16 %v4175
  %v4394 = vunpack.c.l.b16 %v4176
  %v4395 = vunpack.c.h.b16 %v4176
  %v4396 = vunpack.c.l.b16 %v4177
  %v4397 = vunpack.c.h.b16 %v4177
  %v4398 = vunpack.c.l.b16 %v4178
  %v4399 = vunpack.c.h.b16 %v4178
  %v4400 = vunpack.c.l.b16 %v4179
  %v4401 = vunpack.c.h.b16 %v4179
  %v4402 = vunpack.c.l.b16 %v4180
  %v4403 = vunpack.c.h.b16 %v4180
  %v4404 = vunpack.c.l.b16 %v4181
  %v4405 = vunpack.c.h.b16 %v4181
  %v4406 = vunpack.c.l.b16 %v4182
  %v4407 = vunpack.c.h.b16 %v4182
  %v4408 = vunpack.c.l.b16 %v4183
  %v4409 = vunpack.c.h.b16 %v4183
  %v4410 = vunpack.c.l.b16 %v4184
  %v4411 = vunpack.c.h.b16 %v4184
  %v4412 = vunpack.c.l.b16 %v4185
  %v4413 = vunpack.c.h.b16 %v4185
  %v4414 = vunpack.c.l.b16 %v4186
  %v4415 = vunpack.c.h.b16 %v4186
  %v4416 = vunpack.c.l.b16 %v4187
  %v4417 = vunpack.c.h.b16 %v4187
  %v4418 = vunpack.c.l.b16 %v4188
  %v4419 = vunpack.c.l.b16 %v4189
  %v4420 = vunpack.c.h.b16 %v4189
  %v4421 = vunpack.c.l.b16 %v4190
  %v4422 = vunpack.c.h.b16 %v4190
  %v4423 = vunpack.c.l.b16 %v4191
  %v4424 = vunpack.c.h.b16 %v4191
  %v4425 = vunpack.c.l.b16 %v4192
  %v4426 = vunpack.c.h.b16 %v4192
  %v4427 = vunpack.c.l.b16 %v4193
  %v4428 = vunpack.c.h.b16 %v4193
  %v4429 = vunpack.c.l.b16 %v4194
  %v4430 = vunpack.c.h.b16 %v4194
  %v4431 = vunpack.c.l.b16 %v4195
  %v4432 = vunpack.c.h.b16 %v4195
  %v4433 = vunpack.c.l.b16 %v4196
  %v4434 = vunpack.c.h.b16 %v4196
  %v4435 = vunpack.c.l.b16 %v4197
  %v4436 = vunpack.c.h.b16 %v4197
  %v4437 = vunpack.c.l.b16 %v4198
  %v4438 = vunpack.c.h.b16 %v4198
  %v4439 = vunpack.c.l.b16 %v4199
  %v4440 = vunpack.c.h.b16 %v4199
  %v4441 = vunpack.c.l.b16 %v4200
  %v4442 = vunpack.c.h.b16 %v4200
  %v4443 = vunpack.c.l.b16 %v4201
  %v4444 = vunpack.c.l.b16 %v4202
  %v4445 = vunpack.c.h.b16 %v4202
  %v4446 = vunpack.c.l.b16 %v4203
  %v4447 = vunpack.c.h.b16 %v4203
  %v4448 = vunpack.c.l.b16 %v4204
  %v4449 = vunpack.c.h.b16 %v4204
  %v4450 = vunpack.c.l.b16 %v4205
  %v4451 = vunpack.c.h.b16 %v4205
  %v4452 = vunpack.c.l.b16 %v4206
  %v4453 = vunpack.c.h.b16 %v4206
  %v4454 = vunpack.c.l.b16 %v4207
  %v4455 = vunpack.c.h.b16 %v4207
  %v4456 = vunpack.c.l.b16 %v4208
  %v4457 = vunpack.c.h.b16 %v4208
  %v4458 = vunpack.c.l.b16 %v4209
  %v4459 = vunpack.c.h.b16 %v4209
  %v4460 = vunpack.c.l.b16 %v4210
  %v4461 = vunpack.c.h.b16 %v4210
  %v4462 = vunpack.c.l.b16 %v4211
  %v4463 = vunpack.c.h.b16 %v4211
  %v4464 = vunpack.c.l.b16 %v4212
  %v4465 = vunpack.c.h.b16 %v4212
  %v4466 = vunpack.c.l.b16 %v4213
  %v4467 = vunpack.c.h.b16 %v4213
  %v4468 = vunpack.c.l.b16 %v4214
  %v4469 = vunpack.c.l.b16 %v4215
  %v4470 = vunpack.c.h.b16 %v4215
  %v4471 = vunpack.c.l.b16 %v4216
  %v4472 = vunpack.c.h.b16 %v4216
  %v4473 = vunpack.c.l.b16 %v4217
  %v4474 = vunpack.c.h.b16 %v4217
  %v4475 = vunpack.c.l.b16 %v4218
  %v4476 = vunpack.c.h.b16 %v4218
  %v4477 = vunpack.c.l.b16 %v4219
  %v4478 = vunpack.c.h.b16 %v4219
  %v4479 = vunpack.c.l.b16 %v4220
  %v4480 = vunpack.c.h.b16 %v4220
  %v4481 = vunpack.c.l.b16 %v4221
  %v4482 = vunpack.c.h.b16 %v4221
  %v4483 = vunpack.c.l.b16 %v4222
  %v4484 = vunpack.c.h.b16 %v4222
  %v4485 = vunpack.c.l.b16 %v4223
  %v4486 = vunpack.c.h.b16 %v4223
  %v4487 = vunpack.c.l.b16 %v4224
  %v4488 = vunpack.c.h.b16 %v4224
  %v4489 = vunpack.c.l.b16 %v4225
  %v4490 = vunpack.c.h.b16 %v4225
  %v4491 = vunpack.c.l.b16 %v4226
  %v4492 = vunpack.c.h.b16 %v4226
  %v4493 = vunpack.c.l.b16 %v4227
  %v4494 = vpack.c.b16 %v4344, %v4319
  %v4495 = vpack.c.b16 %v4345, %v4320
  %v4496 = vpack.c.b16 %v4346, %v4321
  %v4497 = vpack.c.b16 %v4347, %v4322
  %v4498 = vpack.c.b16 %v4348, %v4323
  %v4499 = vpack.c.b16 %v4349, %v4324
  %v4500 = vpack.c.b16 %v4350, %v4325
  %v4501 = vpack.c.b16 %v4351, %v4326
  %v4502 = vpack.c.b16 %v4352, %v4327
  %v4503 = vpack.c.b16 %v4353, %v4328
  %v4504 = vpack.c.b16 %v4354, %v4329
  %v4505 = vpack.c.b16 %v4355, %v4330
  %v4506 = vpack.c.b16 %v4356, %v4331
  %v4507 = vpack.c.b16 %v4357, %v4332
  %v4508 = vpack.c.b16 %v4358, %v4333
  %v4509 = vpack.c.b16 %v4359, %v4334
  %v4510 = vpack.c.b16 %v4360, %v4335
  %v4511 = vpack.c.b16 %v4361, %v4336
  %v4512 = vpack.c.b16 %v4362, %v4337
  %v4513 = vpack.c.b16 %v4363, %v4338
  %v4514 = vpack.c.b16 %v4364, %v4339
  %v4515 = vpack.c.b16 %v4365, %v4340
  %v4516 = vpack.c.b16 %v4366, %v4341
  %v4517 = vpack.c.b16 %v4367, %v4342
  %v4518 = vpack.c.b16 %v4368, %v4343
  %v4519 = vpack.c.b16 %v4394, %v4369
  %v4520 = vpack.c.b16 %v4395, %v4370
  %v4521 = vpack.c.b16 %v4396, %v4371
  %v4522 = vpack.c.b16 %v4397, %v4372
  %v4523 = vpack.c.b16 %v4398, %v4373
  %v4524 = vpack.c.b16 %v4399, %v4374
  %v4525 = vpack.c.b16 %v4400, %v4375
  %v4526 = vpack.c.b16 %v4401, %v4376
  %v4527 = vpack.c.b16 %v4402, %v4377
  %v4528 = vpack.c.b16 %v4403, %v4378
  %v4529 = vpack.c.b16 %v4404, %v4379
  %v4530 = vpack.c.b16 %v4405, %v4380
  %v4531 = vpack.c.b16 %v4406, %v4381
  %v4532 = vpack.c.b16 %v4407, %v4382
  %v4533 = vpack.c.b16 %v4408, %v4383
  %v4534 = vpack.c.b16 %v4409, %v4384
  %v4535 = vpack.c.b16 %v4410, %v4385
  %v4536 = vpack.c.b16 %v4411, %v4386
  %v4537 = vpack.c.b16 %v4412, %v4387
  %v4538 = vpack.c.b16 %v4413, %v4388
  %v4539 = vpack.c.b16 %v4414, %v4389
  %v4540 = vpack.c.b16 %v4415, %v4390
  %v4541 = vpack.c.b16 %v4416, %v4391
  %v4542 = vpack.c.b16 %v4417, %v4392
  %v4543 = vpack.c.b16 %v4418, %v4393
  %v4544 = vpack.c.b16 %v4444, %v4419
  %v4545 = vpack.c.b16 %v4445, %v4420
  %v4546 = vpack.c.b16 %v4446, %v4421
  %v4547 = vpack.c.b16 %v4447, %v4422
  %v4548 = vpack.c.b16 %v4448, %v4423
  %v4549 = vpack.c.b16 %v4449, %v4424
  %v4550 = vpack.c.b16 %v4450, %v4425
  %v4551 = vpack.c.b16 %v4451, %v4426
  %v4552 = vpack.c.b16 %v4452, %v4427
  %v4553 = vpack.c.b16 %v4453, %v4428
  %v4554 = vpack.c.b16 %v4454, %v4429
  %v4555 = vpack.c.b16 %v4455, %v4430
  %v4556 = vpack.c.b16 %v4456, %v4431
  %v4557 = vpack.c.b16 %v4457, %v4432
  %v4558 = vpack.c.b16 %v4458, %v4433
  %v4559 = vpack.c.b16 %v4459, %v4434
  %v4560 = vpack.c.b16 %v4460, %v4435
  %v4561 = vpack.c.b16 %v4461, %v4436
  %v4562 = vpack.c.b16 %v4462, %v4437
  %v4563 = vpack.c.b16 %v4463, %v4438
  %v4564 = vpack.c.b16 %v4464, %v4439
  %v4565 = vpack.c.b16 %v4465, %v4440
  %v4566 = vpack.c.b16 %v4466, %v4441
  %v4567 = vpack.c.b16 %v4467, %v4442
  %v4568 = vpack.c.b16 %v4468, %v4443
  %v4569 = vpack.c.b16 %v4469, %v4469
  %v4570 = vpack.c.b16 %v4470, %v4470
  %v4571 = vpack.c.b16 %v4471, %v4471
  %v4572 = vpack.c.b16 %v4472, %v4472
  %v4573 = vpack.c.b16 %v4473, %v4473
  %v4574 = vpack.c.b16 %v4474, %v4474
  %v4575 = vpack.c.b16 %v4475, %v4475
  %v4576 = vpack.c.b16 %v4476, %v4476
  %v4577 = vpack.c.b16 %v4477, %v4477
  %v4578 = vpack.c.b16 %v4478, %v4478
  %v4579 = vpack.c.b16 %v4479, %v4479
  %v4580 = vpack.c.b16 %v4480, %v4480
  %v4581 = vpack.c.b16 %v4481, %v4481
  %v4582 = vpack.c.b16 %v4482, %v4482
  %v4583 = vpack.c.b16 %v4483, %v4483
  %v4584 = vpack.c.b16 %v4484, %v4484
  %v4585 = vpack.c.b16 %v4485, %v4485
  %v4586 = vpack.c.b16 %v4486, %v4486
  %v4587 = vpack.c.b16 %v4487, %v4487
  %v4588 = vpack.c.b16 %v4488, %v4488
  %v4589 = vpack.c.b16 %v4489, %v4489
  %v4590 = vpack.c.b16 %v4490, %v4490
  %v4591 = vpack.c.b16 %v4491, %v4491
  %v4592 = vpack.c.b16 %v4492, %v4492
  %v4593 = vpack.c.b16 %v4493, %v4493
  %4694 = vmatpush.bf16.msra.mxu0 %v1778
  %4695 = vmatpush.bf16.msra.mxu0 %v1777
  %4696 = vmatpush.bf16.msra.mxu0 %v1776
  %4697 = vmatpush.bf16.msra.mxu0 %v1775
  %4698 = vmatpush.bf16.msra.mxu0 %v1774
  %4699 = vmatpush.bf16.msra.mxu0 %v1773
  %4700 = vmatpush.bf16.msra.mxu0 %v1772
  %4701 = vmatpush.bf16.msra.mxu0 %v1771
  %4702 = vmatmul.bf16.gmra.mxu0 %v4494
  %v4703 = vpop.f32.mrf.mxu0
  %v4704 = vadd.f32 0.0, %v4703
  %v4705 = vpop.f32.mrf.mxu0
  %v4706 = vadd.f32 0.0, %v4705
  %4707 = vmatmul.bf16.gmra.mxu0 %v4519
  %v4708 = vpop.f32.mrf.mxu0
  %v4709 = vadd.f32 0.0, %v4708
  %v4710 = vpop.f32.mrf.mxu0
  %v4711 = vadd.f32 0.0, %v4710
  %4712 = vmatmul.bf16.gmra.mxu0 %v4544
  %v4713 = vpop.f32.mrf.mxu0
  %v4714 = vadd.f32 0.0, %v4713
  %v4715 = vpop.f32.mrf.mxu0
  %v4716 = vadd.f32 0.0, %v4715
  %4717 = vmatmul.bf16.gmra.mxu0 %v4569
  %v4718 = vpop.f32.mrf.mxu0
  %v4719 = vadd.f32 0.0, %v4718
  %v4720 = vpop.f32.mrf.mxu0
  %4721 = vdwg.mxu0
  %4722 = vmatpush.bf16.msra.mxu0 %v1786
  %4723 = vmatpush.bf16.msra.mxu0 %v1785
  %4724 = vmatpush.bf16.msra.mxu0 %v1784
  %4725 = vmatpush.bf16.msra.mxu0 %v1783
  %4726 = vmatpush.bf16.msra.mxu0 %v1782
  %4727 = vmatpush.bf16.msra.mxu0 %v1781
  %4728 = vmatpush.bf16.msra.mxu0 %v1780
  %4729 = vmatpush.bf16.msra.mxu0 %v1779
  %4730 = vmatmul.bf16.gmra.mxu0 %v4495
  %v4731 = vpop.f32.mrf.mxu0
  %v4732 = vadd.f32 %v4704, %v4731
  %v4733 = vpop.f32.mrf.mxu0
  %v4734 = vadd.f32 %v4706, %v4733
  %4735 = vmatmul.bf16.gmra.mxu0 %v4520
  %v4736 = vpop.f32.mrf.mxu0
  %v4737 = vadd.f32 %v4709, %v4736
  %v4738 = vpop.f32.mrf.mxu0
  %v4739 = vadd.f32 %v4711, %v4738
  %4740 = vmatmul.bf16.gmra.mxu0 %v4545
  %v4741 = vpop.f32.mrf.mxu0
  %v4742 = vadd.f32 %v4714, %v4741
  %v4743 = vpop.f32.mrf.mxu0
  %v4744 = vadd.f32 %v4716, %v4743
  %4745 = vmatmul.bf16.gmra.mxu0 %v4570
  %v4746 = vpop.f32.mrf.mxu0
  %v4747 = vadd.f32 %v4719, %v4746
  %v4748 = vpop.f32.mrf.mxu0
  %4749 = vdwg.mxu0
  %4750 = vmatpush.bf16.msra.mxu0 %v1794
  %4751 = vmatpush.bf16.msra.mxu0 %v1793
  %4752 = vmatpush.bf16.msra.mxu0 %v1792
  %4753 = vmatpush.bf16.msra.mxu0 %v1791
  %4754 = vmatpush.bf16.msra.mxu0 %v1790
  %4755 = vmatpush.bf16.msra.mxu0 %v1789
  %4756 = vmatpush.bf16.msra.mxu0 %v1788
  %4757 = vmatpush.bf16.msra.mxu0 %v1787
  %4758 = vmatmul.bf16.gmra.mxu0 %v4496
  %v4759 = vpop.f32.mrf.mxu0
  %v4760 = vadd.f32 %v4732, %v4759
  %v4761 = vpop.f32.mrf.mxu0
  %v4762 = vadd.f32 %v4734, %v4761
  %4763 = vmatmul.bf16.gmra.mxu0 %v4521
  %v4764 = vpop.f32.mrf.mxu0
  %v4765 = vadd.f32 %v4737, %v4764
  %v4766 = vpop.f32.mrf.mxu0
  %v4767 = vadd.f32 %v4739, %v4766
  %4768 = vmatmul.bf16.gmra.mxu0 %v4546
  %v4769 = vpop.f32.mrf.mxu0
  %v4770 = vadd.f32 %v4742, %v4769
  %v4771 = vpop.f32.mrf.mxu0
  %v4772 = vadd.f32 %v4744, %v4771
  %4773 = vmatmul.bf16.gmra.mxu0 %v4571
  %v4774 = vpop.f32.mrf.mxu0
  %v4775 = vadd.f32 %v4747, %v4774
  %v4776 = vpop.f32.mrf.mxu0
  %4777 = vdwg.mxu0
  %4778 = vmatpush.bf16.msra.mxu0 %v1802
  %4779 = vmatpush.bf16.msra.mxu0 %v1801
  %4780 = vmatpush.bf16.msra.mxu0 %v1800
  %4781 = vmatpush.bf16.msra.mxu0 %v1799
  %4782 = vmatpush.bf16.msra.mxu0 %v1798
  %4783 = vmatpush.bf16.msra.mxu0 %v1797
  %4784 = vmatpush.bf16.msra.mxu0 %v1796
  %4785 = vmatpush.bf16.msra.mxu0 %v1795
  %4786 = vmatmul.bf16.gmra.mxu0 %v4497
  %v4787 = vpop.f32.mrf.mxu0
  %v4788 = vadd.f32 %v4760, %v4787
  %v4789 = vpop.f32.mrf.mxu0
  %v4790 = vadd.f32 %v4762, %v4789
  %4791 = vmatmul.bf16.gmra.mxu0 %v4522
  %v4792 = vpop.f32.mrf.mxu0
  %v4793 = vadd.f32 %v4765, %v4792
  %v4794 = vpop.f32.mrf.mxu0
  %v4795 = vadd.f32 %v4767, %v4794
  %4796 = vmatmul.bf16.gmra.mxu0 %v4547
  %v4797 = vpop.f32.mrf.mxu0
  %v4798 = vadd.f32 %v4770, %v4797
  %v4799 = vpop.f32.mrf.mxu0
  %v4800 = vadd.f32 %v4772, %v4799
  %4801 = vmatmul.bf16.gmra.mxu0 %v4572
  %v4802 = vpop.f32.mrf.mxu0
  %v4803 = vadd.f32 %v4775, %v4802
  %v4804 = vpop.f32.mrf.mxu0
  %4805 = vdwg.mxu0
  %4806 = vmatpush.bf16.msra.mxu0 %v1810
  %4807 = vmatpush.bf16.msra.mxu0 %v1809
  %4808 = vmatpush.bf16.msra.mxu0 %v1808
  %4809 = vmatpush.bf16.msra.mxu0 %v1807
  %4810 = vmatpush.bf16.msra.mxu0 %v1806
  %4811 = vmatpush.bf16.msra.mxu0 %v1805
  %4812 = vmatpush.bf16.msra.mxu0 %v1804
  %4813 = vmatpush.bf16.msra.mxu0 %v1803
  %4814 = vmatmul.bf16.gmra.mxu0 %v4498
  %v4815 = vpop.f32.mrf.mxu0
  %v4816 = vadd.f32 %v4788, %v4815
  %v4817 = vpop.f32.mrf.mxu0
  %v4818 = vadd.f32 %v4790, %v4817
  %4819 = vmatmul.bf16.gmra.mxu0 %v4523
  %v4820 = vpop.f32.mrf.mxu0
  %v4821 = vadd.f32 %v4793, %v4820
  %v4822 = vpop.f32.mrf.mxu0
  %v4823 = vadd.f32 %v4795, %v4822
  %4824 = vmatmul.bf16.gmra.mxu0 %v4548
  %v4825 = vpop.f32.mrf.mxu0
  %v4826 = vadd.f32 %v4798, %v4825
  %v4827 = vpop.f32.mrf.mxu0
  %v4828 = vadd.f32 %v4800, %v4827
  %4829 = vmatmul.bf16.gmra.mxu0 %v4573
  %v4830 = vpop.f32.mrf.mxu0
  %v4831 = vadd.f32 %v4803, %v4830
  %v4832 = vpop.f32.mrf.mxu0
  %4833 = vdwg.mxu0
  %4834 = vmatpush.bf16.msra.mxu0 %v1818
  %4835 = vmatpush.bf16.msra.mxu0 %v1817
  %4836 = vmatpush.bf16.msra.mxu0 %v1816
  %4837 = vmatpush.bf16.msra.mxu0 %v1815
  %4838 = vmatpush.bf16.msra.mxu0 %v1814
  %4839 = vmatpush.bf16.msra.mxu0 %v1813
  %4840 = vmatpush.bf16.msra.mxu0 %v1812
  %4841 = vmatpush.bf16.msra.mxu0 %v1811
  %4842 = vmatmul.bf16.gmra.mxu0 %v4499
  %v4843 = vpop.f32.mrf.mxu0
  %v4844 = vadd.f32 %v4816, %v4843
  %v4845 = vpop.f32.mrf.mxu0
  %v4846 = vadd.f32 %v4818, %v4845
  %4847 = vmatmul.bf16.gmra.mxu0 %v4524
  %v4848 = vpop.f32.mrf.mxu0
  %v4849 = vadd.f32 %v4821, %v4848
  %v4850 = vpop.f32.mrf.mxu0
  %v4851 = vadd.f32 %v4823, %v4850
  %4852 = vmatmul.bf16.gmra.mxu0 %v4549
  %v4853 = vpop.f32.mrf.mxu0
  %v4854 = vadd.f32 %v4826, %v4853
  %v4855 = vpop.f32.mrf.mxu0
  %v4856 = vadd.f32 %v4828, %v4855
  %4857 = vmatmul.bf16.gmra.mxu0 %v4574
  %v4858 = vpop.f32.mrf.mxu0
  %v4859 = vadd.f32 %v4831, %v4858
  %v4860 = vpop.f32.mrf.mxu0
  %4861 = vdwg.mxu0
  %4862 = vmatpush.bf16.msra.mxu0 %v1826
  %4863 = vmatpush.bf16.msra.mxu0 %v1825
  %4864 = vmatpush.bf16.msra.mxu0 %v1824
  %4865 = vmatpush.bf16.msra.mxu0 %v1823
  %4866 = vmatpush.bf16.msra.mxu0 %v1822
  %4867 = vmatpush.bf16.msra.mxu0 %v1821
  %4868 = vmatpush.bf16.msra.mxu0 %v1820
  %4869 = vmatpush.bf16.msra.mxu0 %v1819
  %4870 = vmatmul.bf16.gmra.mxu0 %v4500
  %v4871 = vpop.f32.mrf.mxu0
  %v4872 = vadd.f32 %v4844, %v4871
  %v4873 = vpop.f32.mrf.mxu0
  %v4874 = vadd.f32 %v4846, %v4873
  %4875 = vmatmul.bf16.gmra.mxu0 %v4525
  %v4876 = vpop.f32.mrf.mxu0
  %v4877 = vadd.f32 %v4849, %v4876
  %v4878 = vpop.f32.mrf.mxu0
  %v4879 = vadd.f32 %v4851, %v4878
  %4880 = vmatmul.bf16.gmra.mxu0 %v4550
  %v4881 = vpop.f32.mrf.mxu0
  %v4882 = vadd.f32 %v4854, %v4881
  %v4883 = vpop.f32.mrf.mxu0
  %v4884 = vadd.f32 %v4856, %v4883
  %4885 = vmatmul.bf16.gmra.mxu0 %v4575
  %v4886 = vpop.f32.mrf.mxu0
  %v4887 = vadd.f32 %v4859, %v4886
  %v4888 = vpop.f32.mrf.mxu0
  %4889 = vdwg.mxu0
  %4890 = vmatpush.bf16.msra.mxu0 %v1834
  %4891 = vmatpush.bf16.msra.mxu0 %v1833
  %4892 = vmatpush.bf16.msra.mxu0 %v1832
  %4893 = vmatpush.bf16.msra.mxu0 %v1831
  %4894 = vmatpush.bf16.msra.mxu0 %v1830
  %4895 = vmatpush.bf16.msra.mxu0 %v1829
  %4896 = vmatpush.bf16.msra.mxu0 %v1828
  %4897 = vmatpush.bf16.msra.mxu0 %v1827
  %4898 = vmatmul.bf16.gmra.mxu0 %v4501
  %v4899 = vpop.f32.mrf.mxu0
  %v4900 = vadd.f32 %v4872, %v4899
  %v4901 = vpop.f32.mrf.mxu0
  %v4902 = vadd.f32 %v4874, %v4901
  %4903 = vmatmul.bf16.gmra.mxu0 %v4526
  %v4904 = vpop.f32.mrf.mxu0
  %v4905 = vadd.f32 %v4877, %v4904
  %v4906 = vpop.f32.mrf.mxu0
  %v4907 = vadd.f32 %v4879, %v4906
  %4908 = vmatmul.bf16.gmra.mxu0 %v4551
  %v4909 = vpop.f32.mrf.mxu0
  %v4910 = vadd.f32 %v4882, %v4909
  %v4911 = vpop.f32.mrf.mxu0
  %v4912 = vadd.f32 %v4884, %v4911
  %4913 = vmatmul.bf16.gmra.mxu0 %v4576
  %v4914 = vpop.f32.mrf.mxu0
  %v4915 = vadd.f32 %v4887, %v4914
  %v4916 = vpop.f32.mrf.mxu0
  %4917 = vdwg.mxu0
  %4918 = vmatpush.bf16.msra.mxu0 %v1842
  %4919 = vmatpush.bf16.msra.mxu0 %v1841
  %4920 = vmatpush.bf16.msra.mxu0 %v1840
  %4921 = vmatpush.bf16.msra.mxu0 %v1839
  %4922 = vmatpush.bf16.msra.mxu0 %v1838
  %4923 = vmatpush.bf16.msra.mxu0 %v1837
  %4924 = vmatpush.bf16.msra.mxu0 %v1836
  %4925 = vmatpush.bf16.msra.mxu0 %v1835
  %4926 = vmatmul.bf16.gmra.mxu0 %v4502
  %v4927 = vpop.f32.mrf.mxu0
  %v4928 = vadd.f32 %v4900, %v4927
  %v4929 = vpop.f32.mrf.mxu0
  %v4930 = vadd.f32 %v4902, %v4929
  %4931 = vmatmul.bf16.gmra.mxu0 %v4527
  %v4932 = vpop.f32.mrf.mxu0
  %v4933 = vadd.f32 %v4905, %v4932
  %v4934 = vpop.f32.mrf.mxu0
  %v4935 = vadd.f32 %v4907, %v4934
  %4936 = vmatmul.bf16.gmra.mxu0 %v4552
  %v4937 = vpop.f32.mrf.mxu0
  %v4938 = vadd.f32 %v4910, %v4937
  %v4939 = vpop.f32.mrf.mxu0
  %v4940 = vadd.f32 %v4912, %v4939
  %4941 = vmatmul.bf16.gmra.mxu0 %v4577
  %v4942 = vpop.f32.mrf.mxu0
  %v4943 = vadd.f32 %v4915, %v4942
  %v4944 = vpop.f32.mrf.mxu0
  %4945 = vdwg.mxu0
  %4946 = vmatpush.bf16.msra.mxu0 %v1850
  %4947 = vmatpush.bf16.msra.mxu0 %v1849
  %4948 = vmatpush.bf16.msra.mxu0 %v1848
  %4949 = vmatpush.bf16.msra.mxu0 %v1847
  %4950 = vmatpush.bf16.msra.mxu0 %v1846
  %4951 = vmatpush.bf16.msra.mxu0 %v1845
  %4952 = vmatpush.bf16.msra.mxu0 %v1844
  %4953 = vmatpush.bf16.msra.mxu0 %v1843
  %4954 = vmatmul.bf16.gmra.mxu0 %v4503
  %v4955 = vpop.f32.mrf.mxu0
  %v4956 = vadd.f32 %v4928, %v4955
  %v4957 = vpop.f32.mrf.mxu0
  %v4958 = vadd.f32 %v4930, %v4957
  %4959 = vmatmul.bf16.gmra.mxu0 %v4528
  %v4960 = vpop.f32.mrf.mxu0
  %v4961 = vadd.f32 %v4933, %v4960
  %v4962 = vpop.f32.mrf.mxu0
  %v4963 = vadd.f32 %v4935, %v4962
  %4964 = vmatmul.bf16.gmra.mxu0 %v4553
  %v4965 = vpop.f32.mrf.mxu0
  %v4966 = vadd.f32 %v4938, %v4965
  %v4967 = vpop.f32.mrf.mxu0
  %v4968 = vadd.f32 %v4940, %v4967
  %4969 = vmatmul.bf16.gmra.mxu0 %v4578
  %v4970 = vpop.f32.mrf.mxu0
  %v4971 = vadd.f32 %v4943, %v4970
  %v4972 = vpop.f32.mrf.mxu0
  %4973 = vdwg.mxu0
  %4974 = vmatpush.bf16.msra.mxu0 %v1858
  %4975 = vmatpush.bf16.msra.mxu0 %v1857
  %4976 = vmatpush.bf16.msra.mxu0 %v1856
  %4977 = vmatpush.bf16.msra.mxu0 %v1855
  %4978 = vmatpush.bf16.msra.mxu0 %v1854
  %4979 = vmatpush.bf16.msra.mxu0 %v1853
  %4980 = vmatpush.bf16.msra.mxu0 %v1852
  %4981 = vmatpush.bf16.msra.mxu0 %v1851
  %4982 = vmatmul.bf16.gmra.mxu0 %v4504
  %v4983 = vpop.f32.mrf.mxu0
  %v4984 = vadd.f32 %v4956, %v4983
  %v4985 = vpop.f32.mrf.mxu0
  %v4986 = vadd.f32 %v4958, %v4985
  %4987 = vmatmul.bf16.gmra.mxu0 %v4529
  %v4988 = vpop.f32.mrf.mxu0
  %v4989 = vadd.f32 %v4961, %v4988
  %v4990 = vpop.f32.mrf.mxu0
  %v4991 = vadd.f32 %v4963, %v4990
  %4992 = vmatmul.bf16.gmra.mxu0 %v4554
  %v4993 = vpop.f32.mrf.mxu0
  %v4994 = vadd.f32 %v4966, %v4993
  %v4995 = vpop.f32.mrf.mxu0
  %v4996 = vadd.f32 %v4968, %v4995
  %4997 = vmatmul.bf16.gmra.mxu0 %v4579
  %v4998 = vpop.f32.mrf.mxu0
  %v4999 = vadd.f32 %v4971, %v4998
  %v5000 = vpop.f32.mrf.mxu0
  %5001 = vdwg.mxu0
  %5002 = vmatpush.bf16.msra.mxu0 %v1866
  %5003 = vmatpush.bf16.msra.mxu0 %v1865
  %5004 = vmatpush.bf16.msra.mxu0 %v1864
  %5005 = vmatpush.bf16.msra.mxu0 %v1863
  %5006 = vmatpush.bf16.msra.mxu0 %v1862
  %5007 = vmatpush.bf16.msra.mxu0 %v1861
  %5008 = vmatpush.bf16.msra.mxu0 %v1860
  %5009 = vmatpush.bf16.msra.mxu0 %v1859
  %5010 = vmatmul.bf16.gmra.mxu0 %v4505
  %v5011 = vpop.f32.mrf.mxu0
  %v5012 = vadd.f32 %v4984, %v5011
  %v5013 = vpop.f32.mrf.mxu0
  %v5014 = vadd.f32 %v4986, %v5013
  %5015 = vmatmul.bf16.gmra.mxu0 %v4530
  %v5016 = vpop.f32.mrf.mxu0
  %v5017 = vadd.f32 %v4989, %v5016
  %v5018 = vpop.f32.mrf.mxu0
  %v5019 = vadd.f32 %v4991, %v5018
  %5020 = vmatmul.bf16.gmra.mxu0 %v4555
  %v5021 = vpop.f32.mrf.mxu0
  %v5022 = vadd.f32 %v4994, %v5021
  %v5023 = vpop.f32.mrf.mxu0
  %v5024 = vadd.f32 %v4996, %v5023
  %5025 = vmatmul.bf16.gmra.mxu0 %v4580
  %v5026 = vpop.f32.mrf.mxu0
  %v5027 = vadd.f32 %v4999, %v5026
  %v5028 = vpop.f32.mrf.mxu0
  %5029 = vdwg.mxu0
  %5030 = vmatpush.bf16.msra.mxu0 %v1874
  %5031 = vmatpush.bf16.msra.mxu0 %v1873
  %5032 = vmatpush.bf16.msra.mxu0 %v1872
  %5033 = vmatpush.bf16.msra.mxu0 %v1871
  %5034 = vmatpush.bf16.msra.mxu0 %v1870
  %5035 = vmatpush.bf16.msra.mxu0 %v1869
  %5036 = vmatpush.bf16.msra.mxu0 %v1868
  %5037 = vmatpush.bf16.msra.mxu0 %v1867
  %5038 = vmatmul.bf16.gmra.mxu0 %v4506
  %v5039 = vpop.f32.mrf.mxu0
  %v5040 = vadd.f32 %v5012, %v5039
  %v5041 = vpop.f32.mrf.mxu0
  %v5042 = vadd.f32 %v5014, %v5041
  %5043 = vmatmul.bf16.gmra.mxu0 %v4531
  %v5044 = vpop.f32.mrf.mxu0
  %v5045 = vadd.f32 %v5017, %v5044
  %v5046 = vpop.f32.mrf.mxu0
  %v5047 = vadd.f32 %v5019, %v5046
  %5048 = vmatmul.bf16.gmra.mxu0 %v4556
  %v5049 = vpop.f32.mrf.mxu0
  %v5050 = vadd.f32 %v5022, %v5049
  %v5051 = vpop.f32.mrf.mxu0
  %v5052 = vadd.f32 %v5024, %v5051
  %5053 = vmatmul.bf16.gmra.mxu0 %v4581
  %v5054 = vpop.f32.mrf.mxu0
  %v5055 = vadd.f32 %v5027, %v5054
  %v5056 = vpop.f32.mrf.mxu0
  %5057 = vdwg.mxu0
  %5058 = vmatpush.bf16.msra.mxu0 %v1882
  %5059 = vmatpush.bf16.msra.mxu0 %v1881
  %5060 = vmatpush.bf16.msra.mxu0 %v1880
  %5061 = vmatpush.bf16.msra.mxu0 %v1879
  %5062 = vmatpush.bf16.msra.mxu0 %v1878
  %5063 = vmatpush.bf16.msra.mxu0 %v1877
  %5064 = vmatpush.bf16.msra.mxu0 %v1876
  %5065 = vmatpush.bf16.msra.mxu0 %v1875
  %5066 = vmatmul.bf16.gmra.mxu0 %v4507
  %v5067 = vpop.f32.mrf.mxu0
  %v5068 = vadd.f32 %v5040, %v5067
  %v5069 = vpop.f32.mrf.mxu0
  %v5070 = vadd.f32 %v5042, %v5069
  %5071 = vmatmul.bf16.gmra.mxu0 %v4532
  %v5072 = vpop.f32.mrf.mxu0
  %v5073 = vadd.f32 %v5045, %v5072
  %v5074 = vpop.f32.mrf.mxu0
  %v5075 = vadd.f32 %v5047, %v5074
  %5076 = vmatmul.bf16.gmra.mxu0 %v4557
  %v5077 = vpop.f32.mrf.mxu0
  %v5078 = vadd.f32 %v5050, %v5077
  %v5079 = vpop.f32.mrf.mxu0
  %v5080 = vadd.f32 %v5052, %v5079
  %5081 = vmatmul.bf16.gmra.mxu0 %v4582
  %v5082 = vpop.f32.mrf.mxu0
  %v5083 = vadd.f32 %v5055, %v5082
  %v5084 = vpop.f32.mrf.mxu0
  %5085 = vdwg.mxu0
  %5086 = vmatpush.bf16.msra.mxu0 %v1890
  %5087 = vmatpush.bf16.msra.mxu0 %v1889
  %5088 = vmatpush.bf16.msra.mxu0 %v1888
  %5089 = vmatpush.bf16.msra.mxu0 %v1887
  %5090 = vmatpush.bf16.msra.mxu0 %v1886
  %5091 = vmatpush.bf16.msra.mxu0 %v1885
  %5092 = vmatpush.bf16.msra.mxu0 %v1884
  %5093 = vmatpush.bf16.msra.mxu0 %v1883
  %5094 = vmatmul.bf16.gmra.mxu0 %v4508
  %v5095 = vpop.f32.mrf.mxu0
  %v5096 = vadd.f32 %v5068, %v5095
  %v5097 = vpop.f32.mrf.mxu0
  %v5098 = vadd.f32 %v5070, %v5097
  %5099 = vmatmul.bf16.gmra.mxu0 %v4533
  %v5100 = vpop.f32.mrf.mxu0
  %v5101 = vadd.f32 %v5073, %v5100
  %v5102 = vpop.f32.mrf.mxu0
  %v5103 = vadd.f32 %v5075, %v5102
  %5104 = vmatmul.bf16.gmra.mxu0 %v4558
  %v5105 = vpop.f32.mrf.mxu0
  %v5106 = vadd.f32 %v5078, %v5105
  %v5107 = vpop.f32.mrf.mxu0
  %v5108 = vadd.f32 %v5080, %v5107
  %5109 = vmatmul.bf16.gmra.mxu0 %v4583
  %v5110 = vpop.f32.mrf.mxu0
  %v5111 = vadd.f32 %v5083, %v5110
  %v5112 = vpop.f32.mrf.mxu0
  %5113 = vdwg.mxu0
  %5114 = vmatpush.bf16.msra.mxu0 %v1898
  %5115 = vmatpush.bf16.msra.mxu0 %v1897
  %5116 = vmatpush.bf16.msra.mxu0 %v1896
  %5117 = vmatpush.bf16.msra.mxu0 %v1895
  %5118 = vmatpush.bf16.msra.mxu0 %v1894
  %5119 = vmatpush.bf16.msra.mxu0 %v1893
  %5120 = vmatpush.bf16.msra.mxu0 %v1892
  %5121 = vmatpush.bf16.msra.mxu0 %v1891
  %5122 = vmatmul.bf16.gmra.mxu0 %v4509
  %v5123 = vpop.f32.mrf.mxu0
  %v5124 = vadd.f32 %v5096, %v5123
  %v5125 = vpop.f32.mrf.mxu0
  %v5126 = vadd.f32 %v5098, %v5125
  %5127 = vmatmul.bf16.gmra.mxu0 %v4534
  %v5128 = vpop.f32.mrf.mxu0
  %v5129 = vadd.f32 %v5101, %v5128
  %v5130 = vpop.f32.mrf.mxu0
  %v5131 = vadd.f32 %v5103, %v5130
  %5132 = vmatmul.bf16.gmra.mxu0 %v4559
  %v5133 = vpop.f32.mrf.mxu0
  %v5134 = vadd.f32 %v5106, %v5133
  %v5135 = vpop.f32.mrf.mxu0
  %v5136 = vadd.f32 %v5108, %v5135
  %5137 = vmatmul.bf16.gmra.mxu0 %v4584
  %v5138 = vpop.f32.mrf.mxu0
  %v5139 = vadd.f32 %v5111, %v5138
  %v5140 = vpop.f32.mrf.mxu0
  %5141 = vdwg.mxu0
  %5142 = vmatpush.bf16.msra.mxu0 %v1906
  %5143 = vmatpush.bf16.msra.mxu0 %v1905
  %5144 = vmatpush.bf16.msra.mxu0 %v1904
  %5145 = vmatpush.bf16.msra.mxu0 %v1903
  %5146 = vmatpush.bf16.msra.mxu0 %v1902
  %5147 = vmatpush.bf16.msra.mxu0 %v1901
  %5148 = vmatpush.bf16.msra.mxu0 %v1900
  %5149 = vmatpush.bf16.msra.mxu0 %v1899
  %5150 = vmatmul.bf16.gmra.mxu0 %v4510
  %v5151 = vpop.f32.mrf.mxu0
  %v5152 = vadd.f32 %v5124, %v5151
  %v5153 = vpop.f32.mrf.mxu0
  %v5154 = vadd.f32 %v5126, %v5153
  %5155 = vmatmul.bf16.gmra.mxu0 %v4535
  %v5156 = vpop.f32.mrf.mxu0
  %v5157 = vadd.f32 %v5129, %v5156
  %v5158 = vpop.f32.mrf.mxu0
  %v5159 = vadd.f32 %v5131, %v5158
  %5160 = vmatmul.bf16.gmra.mxu0 %v4560
  %v5161 = vpop.f32.mrf.mxu0
  %v5162 = vadd.f32 %v5134, %v5161
  %v5163 = vpop.f32.mrf.mxu0
  %v5164 = vadd.f32 %v5136, %v5163
  %5165 = vmatmul.bf16.gmra.mxu0 %v4585
  %v5166 = vpop.f32.mrf.mxu0
  %v5167 = vadd.f32 %v5139, %v5166
  %v5168 = vpop.f32.mrf.mxu0
  %5169 = vdwg.mxu0
  %5170 = vmatpush.bf16.msra.mxu0 %v1914
  %5171 = vmatpush.bf16.msra.mxu0 %v1913
  %5172 = vmatpush.bf16.msra.mxu0 %v1912
  %5173 = vmatpush.bf16.msra.mxu0 %v1911
  %5174 = vmatpush.bf16.msra.mxu0 %v1910
  %5175 = vmatpush.bf16.msra.mxu0 %v1909
  %5176 = vmatpush.bf16.msra.mxu0 %v1908
  %5177 = vmatpush.bf16.msra.mxu0 %v1907
  %5178 = vmatmul.bf16.gmra.mxu0 %v4511
  %v5179 = vpop.f32.mrf.mxu0
  %v5180 = vadd.f32 %v5152, %v5179
  %v5181 = vpop.f32.mrf.mxu0
  %v5182 = vadd.f32 %v5154, %v5181
  %5183 = vmatmul.bf16.gmra.mxu0 %v4536
  %v5184 = vpop.f32.mrf.mxu0
  %v5185 = vadd.f32 %v5157, %v5184
  %v5186 = vpop.f32.mrf.mxu0
  %v5187 = vadd.f32 %v5159, %v5186
  %5188 = vmatmul.bf16.gmra.mxu0 %v4561
  %v5189 = vpop.f32.mrf.mxu0
  %v5190 = vadd.f32 %v5162, %v5189
  %v5191 = vpop.f32.mrf.mxu0
  %v5192 = vadd.f32 %v5164, %v5191
  %5193 = vmatmul.bf16.gmra.mxu0 %v4586
  %v5194 = vpop.f32.mrf.mxu0
  %v5195 = vadd.f32 %v5167, %v5194
  %v5196 = vpop.f32.mrf.mxu0
  %5197 = vdwg.mxu0
  %5198 = vmatpush.bf16.msra.mxu0 %v1922
  %5199 = vmatpush.bf16.msra.mxu0 %v1921
  %5200 = vmatpush.bf16.msra.mxu0 %v1920
  %5201 = vmatpush.bf16.msra.mxu0 %v1919
  %5202 = vmatpush.bf16.msra.mxu0 %v1918
  %5203 = vmatpush.bf16.msra.mxu0 %v1917
  %5204 = vmatpush.bf16.msra.mxu0 %v1916
  %5205 = vmatpush.bf16.msra.mxu0 %v1915
  %5206 = vmatmul.bf16.gmra.mxu0 %v4512
  %v5207 = vpop.f32.mrf.mxu0
  %v5208 = vadd.f32 %v5180, %v5207
  %v5209 = vpop.f32.mrf.mxu0
  %v5210 = vadd.f32 %v5182, %v5209
  %5211 = vmatmul.bf16.gmra.mxu0 %v4537
  %v5212 = vpop.f32.mrf.mxu0
  %v5213 = vadd.f32 %v5185, %v5212
  %v5214 = vpop.f32.mrf.mxu0
  %v5215 = vadd.f32 %v5187, %v5214
  %5216 = vmatmul.bf16.gmra.mxu0 %v4562
  %v5217 = vpop.f32.mrf.mxu0
  %v5218 = vadd.f32 %v5190, %v5217
  %v5219 = vpop.f32.mrf.mxu0
  %v5220 = vadd.f32 %v5192, %v5219
  %5221 = vmatmul.bf16.gmra.mxu0 %v4587
  %v5222 = vpop.f32.mrf.mxu0
  %v5223 = vadd.f32 %v5195, %v5222
  %v5224 = vpop.f32.mrf.mxu0
  %5225 = vdwg.mxu0
  %5226 = vmatpush.bf16.msra.mxu0 %v1930
  %5227 = vmatpush.bf16.msra.mxu0 %v1929
  %5228 = vmatpush.bf16.msra.mxu0 %v1928
  %5229 = vmatpush.bf16.msra.mxu0 %v1927
  %5230 = vmatpush.bf16.msra.mxu0 %v1926
  %5231 = vmatpush.bf16.msra.mxu0 %v1925
  %5232 = vmatpush.bf16.msra.mxu0 %v1924
  %5233 = vmatpush.bf16.msra.mxu0 %v1923
  %5234 = vmatmul.bf16.gmra.mxu0 %v4513
  %v5235 = vpop.f32.mrf.mxu0
  %v5236 = vadd.f32 %v5208, %v5235
  %v5237 = vpop.f32.mrf.mxu0
  %v5238 = vadd.f32 %v5210, %v5237
  %5239 = vmatmul.bf16.gmra.mxu0 %v4538
  %v5240 = vpop.f32.mrf.mxu0
  %v5241 = vadd.f32 %v5213, %v5240
  %v5242 = vpop.f32.mrf.mxu0
  %v5243 = vadd.f32 %v5215, %v5242
  %5244 = vmatmul.bf16.gmra.mxu0 %v4563
  %v5245 = vpop.f32.mrf.mxu0
  %v5246 = vadd.f32 %v5218, %v5245
  %v5247 = vpop.f32.mrf.mxu0
  %v5248 = vadd.f32 %v5220, %v5247
  %5249 = vmatmul.bf16.gmra.mxu0 %v4588
  %v5250 = vpop.f32.mrf.mxu0
  %v5251 = vadd.f32 %v5223, %v5250
  %v5252 = vpop.f32.mrf.mxu0
  %5253 = vdwg.mxu0
  %5254 = vmatpush.bf16.msra.mxu0 %v1938
  %5255 = vmatpush.bf16.msra.mxu0 %v1937
  %5256 = vmatpush.bf16.msra.mxu0 %v1936
  %5257 = vmatpush.bf16.msra.mxu0 %v1935
  %5258 = vmatpush.bf16.msra.mxu0 %v1934
  %5259 = vmatpush.bf16.msra.mxu0 %v1933
  %5260 = vmatpush.bf16.msra.mxu0 %v1932
  %5261 = vmatpush.bf16.msra.mxu0 %v1931
  %5262 = vmatmul.bf16.gmra.mxu0 %v4514
  %v5263 = vpop.f32.mrf.mxu0
  %v5264 = vadd.f32 %v5236, %v5263
  %v5265 = vpop.f32.mrf.mxu0
  %v5266 = vadd.f32 %v5238, %v5265
  %5267 = vmatmul.bf16.gmra.mxu0 %v4539
  %v5268 = vpop.f32.mrf.mxu0
  %v5269 = vadd.f32 %v5241, %v5268
  %v5270 = vpop.f32.mrf.mxu0
  %v5271 = vadd.f32 %v5243, %v5270
  %5272 = vmatmul.bf16.gmra.mxu0 %v4564
  %v5273 = vpop.f32.mrf.mxu0
  %v5274 = vadd.f32 %v5246, %v5273
  %v5275 = vpop.f32.mrf.mxu0
  %v5276 = vadd.f32 %v5248, %v5275
  %5277 = vmatmul.bf16.gmra.mxu0 %v4589
  %v5278 = vpop.f32.mrf.mxu0
  %v5279 = vadd.f32 %v5251, %v5278
  %v5280 = vpop.f32.mrf.mxu0
  %5281 = vdwg.mxu0
  %5282 = vmatpush.bf16.msra.mxu0 %v1946
  %5283 = vmatpush.bf16.msra.mxu0 %v1945
  %5284 = vmatpush.bf16.msra.mxu0 %v1944
  %5285 = vmatpush.bf16.msra.mxu0 %v1943
  %5286 = vmatpush.bf16.msra.mxu0 %v1942
  %5287 = vmatpush.bf16.msra.mxu0 %v1941
  %5288 = vmatpush.bf16.msra.mxu0 %v1940
  %5289 = vmatpush.bf16.msra.mxu0 %v1939
  %5290 = vmatmul.bf16.gmra.mxu0 %v4515
  %v5291 = vpop.f32.mrf.mxu0
  %v5292 = vadd.f32 %v5264, %v5291
  %v5293 = vpop.f32.mrf.mxu0
  %v5294 = vadd.f32 %v5266, %v5293
  %5295 = vmatmul.bf16.gmra.mxu0 %v4540
  %v5296 = vpop.f32.mrf.mxu0
  %v5297 = vadd.f32 %v5269, %v5296
  %v5298 = vpop.f32.mrf.mxu0
  %v5299 = vadd.f32 %v5271, %v5298
  %5300 = vmatmul.bf16.gmra.mxu0 %v4565
  %v5301 = vpop.f32.mrf.mxu0
  %v5302 = vadd.f32 %v5274, %v5301
  %v5303 = vpop.f32.mrf.mxu0
  %v5304 = vadd.f32 %v5276, %v5303
  %5305 = vmatmul.bf16.gmra.mxu0 %v4590
  %v5306 = vpop.f32.mrf.mxu0
  %v5307 = vadd.f32 %v5279, %v5306
  %v5308 = vpop.f32.mrf.mxu0
  %5309 = vdwg.mxu0
  %5310 = vmatpush.bf16.msra.mxu0 %v1954
  %5311 = vmatpush.bf16.msra.mxu0 %v1953
  %5312 = vmatpush.bf16.msra.mxu0 %v1952
  %5313 = vmatpush.bf16.msra.mxu0 %v1951
  %5314 = vmatpush.bf16.msra.mxu0 %v1950
  %5315 = vmatpush.bf16.msra.mxu0 %v1949
  %5316 = vmatpush.bf16.msra.mxu0 %v1948
  %5317 = vmatpush.bf16.msra.mxu0 %v1947
  %5318 = vmatmul.bf16.gmra.mxu0 %v4516
  %v5319 = vpop.f32.mrf.mxu0
  %v5320 = vadd.f32 %v5292, %v5319
  %v5321 = vpop.f32.mrf.mxu0
  %v5322 = vadd.f32 %v5294, %v5321
  %5323 = vmatmul.bf16.gmra.mxu0 %v4541
  %v5324 = vpop.f32.mrf.mxu0
  %v5325 = vadd.f32 %v5297, %v5324
  %v5326 = vpop.f32.mrf.mxu0
  %v5327 = vadd.f32 %v5299, %v5326
  %5328 = vmatmul.bf16.gmra.mxu0 %v4566
  %v5329 = vpop.f32.mrf.mxu0
  %v5330 = vadd.f32 %v5302, %v5329
  %v5331 = vpop.f32.mrf.mxu0
  %v5332 = vadd.f32 %v5304, %v5331
  %5333 = vmatmul.bf16.gmra.mxu0 %v4591
  %v5334 = vpop.f32.mrf.mxu0
  %v5335 = vadd.f32 %v5307, %v5334
  %v5336 = vpop.f32.mrf.mxu0
  %5337 = vdwg.mxu0
  %5338 = vmatpush.bf16.msra.mxu0 %v1962
  %5339 = vmatpush.bf16.msra.mxu0 %v1961
  %5340 = vmatpush.bf16.msra.mxu0 %v1960
  %5341 = vmatpush.bf16.msra.mxu0 %v1959
  %5342 = vmatpush.bf16.msra.mxu0 %v1958
  %5343 = vmatpush.bf16.msra.mxu0 %v1957
  %5344 = vmatpush.bf16.msra.mxu0 %v1956
  %5345 = vmatpush.bf16.msra.mxu0 %v1955
  %5346 = vmatmul.bf16.gmra.mxu0 %v4517
  %v5347 = vpop.f32.mrf.mxu0
  %v5348 = vadd.f32 %v5320, %v5347
  %v5349 = vpop.f32.mrf.mxu0
  %v5350 = vadd.f32 %v5322, %v5349
  %5351 = vmatmul.bf16.gmra.mxu0 %v4542
  %v5352 = vpop.f32.mrf.mxu0
  %v5353 = vadd.f32 %v5325, %v5352
  %v5354 = vpop.f32.mrf.mxu0
  %v5355 = vadd.f32 %v5327, %v5354
  %5356 = vmatmul.bf16.gmra.mxu0 %v4567
  %v5357 = vpop.f32.mrf.mxu0
  %v5358 = vadd.f32 %v5330, %v5357
  %v5359 = vpop.f32.mrf.mxu0
  %v5360 = vadd.f32 %v5332, %v5359
  %5361 = vmatmul.bf16.gmra.mxu0 %v4592
  %v5362 = vpop.f32.mrf.mxu0
  %v5363 = vadd.f32 %v5335, %v5362
  %v5364 = vpop.f32.mrf.mxu0
  %5365 = vdwg.mxu0
  %5366 = vmatpush.bf16.msra.mxu0 %v1970
  %5367 = vmatpush.bf16.msra.mxu0 %v1969
  %5368 = vmatpush.bf16.msra.mxu0 %v1968
  %5369 = vmatpush.bf16.msra.mxu0 %v1967
  %5370 = vmatpush.bf16.msra.mxu0 %v1966
  %5371 = vmatpush.bf16.msra.mxu0 %v1965
  %5372 = vmatpush.bf16.msra.mxu0 %v1964
  %5373 = vmatpush.bf16.msra.mxu0 %v1963
  %5374 = vmatmul.bf16.gmra.mxu0 %v4518
  %v5375 = vpop.f32.mrf.mxu0
  %v5376 = vadd.f32 %v5348, %v5375
  %v5377 = vpop.f32.mrf.mxu0
  %v5378 = vadd.f32 %v5350, %v5377
  %5379 = vmatmul.bf16.gmra.mxu0 %v4543
  %v5380 = vpop.f32.mrf.mxu0
  %v5381 = vadd.f32 %v5353, %v5380
  %v5382 = vpop.f32.mrf.mxu0
  %v5383 = vadd.f32 %v5355, %v5382
  %5384 = vmatmul.bf16.gmra.mxu0 %v4568
  %v5385 = vpop.f32.mrf.mxu0
  %v5386 = vadd.f32 %v5358, %v5385
  %v5387 = vpop.f32.mrf.mxu0
  %v5388 = vadd.f32 %v5360, %v5387
  %5389 = vmatmul.bf16.gmra.mxu0 %v4593
  %v5390 = vpop.f32.mrf.mxu0
  %v5391 = vadd.f32 %v5363, %v5390
  %v5392 = vpop.f32.mrf.mxu0
  %5393 = vdwg.mxu0
  %v5394 = vmax.f32 %v4129, %v5376
  %v5395 = vmax.f32 %v4130, %v5378
  %v5396 = vmax.f32 %v4131, %v5381
  %v5397 = vmax.f32 %v4132, %v5383
  %v5398 = vmax.f32 %v4133, %v5386
  %v5399 = vmax.f32 %v4134, %v5388
  %v5400 = vmax.f32 %v4135, %v5391
  %s5401 = scalar_lea.vmem %s0, 2100
  %v5402 = vld [vmem:[%s5401] sm:$0xff]
  %v5403 = vld [vmem:[%s5401 + $0x8] sm:$0xff]
  %v5404 = vld [vmem:[%s5401 + $0x10] sm:$0xff]
  %v5405 = vld [vmem:[%s5401 + $0x18] sm:$0xff]
  %v5406 = vld [vmem:[%s5401 + $0x20] sm:$0xff]
  %v5407 = vld [vmem:[%s5401 + $0x28] sm:$0xff]
  %v5408 = vld [vmem:[%s5401 + $0x30] sm:$0xff]
  %v5409 = vld [vmem:[%s5401 + $0x38] sm:$0xff]
  %v5410 = vld [vmem:[%s5401 + $0x40] sm:$0xff]
  %v5411 = vld [vmem:[%s5401 + $0x48] sm:$0xff]
  %v5412 = vld [vmem:[%s5401 + $0x50] sm:$0xff]
  %v5413 = vld [vmem:[%s5401 + $0x58] sm:$0xff]
  %v5414 = vld [vmem:[%s5401 + $0x60] sm:$0xf]
  %v5415 = vld [vmem:[%s5401 + $0x64] sm:$0xff]
  %v5416 = vld [vmem:[%s5401 + $0x6c] sm:$0xff]
  %v5417 = vld [vmem:[%s5401 + $0x74] sm:$0xff]
  %v5418 = vld [vmem:[%s5401 + $0x7c] sm:$0xff]
  %v5419 = vld [vmem:[%s5401 + $0x84] sm:$0xff]
  %v5420 = vld [vmem:[%s5401 + $0x8c] sm:$0xff]
  %v5421 = vld [vmem:[%s5401 + $0x94] sm:$0xff]
  %v5422 = vld [vmem:[%s5401 + $0x9c] sm:$0xff]
  %v5423 = vld [vmem:[%s5401 + $0xa4] sm:$0xff]
  %v5424 = vld [vmem:[%s5401 + $0xac] sm:$0xff]
  %v5425 = vld [vmem:[%s5401 + $0xb4] sm:$0xff]
  %v5426 = vld [vmem:[%s5401 + $0xbc] sm:$0xff]
  %v5427 = vld [vmem:[%s5401 + $0xc4] sm:$0xf]
  %v5428 = vld [vmem:[%s5401 + $0xc8] sm:$0xff]
  %v5429 = vld [vmem:[%s5401 + $0xd0] sm:$0xff]
  %v5430 = vld [vmem:[%s5401 + $0xd8] sm:$0xff]
  %v5431 = vld [vmem:[%s5401 + $0xe0] sm:$0xff]
  %v5432 = vld [vmem:[%s5401 + $0xe8] sm:$0xff]
  %v5433 = vld [vmem:[%s5401 + $0xf0] sm:$0xff]
  %v5434 = vld [vmem:[%s5401 + $0xf8] sm:$0xff]
  %v5435 = vld [vmem:[%s5401 + $0x100] sm:$0xff]
  %v5436 = vld [vmem:[%s5401 + $0x108] sm:$0xff]
  %v5437 = vld [vmem:[%s5401 + $0x110] sm:$0xff]
  %v5438 = vld [vmem:[%s5401 + $0x118] sm:$0xff]
  %v5439 = vld [vmem:[%s5401 + $0x120] sm:$0xff]
  %v5440 = vld [vmem:[%s5401 + $0x128] sm:$0xf]
  %v5441 = vld [vmem:[%s5401 + $0x12c] sm:$0xff]
  %v5442 = vld [vmem:[%s5401 + $0x134] sm:$0xff]
  %v5443 = vld [vmem:[%s5401 + $0x13c] sm:$0xff]
  %v5444 = vld [vmem:[%s5401 + $0x144] sm:$0xff]
  %v5445 = vld [vmem:[%s5401 + $0x14c] sm:$0xff]
  %v5446 = vld [vmem:[%s5401 + $0x154] sm:$0xff]
  %v5447 = vld [vmem:[%s5401 + $0x15c] sm:$0xff]
  %v5448 = vld [vmem:[%s5401 + $0x164] sm:$0xff]
  %v5449 = vld [vmem:[%s5401 + $0x16c] sm:$0xff]
  %v5450 = vld [vmem:[%s5401 + $0x174] sm:$0xff]
  %v5451 = vld [vmem:[%s5401 + $0x17c] sm:$0xff]
  %v5452 = vld [vmem:[%s5401 + $0x184] sm:$0xff]
  %v5453 = vld [vmem:[%s5401 + $0x18c] sm:$0xf]
  %v5454 = vld [vmem:[%s5401 + $0x190] sm:$0xff]
  %v5455 = vld [vmem:[%s5401 + $0x198] sm:$0xff]
  %v5456 = vld [vmem:[%s5401 + $0x1a0] sm:$0xff]
  %v5457 = vld [vmem:[%s5401 + $0x1a8] sm:$0xff]
  %v5458 = vld [vmem:[%s5401 + $0x1b0] sm:$0xff]
  %v5459 = vld [vmem:[%s5401 + $0x1b8] sm:$0xff]
  %v5460 = vld [vmem:[%s5401 + $0x1c0] sm:$0xff]
  %v5461 = vld [vmem:[%s5401 + $0x1c8] sm:$0xff]
  %v5462 = vld [vmem:[%s5401 + $0x1d0] sm:$0xff]
  %v5463 = vld [vmem:[%s5401 + $0x1d8] sm:$0xff]
  %v5464 = vld [vmem:[%s5401 + $0x1e0] sm:$0xff]
  %v5465 = vld [vmem:[%s5401 + $0x1e8] sm:$0xff]
  %v5466 = vld [vmem:[%s5401 + $0x1f0] sm:$0xf]
  %v5467 = vld [vmem:[%s5401 + $0x1f4] sm:$0xff]
  %v5468 = vld [vmem:[%s5401 + $0x1fc] sm:$0xff]
  %v5469 = vld [vmem:[%s5401 + $0x204] sm:$0xff]
  %v5470 = vld [vmem:[%s5401 + $0x20c] sm:$0xff]
  %v5471 = vld [vmem:[%s5401 + $0x214] sm:$0xff]
  %v5472 = vld [vmem:[%s5401 + $0x21c] sm:$0xff]
  %v5473 = vld [vmem:[%s5401 + $0x224] sm:$0xff]
  %v5474 = vld [vmem:[%s5401 + $0x22c] sm:$0xff]
  %v5475 = vld [vmem:[%s5401 + $0x234] sm:$0xff]
  %v5476 = vld [vmem:[%s5401 + $0x23c] sm:$0xff]
  %v5477 = vld [vmem:[%s5401 + $0x244] sm:$0xff]
  %v5478 = vld [vmem:[%s5401 + $0x24c] sm:$0xff]
  %v5479 = vld [vmem:[%s5401 + $0x254] sm:$0xf]
  %v5480 = vld [vmem:[%s5401 + $0x258] sm:$0xff]
  %v5481 = vld [vmem:[%s5401 + $0x260] sm:$0xff]
  %v5482 = vld [vmem:[%s5401 + $0x268] sm:$0xff]
  %v5483 = vld [vmem:[%s5401 + $0x270] sm:$0xff]
  %v5484 = vld [vmem:[%s5401 + $0x278] sm:$0xff]
  %v5485 = vld [vmem:[%s5401 + $0x280] sm:$0xff]
  %v5486 = vld [vmem:[%s5401 + $0x288] sm:$0xff]
  %v5487 = vld [vmem:[%s5401 + $0x290] sm:$0xff]
  %v5488 = vld [vmem:[%s5401 + $0x298] sm:$0xff]
  %v5489 = vld [vmem:[%s5401 + $0x2a0] sm:$0xff]
  %v5490 = vld [vmem:[%s5401 + $0x2a8] sm:$0xff]
  %v5491 = vld [vmem:[%s5401 + $0x2b0] sm:$0xff]
  %v5492 = vld [vmem:[%s5401 + $0x2b8] sm:$0xf]
  %v5584 = vunpack.c.l.b16 %v5402
  %v5585 = vunpack.c.h.b16 %v5402
  %v5586 = vunpack.c.l.b16 %v5403
  %v5587 = vunpack.c.h.b16 %v5403
  %v5588 = vunpack.c.l.b16 %v5404
  %v5589 = vunpack.c.h.b16 %v5404
  %v5590 = vunpack.c.l.b16 %v5405
  %v5591 = vunpack.c.h.b16 %v5405
  %v5592 = vunpack.c.l.b16 %v5406
  %v5593 = vunpack.c.h.b16 %v5406
  %v5594 = vunpack.c.l.b16 %v5407
  %v5595 = vunpack.c.h.b16 %v5407
  %v5596 = vunpack.c.l.b16 %v5408
  %v5597 = vunpack.c.h.b16 %v5408
  %v5598 = vunpack.c.l.b16 %v5409
  %v5599 = vunpack.c.h.b16 %v5409
  %v5600 = vunpack.c.l.b16 %v5410
  %v5601 = vunpack.c.h.b16 %v5410
  %v5602 = vunpack.c.l.b16 %v5411
  %v5603 = vunpack.c.h.b16 %v5411
  %v5604 = vunpack.c.l.b16 %v5412
  %v5605 = vunpack.c.h.b16 %v5412
  %v5606 = vunpack.c.l.b16 %v5413
  %v5607 = vunpack.c.h.b16 %v5413
  %v5608 = vunpack.c.l.b16 %v5414
  %v5609 = vunpack.c.l.b16 %v5415
  %v5610 = vunpack.c.h.b16 %v5415
  %v5611 = vunpack.c.l.b16 %v5416
  %v5612 = vunpack.c.h.b16 %v5416
  %v5613 = vunpack.c.l.b16 %v5417
  %v5614 = vunpack.c.h.b16 %v5417
  %v5615 = vunpack.c.l.b16 %v5418
  %v5616 = vunpack.c.h.b16 %v5418
  %v5617 = vunpack.c.l.b16 %v5419
  %v5618 = vunpack.c.h.b16 %v5419
  %v5619 = vunpack.c.l.b16 %v5420
  %v5620 = vunpack.c.h.b16 %v5420
  %v5621 = vunpack.c.l.b16 %v5421
  %v5622 = vunpack.c.h.b16 %v5421
  %v5623 = vunpack.c.l.b16 %v5422
  %v5624 = vunpack.c.h.b16 %v5422
  %v5625 = vunpack.c.l.b16 %v5423
  %v5626 = vunpack.c.h.b16 %v5423
  %v5627 = vunpack.c.l.b16 %v5424
  %v5628 = vunpack.c.h.b16 %v5424
  %v5629 = vunpack.c.l.b16 %v5425
  %v5630 = vunpack.c.h.b16 %v5425
  %v5631 = vunpack.c.l.b16 %v5426
  %v5632 = vunpack.c.h.b16 %v5426
  %v5633 = vunpack.c.l.b16 %v5427
  %v5634 = vunpack.c.l.b16 %v5428
  %v5635 = vunpack.c.h.b16 %v5428
  %v5636 = vunpack.c.l.b16 %v5429
  %v5637 = vunpack.c.h.b16 %v5429
  %v5638 = vunpack.c.l.b16 %v5430
  %v5639 = vunpack.c.h.b16 %v5430
  %v5640 = vunpack.c.l.b16 %v5431
  %v5641 = vunpack.c.h.b16 %v5431
  %v5642 = vunpack.c.l.b16 %v5432
  %v5643 = vunpack.c.h.b16 %v5432
  %v5644 = vunpack.c.l.b16 %v5433
  %v5645 = vunpack.c.h.b16 %v5433
  %v5646 = vunpack.c.l.b16 %v5434
  %v5647 = vunpack.c.h.b16 %v5434
  %v5648 = vunpack.c.l.b16 %v5435
  %v5649 = vunpack.c.h.b16 %v5435
  %v5650 = vunpack.c.l.b16 %v5436
  %v5651 = vunpack.c.h.b16 %v5436
  %v5652 = vunpack.c.l.b16 %v5437
  %v5653 = vunpack.c.h.b16 %v5437
  %v5654 = vunpack.c.l.b16 %v5438
  %v5655 = vunpack.c.h.b16 %v5438
  %v5656 = vunpack.c.l.b16 %v5439
  %v5657 = vunpack.c.h.b16 %v5439
  %v5658 = vunpack.c.l.b16 %v5440
  %v5659 = vunpack.c.l.b16 %v5441
  %v5660 = vunpack.c.h.b16 %v5441
  %v5661 = vunpack.c.l.b16 %v5442
  %v5662 = vunpack.c.h.b16 %v5442
  %v5663 = vunpack.c.l.b16 %v5443
  %v5664 = vunpack.c.h.b16 %v5443
  %v5665 = vunpack.c.l.b16 %v5444
  %v5666 = vunpack.c.h.b16 %v5444
  %v5667 = vunpack.c.l.b16 %v5445
  %v5668 = vunpack.c.h.b16 %v5445
  %v5669 = vunpack.c.l.b16 %v5446
  %v5670 = vunpack.c.h.b16 %v5446
  %v5671 = vunpack.c.l.b16 %v5447
  %v5672 = vunpack.c.h.b16 %v5447
  %v5673 = vunpack.c.l.b16 %v5448
  %v5674 = vunpack.c.h.b16 %v5448
  %v5675 = vunpack.c.l.b16 %v5449
  %v5676 = vunpack.c.h.b16 %v5449
  %v5677 = vunpack.c.l.b16 %v5450
  %v5678 = vunpack.c.h.b16 %v5450
  %v5679 = vunpack.c.l.b16 %v5451
  %v5680 = vunpack.c.h.b16 %v5451
  %v5681 = vunpack.c.l.b16 %v5452
  %v5682 = vunpack.c.h.b16 %v5452
  %v5683 = vunpack.c.l.b16 %v5453
  %v5684 = vunpack.c.l.b16 %v5454
  %v5685 = vunpack.c.h.b16 %v5454
  %v5686 = vunpack.c.l.b16 %v5455
  %v5687 = vunpack.c.h.b16 %v5455
  %v5688 = vunpack.c.l.b16 %v5456
  %v5689 = vunpack.c.h.b16 %v5456
  %v5690 = vunpack.c.l.b16 %v5457
  %v5691 = vunpack.c.h.b16 %v5457
  %v5692 = vunpack.c.l.b16 %v5458
  %v5693 = vunpack.c.h.b16 %v5458
  %v5694 = vunpack.c.l.b16 %v5459
  %v5695 = vunpack.c.h.b16 %v5459
  %v5696 = vunpack.c.l.b16 %v5460
  %v5697 = vunpack.c.h.b16 %v5460
  %v5698 = vunpack.c.l.b16 %v5461
  %v5699 = vunpack.c.h.b16 %v5461
  %v5700 = vunpack.c.l.b16 %v5462
  %v5701 = vunpack.c.h.b16 %v5462
  %v5702 = vunpack.c.l.b16 %v5463
  %v5703 = vunpack.c.h.b16 %v5463
  %v5704 = vunpack.c.l.b16 %v5464
  %v5705 = vunpack.c.h.b16 %v5464
  %v5706 = vunpack.c.l.b16 %v5465
  %v5707 = vunpack.c.h.b16 %v5465
  %v5708 = vunpack.c.l.b16 %v5466
  %v5709 = vunpack.c.l.b16 %v5467
  %v5710 = vunpack.c.h.b16 %v5467
  %v5711 = vunpack.c.l.b16 %v5468
  %v5712 = vunpack.c.h.b16 %v5468
  %v5713 = vunpack.c.l.b16 %v5469
  %v5714 = vunpack.c.h.b16 %v5469
  %v5715 = vunpack.c.l.b16 %v5470
  %v5716 = vunpack.c.h.b16 %v5470
  %v5717 = vunpack.c.l.b16 %v5471
  %v5718 = vunpack.c.h.b16 %v5471
  %v5719 = vunpack.c.l.b16 %v5472
  %v5720 = vunpack.c.h.b16 %v5472
  %v5721 = vunpack.c.l.b16 %v5473
  %v5722 = vunpack.c.h.b16 %v5473
  %v5723 = vunpack.c.l.b16 %v5474
  %v5724 = vunpack.c.h.b16 %v5474
  %v5725 = vunpack.c.l.b16 %v5475
  %v5726 = vunpack.c.h.b16 %v5475
  %v5727 = vunpack.c.l.b16 %v5476
  %v5728 = vunpack.c.h.b16 %v5476
  %v5729 = vunpack.c.l.b16 %v5477
  %v5730 = vunpack.c.h.b16 %v5477
  %v5731 = vunpack.c.l.b16 %v5478
  %v5732 = vunpack.c.h.b16 %v5478
  %v5733 = vunpack.c.l.b16 %v5479
  %v5734 = vunpack.c.l.b16 %v5480
  %v5735 = vunpack.c.h.b16 %v5480
  %v5736 = vunpack.c.l.b16 %v5481
  %v5737 = vunpack.c.h.b16 %v5481
  %v5738 = vunpack.c.l.b16 %v5482
  %v5739 = vunpack.c.h.b16 %v5482
  %v5740 = vunpack.c.l.b16 %v5483
  %v5741 = vunpack.c.h.b16 %v5483
  %v5742 = vunpack.c.l.b16 %v5484
  %v5743 = vunpack.c.h.b16 %v5484
  %v5744 = vunpack.c.l.b16 %v5485
  %v5745 = vunpack.c.h.b16 %v5485
  %v5746 = vunpack.c.l.b16 %v5486
  %v5747 = vunpack.c.h.b16 %v5486
  %v5748 = vunpack.c.l.b16 %v5487
  %v5749 = vunpack.c.h.b16 %v5487
  %v5750 = vunpack.c.l.b16 %v5488
  %v5751 = vunpack.c.h.b16 %v5488
  %v5752 = vunpack.c.l.b16 %v5489
  %v5753 = vunpack.c.h.b16 %v5489
  %v5754 = vunpack.c.l.b16 %v5490
  %v5755 = vunpack.c.h.b16 %v5490
  %v5756 = vunpack.c.l.b16 %v5491
  %v5757 = vunpack.c.h.b16 %v5491
  %v5758 = vunpack.c.l.b16 %v5492
  %v5759 = vpack.c.b16 %v5609, %v5584
  %v5760 = vpack.c.b16 %v5610, %v5585
  %v5761 = vpack.c.b16 %v5611, %v5586
  %v5762 = vpack.c.b16 %v5612, %v5587
  %v5763 = vpack.c.b16 %v5613, %v5588
  %v5764 = vpack.c.b16 %v5614, %v5589
  %v5765 = vpack.c.b16 %v5615, %v5590
  %v5766 = vpack.c.b16 %v5616, %v5591
  %v5767 = vpack.c.b16 %v5617, %v5592
  %v5768 = vpack.c.b16 %v5618, %v5593
  %v5769 = vpack.c.b16 %v5619, %v5594
  %v5770 = vpack.c.b16 %v5620, %v5595
  %v5771 = vpack.c.b16 %v5621, %v5596
  %v5772 = vpack.c.b16 %v5622, %v5597
  %v5773 = vpack.c.b16 %v5623, %v5598
  %v5774 = vpack.c.b16 %v5624, %v5599
  %v5775 = vpack.c.b16 %v5625, %v5600
  %v5776 = vpack.c.b16 %v5626, %v5601
  %v5777 = vpack.c.b16 %v5627, %v5602
  %v5778 = vpack.c.b16 %v5628, %v5603
  %v5779 = vpack.c.b16 %v5629, %v5604
  %v5780 = vpack.c.b16 %v5630, %v5605
  %v5781 = vpack.c.b16 %v5631, %v5606
  %v5782 = vpack.c.b16 %v5632, %v5607
  %v5783 = vpack.c.b16 %v5633, %v5608
  %v5784 = vpack.c.b16 %v5659, %v5634
  %v5785 = vpack.c.b16 %v5660, %v5635
  %v5786 = vpack.c.b16 %v5661, %v5636
  %v5787 = vpack.c.b16 %v5662, %v5637
  %v5788 = vpack.c.b16 %v5663, %v5638
  %v5789 = vpack.c.b16 %v5664, %v5639
  %v5790 = vpack.c.b16 %v5665, %v5640
  %v5791 = vpack.c.b16 %v5666, %v5641
  %v5792 = vpack.c.b16 %v5667, %v5642
  %v5793 = vpack.c.b16 %v5668, %v5643
  %v5794 = vpack.c.b16 %v5669, %v5644
  %v5795 = vpack.c.b16 %v5670, %v5645
  %v5796 = vpack.c.b16 %v5671, %v5646
  %v5797 = vpack.c.b16 %v5672, %v5647
  %v5798 = vpack.c.b16 %v5673, %v5648
  %v5799 = vpack.c.b16 %v5674, %v5649
  %v5800 = vpack.c.b16 %v5675, %v5650
  %v5801 = vpack.c.b16 %v5676, %v5651
  %v5802 = vpack.c.b16 %v5677, %v5652
  %v5803 = vpack.c.b16 %v5678, %v5653
  %v5804 = vpack.c.b16 %v5679, %v5654
  %v5805 = vpack.c.b16 %v5680, %v5655
  %v5806 = vpack.c.b16 %v5681, %v5656
  %v5807 = vpack.c.b16 %v5682, %v5657
  %v5808 = vpack.c.b16 %v5683, %v5658
  %v5809 = vpack.c.b16 %v5709, %v5684
  %v5810 = vpack.c.b16 %v5710, %v5685
  %v5811 = vpack.c.b16 %v5711, %v5686
  %v5812 = vpack.c.b16 %v5712, %v5687
  %v5813 = vpack.c.b16 %v5713, %v5688
  %v5814 = vpack.c.b16 %v5714, %v5689
  %v5815 = vpack.c.b16 %v5715, %v5690
  %v5816 = vpack.c.b16 %v5716, %v5691
  %v5817 = vpack.c.b16 %v5717, %v5692
  %v5818 = vpack.c.b16 %v5718, %v5693
  %v5819 = vpack.c.b16 %v5719, %v5694
  %v5820 = vpack.c.b16 %v5720, %v5695
  %v5821 = vpack.c.b16 %v5721, %v5696
  %v5822 = vpack.c.b16 %v5722, %v5697
  %v5823 = vpack.c.b16 %v5723, %v5698
  %v5824 = vpack.c.b16 %v5724, %v5699
  %v5825 = vpack.c.b16 %v5725, %v5700
  %v5826 = vpack.c.b16 %v5726, %v5701
  %v5827 = vpack.c.b16 %v5727, %v5702
  %v5828 = vpack.c.b16 %v5728, %v5703
  %v5829 = vpack.c.b16 %v5729, %v5704
  %v5830 = vpack.c.b16 %v5730, %v5705
  %v5831 = vpack.c.b16 %v5731, %v5706
  %v5832 = vpack.c.b16 %v5732, %v5707
  %v5833 = vpack.c.b16 %v5733, %v5708
  %v5834 = vpack.c.b16 %v5734, %v5734
  %v5835 = vpack.c.b16 %v5735, %v5735
  %v5836 = vpack.c.b16 %v5736, %v5736
  %v5837 = vpack.c.b16 %v5737, %v5737
  %v5838 = vpack.c.b16 %v5738, %v5738
  %v5839 = vpack.c.b16 %v5739, %v5739
  %v5840 = vpack.c.b16 %v5740, %v5740
  %v5841 = vpack.c.b16 %v5741, %v5741
  %v5842 = vpack.c.b16 %v5742, %v5742
  %v5843 = vpack.c.b16 %v5743, %v5743
  %v5844 = vpack.c.b16 %v5744, %v5744
  %v5845 = vpack.c.b16 %v5745, %v5745
  %v5846 = vpack.c.b16 %v5746, %v5746
  %v5847 = vpack.c.b16 %v5747, %v5747
  %v5848 = vpack.c.b16 %v5748, %v5748
  %v5849 = vpack.c.b16 %v5749, %v5749
  %v5850 = vpack.c.b16 %v5750, %v5750
  %v5851 = vpack.c.b16 %v5751, %v5751
  %v5852 = vpack.c.b16 %v5752, %v5752
  %v5853 = vpack.c.b16 %v5753, %v5753
  %v5854 = vpack.c.b16 %v5754, %v5754
  %v5855 = vpack.c.b16 %v5755, %v5755
  %v5856 = vpack.c.b16 %v5756, %v5756
  %v5857 = vpack.c.b16 %v5757, %v5757
  %v5858 = vpack.c.b16 %v5758, %v5758
  %5959 = vmatpush.bf16.msra.mxu0 %v1778
  %5960 = vmatpush.bf16.msra.mxu0 %v1777
  %5961 = vmatpush.bf16.msra.mxu0 %v1776
  %5962 = vmatpush.bf16.msra.mxu0 %v1775
  %5963 = vmatpush.bf16.msra.mxu0 %v1774
  %5964 = vmatpush.bf16.msra.mxu0 %v1773
  %5965 = vmatpush.bf16.msra.mxu0 %v1772
  %5966 = vmatpush.bf16.msra.mxu0 %v1771
  %5967 = vmatmul.bf16.gmra.mxu0 %v5759
  %v5968 = vpop.f32.mrf.mxu0
  %v5969 = vadd.f32 0.0, %v5968
  %v5970 = vpop.f32.mrf.mxu0
  %v5971 = vadd.f32 0.0, %v5970
  %5972 = vmatmul.bf16.gmra.mxu0 %v5784
  %v5973 = vpop.f32.mrf.mxu0
  %v5974 = vadd.f32 0.0, %v5973
  %v5975 = vpop.f32.mrf.mxu0
  %v5976 = vadd.f32 0.0, %v5975
  %5977 = vmatmul.bf16.gmra.mxu0 %v5809
  %v5978 = vpop.f32.mrf.mxu0
  %v5979 = vadd.f32 0.0, %v5978
  %v5980 = vpop.f32.mrf.mxu0
  %v5981 = vadd.f32 0.0, %v5980
  %5982 = vmatmul.bf16.gmra.mxu0 %v5834
  %v5983 = vpop.f32.mrf.mxu0
  %v5984 = vadd.f32 0.0, %v5983
  %v5985 = vpop.f32.mrf.mxu0
  %5986 = vdwg.mxu0
  %5987 = vmatpush.bf16.msra.mxu0 %v1786
  %5988 = vmatpush.bf16.msra.mxu0 %v1785
  %5989 = vmatpush.bf16.msra.mxu0 %v1784
  %5990 = vmatpush.bf16.msra.mxu0 %v1783
  %5991 = vmatpush.bf16.msra.mxu0 %v1782
  %5992 = vmatpush.bf16.msra.mxu0 %v1781
  %5993 = vmatpush.bf16.msra.mxu0 %v1780
  %5994 = vmatpush.bf16.msra.mxu0 %v1779
  %5995 = vmatmul.bf16.gmra.mxu0 %v5760
  %v5996 = vpop.f32.mrf.mxu0
  %v5997 = vadd.f32 %v5969, %v5996
  %v5998 = vpop.f32.mrf.mxu0
  %v5999 = vadd.f32 %v5971, %v5998
  %6000 = vmatmul.bf16.gmra.mxu0 %v5785
  %v6001 = vpop.f32.mrf.mxu0
  %v6002 = vadd.f32 %v5974, %v6001
  %v6003 = vpop.f32.mrf.mxu0
  %v6004 = vadd.f32 %v5976, %v6003
  %6005 = vmatmul.bf16.gmra.mxu0 %v5810
  %v6006 = vpop.f32.mrf.mxu0
  %v6007 = vadd.f32 %v5979, %v6006
  %v6008 = vpop.f32.mrf.mxu0
  %v6009 = vadd.f32 %v5981, %v6008
  %6010 = vmatmul.bf16.gmra.mxu0 %v5835
  %v6011 = vpop.f32.mrf.mxu0
  %v6012 = vadd.f32 %v5984, %v6011
  %v6013 = vpop.f32.mrf.mxu0
  %6014 = vdwg.mxu0
  %6015 = vmatpush.bf16.msra.mxu0 %v1794
  %6016 = vmatpush.bf16.msra.mxu0 %v1793
  %6017 = vmatpush.bf16.msra.mxu0 %v1792
  %6018 = vmatpush.bf16.msra.mxu0 %v1791
  %6019 = vmatpush.bf16.msra.mxu0 %v1790
  %6020 = vmatpush.bf16.msra.mxu0 %v1789
  %6021 = vmatpush.bf16.msra.mxu0 %v1788
  %6022 = vmatpush.bf16.msra.mxu0 %v1787
  %6023 = vmatmul.bf16.gmra.mxu0 %v5761
  %v6024 = vpop.f32.mrf.mxu0
  %v6025 = vadd.f32 %v5997, %v6024
  %v6026 = vpop.f32.mrf.mxu0
  %v6027 = vadd.f32 %v5999, %v6026
  %6028 = vmatmul.bf16.gmra.mxu0 %v5786
  %v6029 = vpop.f32.mrf.mxu0
  %v6030 = vadd.f32 %v6002, %v6029
  %v6031 = vpop.f32.mrf.mxu0
  %v6032 = vadd.f32 %v6004, %v6031
  %6033 = vmatmul.bf16.gmra.mxu0 %v5811
  %v6034 = vpop.f32.mrf.mxu0
  %v6035 = vadd.f32 %v6007, %v6034
  %v6036 = vpop.f32.mrf.mxu0
  %v6037 = vadd.f32 %v6009, %v6036
  %6038 = vmatmul.bf16.gmra.mxu0 %v5836
  %v6039 = vpop.f32.mrf.mxu0
  %v6040 = vadd.f32 %v6012, %v6039
  %v6041 = vpop.f32.mrf.mxu0
  %6042 = vdwg.mxu0
  %6043 = vmatpush.bf16.msra.mxu0 %v1802
  %6044 = vmatpush.bf16.msra.mxu0 %v1801
  %6045 = vmatpush.bf16.msra.mxu0 %v1800
  %6046 = vmatpush.bf16.msra.mxu0 %v1799
  %6047 = vmatpush.bf16.msra.mxu0 %v1798
  %6048 = vmatpush.bf16.msra.mxu0 %v1797
  %6049 = vmatpush.bf16.msra.mxu0 %v1796
  %6050 = vmatpush.bf16.msra.mxu0 %v1795
  %6051 = vmatmul.bf16.gmra.mxu0 %v5762
  %v6052 = vpop.f32.mrf.mxu0
  %v6053 = vadd.f32 %v6025, %v6052
  %v6054 = vpop.f32.mrf.mxu0
  %v6055 = vadd.f32 %v6027, %v6054
  %6056 = vmatmul.bf16.gmra.mxu0 %v5787
  %v6057 = vpop.f32.mrf.mxu0
  %v6058 = vadd.f32 %v6030, %v6057
  %v6059 = vpop.f32.mrf.mxu0
  %v6060 = vadd.f32 %v6032, %v6059
  %6061 = vmatmul.bf16.gmra.mxu0 %v5812
  %v6062 = vpop.f32.mrf.mxu0
  %v6063 = vadd.f32 %v6035, %v6062
  %v6064 = vpop.f32.mrf.mxu0
  %v6065 = vadd.f32 %v6037, %v6064
  %6066 = vmatmul.bf16.gmra.mxu0 %v5837
  %v6067 = vpop.f32.mrf.mxu0
  %v6068 = vadd.f32 %v6040, %v6067
  %v6069 = vpop.f32.mrf.mxu0
  %6070 = vdwg.mxu0
  %6071 = vmatpush.bf16.msra.mxu0 %v1810
  %6072 = vmatpush.bf16.msra.mxu0 %v1809
  %6073 = vmatpush.bf16.msra.mxu0 %v1808
  %6074 = vmatpush.bf16.msra.mxu0 %v1807
  %6075 = vmatpush.bf16.msra.mxu0 %v1806
  %6076 = vmatpush.bf16.msra.mxu0 %v1805
  %6077 = vmatpush.bf16.msra.mxu0 %v1804
  %6078 = vmatpush.bf16.msra.mxu0 %v1803
  %6079 = vmatmul.bf16.gmra.mxu0 %v5763
  %v6080 = vpop.f32.mrf.mxu0
  %v6081 = vadd.f32 %v6053, %v6080
  %v6082 = vpop.f32.mrf.mxu0
  %v6083 = vadd.f32 %v6055, %v6082
  %6084 = vmatmul.bf16.gmra.mxu0 %v5788
  %v6085 = vpop.f32.mrf.mxu0
  %v6086 = vadd.f32 %v6058, %v6085
  %v6087 = vpop.f32.mrf.mxu0
  %v6088 = vadd.f32 %v6060, %v6087
  %6089 = vmatmul.bf16.gmra.mxu0 %v5813
  %v6090 = vpop.f32.mrf.mxu0
  %v6091 = vadd.f32 %v6063, %v6090
  %v6092 = vpop.f32.mrf.mxu0
  %v6093 = vadd.f32 %v6065, %v6092
  %6094 = vmatmul.bf16.gmra.mxu0 %v5838
  %v6095 = vpop.f32.mrf.mxu0
  %v6096 = vadd.f32 %v6068, %v6095
  %v6097 = vpop.f32.mrf.mxu0
  %6098 = vdwg.mxu0
  %6099 = vmatpush.bf16.msra.mxu0 %v1818
  %6100 = vmatpush.bf16.msra.mxu0 %v1817
  %6101 = vmatpush.bf16.msra.mxu0 %v1816
  %6102 = vmatpush.bf16.msra.mxu0 %v1815
  %6103 = vmatpush.bf16.msra.mxu0 %v1814
  %6104 = vmatpush.bf16.msra.mxu0 %v1813
  %6105 = vmatpush.bf16.msra.mxu0 %v1812
  %6106 = vmatpush.bf16.msra.mxu0 %v1811
  %6107 = vmatmul.bf16.gmra.mxu0 %v5764
  %v6108 = vpop.f32.mrf.mxu0
  %v6109 = vadd.f32 %v6081, %v6108
  %v6110 = vpop.f32.mrf.mxu0
  %v6111 = vadd.f32 %v6083, %v6110
  %6112 = vmatmul.bf16.gmra.mxu0 %v5789
  %v6113 = vpop.f32.mrf.mxu0
  %v6114 = vadd.f32 %v6086, %v6113
  %v6115 = vpop.f32.mrf.mxu0
  %v6116 = vadd.f32 %v6088, %v6115
  %6117 = vmatmul.bf16.gmra.mxu0 %v5814
  %v6118 = vpop.f32.mrf.mxu0
  %v6119 = vadd.f32 %v6091, %v6118
  %v6120 = vpop.f32.mrf.mxu0
  %v6121 = vadd.f32 %v6093, %v6120
  %6122 = vmatmul.bf16.gmra.mxu0 %v5839
  %v6123 = vpop.f32.mrf.mxu0
  %v6124 = vadd.f32 %v6096, %v6123
  %v6125 = vpop.f32.mrf.mxu0
  %6126 = vdwg.mxu0
  %6127 = vmatpush.bf16.msra.mxu0 %v1826
  %6128 = vmatpush.bf16.msra.mxu0 %v1825
  %6129 = vmatpush.bf16.msra.mxu0 %v1824
  %6130 = vmatpush.bf16.msra.mxu0 %v1823
  %6131 = vmatpush.bf16.msra.mxu0 %v1822
  %6132 = vmatpush.bf16.msra.mxu0 %v1821
  %6133 = vmatpush.bf16.msra.mxu0 %v1820
  %6134 = vmatpush.bf16.msra.mxu0 %v1819
  %6135 = vmatmul.bf16.gmra.mxu0 %v5765
  %v6136 = vpop.f32.mrf.mxu0
  %v6137 = vadd.f32 %v6109, %v6136
  %v6138 = vpop.f32.mrf.mxu0
  %v6139 = vadd.f32 %v6111, %v6138
  %6140 = vmatmul.bf16.gmra.mxu0 %v5790
  %v6141 = vpop.f32.mrf.mxu0
  %v6142 = vadd.f32 %v6114, %v6141
  %v6143 = vpop.f32.mrf.mxu0
  %v6144 = vadd.f32 %v6116, %v6143
  %6145 = vmatmul.bf16.gmra.mxu0 %v5815
  %v6146 = vpop.f32.mrf.mxu0
  %v6147 = vadd.f32 %v6119, %v6146
  %v6148 = vpop.f32.mrf.mxu0
  %v6149 = vadd.f32 %v6121, %v6148
  %6150 = vmatmul.bf16.gmra.mxu0 %v5840
  %v6151 = vpop.f32.mrf.mxu0
  %v6152 = vadd.f32 %v6124, %v6151
  %v6153 = vpop.f32.mrf.mxu0
  %6154 = vdwg.mxu0
  %6155 = vmatpush.bf16.msra.mxu0 %v1834
  %6156 = vmatpush.bf16.msra.mxu0 %v1833
  %6157 = vmatpush.bf16.msra.mxu0 %v1832
  %6158 = vmatpush.bf16.msra.mxu0 %v1831
  %6159 = vmatpush.bf16.msra.mxu0 %v1830
  %6160 = vmatpush.bf16.msra.mxu0 %v1829
  %6161 = vmatpush.bf16.msra.mxu0 %v1828
  %6162 = vmatpush.bf16.msra.mxu0 %v1827
  %6163 = vmatmul.bf16.gmra.mxu0 %v5766
  %v6164 = vpop.f32.mrf.mxu0
  %v6165 = vadd.f32 %v6137, %v6164
  %v6166 = vpop.f32.mrf.mxu0
  %v6167 = vadd.f32 %v6139, %v6166
  %6168 = vmatmul.bf16.gmra.mxu0 %v5791
  %v6169 = vpop.f32.mrf.mxu0
  %v6170 = vadd.f32 %v6142, %v6169
  %v6171 = vpop.f32.mrf.mxu0
  %v6172 = vadd.f32 %v6144, %v6171
  %6173 = vmatmul.bf16.gmra.mxu0 %v5816
  %v6174 = vpop.f32.mrf.mxu0
  %v6175 = vadd.f32 %v6147, %v6174
  %v6176 = vpop.f32.mrf.mxu0
  %v6177 = vadd.f32 %v6149, %v6176
  %6178 = vmatmul.bf16.gmra.mxu0 %v5841
  %v6179 = vpop.f32.mrf.mxu0
  %v6180 = vadd.f32 %v6152, %v6179
  %v6181 = vpop.f32.mrf.mxu0
  %6182 = vdwg.mxu0
  %6183 = vmatpush.bf16.msra.mxu0 %v1842
  %6184 = vmatpush.bf16.msra.mxu0 %v1841
  %6185 = vmatpush.bf16.msra.mxu0 %v1840
  %6186 = vmatpush.bf16.msra.mxu0 %v1839
  %6187 = vmatpush.bf16.msra.mxu0 %v1838
  %6188 = vmatpush.bf16.msra.mxu0 %v1837
  %6189 = vmatpush.bf16.msra.mxu0 %v1836
  %6190 = vmatpush.bf16.msra.mxu0 %v1835
  %6191 = vmatmul.bf16.gmra.mxu0 %v5767
  %v6192 = vpop.f32.mrf.mxu0
  %v6193 = vadd.f32 %v6165, %v6192
  %v6194 = vpop.f32.mrf.mxu0
  %v6195 = vadd.f32 %v6167, %v6194
  %6196 = vmatmul.bf16.gmra.mxu0 %v5792
  %v6197 = vpop.f32.mrf.mxu0
  %v6198 = vadd.f32 %v6170, %v6197
  %v6199 = vpop.f32.mrf.mxu0
  %v6200 = vadd.f32 %v6172, %v6199
  %6201 = vmatmul.bf16.gmra.mxu0 %v5817
  %v6202 = vpop.f32.mrf.mxu0
  %v6203 = vadd.f32 %v6175, %v6202
  %v6204 = vpop.f32.mrf.mxu0
  %v6205 = vadd.f32 %v6177, %v6204
  %6206 = vmatmul.bf16.gmra.mxu0 %v5842
  %v6207 = vpop.f32.mrf.mxu0
  %v6208 = vadd.f32 %v6180, %v6207
  %v6209 = vpop.f32.mrf.mxu0
  %6210 = vdwg.mxu0
  %6211 = vmatpush.bf16.msra.mxu0 %v1850
  %6212 = vmatpush.bf16.msra.mxu0 %v1849
  %6213 = vmatpush.bf16.msra.mxu0 %v1848
  %6214 = vmatpush.bf16.msra.mxu0 %v1847
  %6215 = vmatpush.bf16.msra.mxu0 %v1846
  %6216 = vmatpush.bf16.msra.mxu0 %v1845
  %6217 = vmatpush.bf16.msra.mxu0 %v1844
  %6218 = vmatpush.bf16.msra.mxu0 %v1843
  %6219 = vmatmul.bf16.gmra.mxu0 %v5768
  %v6220 = vpop.f32.mrf.mxu0
  %v6221 = vadd.f32 %v6193, %v6220
  %v6222 = vpop.f32.mrf.mxu0
  %v6223 = vadd.f32 %v6195, %v6222
  %6224 = vmatmul.bf16.gmra.mxu0 %v5793
  %v6225 = vpop.f32.mrf.mxu0
  %v6226 = vadd.f32 %v6198, %v6225
  %v6227 = vpop.f32.mrf.mxu0
  %v6228 = vadd.f32 %v6200, %v6227
  %6229 = vmatmul.bf16.gmra.mxu0 %v5818
  %v6230 = vpop.f32.mrf.mxu0
  %v6231 = vadd.f32 %v6203, %v6230
  %v6232 = vpop.f32.mrf.mxu0
  %v6233 = vadd.f32 %v6205, %v6232
  %6234 = vmatmul.bf16.gmra.mxu0 %v5843
  %v6235 = vpop.f32.mrf.mxu0
  %v6236 = vadd.f32 %v6208, %v6235
  %v6237 = vpop.f32.mrf.mxu0
  %6238 = vdwg.mxu0
  %6239 = vmatpush.bf16.msra.mxu0 %v1858
  %6240 = vmatpush.bf16.msra.mxu0 %v1857
  %6241 = vmatpush.bf16.msra.mxu0 %v1856
  %6242 = vmatpush.bf16.msra.mxu0 %v1855
  %6243 = vmatpush.bf16.msra.mxu0 %v1854
  %6244 = vmatpush.bf16.msra.mxu0 %v1853
  %6245 = vmatpush.bf16.msra.mxu0 %v1852
  %6246 = vmatpush.bf16.msra.mxu0 %v1851
  %6247 = vmatmul.bf16.gmra.mxu0 %v5769
  %v6248 = vpop.f32.mrf.mxu0
  %v6249 = vadd.f32 %v6221, %v6248
  %v6250 = vpop.f32.mrf.mxu0
  %v6251 = vadd.f32 %v6223, %v6250
  %6252 = vmatmul.bf16.gmra.mxu0 %v5794
  %v6253 = vpop.f32.mrf.mxu0
  %v6254 = vadd.f32 %v6226, %v6253
  %v6255 = vpop.f32.mrf.mxu0
  %v6256 = vadd.f32 %v6228, %v6255
  %6257 = vmatmul.bf16.gmra.mxu0 %v5819
  %v6258 = vpop.f32.mrf.mxu0
  %v6259 = vadd.f32 %v6231, %v6258
  %v6260 = vpop.f32.mrf.mxu0
  %v6261 = vadd.f32 %v6233, %v6260
  %6262 = vmatmul.bf16.gmra.mxu0 %v5844
  %v6263 = vpop.f32.mrf.mxu0
  %v6264 = vadd.f32 %v6236, %v6263
  %v6265 = vpop.f32.mrf.mxu0
  %6266 = vdwg.mxu0
  %6267 = vmatpush.bf16.msra.mxu0 %v1866
  %6268 = vmatpush.bf16.msra.mxu0 %v1865
  %6269 = vmatpush.bf16.msra.mxu0 %v1864
  %6270 = vmatpush.bf16.msra.mxu0 %v1863
  %6271 = vmatpush.bf16.msra.mxu0 %v1862
  %6272 = vmatpush.bf16.msra.mxu0 %v1861
  %6273 = vmatpush.bf16.msra.mxu0 %v1860
  %6274 = vmatpush.bf16.msra.mxu0 %v1859
  %6275 = vmatmul.bf16.gmra.mxu0 %v5770
  %v6276 = vpop.f32.mrf.mxu0
  %v6277 = vadd.f32 %v6249, %v6276
  %v6278 = vpop.f32.mrf.mxu0
  %v6279 = vadd.f32 %v6251, %v6278
  %6280 = vmatmul.bf16.gmra.mxu0 %v5795
  %v6281 = vpop.f32.mrf.mxu0
  %v6282 = vadd.f32 %v6254, %v6281
  %v6283 = vpop.f32.mrf.mxu0
  %v6284 = vadd.f32 %v6256, %v6283
  %6285 = vmatmul.bf16.gmra.mxu0 %v5820
  %v6286 = vpop.f32.mrf.mxu0
  %v6287 = vadd.f32 %v6259, %v6286
  %v6288 = vpop.f32.mrf.mxu0
  %v6289 = vadd.f32 %v6261, %v6288
  %6290 = vmatmul.bf16.gmra.mxu0 %v5845
  %v6291 = vpop.f32.mrf.mxu0
  %v6292 = vadd.f32 %v6264, %v6291
  %v6293 = vpop.f32.mrf.mxu0
  %6294 = vdwg.mxu0
  %6295 = vmatpush.bf16.msra.mxu0 %v1874
  %6296 = vmatpush.bf16.msra.mxu0 %v1873
  %6297 = vmatpush.bf16.msra.mxu0 %v1872
  %6298 = vmatpush.bf16.msra.mxu0 %v1871
  %6299 = vmatpush.bf16.msra.mxu0 %v1870
  %6300 = vmatpush.bf16.msra.mxu0 %v1869
  %6301 = vmatpush.bf16.msra.mxu0 %v1868
  %6302 = vmatpush.bf16.msra.mxu0 %v1867
  %6303 = vmatmul.bf16.gmra.mxu0 %v5771
  %v6304 = vpop.f32.mrf.mxu0
  %v6305 = vadd.f32 %v6277, %v6304
  %v6306 = vpop.f32.mrf.mxu0
  %v6307 = vadd.f32 %v6279, %v6306
  %6308 = vmatmul.bf16.gmra.mxu0 %v5796
  %v6309 = vpop.f32.mrf.mxu0
  %v6310 = vadd.f32 %v6282, %v6309
  %v6311 = vpop.f32.mrf.mxu0
  %v6312 = vadd.f32 %v6284, %v6311
  %6313 = vmatmul.bf16.gmra.mxu0 %v5821
  %v6314 = vpop.f32.mrf.mxu0
  %v6315 = vadd.f32 %v6287, %v6314
  %v6316 = vpop.f32.mrf.mxu0
  %v6317 = vadd.f32 %v6289, %v6316
  %6318 = vmatmul.bf16.gmra.mxu0 %v5846
  %v6319 = vpop.f32.mrf.mxu0
  %v6320 = vadd.f32 %v6292, %v6319
  %v6321 = vpop.f32.mrf.mxu0
  %6322 = vdwg.mxu0
  %6323 = vmatpush.bf16.msra.mxu0 %v1882
  %6324 = vmatpush.bf16.msra.mxu0 %v1881
  %6325 = vmatpush.bf16.msra.mxu0 %v1880
  %6326 = vmatpush.bf16.msra.mxu0 %v1879
  %6327 = vmatpush.bf16.msra.mxu0 %v1878
  %6328 = vmatpush.bf16.msra.mxu0 %v1877
  %6329 = vmatpush.bf16.msra.mxu0 %v1876
  %6330 = vmatpush.bf16.msra.mxu0 %v1875
  %6331 = vmatmul.bf16.gmra.mxu0 %v5772
  %v6332 = vpop.f32.mrf.mxu0
  %v6333 = vadd.f32 %v6305, %v6332
  %v6334 = vpop.f32.mrf.mxu0
  %v6335 = vadd.f32 %v6307, %v6334
  %6336 = vmatmul.bf16.gmra.mxu0 %v5797
  %v6337 = vpop.f32.mrf.mxu0
  %v6338 = vadd.f32 %v6310, %v6337
  %v6339 = vpop.f32.mrf.mxu0
  %v6340 = vadd.f32 %v6312, %v6339
  %6341 = vmatmul.bf16.gmra.mxu0 %v5822
  %v6342 = vpop.f32.mrf.mxu0
  %v6343 = vadd.f32 %v6315, %v6342
  %v6344 = vpop.f32.mrf.mxu0
  %v6345 = vadd.f32 %v6317, %v6344
  %6346 = vmatmul.bf16.gmra.mxu0 %v5847
  %v6347 = vpop.f32.mrf.mxu0
  %v6348 = vadd.f32 %v6320, %v6347
  %v6349 = vpop.f32.mrf.mxu0
  %6350 = vdwg.mxu0
  %6351 = vmatpush.bf16.msra.mxu0 %v1890
  %6352 = vmatpush.bf16.msra.mxu0 %v1889
  %6353 = vmatpush.bf16.msra.mxu0 %v1888
  %6354 = vmatpush.bf16.msra.mxu0 %v1887
  %6355 = vmatpush.bf16.msra.mxu0 %v1886
  %6356 = vmatpush.bf16.msra.mxu0 %v1885
  %6357 = vmatpush.bf16.msra.mxu0 %v1884
  %6358 = vmatpush.bf16.msra.mxu0 %v1883
  %6359 = vmatmul.bf16.gmra.mxu0 %v5773
  %v6360 = vpop.f32.mrf.mxu0
  %v6361 = vadd.f32 %v6333, %v6360
  %v6362 = vpop.f32.mrf.mxu0
  %v6363 = vadd.f32 %v6335, %v6362
  %6364 = vmatmul.bf16.gmra.mxu0 %v5798
  %v6365 = vpop.f32.mrf.mxu0
  %v6366 = vadd.f32 %v6338, %v6365
  %v6367 = vpop.f32.mrf.mxu0
  %v6368 = vadd.f32 %v6340, %v6367
  %6369 = vmatmul.bf16.gmra.mxu0 %v5823
  %v6370 = vpop.f32.mrf.mxu0
  %v6371 = vadd.f32 %v6343, %v6370
  %v6372 = vpop.f32.mrf.mxu0
  %v6373 = vadd.f32 %v6345, %v6372
  %6374 = vmatmul.bf16.gmra.mxu0 %v5848
  %v6375 = vpop.f32.mrf.mxu0
  %v6376 = vadd.f32 %v6348, %v6375
  %v6377 = vpop.f32.mrf.mxu0
  %6378 = vdwg.mxu0
  %6379 = vmatpush.bf16.msra.mxu0 %v1898
  %6380 = vmatpush.bf16.msra.mxu0 %v1897
  %6381 = vmatpush.bf16.msra.mxu0 %v1896
  %6382 = vmatpush.bf16.msra.mxu0 %v1895
  %6383 = vmatpush.bf16.msra.mxu0 %v1894
  %6384 = vmatpush.bf16.msra.mxu0 %v1893
  %6385 = vmatpush.bf16.msra.mxu0 %v1892
  %6386 = vmatpush.bf16.msra.mxu0 %v1891
  %6387 = vmatmul.bf16.gmra.mxu0 %v5774
  %v6388 = vpop.f32.mrf.mxu0
  %v6389 = vadd.f32 %v6361, %v6388
  %v6390 = vpop.f32.mrf.mxu0
  %v6391 = vadd.f32 %v6363, %v6390
  %6392 = vmatmul.bf16.gmra.mxu0 %v5799
  %v6393 = vpop.f32.mrf.mxu0
  %v6394 = vadd.f32 %v6366, %v6393
  %v6395 = vpop.f32.mrf.mxu0
  %v6396 = vadd.f32 %v6368, %v6395
  %6397 = vmatmul.bf16.gmra.mxu0 %v5824
  %v6398 = vpop.f32.mrf.mxu0
  %v6399 = vadd.f32 %v6371, %v6398
  %v6400 = vpop.f32.mrf.mxu0
  %v6401 = vadd.f32 %v6373, %v6400
  %6402 = vmatmul.bf16.gmra.mxu0 %v5849
  %v6403 = vpop.f32.mrf.mxu0
  %v6404 = vadd.f32 %v6376, %v6403
  %v6405 = vpop.f32.mrf.mxu0
  %6406 = vdwg.mxu0
  %6407 = vmatpush.bf16.msra.mxu0 %v1906
  %6408 = vmatpush.bf16.msra.mxu0 %v1905
  %6409 = vmatpush.bf16.msra.mxu0 %v1904
  %6410 = vmatpush.bf16.msra.mxu0 %v1903
  %6411 = vmatpush.bf16.msra.mxu0 %v1902
  %6412 = vmatpush.bf16.msra.mxu0 %v1901
  %6413 = vmatpush.bf16.msra.mxu0 %v1900
  %6414 = vmatpush.bf16.msra.mxu0 %v1899
  %6415 = vmatmul.bf16.gmra.mxu0 %v5775
  %v6416 = vpop.f32.mrf.mxu0
  %v6417 = vadd.f32 %v6389, %v6416
  %v6418 = vpop.f32.mrf.mxu0
  %v6419 = vadd.f32 %v6391, %v6418
  %6420 = vmatmul.bf16.gmra.mxu0 %v5800
  %v6421 = vpop.f32.mrf.mxu0
  %v6422 = vadd.f32 %v6394, %v6421
  %v6423 = vpop.f32.mrf.mxu0
  %v6424 = vadd.f32 %v6396, %v6423
  %6425 = vmatmul.bf16.gmra.mxu0 %v5825
  %v6426 = vpop.f32.mrf.mxu0
  %v6427 = vadd.f32 %v6399, %v6426
  %v6428 = vpop.f32.mrf.mxu0
  %v6429 = vadd.f32 %v6401, %v6428
  %6430 = vmatmul.bf16.gmra.mxu0 %v5850
  %v6431 = vpop.f32.mrf.mxu0
  %v6432 = vadd.f32 %v6404, %v6431
  %v6433 = vpop.f32.mrf.mxu0
  %6434 = vdwg.mxu0
  %6435 = vmatpush.bf16.msra.mxu0 %v1914
  %6436 = vmatpush.bf16.msra.mxu0 %v1913
  %6437 = vmatpush.bf16.msra.mxu0 %v1912
  %6438 = vmatpush.bf16.msra.mxu0 %v1911
  %6439 = vmatpush.bf16.msra.mxu0 %v1910
  %6440 = vmatpush.bf16.msra.mxu0 %v1909
  %6441 = vmatpush.bf16.msra.mxu0 %v1908
  %6442 = vmatpush.bf16.msra.mxu0 %v1907
  %6443 = vmatmul.bf16.gmra.mxu0 %v5776
  %v6444 = vpop.f32.mrf.mxu0
  %v6445 = vadd.f32 %v6417, %v6444
  %v6446 = vpop.f32.mrf.mxu0
  %v6447 = vadd.f32 %v6419, %v6446
  %6448 = vmatmul.bf16.gmra.mxu0 %v5801
  %v6449 = vpop.f32.mrf.mxu0
  %v6450 = vadd.f32 %v6422, %v6449
  %v6451 = vpop.f32.mrf.mxu0
  %v6452 = vadd.f32 %v6424, %v6451
  %6453 = vmatmul.bf16.gmra.mxu0 %v5826
  %v6454 = vpop.f32.mrf.mxu0
  %v6455 = vadd.f32 %v6427, %v6454
  %v6456 = vpop.f32.mrf.mxu0
  %v6457 = vadd.f32 %v6429, %v6456
  %6458 = vmatmul.bf16.gmra.mxu0 %v5851
  %v6459 = vpop.f32.mrf.mxu0
  %v6460 = vadd.f32 %v6432, %v6459
  %v6461 = vpop.f32.mrf.mxu0
  %6462 = vdwg.mxu0
  %6463 = vmatpush.bf16.msra.mxu0 %v1922
  %6464 = vmatpush.bf16.msra.mxu0 %v1921
  %6465 = vmatpush.bf16.msra.mxu0 %v1920
  %6466 = vmatpush.bf16.msra.mxu0 %v1919
  %6467 = vmatpush.bf16.msra.mxu0 %v1918
  %6468 = vmatpush.bf16.msra.mxu0 %v1917
  %6469 = vmatpush.bf16.msra.mxu0 %v1916
  %6470 = vmatpush.bf16.msra.mxu0 %v1915
  %6471 = vmatmul.bf16.gmra.mxu0 %v5777
  %v6472 = vpop.f32.mrf.mxu0
  %v6473 = vadd.f32 %v6445, %v6472
  %v6474 = vpop.f32.mrf.mxu0
  %v6475 = vadd.f32 %v6447, %v6474
  %6476 = vmatmul.bf16.gmra.mxu0 %v5802
  %v6477 = vpop.f32.mrf.mxu0
  %v6478 = vadd.f32 %v6450, %v6477
  %v6479 = vpop.f32.mrf.mxu0
  %v6480 = vadd.f32 %v6452, %v6479
  %6481 = vmatmul.bf16.gmra.mxu0 %v5827
  %v6482 = vpop.f32.mrf.mxu0
  %v6483 = vadd.f32 %v6455, %v6482
  %v6484 = vpop.f32.mrf.mxu0
  %v6485 = vadd.f32 %v6457, %v6484
  %6486 = vmatmul.bf16.gmra.mxu0 %v5852
  %v6487 = vpop.f32.mrf.mxu0
  %v6488 = vadd.f32 %v6460, %v6487
  %v6489 = vpop.f32.mrf.mxu0
  %6490 = vdwg.mxu0
  %6491 = vmatpush.bf16.msra.mxu0 %v1930
  %6492 = vmatpush.bf16.msra.mxu0 %v1929
  %6493 = vmatpush.bf16.msra.mxu0 %v1928
  %6494 = vmatpush.bf16.msra.mxu0 %v1927
  %6495 = vmatpush.bf16.msra.mxu0 %v1926
  %6496 = vmatpush.bf16.msra.mxu0 %v1925
  %6497 = vmatpush.bf16.msra.mxu0 %v1924
  %6498 = vmatpush.bf16.msra.mxu0 %v1923
  %6499 = vmatmul.bf16.gmra.mxu0 %v5778
  %v6500 = vpop.f32.mrf.mxu0
  %v6501 = vadd.f32 %v6473, %v6500
  %v6502 = vpop.f32.mrf.mxu0
  %v6503 = vadd.f32 %v6475, %v6502
  %6504 = vmatmul.bf16.gmra.mxu0 %v5803
  %v6505 = vpop.f32.mrf.mxu0
  %v6506 = vadd.f32 %v6478, %v6505
  %v6507 = vpop.f32.mrf.mxu0
  %v6508 = vadd.f32 %v6480, %v6507
  %6509 = vmatmul.bf16.gmra.mxu0 %v5828
  %v6510 = vpop.f32.mrf.mxu0
  %v6511 = vadd.f32 %v6483, %v6510
  %v6512 = vpop.f32.mrf.mxu0
  %v6513 = vadd.f32 %v6485, %v6512
  %6514 = vmatmul.bf16.gmra.mxu0 %v5853
  %v6515 = vpop.f32.mrf.mxu0
  %v6516 = vadd.f32 %v6488, %v6515
  %v6517 = vpop.f32.mrf.mxu0
  %6518 = vdwg.mxu0
  %6519 = vmatpush.bf16.msra.mxu0 %v1938
  %6520 = vmatpush.bf16.msra.mxu0 %v1937
  %6521 = vmatpush.bf16.msra.mxu0 %v1936
  %6522 = vmatpush.bf16.msra.mxu0 %v1935
  %6523 = vmatpush.bf16.msra.mxu0 %v1934
  %6524 = vmatpush.bf16.msra.mxu0 %v1933
  %6525 = vmatpush.bf16.msra.mxu0 %v1932
  %6526 = vmatpush.bf16.msra.mxu0 %v1931
  %6527 = vmatmul.bf16.gmra.mxu0 %v5779
  %v6528 = vpop.f32.mrf.mxu0
  %v6529 = vadd.f32 %v6501, %v6528
  %v6530 = vpop.f32.mrf.mxu0
  %v6531 = vadd.f32 %v6503, %v6530
  %6532 = vmatmul.bf16.gmra.mxu0 %v5804
  %v6533 = vpop.f32.mrf.mxu0
  %v6534 = vadd.f32 %v6506, %v6533
  %v6535 = vpop.f32.mrf.mxu0
  %v6536 = vadd.f32 %v6508, %v6535
  %6537 = vmatmul.bf16.gmra.mxu0 %v5829
  %v6538 = vpop.f32.mrf.mxu0
  %v6539 = vadd.f32 %v6511, %v6538
  %v6540 = vpop.f32.mrf.mxu0
  %v6541 = vadd.f32 %v6513, %v6540
  %6542 = vmatmul.bf16.gmra.mxu0 %v5854
  %v6543 = vpop.f32.mrf.mxu0
  %v6544 = vadd.f32 %v6516, %v6543
  %v6545 = vpop.f32.mrf.mxu0
  %6546 = vdwg.mxu0
  %6547 = vmatpush.bf16.msra.mxu0 %v1946
  %6548 = vmatpush.bf16.msra.mxu0 %v1945
  %6549 = vmatpush.bf16.msra.mxu0 %v1944
  %6550 = vmatpush.bf16.msra.mxu0 %v1943
  %6551 = vmatpush.bf16.msra.mxu0 %v1942
  %6552 = vmatpush.bf16.msra.mxu0 %v1941
  %6553 = vmatpush.bf16.msra.mxu0 %v1940
  %6554 = vmatpush.bf16.msra.mxu0 %v1939
  %6555 = vmatmul.bf16.gmra.mxu0 %v5780
  %v6556 = vpop.f32.mrf.mxu0
  %v6557 = vadd.f32 %v6529, %v6556
  %v6558 = vpop.f32.mrf.mxu0
  %v6559 = vadd.f32 %v6531, %v6558
  %6560 = vmatmul.bf16.gmra.mxu0 %v5805
  %v6561 = vpop.f32.mrf.mxu0
  %v6562 = vadd.f32 %v6534, %v6561
  %v6563 = vpop.f32.mrf.mxu0
  %v6564 = vadd.f32 %v6536, %v6563
  %6565 = vmatmul.bf16.gmra.mxu0 %v5830
  %v6566 = vpop.f32.mrf.mxu0
  %v6567 = vadd.f32 %v6539, %v6566
  %v6568 = vpop.f32.mrf.mxu0
  %v6569 = vadd.f32 %v6541, %v6568
  %6570 = vmatmul.bf16.gmra.mxu0 %v5855
  %v6571 = vpop.f32.mrf.mxu0
  %v6572 = vadd.f32 %v6544, %v6571
  %v6573 = vpop.f32.mrf.mxu0
  %6574 = vdwg.mxu0
  %6575 = vmatpush.bf16.msra.mxu0 %v1954
  %6576 = vmatpush.bf16.msra.mxu0 %v1953
  %6577 = vmatpush.bf16.msra.mxu0 %v1952
  %6578 = vmatpush.bf16.msra.mxu0 %v1951
  %6579 = vmatpush.bf16.msra.mxu0 %v1950
  %6580 = vmatpush.bf16.msra.mxu0 %v1949
  %6581 = vmatpush.bf16.msra.mxu0 %v1948
  %6582 = vmatpush.bf16.msra.mxu0 %v1947
  %6583 = vmatmul.bf16.gmra.mxu0 %v5781
  %v6584 = vpop.f32.mrf.mxu0
  %v6585 = vadd.f32 %v6557, %v6584
  %v6586 = vpop.f32.mrf.mxu0
  %v6587 = vadd.f32 %v6559, %v6586
  %6588 = vmatmul.bf16.gmra.mxu0 %v5806
  %v6589 = vpop.f32.mrf.mxu0
  %v6590 = vadd.f32 %v6562, %v6589
  %v6591 = vpop.f32.mrf.mxu0
  %v6592 = vadd.f32 %v6564, %v6591
  %6593 = vmatmul.bf16.gmra.mxu0 %v5831
  %v6594 = vpop.f32.mrf.mxu0
  %v6595 = vadd.f32 %v6567, %v6594
  %v6596 = vpop.f32.mrf.mxu0
  %v6597 = vadd.f32 %v6569, %v6596
  %6598 = vmatmul.bf16.gmra.mxu0 %v5856
  %v6599 = vpop.f32.mrf.mxu0
  %v6600 = vadd.f32 %v6572, %v6599
  %v6601 = vpop.f32.mrf.mxu0
  %6602 = vdwg.mxu0
  %6603 = vmatpush.bf16.msra.mxu0 %v1962
  %6604 = vmatpush.bf16.msra.mxu0 %v1961
  %6605 = vmatpush.bf16.msra.mxu0 %v1960
  %6606 = vmatpush.bf16.msra.mxu0 %v1959
  %6607 = vmatpush.bf16.msra.mxu0 %v1958
  %6608 = vmatpush.bf16.msra.mxu0 %v1957
  %6609 = vmatpush.bf16.msra.mxu0 %v1956
  %6610 = vmatpush.bf16.msra.mxu0 %v1955
  %6611 = vmatmul.bf16.gmra.mxu0 %v5782
  %v6612 = vpop.f32.mrf.mxu0
  %v6613 = vadd.f32 %v6585, %v6612
  %v6614 = vpop.f32.mrf.mxu0
  %v6615 = vadd.f32 %v6587, %v6614
  %6616 = vmatmul.bf16.gmra.mxu0 %v5807
  %v6617 = vpop.f32.mrf.mxu0
  %v6618 = vadd.f32 %v6590, %v6617
  %v6619 = vpop.f32.mrf.mxu0
  %v6620 = vadd.f32 %v6592, %v6619
  %6621 = vmatmul.bf16.gmra.mxu0 %v5832
  %v6622 = vpop.f32.mrf.mxu0
  %v6623 = vadd.f32 %v6595, %v6622
  %v6624 = vpop.f32.mrf.mxu0
  %v6625 = vadd.f32 %v6597, %v6624
  %6626 = vmatmul.bf16.gmra.mxu0 %v5857
  %v6627 = vpop.f32.mrf.mxu0
  %v6628 = vadd.f32 %v6600, %v6627
  %v6629 = vpop.f32.mrf.mxu0
  %6630 = vdwg.mxu0
  %6631 = vmatpush.bf16.msra.mxu0 %v1970
  %6632 = vmatpush.bf16.msra.mxu0 %v1969
  %6633 = vmatpush.bf16.msra.mxu0 %v1968
  %6634 = vmatpush.bf16.msra.mxu0 %v1967
  %6635 = vmatpush.bf16.msra.mxu0 %v1966
  %6636 = vmatpush.bf16.msra.mxu0 %v1965
  %6637 = vmatpush.bf16.msra.mxu0 %v1964
  %6638 = vmatpush.bf16.msra.mxu0 %v1963
  %6639 = vmatmul.bf16.gmra.mxu0 %v5783
  %v6640 = vpop.f32.mrf.mxu0
  %v6641 = vadd.f32 %v6613, %v6640
  %v6642 = vpop.f32.mrf.mxu0
  %v6643 = vadd.f32 %v6615, %v6642
  %6644 = vmatmul.bf16.gmra.mxu0 %v5808
  %v6645 = vpop.f32.mrf.mxu0
  %v6646 = vadd.f32 %v6618, %v6645
  %v6647 = vpop.f32.mrf.mxu0
  %v6648 = vadd.f32 %v6620, %v6647
  %6649 = vmatmul.bf16.gmra.mxu0 %v5833
  %v6650 = vpop.f32.mrf.mxu0
  %v6651 = vadd.f32 %v6623, %v6650
  %v6652 = vpop.f32.mrf.mxu0
  %v6653 = vadd.f32 %v6625, %v6652
  %6654 = vmatmul.bf16.gmra.mxu0 %v5858
  %v6655 = vpop.f32.mrf.mxu0
  %v6656 = vadd.f32 %v6628, %v6655
  %v6657 = vpop.f32.mrf.mxu0
  %6658 = vdwg.mxu0
  %v6659 = vmax.f32 %v5394, %v6641
  %v6660 = vmax.f32 %v5395, %v6643
  %v6661 = vmax.f32 %v5396, %v6646
  %v6662 = vmax.f32 %v5397, %v6648
  %v6663 = vmax.f32 %v5398, %v6651
  %v6664 = vmax.f32 %v5399, %v6653
  %v6665 = vmax.f32 %v5400, %v6656
  %v6666 = vld [vmem:[%s2] sm:$0x1]
  %v6668 = vperm.slane %v6666, 0
  %v6670 = vadd.f32 %v6659, %v6668
  %v6671 = vadd.f32 %v6660, %v6668
  %v6672 = vadd.f32 %v6661, %v6668
  %v6673 = vadd.f32 %v6662, %v6668
  %v6674 = vadd.f32 %v6663, %v6668
  %v6675 = vadd.f32 %v6664, %v6668
  %v6676 = vadd.f32 %v6665, %v6668
  %v6677 = vmax.f32 %v6670, 0.0
  %v6678 = vmax.f32 %v6671, 0.0
  %v6679 = vmax.f32 %v6672, 0.0
  %v6680 = vmax.f32 %v6673, 0.0
  %v6681 = vmax.f32 %v6674, 0.0
  %v6682 = vmax.f32 %v6675, 0.0
  %v6683 = vmax.f32 %v6676, 0.0
  %v6684 = vpack.c.bf16 %v6677, %v6677
  %v6685 = vpack.c.bf16 %v6678, %v6678
  %v6686 = vpack.c.bf16 %v6679, %v6679
  %v6687 = vpack.c.bf16 %v6680, %v6680
  %v6688 = vpack.c.bf16 %v6681, %v6681
  %v6689 = vpack.c.bf16 %v6682, %v6682
  %v6690 = vpack.c.bf16 %v6683, %v6683
  %6691 = vst [vmem:[%s3] sm:$0xf] %v6684
  %6692 = vst [vmem:[%s3 + $0x4] sm:$0xf] %v6685
  %6693 = vst [vmem:[%s3 + $0x8] sm:$0xf] %v6686
  %6694 = vst [vmem:[%s3 + $0xc] sm:$0xf] %v6687
  %6695 = vst [vmem:[%s3 + $0x10] sm:$0xf] %v6688
  %6696 = vst [vmem:[%s3 + $0x14] sm:$0xf] %v6689
  %6697 = vst [vmem:[%s3 + $0x18] sm:$0xf] %v6690
  // Predicated region
  $region14: #{net_forward.4} parent=0 // pred_check
    _
  $region15: #{net_forward.4} parent=0 // pred_check_branch
    %6699 = sbr.rel (0) target = $region17
  $region16: #{net_forward.4} parent=0 // pred_region
    _
  $region17: #{net_forward.4} parent=0 // pred_fallthru
    _
  // Predicated region
  $region18: #{net_forward.4} parent=0 // pred_check
    _
  $region19: #{net_forward.4} parent=0 // pred_check_branch
    %6701 = sbr.rel (0) target = $region21
  $region20: #{net_forward.4} parent=0 // pred_region
    _
  $region21: #{net_forward.4} parent=0 // pred_fallthru
    _

</llo_original>
